<compile_context>
chip_gen: v6e
topology: v6e:2x2x1
jax: 0.10.0
libtpu: 0.0.40
codegen_flags: <defaults>
</compile_context>

<pallas_src>
import jax
import jax.numpy as jnp
from jax.experimental import pallas as pl
from jax.experimental.pallas import tpu as pltpu

BN_EPS = 1e-5
C = 128          # every channel dim is zero-padded to one lane-dense vreg width


# --------------------------------------------------------------------------
# Fused forward kernel (built per batch size N; all sizes static)
# --------------------------------------------------------------------------
def _build_fused_kernel(N, r1_pad, chunk):
    H1 = W1 = 26                 # conv1 output (28 - 2)
    H2 = W2 = 24                 # conv2 / conv3 output
    HP, WP, WPS = 12, 12, 16     # maxpool output (row stride padded to 16)
    H4, W4, W4S = 10, 10, 16     # conv4 output (row stride padded to 16)
    H5 = W5 = 8                  # conv5 output

    img1 = H1 * W1               # 676  (row stride 26)
    img2 = H2 * W2               # 576  (row stride 24)
    imgp = HP * WPS              # 192
    img4 = H4 * W4S              # 160
    img5 = H5 * W5               # 64   (row stride 8)

    cnt1 = float(N * H1 * W1)
    cnt2 = float(N * H2 * W2)
    cnt4 = float(N * H4 * W4)
    cnt5 = float(N * H5 * W5)

    def _bn_affine(ssum, ssq, cnt, gamma, beta):
        # training-mode (biased) batch stats folded into y * scale + shift
        mean = ssum * (1.0 / cnt)
        var = jnp.maximum(ssq * (1.0 / cnt) - mean * mean, 0.0)
        scale = gamma * jax.lax.rsqrt(var + BN_EPS)
        return scale, beta - mean * scale

    def kernel(p_ref, w1_ref, g1_ref, b1_ref,
               w2_ref, g2_ref, b2_ref,
               w3_ref,
               w4_ref, g4_ref, b4_ref,
               w5_ref, g5_ref, b5_ref,
               w8_ref, out_ref,
               s1, s2, sp, s4, s5):
        f32 = jnp.float32
        zero = jnp.zeros((1, C), f32)

        # ---------------- conv1 (3x3, 1->6) as one chunked patch matmul ------
        w1 = w1_ref[...]

        def c1_body(c, carry):
            ssum, ssq = carry
            xs = p_ref[pl.ds(c * chunk, chunk), :]
            y = jnp.maximum(jnp.dot(xs, w1, preferred_element_type=f32), 0.0)
            s1[pl.ds(c * chunk, chunk), :] = y
            return (ssum + jnp.sum(y, axis=0, keepdims=True),
                    ssq + jnp.sum(y * y, axis=0, keepdims=True))

        ssum1, ssq1 = jax.lax.fori_loop(0, r1_pad // chunk, c1_body, (zero, zero))
        sc1, sh1 = _bn_affine(ssum1, ssq1, cnt1, g1_ref[...], b1_ref[...])

        # ------- generic 3x3 conv: per-output-row shifted matmuls ------------
        def conv3x3(s_in, s_out, w_ref_, base_in, stride_in,
                    base_out, stride_out, oh, ow, scale, shift):
            """ReLU(conv3x3(affine(s_in))) -> s_out; returns BN sum/sumsq."""
            def body(i, carry):
                ssum, ssq = carry
                acc = jnp.zeros((ow, C), f32)
                for dy in range(3):
                    for dx in range(3):
                        off = base_in + (i + dy) * stride_in + dx
                        xs = s_in[pl.ds(off, ow), :]
                        if scale is not None:
                            xs = xs * scale + shift          # folded BatchNorm
                        acc = acc + jnp.dot(xs, w_ref_[dy, dx],
                                            preferred_element_type=f32)
                acc = jnp.maximum(acc, 0.0)                  # ReLU
                s_out[pl.ds(base_out + i * stride_out, ow), :] = acc
                return (ssum + jnp.sum(acc, axis=0, keepdims=True),
                        ssq + jnp.sum(acc * acc, axis=0, keepdims=True))
            return jax.lax.fori_loop(0, oh, body, (zero, zero))

        # ---------------- conv2 (3x3, 6->8) ----------------------------------
        ssum2, ssq2 = zero, zero
        for n in range(N):
            a, b = conv3x3(s1, s2, w2_ref, n * img1, W1, n * img2, W2,
                           H2, W2, sc1, sh1)
            ssum2, ssq2 = ssum2 + a, ssq2 + b
        sc2, sh2 = _bn_affine(ssum2, ssq2, cnt2, g2_ref[...], b2_ref[...])

        # -------- conv3 (1x1, 8->10) fused with MaxPool2d(2,2) ---------------
        # W stride-2 decimation via two tiny selection matmuls; selector rows
        # 12..15 are zero so the pooled row stores as a full aligned (16,128).
        rr = jax.lax.broadcasted_iota(jnp.int32, (WPS, W2), 0)
        cc = jax.lax.broadcasted_iota(jnp.int32, (WPS, W2), 1)
        sel_even = ((rr < WP) & (cc == 2 * rr)).astype(f32)
        sel_odd = ((rr < WP) & (cc == 2 * rr + 1)).astype(f32)
        w3 = w3_ref[...]

        for n in range(N):
            def pool_body(i, carry, n=n):
                r0 = s2[pl.ds(n * img2 + (2 * i) * W2, W2), :] * sc2 + sh2
                r1 = s2[pl.ds(n * img2 + (2 * i + 1) * W2, W2), :] * sc2 + sh2
                y0 = jnp.dot(r0, w3, preferred_element_type=f32)
                y1 = jnp.dot(r1, w3, preferred_element_type=f32)
                hm = jnp.maximum(y0, y1)                      # max over H pair
                pr = jnp.maximum(                             # max + decimate W
                    jnp.dot(sel_even, hm, preferred_element_type=f32),
                    jnp.dot(sel_odd, hm, preferred_element_type=f32))
                sp[pl.ds(n * imgp + i * WPS, WPS), :] = pr
                return carry
            jax.lax.fori_loop(0, HP, pool_body, 0)

        # ---------------- conv4 (3x3, 10->14) --------------------------------
        ssum4, ssq4 = zero, zero
        for n in range(N):
            a, b = conv3x3(sp, s4, w4_ref, n * imgp, WPS, n * img4, W4S,
                           H4, W4, None, None)
            ssum4, ssq4 = ssum4 + a, ssq4 + b
        sc4, sh4 = _bn_affine(ssum4, ssq4, cnt4, g4_ref[...], b4_ref[...])

        # ---------------- conv5 (3x3, 14->16) --------------------------------
        ssum5, ssq5 = zero, zero
        for n in range(N):
            a, b = conv3x3(s4, s5, w5_ref, n * img4, W4S, n * img5, W5,
                           H5, W5, sc4, sh4)
            ssum5, ssq5 = ssum5 + a, ssq5 + b
        sc5, sh5 = _bn_affine(ssum5, ssq5, cnt5, g5_ref[...], b5_ref[...])

        # -------- head: gap (6x6 window mean) -> 1x1 conv -> log_softmax -----
        w8 = w8_ref[...]
        for n in range(N):
            gsum = zero
            for i in range(6):
                win = s5[pl.ds(n * img5 + i * W5, 6), :]
                gsum = gsum + jnp.sum(win, axis=0, keepdims=True)
            gap = (gsum * (1.0 / 36.0)) * sc5 + sh5
            logits = jnp.dot(gap, w8, preferred_element_type=f32)[:, :10]
            m = jnp.max(logits, axis=-1, keepdims=True)
            z = logits - m
            lse = jnp.log(jnp.sum(jnp.exp(z), axis=-1, keepdims=True))
            out_ref[pl.ds(n, 1), :] = z - lse

    scratch = [
        pltpu.VMEM((r1_pad, C), jnp.float32),    # s1: conv1 out (26x26)
        pltpu.VMEM((N * img2, C), jnp.float32),  # s2: conv2 out (24x24)
        pltpu.VMEM((N * imgp, C), jnp.float32),  # sp: pooled   (12x12, stride 16)
        pltpu.VMEM((N * img4, C), jnp.float32),  # s4: conv4 out (10x10, stride 16)
        pltpu.VMEM((N * img5, C), jnp.float32),  # s5: conv5 out (8x8)
    ]
    return kernel, scratch


# --------------------------------------------------------------------------
# Wrapper: pad params to 128 lanes, build conv1 patches, call the fused kernel
# --------------------------------------------------------------------------
def _pad2(a, rows, cols):
    return jnp.pad(a, ((0, rows - a.shape[0]), (0, cols - a.shape[1])))


def _pad_w3x3(w):                       # (3,3,cin,cout) -> (3,3,128,128)
    return jnp.pad(w, ((0, 0), (0, 0),
                       (0, C - w.shape[2]), (0, C - w.shape[3])))


def _pad_vec(v):                        # (c,) -> (1,128)
    return jnp.pad(v.reshape(1, -1), ((0, 0), (0, C - v.shape[0])))


def model4_forward(x_nchw, p):
    """x_nchw: (N, 1, 28, 28) -> (N, 10) log-probabilities."""
    n = x_nchw.shape[0]
    x = x_nchw[:, 0, :, :].astype(jnp.float32)             # (N, 28, 28), Cin=1

    # conv1 im2col in the wrapper (Cin=1 => patches are only N*676 x 9, ~50 KB);
    # K padded to 16, rows padded (with zeros) to a multiple of the chunk size.
    chunk = 128
    cols = [x[:, dy:dy + 26, dx:dx + 26] for dy in range(3) for dx in range(3)]
    patches = jnp.stack(cols, axis=-1).reshape(n * 676, 9)
    r1 = n * 676
    r1_pad = ((r1 + chunk - 1) // chunk) * chunk
    patches = jnp.pad(patches, ((0, r1_pad - r1), (0, 16 - 9)))

    # Zero-pad every weight / BN param to 128 lanes; padded channels stay 0
    # through the whole network, so the maths is unchanged.
    w1p = _pad2(p["w1"].reshape(9, 6), 16, C)
    w2p = _pad_w3x3(p["w2"])
    w3p = _pad2(p["w3"].reshape(8, 10), C, C)
    w4p = _pad_w3x3(p["w4"])
    w5p = _pad_w3x3(p["w5"])
    w8p = _pad2(p["w8"].reshape(16, 10), C, C)
    g1p, b1p = _pad_vec(p["g1"]), _pad_vec(p["b1"])
    g2p, b2p = _pad_vec(p["g2"]), _pad_vec(p["b2"])
    g4p, b4p = _pad_vec(p["g4"]), _pad_vec(p["b4"])
    g5p, b5p = _pad_vec(p["g5"]), _pad_vec(p["b5"])

    args = (patches, w1p, g1p, b1p, w2p, g2p, b2p, w3p,
            w4p, g4p, b4p, w5p, g5p, b5p, w8p)

    kernel, scratch = _build_fused_kernel(n, r1_pad, chunk)

    def full_spec(shape):
        nd = len(shape)
        return pl.BlockSpec(shape, lambda i, _nd=nd: (0,) * _nd)

    return pl.pallas_call(
        kernel,
        out_shape=jax.ShapeDtypeStruct((n, 10), jnp.float32),
        grid=(1,),
        in_specs=[full_spec(a.shape) for a in args],
        out_specs=full_spec((n, 10)),
        scratch_shapes=scratch,
        compiler_params=pltpu.CompilerParams(
            dimension_semantics=("arbitrary",),
            vmem_limit_bytes=32 * 1024 * 1024,
        ),
    )(*args)


# --------------------------------------------------------------------------
# Parameters (deterministic, torch-free stand-ins; (KH,KW,Cin,Cout) layout)
# --------------------------------------------------------------------------
def init_params(key):
    ks = jax.random.split(key, 6)

    def conv_w(k, shape):
        fan_in = shape[0] * shape[1] * shape[2]
        return jax.random.normal(k, shape, jnp.float32) / jnp.sqrt(float(fan_in))

    return {
        "w1": conv_w(ks[0], (3, 3, 1, 6)),
        "g1": jnp.ones((6,), jnp.float32), "b1": jnp.zeros((6,), jnp.float32),
        "w2": conv_w(ks[1], (3, 3, 6, 8)),
        "g2": jnp.ones((8,), jnp.float32), "b2": jnp.zeros((8,), jnp.float32),
        "w3": conv_w(ks[2], (1, 1, 8, 10)),
        "w4": conv_w(ks[3], (3, 3, 10, 14)),
        "g4": jnp.ones((14,), jnp.float32), "b4": jnp.zeros((14,), jnp.float32),
        "w5": conv_w(ks[4], (3, 3, 14, 16)),
        "g5": jnp.ones((16,), jnp.float32), "b5": jnp.zeros((16,), jnp.float32),
        "w8": conv_w(ks[5], (1, 1, 16, 10)),
    }


# --------------------------------------------------------------------------
# Pure-JAX reference (same training-mode BN semantics) for a correctness check
# --------------------------------------------------------------------------
def _reference_forward(x_nchw, p):
    hi = jax.lax.Precision.HIGHEST
    x = jnp.transpose(x_nchw, (0, 2, 3, 1)).astype(jnp.float32)

    def conv(y, w):
        return jax.lax.conv_general_dilated(
            y, w, (1, 1), "VALID",
            dimension_numbers=("NHWC", "HWIO", "NHWC"), precision=hi)

    def bn(y, g, b):
        mean = jnp.mean(y, axis=(0, 1, 2))
        var = jnp.mean((y - mean) ** 2, axis=(0, 1, 2))
        return (y - mean) * jax.lax.rsqrt(var + BN_EPS) * g + b

    y = bn(jnp.maximum(conv(x, p["w1"]), 0.0), p["g1"], p["b1"])
    y = bn(jnp.maximum(conv(y, p["w2"]), 0.0), p["g2"], p["b2"])
    y = conv(y, p["w3"])
    y = jax.lax.reduce_window(y, -jnp.inf, jax.lax.max,
                              (1, 2, 2, 1), (1, 2, 2, 1), "VALID")
    y = bn(jnp.maximum(conv(y, p["w4"]), 0.0), p["g4"], p["b4"])
    y = bn(jnp.maximum(conv(y, p["w5"]), 0.0), p["g5"], p["b5"])
    y = jnp.mean(y[:, :6, :6, :], axis=(1, 2))               # AvgPool2d(6)
    logits = jnp.dot(y, p["w8"].reshape(16, 10), precision=hi)
    return jax.nn.log_softmax(logits, axis=-1)


if __name__ == "__main__":
    key = jax.random.PRNGKey(0)
    pkey, xkey = jax.random.split(key)
    params = init_params(pkey)

    # Input shape implied by the module: 1 channel, 28x28 (MNIST-style), NCHW.
    x = jax.random.normal(xkey, (2, 1, 28, 28), jnp.float32)

    out = jax.block_until_ready(jax.jit(model4_forward)(x, params))
    assert out.shape == (2, 10)
    assert bool(jnp.all(jnp.isfinite(out)))
    assert bool(jnp.allclose(jnp.sum(jnp.exp(out), axis=-1), 1.0, atol=1e-4))

    ref = _reference_forward(x, params)
    assert bool(jnp.allclose(out, ref, atol=2e-2, rtol=2e-2))

    print("KERNEL_OK")
</pallas_src>

<mosaic_0001>
module attributes {stable_mosaic.version = 11 : i64} {
  func.func @kernel(%arg0: i32, %arg1: memref<1408x16xf32, #tpu.memory_space<vmem>>, %arg2: memref<16x128xf32, #tpu.memory_space<vmem>>, %arg3: memref<1x128xf32, #tpu.memory_space<vmem>>, %arg4: memref<1x128xf32, #tpu.memory_space<vmem>>, %arg5: memref<3x3x128x128xf32, #tpu.memory_space<vmem>>, %arg6: memref<1x128xf32, #tpu.memory_space<vmem>>, %arg7: memref<1x128xf32, #tpu.memory_space<vmem>>, %arg8: memref<128x128xf32, #tpu.memory_space<vmem>>, %arg9: memref<3x3x128x128xf32, #tpu.memory_space<vmem>>, %arg10: memref<1x128xf32, #tpu.memory_space<vmem>>, %arg11: memref<1x128xf32, #tpu.memory_space<vmem>>, %arg12: memref<3x3x128x128xf32, #tpu.memory_space<vmem>>, %arg13: memref<1x128xf32, #tpu.memory_space<vmem>>, %arg14: memref<1x128xf32, #tpu.memory_space<vmem>>, %arg15: memref<128x128xf32, #tpu.memory_space<vmem>>, %arg16: memref<2x10xf32, #tpu.memory_space<vmem>>, %arg17: memref<1408x128xf32, #tpu.memory_space<vmem>>, %arg18: memref<1152x128xf32, #tpu.memory_space<vmem>>, %arg19: memref<384x128xf32, #tpu.memory_space<vmem>>, %arg20: memref<320x128xf32, #tpu.memory_space<vmem>>, %arg21: memref<128x128xf32, #tpu.memory_space<vmem>>) attributes {dimension_semantics = [#tpu.dimension_semantics<arbitrary>], iteration_bounds = array<i64: 1>, scalar_prefetch = 0 : i64, scratch_operands = 5 : i64, tpu.core_type = #tpu.core_type<tc>, window_params = [{pipeline_mode = #tpu.pipeline_mode<synchronous>, transform_indices = @transform_0, window_bounds = array<i64: 1408, 16>}, {pipeline_mode = #tpu.pipeline_mode<synchronous>, transform_indices = @transform_1, window_bounds = array<i64: 16, 128>}, {pipeline_mode = #tpu.pipeline_mode<synchronous>, transform_indices = @transform_2, window_bounds = array<i64: 1, 128>}, {pipeline_mode = #tpu.pipeline_mode<synchronous>, transform_indices = @transform_3, window_bounds = array<i64: 1, 128>}, {pipeline_mode = #tpu.pipeline_mode<synchronous>, transform_indices = @transform_4, window_bounds = array<i64: 3, 3, 128, 128>}, {pipeline_mode = #tpu.pipeline_mode<synchronous>, transform_indices = @transform_5, window_bounds = array<i64: 1, 128>}, {pipeline_mode = #tpu.pipeline_mode<synchronous>, transform_indices = @transform_6, window_bounds = array<i64: 1, 128>}, {pipeline_mode = #tpu.pipeline_mode<synchronous>, transform_indices = @transform_7, window_bounds = array<i64: 128, 128>}, {pipeline_mode = #tpu.pipeline_mode<synchronous>, transform_indices = @transform_8, window_bounds = array<i64: 3, 3, 128, 128>}, {pipeline_mode = #tpu.pipeline_mode<synchronous>, transform_indices = @transform_9, window_bounds = array<i64: 1, 128>}, {pipeline_mode = #tpu.pipeline_mode<synchronous>, transform_indices = @transform_10, window_bounds = array<i64: 1, 128>}, {pipeline_mode = #tpu.pipeline_mode<synchronous>, transform_indices = @transform_11, window_bounds = array<i64: 3, 3, 128, 128>}, {pipeline_mode = #tpu.pipeline_mode<synchronous>, transform_indices = @transform_12, window_bounds = array<i64: 1, 128>}, {pipeline_mode = #tpu.pipeline_mode<synchronous>, transform_indices = @transform_13, window_bounds = array<i64: 1, 128>}, {pipeline_mode = #tpu.pipeline_mode<synchronous>, transform_indices = @transform_14, window_bounds = array<i64: 128, 128>}, {pipeline_mode = #tpu.pipeline_mode<synchronous>, transform_indices = @transform_15, window_bounds = array<i64: 2, 10>}]} {
    %cst = arith.constant 0.000000e+00 : f32
    %0 = vector.broadcast %cst : f32 to vector<1x128xf32>
    %c0 = arith.constant 0 : index
    %c0_0 = arith.constant 0 : index
    %1 = vector.load %arg2[%c0, %c0_0] : memref<16x128xf32, #tpu.memory_space<vmem>>, vector<16x128xf32>
    %c0_i32 = arith.constant 0 : i32
    %c11_i32 = arith.constant 11 : i32
    %2 = arith.addi %c0_i32, %c11_i32 : i32
    %c1_i32 = arith.constant 1 : i32
    %3:2 = scf.for %arg22 = %c0_i32 to %2 step %c1_i32 iter_args(%arg23 = %0, %arg24 = %0) -> (vector<1x128xf32>, vector<1x128xf32>)  : i32 {
      %c128_i32 = arith.constant 128 : i32
      %198 = arith.muli %arg22, %c128_i32 : i32
      %199 = arith.index_cast %198 : i32 to index
      %c0_106 = arith.constant 0 : index
      %200 = vector.load %arg1[%199, %c0_106] : memref<1408x16xf32, #tpu.memory_space<vmem>>, vector<128x16xf32>
      %cst_107 = arith.constant dense<0.000000e+00> : vector<128x128xf32>
      %201 = tpu.matmul %200, %1, %cst_107 {dimension_numbers = #tpu.dot_dimension_numbers<[1], [0], [0], [1], [0, 0, 1, 1], [], []>} : vector<128x16xf32>, vector<16x128xf32>, vector<128x128xf32> -> vector<128x128xf32>
      %cst_108 = arith.constant 0.000000e+00 : f32
      %202 = vector.broadcast %cst_108 : f32 to vector<128x128xf32>
      %203 = arith.maximumf %201, %202 : vector<128x128xf32>
      %c128_i32_109 = arith.constant 128 : i32
      %204 = arith.muli %arg22, %c128_i32_109 : i32
      %205 = arith.index_cast %204 : i32 to index
      %c0_110 = arith.constant 0 : index
      %206 = vector.load %arg17[%205, %c0_110] : memref<1408x128xf32, #tpu.memory_space<vmem>>, vector<128x128xf32>
      tpu.vector_store %arg17[%205, %c0_110], %203 {strides = array<i32>} : memref<1408x128xf32, #tpu.memory_space<vmem>>, vector<128x128xf32>,
      %cst_111 = arith.constant dense<0.000000e+00> : vector<128xf32>
      %207 = vector.multi_reduction <add>, %203, %cst_111 [0] : vector<128x128xf32> to vector<128xf32>
      %208 = vector.shape_cast %207 : vector<128xf32> to vector<1x128xf32>
      %209 = arith.addf %arg23, %208 : vector<1x128xf32>
      %210 = arith.mulf %203, %203 : vector<128x128xf32>
      %cst_112 = arith.constant dense<0.000000e+00> : vector<128xf32>
      %211 = vector.multi_reduction <add>, %210, %cst_112 [0] : vector<128x128xf32> to vector<128xf32>
      %212 = vector.shape_cast %211 : vector<128xf32> to vector<1x128xf32>
      %213 = arith.addf %arg24, %212 : vector<1x128xf32>
      scf.yield %209, %213 : vector<1x128xf32>, vector<1x128xf32>
    }
    %c11_i32_1 = arith.constant 11 : i32
    %c0_2 = arith.constant 0 : index
    %c0_3 = arith.constant 0 : index
    %4 = vector.load %arg3[%c0_2, %c0_3] : memref<1x128xf32, #tpu.memory_space<vmem>>, vector<1x128xf32>
    %c0_4 = arith.constant 0 : index
    %c0_5 = arith.constant 0 : index
    %5 = vector.load %arg4[%c0_4, %c0_5] : memref<1x128xf32, #tpu.memory_space<vmem>>, vector<1x128xf32>
    %cst_6 = arith.constant 7.396450e-04 : f32
    %6 = vector.broadcast %cst_6 : f32 to vector<1x128xf32>
    %7 = arith.mulf %3#0, %6 : vector<1x128xf32>
    %cst_7 = arith.constant 7.396450e-04 : f32
    %8 = vector.broadcast %cst_7 : f32 to vector<1x128xf32>
    %9 = arith.mulf %3#1, %8 : vector<1x128xf32>
    %10 = arith.mulf %7, %7 : vector<1x128xf32>
    %11 = arith.subf %9, %10 : vector<1x128xf32>
    %cst_8 = arith.constant 0.000000e+00 : f32
    %12 = vector.broadcast %cst_8 : f32 to vector<1x128xf32>
    %13 = arith.maximumf %11, %12 : vector<1x128xf32>
    %cst_9 = arith.constant 9.99999974E-6 : f32
    %14 = vector.broadcast %cst_9 : f32 to vector<1x128xf32>
    %15 = arith.addf %13, %14 : vector<1x128xf32>
    %16 = math.rsqrt %15 : vector<1x128xf32>
    %17 = arith.mulf %4, %16 : vector<1x128xf32>
    %18 = arith.mulf %7, %17 : vector<1x128xf32>
    %19 = arith.subf %5, %18 : vector<1x128xf32>
    %c0_i32_10 = arith.constant 0 : i32
    %c24_i32 = arith.constant 24 : i32
    %20 = arith.addi %c0_i32_10, %c24_i32 : i32
    %c1_i32_11 = arith.constant 1 : i32
    %21:2 = scf.for %arg22 = %c0_i32_10 to %20 step %c1_i32_11 iter_args(%arg23 = %0, %arg24 = %0) -> (vector<1x128xf32>, vector<1x128xf32>)  : i32 {
      %cst_106 = arith.constant 0.000000e+00 : f32
      %198 = vector.broadcast %cst_106 : f32 to vector<24x128xf32>
      %c0_i32_107 = arith.constant 0 : i32
      %199 = arith.addi %arg22, %c0_i32_107 : i32
      %c26_i32 = arith.constant 26 : i32
      %200 = arith.muli %199, %c26_i32 : i32
      %c0_i32_108 = arith.constant 0 : i32
      %201 = arith.addi %c0_i32_108, %200 : i32
      %c0_i32_109 = arith.constant 0 : i32
      %202 = arith.addi %201, %c0_i32_109 : i32
      %203 = arith.index_cast %202 : i32 to index
      %c0_110 = arith.constant 0 : index
      %204 = vector.load %arg17[%203, %c0_110] : memref<1408x128xf32, #tpu.memory_space<vmem>>, vector<24x128xf32>
      %205 = vector.broadcast %17 : vector<1x128xf32> to vector<24x128xf32>
      %206 = arith.mulf %204, %205 : vector<24x128xf32>
      %207 = vector.broadcast %19 : vector<1x128xf32> to vector<24x128xf32>
      %208 = arith.addf %206, %207 : vector<24x128xf32>
      %c0_111 = arith.constant 0 : index
      %c0_112 = arith.constant 0 : index
      %c0_113 = arith.constant 0 : index
      %c0_114 = arith.constant 0 : index
      %209 = vector.load %arg5[%c0_111, %c0_112, %c0_113, %c0_114] : memref<3x3x128x128xf32, #tpu.memory_space<vmem>>, vector<1x1x128x128xf32>
      %210 = vector.shape_cast %209 : vector<1x1x128x128xf32> to vector<128x128xf32>
      %cst_115 = arith.constant dense<0.000000e+00> : vector<24x128xf32>
      %211 = tpu.matmul %208, %210, %cst_115 {dimension_numbers = #tpu.dot_dimension_numbers<[1], [0], [0], [1], [0, 0, 1, 1], [], []>} : vector<24x128xf32>, vector<128x128xf32>, vector<24x128xf32> -> vector<24x128xf32>
      %212 = arith.addf %198, %211 : vector<24x128xf32>
      %c0_i32_116 = arith.constant 0 : i32
      %213 = arith.addi %arg22, %c0_i32_116 : i32
      %c26_i32_117 = arith.constant 26 : i32
      %214 = arith.muli %213, %c26_i32_117 : i32
      %c0_i32_118 = arith.constant 0 : i32
      %215 = arith.addi %c0_i32_118, %214 : i32
      %c1_i32_119 = arith.constant 1 : i32
      %216 = arith.addi %215, %c1_i32_119 : i32
      %217 = arith.index_cast %216 : i32 to index
      %c0_120 = arith.constant 0 : index
      %218 = vector.load %arg17[%217, %c0_120] : memref<1408x128xf32, #tpu.memory_space<vmem>>, vector<24x128xf32>
      %219 = vector.broadcast %17 : vector<1x128xf32> to vector<24x128xf32>
      %220 = arith.mulf %218, %219 : vector<24x128xf32>
      %221 = vector.broadcast %19 : vector<1x128xf32> to vector<24x128xf32>
      %222 = arith.addf %220, %221 : vector<24x128xf32>
      %c0_121 = arith.constant 0 : index
      %c1_122 = arith.constant 1 : index
      %c0_123 = arith.constant 0 : index
      %c0_124 = arith.constant 0 : index
      %223 = vector.load %arg5[%c0_121, %c1_122, %c0_123, %c0_124] : memref<3x3x128x128xf32, #tpu.memory_space<vmem>>, vector<1x1x128x128xf32>
      %224 = vector.shape_cast %223 : vector<1x1x128x128xf32> to vector<128x128xf32>
      %cst_125 = arith.constant dense<0.000000e+00> : vector<24x128xf32>
      %225 = tpu.matmul %222, %224, %cst_125 {dimension_numbers = #tpu.dot_dimension_numbers<[1], [0], [0], [1], [0, 0, 1, 1], [], []>} : vector<24x128xf32>, vector<128x128xf32>, vector<24x128xf32> -> vector<24x128xf32>
      %226 = arith.addf %212, %225 : vector<24x128xf32>
      %c0_i32_126 = arith.constant 0 : i32
      %227 = arith.addi %arg22, %c0_i32_126 : i32
      %c26_i32_127 = arith.constant 26 : i32
      %228 = arith.muli %227, %c26_i32_127 : i32
      %c0_i32_128 = arith.constant 0 : i32
      %229 = arith.addi %c0_i32_128, %228 : i32
      %c2_i32_129 = arith.constant 2 : i32
      %230 = arith.addi %229, %c2_i32_129 : i32
      %231 = arith.index_cast %230 : i32 to index
      %c0_130 = arith.constant 0 : index
      %232 = vector.load %arg17[%231, %c0_130] : memref<1408x128xf32, #tpu.memory_space<vmem>>, vector<24x128xf32>
      %233 = vector.broadcast %17 : vector<1x128xf32> to vector<24x128xf32>
      %234 = arith.mulf %232, %233 : vector<24x128xf32>
      %235 = vector.broadcast %19 : vector<1x128xf32> to vector<24x128xf32>
      %236 = arith.addf %234, %235 : vector<24x128xf32>
      %c0_131 = arith.constant 0 : index
      %c2 = arith.constant 2 : index
      %c0_132 = arith.constant 0 : index
      %c0_133 = arith.constant 0 : index
      %237 = vector.load %arg5[%c0_131, %c2, %c0_132, %c0_133] : memref<3x3x128x128xf32, #tpu.memory_space<vmem>>, vector<1x1x128x128xf32>
      %238 = vector.shape_cast %237 : vector<1x1x128x128xf32> to vector<128x128xf32>
      %cst_134 = arith.constant dense<0.000000e+00> : vector<24x128xf32>
      %239 = tpu.matmul %236, %238, %cst_134 {dimension_numbers = #tpu.dot_dimension_numbers<[1], [0], [0], [1], [0, 0, 1, 1], [], []>} : vector<24x128xf32>, vector<128x128xf32>, vector<24x128xf32> -> vector<24x128xf32>
      %240 = arith.addf %226, %239 : vector<24x128xf32>
      %c1_i32_135 = arith.constant 1 : i32
      %241 = arith.addi %arg22, %c1_i32_135 : i32
      %c26_i32_136 = arith.constant 26 : i32
      %242 = arith.muli %241, %c26_i32_136 : i32
      %c0_i32_137 = arith.constant 0 : i32
      %243 = arith.addi %c0_i32_137, %242 : i32
      %c0_i32_138 = arith.constant 0 : i32
      %244 = arith.addi %243, %c0_i32_138 : i32
      %245 = arith.index_cast %244 : i32 to index
      %c0_139 = arith.constant 0 : index
      %246 = vector.load %arg17[%245, %c0_139] : memref<1408x128xf32, #tpu.memory_space<vmem>>, vector<24x128xf32>
      %247 = vector.broadcast %17 : vector<1x128xf32> to vector<24x128xf32>
      %248 = arith.mulf %246, %247 : vector<24x128xf32>
      %249 = vector.broadcast %19 : vector<1x128xf32> to vector<24x128xf32>
      %250 = arith.addf %248, %249 : vector<24x128xf32>
      %c1_140 = arith.constant 1 : index
      %c0_141 = arith.constant 0 : index
      %c0_142 = arith.constant 0 : index
      %c0_143 = arith.constant 0 : index
      %251 = vector.load %arg5[%c1_140, %c0_141, %c0_142, %c0_143] : memref<3x3x128x128xf32, #tpu.memory_space<vmem>>, vector<1x1x128x128xf32>
      %252 = vector.shape_cast %251 : vector<1x1x128x128xf32> to vector<128x128xf32>
      %cst_144 = arith.constant dense<0.000000e+00> : vector<24x128xf32>
      %253 = tpu.matmul %250, %252, %cst_144 {dimension_numbers = #tpu.dot_dimension_numbers<[1], [0], [0], [1], [0, 0, 1, 1], [], []>} : vector<24x128xf32>, vector<128x128xf32>, vector<24x128xf32> -> vector<24x128xf32>
      %254 = arith.addf %240, %253 : vector<24x128xf32>
      %c1_i32_145 = arith.constant 1 : i32
      %255 = arith.addi %arg22, %c1_i32_145 : i32
      %c26_i32_146 = arith.constant 26 : i32
      %256 = arith.muli %255, %c26_i32_146 : i32
      %c0_i32_147 = arith.constant 0 : i32
      %257 = arith.addi %c0_i32_147, %256 : i32
      %c1_i32_148 = arith.constant 1 : i32
      %258 = arith.addi %257, %c1_i32_148 : i32
      %259 = arith.index_cast %258 : i32 to index
      %c0_149 = arith.constant 0 : index
      %260 = vector.load %arg17[%259, %c0_149] : memref<1408x128xf32, #tpu.memory_space<vmem>>, vector<24x128xf32>
      %261 = vector.broadcast %17 : vector<1x128xf32> to vector<24x128xf32>
      %262 = arith.mulf %260, %261 : vector<24x128xf32>
      %263 = vector.broadcast %19 : vector<1x128xf32> to vector<24x128xf32>
      %264 = arith.addf %262, %263 : vector<24x128xf32>
      %c1_150 = arith.constant 1 : index
      %c1_151 = arith.constant 1 : index
      %c0_152 = arith.constant 0 : index
      %c0_153 = arith.constant 0 : index
      %265 = vector.load %arg5[%c1_150, %c1_151, %c0_152, %c0_153] : memref<3x3x128x128xf32, #tpu.memory_space<vmem>>, vector<1x1x128x128xf32>
      %266 = vector.shape_cast %265 : vector<1x1x128x128xf32> to vector<128x128xf32>
      %cst_154 = arith.constant dense<0.000000e+00> : vector<24x128xf32>
      %267 = tpu.matmul %264, %266, %cst_154 {dimension_numbers = #tpu.dot_dimension_numbers<[1], [0], [0], [1], [0, 0, 1, 1], [], []>} : vector<24x128xf32>, vector<128x128xf32>, vector<24x128xf32> -> vector<24x128xf32>
      %268 = arith.addf %254, %267 : vector<24x128xf32>
      %c1_i32_155 = arith.constant 1 : i32
      %269 = arith.addi %arg22, %c1_i32_155 : i32
      %c26_i32_156 = arith.constant 26 : i32
      %270 = arith.muli %269, %c26_i32_156 : i32
      %c0_i32_157 = arith.constant 0 : i32
      %271 = arith.addi %c0_i32_157, %270 : i32
      %c2_i32_158 = arith.constant 2 : i32
      %272 = arith.addi %271, %c2_i32_158 : i32
      %273 = arith.index_cast %272 : i32 to index
      %c0_159 = arith.constant 0 : index
      %274 = vector.load %arg17[%273, %c0_159] : memref<1408x128xf32, #tpu.memory_space<vmem>>, vector<24x128xf32>
      %275 = vector.broadcast %17 : vector<1x128xf32> to vector<24x128xf32>
      %276 = arith.mulf %274, %275 : vector<24x128xf32>
      %277 = vector.broadcast %19 : vector<1x128xf32> to vector<24x128xf32>
      %278 = arith.addf %276, %277 : vector<24x128xf32>
      %c1_160 = arith.constant 1 : index
      %c2_161 = arith.constant 2 : index
      %c0_162 = arith.constant 0 : index
      %c0_163 = arith.constant 0 : index
      %279 = vector.load %arg5[%c1_160, %c2_161, %c0_162, %c0_163] : memref<3x3x128x128xf32, #tpu.memory_space<vmem>>, vector<1x1x128x128xf32>
      %280 = vector.shape_cast %279 : vector<1x1x128x128xf32> to vector<128x128xf32>
      %cst_164 = arith.constant dense<0.000000e+00> : vector<24x128xf32>
      %281 = tpu.matmul %278, %280, %cst_164 {dimension_numbers = #tpu.dot_dimension_numbers<[1], [0], [0], [1], [0, 0, 1, 1], [], []>} : vector<24x128xf32>, vector<128x128xf32>, vector<24x128xf32> -> vector<24x128xf32>
      %282 = arith.addf %268, %281 : vector<24x128xf32>
      %c2_i32_165 = arith.constant 2 : i32
      %283 = arith.addi %arg22, %c2_i32_165 : i32
      %c26_i32_166 = arith.constant 26 : i32
      %284 = arith.muli %283, %c26_i32_166 : i32
      %c0_i32_167 = arith.constant 0 : i32
      %285 = arith.addi %c0_i32_167, %284 : i32
      %c0_i32_168 = arith.constant 0 : i32
      %286 = arith.addi %285, %c0_i32_168 : i32
      %287 = arith.index_cast %286 : i32 to index
      %c0_169 = arith.constant 0 : index
      %288 = vector.load %arg17[%287, %c0_169] : memref<1408x128xf32, #tpu.memory_space<vmem>>, vector<24x128xf32>
      %289 = vector.broadcast %17 : vector<1x128xf32> to vector<24x128xf32>
      %290 = arith.mulf %288, %289 : vector<24x128xf32>
      %291 = vector.broadcast %19 : vector<1x128xf32> to vector<24x128xf32>
      %292 = arith.addf %290, %291 : vector<24x128xf32>
      %c2_170 = arith.constant 2 : index
      %c0_171 = arith.constant 0 : index
      %c0_172 = arith.constant 0 : index
      %c0_173 = arith.constant 0 : index
      %293 = vector.load %arg5[%c2_170, %c0_171, %c0_172, %c0_173] : memref<3x3x128x128xf32, #tpu.memory_space<vmem>>, vector<1x1x128x128xf32>
      %294 = vector.shape_cast %293 : vector<1x1x128x128xf32> to vector<128x128xf32>
      %cst_174 = arith.constant dense<0.000000e+00> : vector<24x128xf32>
      %295 = tpu.matmul %292, %294, %cst_174 {dimension_numbers = #tpu.dot_dimension_numbers<[1], [0], [0], [1], [0, 0, 1, 1], [], []>} : vector<24x128xf32>, vector<128x128xf32>, vector<24x128xf32> -> vector<24x128xf32>
      %296 = arith.addf %282, %295 : vector<24x128xf32>
      %c2_i32_175 = arith.constant 2 : i32
      %297 = arith.addi %arg22, %c2_i32_175 : i32
      %c26_i32_176 = arith.constant 26 : i32
      %298 = arith.muli %297, %c26_i32_176 : i32
      %c0_i32_177 = arith.constant 0 : i32
      %299 = arith.addi %c0_i32_177, %298 : i32
      %c1_i32_178 = arith.constant 1 : i32
      %300 = arith.addi %299, %c1_i32_178 : i32
      %301 = arith.index_cast %300 : i32 to index
      %c0_179 = arith.constant 0 : index
      %302 = vector.load %arg17[%301, %c0_179] : memref<1408x128xf32, #tpu.memory_space<vmem>>, vector<24x128xf32>
      %303 = vector.broadcast %17 : vector<1x128xf32> to vector<24x128xf32>
      %304 = arith.mulf %302, %303 : vector<24x128xf32>
      %305 = vector.broadcast %19 : vector<1x128xf32> to vector<24x128xf32>
      %306 = arith.addf %304, %305 : vector<24x128xf32>
      %c2_180 = arith.constant 2 : index
      %c1_181 = arith.constant 1 : index
      %c0_182 = arith.constant 0 : index
      %c0_183 = arith.constant 0 : index
      %307 = vector.load %arg5[%c2_180, %c1_181, %c0_182, %c0_183] : memref<3x3x128x128xf32, #tpu.memory_space<vmem>>, vector<1x1x128x128xf32>
      %308 = vector.shape_cast %307 : vector<1x1x128x128xf32> to vector<128x128xf32>
      %cst_184 = arith.constant dense<0.000000e+00> : vector<24x128xf32>
      %309 = tpu.matmul %306, %308, %cst_184 {dimension_numbers = #tpu.dot_dimension_numbers<[1], [0], [0], [1], [0, 0, 1, 1], [], []>} : vector<24x128xf32>, vector<128x128xf32>, vector<24x128xf32> -> vector<24x128xf32>
      %310 = arith.addf %296, %309 : vector<24x128xf32>
      %c2_i32_185 = arith.constant 2 : i32
      %311 = arith.addi %arg22, %c2_i32_185 : i32
      %c26_i32_186 = arith.constant 26 : i32
      %312 = arith.muli %311, %c26_i32_186 : i32
      %c0_i32_187 = arith.constant 0 : i32
      %313 = arith.addi %c0_i32_187, %312 : i32
      %c2_i32_188 = arith.constant 2 : i32
      %314 = arith.addi %313, %c2_i32_188 : i32
      %315 = arith.index_cast %314 : i32 to index
      %c0_189 = arith.constant 0 : index
      %316 = vector.load %arg17[%315, %c0_189] : memref<1408x128xf32, #tpu.memory_space<vmem>>, vector<24x128xf32>
      %317 = vector.broadcast %17 : vector<1x128xf32> to vector<24x128xf32>
      %318 = arith.mulf %316, %317 : vector<24x128xf32>
      %319 = vector.broadcast %19 : vector<1x128xf32> to vector<24x128xf32>
      %320 = arith.addf %318, %319 : vector<24x128xf32>
      %c2_190 = arith.constant 2 : index
      %c2_191 = arith.constant 2 : index
      %c0_192 = arith.constant 0 : index
      %c0_193 = arith.constant 0 : index
      %321 = vector.load %arg5[%c2_190, %c2_191, %c0_192, %c0_193] : memref<3x3x128x128xf32, #tpu.memory_space<vmem>>, vector<1x1x128x128xf32>
      %322 = vector.shape_cast %321 : vector<1x1x128x128xf32> to vector<128x128xf32>
      %cst_194 = arith.constant dense<0.000000e+00> : vector<24x128xf32>
      %323 = tpu.matmul %320, %322, %cst_194 {dimension_numbers = #tpu.dot_dimension_numbers<[1], [0], [0], [1], [0, 0, 1, 1], [], []>} : vector<24x128xf32>, vector<128x128xf32>, vector<24x128xf32> -> vector<24x128xf32>
      %324 = arith.addf %310, %323 : vector<24x128xf32>
      %cst_195 = arith.constant 0.000000e+00 : f32
      %325 = vector.broadcast %cst_195 : f32 to vector<24x128xf32>
      %326 = arith.maximumf %324, %325 : vector<24x128xf32>
      %c24_i32_196 = arith.constant 24 : i32
      %327 = arith.muli %arg22, %c24_i32_196 : i32
      %c0_i32_197 = arith.constant 0 : i32
      %328 = arith.addi %c0_i32_197, %327 : i32
      %329 = arith.index_cast %328 : i32 to index
      %c0_198 = arith.constant 0 : index
      %330 = vector.load %arg18[%329, %c0_198] : memref<1152x128xf32, #tpu.memory_space<vmem>>, vector<24x128xf32>
      tpu.vector_store %arg18[%329, %c0_198], %326 {strides = array<i32>} : memref<1152x128xf32, #tpu.memory_space<vmem>>, vector<24x128xf32>,
      %cst_199 = arith.constant dense<0.000000e+00> : vector<128xf32>
      %331 = vector.multi_reduction <add>, %326, %cst_199 [0] : vector<24x128xf32> to vector<128xf32>
      %332 = vector.shape_cast %331 : vector<128xf32> to vector<1x128xf32>
      %333 = arith.addf %arg23, %332 : vector<1x128xf32>
      %334 = arith.mulf %326, %326 : vector<24x128xf32>
      %cst_200 = arith.constant dense<0.000000e+00> : vector<128xf32>
      %335 = vector.multi_reduction <add>, %334, %cst_200 [0] : vector<24x128xf32> to vector<128xf32>
      %336 = vector.shape_cast %335 : vector<128xf32> to vector<1x128xf32>
      %337 = arith.addf %arg24, %336 : vector<1x128xf32>
      scf.yield %333, %337 : vector<1x128xf32>, vector<1x128xf32>
    }
    %c24_i32_12 = arith.constant 24 : i32
    %22 = arith.addf %0, %21#0 : vector<1x128xf32>
    %23 = arith.addf %0, %21#1 : vector<1x128xf32>
    %c0_i32_13 = arith.constant 0 : i32
    %c24_i32_14 = arith.constant 24 : i32
    %24 = arith.addi %c0_i32_13, %c24_i32_14 : i32
    %c1_i32_15 = arith.constant 1 : i32
    %25:2 = scf.for %arg22 = %c0_i32_13 to %24 step %c1_i32_15 iter_args(%arg23 = %0, %arg24 = %0) -> (vector<1x128xf32>, vector<1x128xf32>)  : i32 {
      %cst_106 = arith.constant 0.000000e+00 : f32
      %198 = vector.broadcast %cst_106 : f32 to vector<24x128xf32>
      %c0_i32_107 = arith.constant 0 : i32
      %199 = arith.addi %arg22, %c0_i32_107 : i32
      %c26_i32 = arith.constant 26 : i32
      %200 = arith.muli %199, %c26_i32 : i32
      %c676_i32 = arith.constant 676 : i32
      %201 = arith.addi %c676_i32, %200 : i32
      %c0_i32_108 = arith.constant 0 : i32
      %202 = arith.addi %201, %c0_i32_108 : i32
      %203 = arith.index_cast %202 : i32 to index
      %c0_109 = arith.constant 0 : index
      %204 = vector.load %arg17[%203, %c0_109] : memref<1408x128xf32, #tpu.memory_space<vmem>>, vector<24x128xf32>
      %205 = vector.broadcast %17 : vector<1x128xf32> to vector<24x128xf32>
      %206 = arith.mulf %204, %205 : vector<24x128xf32>
      %207 = vector.broadcast %19 : vector<1x128xf32> to vector<24x128xf32>
      %208 = arith.addf %206, %207 : vector<24x128xf32>
      %c0_110 = arith.constant 0 : index
      %c0_111 = arith.constant 0 : index
      %c0_112 = arith.constant 0 : index
      %c0_113 = arith.constant 0 : index
      %209 = vector.load %arg5[%c0_110, %c0_111, %c0_112, %c0_113] : memref<3x3x128x128xf32, #tpu.memory_space<vmem>>, vector<1x1x128x128xf32>
      %210 = vector.shape_cast %209 : vector<1x1x128x128xf32> to vector<128x128xf32>
      %cst_114 = arith.constant dense<0.000000e+00> : vector<24x128xf32>
      %211 = tpu.matmul %208, %210, %cst_114 {dimension_numbers = #tpu.dot_dimension_numbers<[1], [0], [0], [1], [0, 0, 1, 1], [], []>} : vector<24x128xf32>, vector<128x128xf32>, vector<24x128xf32> -> vector<24x128xf32>
      %212 = arith.addf %198, %211 : vector<24x128xf32>
      %c0_i32_115 = arith.constant 0 : i32
      %213 = arith.addi %arg22, %c0_i32_115 : i32
      %c26_i32_116 = arith.constant 26 : i32
      %214 = arith.muli %213, %c26_i32_116 : i32
      %c676_i32_117 = arith.constant 676 : i32
      %215 = arith.addi %c676_i32_117, %214 : i32
      %c1_i32_118 = arith.constant 1 : i32
      %216 = arith.addi %215, %c1_i32_118 : i32
      %217 = arith.index_cast %216 : i32 to index
      %c0_119 = arith.constant 0 : index
      %218 = vector.load %arg17[%217, %c0_119] : memref<1408x128xf32, #tpu.memory_space<vmem>>, vector<24x128xf32>
      %219 = vector.broadcast %17 : vector<1x128xf32> to vector<24x128xf32>
      %220 = arith.mulf %218, %219 : vector<24x128xf32>
      %221 = vector.broadcast %19 : vector<1x128xf32> to vector<24x128xf32>
      %222 = arith.addf %220, %221 : vector<24x128xf32>
      %c0_120 = arith.constant 0 : index
      %c1_121 = arith.constant 1 : index
      %c0_122 = arith.constant 0 : index
      %c0_123 = arith.constant 0 : index
      %223 = vector.load %arg5[%c0_120, %c1_121, %c0_122, %c0_123] : memref<3x3x128x128xf32, #tpu.memory_space<vmem>>, vector<1x1x128x128xf32>
      %224 = vector.shape_cast %223 : vector<1x1x128x128xf32> to vector<128x128xf32>
      %cst_124 = arith.constant dense<0.000000e+00> : vector<24x128xf32>
      %225 = tpu.matmul %222, %224, %cst_124 {dimension_numbers = #tpu.dot_dimension_numbers<[1], [0], [0], [1], [0, 0, 1, 1], [], []>} : vector<24x128xf32>, vector<128x128xf32>, vector<24x128xf32> -> vector<24x128xf32>
      %226 = arith.addf %212, %225 : vector<24x128xf32>
      %c0_i32_125 = arith.constant 0 : i32
      %227 = arith.addi %arg22, %c0_i32_125 : i32
      %c26_i32_126 = arith.constant 26 : i32
      %228 = arith.muli %227, %c26_i32_126 : i32
      %c676_i32_127 = arith.constant 676 : i32
      %229 = arith.addi %c676_i32_127, %228 : i32
      %c2_i32_128 = arith.constant 2 : i32
      %230 = arith.addi %229, %c2_i32_128 : i32
      %231 = arith.index_cast %230 : i32 to index
      %c0_129 = arith.constant 0 : index
      %232 = vector.load %arg17[%231, %c0_129] : memref<1408x128xf32, #tpu.memory_space<vmem>>, vector<24x128xf32>
      %233 = vector.broadcast %17 : vector<1x128xf32> to vector<24x128xf32>
      %234 = arith.mulf %232, %233 : vector<24x128xf32>
      %235 = vector.broadcast %19 : vector<1x128xf32> to vector<24x128xf32>
      %236 = arith.addf %234, %235 : vector<24x128xf32>
      %c0_130 = arith.constant 0 : index
      %c2 = arith.constant 2 : index
      %c0_131 = arith.constant 0 : index
      %c0_132 = arith.constant 0 : index
      %237 = vector.load %arg5[%c0_130, %c2, %c0_131, %c0_132] : memref<3x3x128x128xf32, #tpu.memory_space<vmem>>, vector<1x1x128x128xf32>
      %238 = vector.shape_cast %237 : vector<1x1x128x128xf32> to vector<128x128xf32>
      %cst_133 = arith.constant dense<0.000000e+00> : vector<24x128xf32>
      %239 = tpu.matmul %236, %238, %cst_133 {dimension_numbers = #tpu.dot_dimension_numbers<[1], [0], [0], [1], [0, 0, 1, 1], [], []>} : vector<24x128xf32>, vector<128x128xf32>, vector<24x128xf32> -> vector<24x128xf32>
      %240 = arith.addf %226, %239 : vector<24x128xf32>
      %c1_i32_134 = arith.constant 1 : i32
      %241 = arith.addi %arg22, %c1_i32_134 : i32
      %c26_i32_135 = arith.constant 26 : i32
      %242 = arith.muli %241, %c26_i32_135 : i32
      %c676_i32_136 = arith.constant 676 : i32
      %243 = arith.addi %c676_i32_136, %242 : i32
      %c0_i32_137 = arith.constant 0 : i32
      %244 = arith.addi %243, %c0_i32_137 : i32
      %245 = arith.index_cast %244 : i32 to index
      %c0_138 = arith.constant 0 : index
      %246 = vector.load %arg17[%245, %c0_138] : memref<1408x128xf32, #tpu.memory_space<vmem>>, vector<24x128xf32>
      %247 = vector.broadcast %17 : vector<1x128xf32> to vector<24x128xf32>
      %248 = arith.mulf %246, %247 : vector<24x128xf32>
      %249 = vector.broadcast %19 : vector<1x128xf32> to vector<24x128xf32>
      %250 = arith.addf %248, %249 : vector<24x128xf32>
      %c1_139 = arith.constant 1 : index
      %c0_140 = arith.constant 0 : index
      %c0_141 = arith.constant 0 : index
      %c0_142 = arith.constant 0 : index
      %251 = vector.load %arg5[%c1_139, %c0_140, %c0_141, %c0_142] : memref<3x3x128x128xf32, #tpu.memory_space<vmem>>, vector<1x1x128x128xf32>
      %252 = vector.shape_cast %251 : vector<1x1x128x128xf32> to vector<128x128xf32>
      %cst_143 = arith.constant dense<0.000000e+00> : vector<24x128xf32>
      %253 = tpu.matmul %250, %252, %cst_143 {dimension_numbers = #tpu.dot_dimension_numbers<[1], [0], [0], [1], [0, 0, 1, 1], [], []>} : vector<24x128xf32>, vector<128x128xf32>, vector<24x128xf32> -> vector<24x128xf32>
      %254 = arith.addf %240, %253 : vector<24x128xf32>
      %c1_i32_144 = arith.constant 1 : i32
      %255 = arith.addi %arg22, %c1_i32_144 : i32
      %c26_i32_145 = arith.constant 26 : i32
      %256 = arith.muli %255, %c26_i32_145 : i32
      %c676_i32_146 = arith.constant 676 : i32
      %257 = arith.addi %c676_i32_146, %256 : i32
      %c1_i32_147 = arith.constant 1 : i32
      %258 = arith.addi %257, %c1_i32_147 : i32
      %259 = arith.index_cast %258 : i32 to index
      %c0_148 = arith.constant 0 : index
      %260 = vector.load %arg17[%259, %c0_148] : memref<1408x128xf32, #tpu.memory_space<vmem>>, vector<24x128xf32>
      %261 = vector.broadcast %17 : vector<1x128xf32> to vector<24x128xf32>
      %262 = arith.mulf %260, %261 : vector<24x128xf32>
      %263 = vector.broadcast %19 : vector<1x128xf32> to vector<24x128xf32>
      %264 = arith.addf %262, %263 : vector<24x128xf32>
      %c1_149 = arith.constant 1 : index
      %c1_150 = arith.constant 1 : index
      %c0_151 = arith.constant 0 : index
      %c0_152 = arith.constant 0 : index
      %265 = vector.load %arg5[%c1_149, %c1_150, %c0_151, %c0_152] : memref<3x3x128x128xf32, #tpu.memory_space<vmem>>, vector<1x1x128x128xf32>
      %266 = vector.shape_cast %265 : vector<1x1x128x128xf32> to vector<128x128xf32>
      %cst_153 = arith.constant dense<0.000000e+00> : vector<24x128xf32>
      %267 = tpu.matmul %264, %266, %cst_153 {dimension_numbers = #tpu.dot_dimension_numbers<[1], [0], [0], [1], [0, 0, 1, 1], [], []>} : vector<24x128xf32>, vector<128x128xf32>, vector<24x128xf32> -> vector<24x128xf32>
      %268 = arith.addf %254, %267 : vector<24x128xf32>
      %c1_i32_154 = arith.constant 1 : i32
      %269 = arith.addi %arg22, %c1_i32_154 : i32
      %c26_i32_155 = arith.constant 26 : i32
      %270 = arith.muli %269, %c26_i32_155 : i32
      %c676_i32_156 = arith.constant 676 : i32
      %271 = arith.addi %c676_i32_156, %270 : i32
      %c2_i32_157 = arith.constant 2 : i32
      %272 = arith.addi %271, %c2_i32_157 : i32
      %273 = arith.index_cast %272 : i32 to index
      %c0_158 = arith.constant 0 : index
      %274 = vector.load %arg17[%273, %c0_158] : memref<1408x128xf32, #tpu.memory_space<vmem>>, vector<24x128xf32>
      %275 = vector.broadcast %17 : vector<1x128xf32> to vector<24x128xf32>
      %276 = arith.mulf %274, %275 : vector<24x128xf32>
      %277 = vector.broadcast %19 : vector<1x128xf32> to vector<24x128xf32>
      %278 = arith.addf %276, %277 : vector<24x128xf32>
      %c1_159 = arith.constant 1 : index
      %c2_160 = arith.constant 2 : index
      %c0_161 = arith.constant 0 : index
      %c0_162 = arith.constant 0 : index
      %279 = vector.load %arg5[%c1_159, %c2_160, %c0_161, %c0_162] : memref<3x3x128x128xf32, #tpu.memory_space<vmem>>, vector<1x1x128x128xf32>
      %280 = vector.shape_cast %279 : vector<1x1x128x128xf32> to vector<128x128xf32>
      %cst_163 = arith.constant dense<0.000000e+00> : vector<24x128xf32>
      %281 = tpu.matmul %278, %280, %cst_163 {dimension_numbers = #tpu.dot_dimension_numbers<[1], [0], [0], [1], [0, 0, 1, 1], [], []>} : vector<24x128xf32>, vector<128x128xf32>, vector<24x128xf32> -> vector<24x128xf32>
      %282 = arith.addf %268, %281 : vector<24x128xf32>
      %c2_i32_164 = arith.constant 2 : i32
      %283 = arith.addi %arg22, %c2_i32_164 : i32
      %c26_i32_165 = arith.constant 26 : i32
      %284 = arith.muli %283, %c26_i32_165 : i32
      %c676_i32_166 = arith.constant 676 : i32
      %285 = arith.addi %c676_i32_166, %284 : i32
      %c0_i32_167 = arith.constant 0 : i32
      %286 = arith.addi %285, %c0_i32_167 : i32
      %287 = arith.index_cast %286 : i32 to index
      %c0_168 = arith.constant 0 : index
      %288 = vector.load %arg17[%287, %c0_168] : memref<1408x128xf32, #tpu.memory_space<vmem>>, vector<24x128xf32>
      %289 = vector.broadcast %17 : vector<1x128xf32> to vector<24x128xf32>
      %290 = arith.mulf %288, %289 : vector<24x128xf32>
      %291 = vector.broadcast %19 : vector<1x128xf32> to vector<24x128xf32>
      %292 = arith.addf %290, %291 : vector<24x128xf32>
      %c2_169 = arith.constant 2 : index
      %c0_170 = arith.constant 0 : index
      %c0_171 = arith.constant 0 : index
      %c0_172 = arith.constant 0 : index
      %293 = vector.load %arg5[%c2_169, %c0_170, %c0_171, %c0_172] : memref<3x3x128x128xf32, #tpu.memory_space<vmem>>, vector<1x1x128x128xf32>
      %294 = vector.shape_cast %293 : vector<1x1x128x128xf32> to vector<128x128xf32>
      %cst_173 = arith.constant dense<0.000000e+00> : vector<24x128xf32>
      %295 = tpu.matmul %292, %294, %cst_173 {dimension_numbers = #tpu.dot_dimension_numbers<[1], [0], [0], [1], [0, 0, 1, 1], [], []>} : vector<24x128xf32>, vector<128x128xf32>, vector<24x128xf32> -> vector<24x128xf32>
      %296 = arith.addf %282, %295 : vector<24x128xf32>
      %c2_i32_174 = arith.constant 2 : i32
      %297 = arith.addi %arg22, %c2_i32_174 : i32
      %c26_i32_175 = arith.constant 26 : i32
      %298 = arith.muli %297, %c26_i32_175 : i32
      %c676_i32_176 = arith.constant 676 : i32
      %299 = arith.addi %c676_i32_176, %298 : i32
      %c1_i32_177 = arith.constant 1 : i32
      %300 = arith.addi %299, %c1_i32_177 : i32
      %301 = arith.index_cast %300 : i32 to index
      %c0_178 = arith.constant 0 : index
      %302 = vector.load %arg17[%301, %c0_178] : memref<1408x128xf32, #tpu.memory_space<vmem>>, vector<24x128xf32>
      %303 = vector.broadcast %17 : vector<1x128xf32> to vector<24x128xf32>
      %304 = arith.mulf %302, %303 : vector<24x128xf32>
      %305 = vector.broadcast %19 : vector<1x128xf32> to vector<24x128xf32>
      %306 = arith.addf %304, %305 : vector<24x128xf32>
      %c2_179 = arith.constant 2 : index
      %c1_180 = arith.constant 1 : index
      %c0_181 = arith.constant 0 : index
      %c0_182 = arith.constant 0 : index
      %307 = vector.load %arg5[%c2_179, %c1_180, %c0_181, %c0_182] : memref<3x3x128x128xf32, #tpu.memory_space<vmem>>, vector<1x1x128x128xf32>
      %308 = vector.shape_cast %307 : vector<1x1x128x128xf32> to vector<128x128xf32>
      %cst_183 = arith.constant dense<0.000000e+00> : vector<24x128xf32>
      %309 = tpu.matmul %306, %308, %cst_183 {dimension_numbers = #tpu.dot_dimension_numbers<[1], [0], [0], [1], [0, 0, 1, 1], [], []>} : vector<24x128xf32>, vector<128x128xf32>, vector<24x128xf32> -> vector<24x128xf32>
      %310 = arith.addf %296, %309 : vector<24x128xf32>
      %c2_i32_184 = arith.constant 2 : i32
      %311 = arith.addi %arg22, %c2_i32_184 : i32
      %c26_i32_185 = arith.constant 26 : i32
      %312 = arith.muli %311, %c26_i32_185 : i32
      %c676_i32_186 = arith.constant 676 : i32
      %313 = arith.addi %c676_i32_186, %312 : i32
      %c2_i32_187 = arith.constant 2 : i32
      %314 = arith.addi %313, %c2_i32_187 : i32
      %315 = arith.index_cast %314 : i32 to index
      %c0_188 = arith.constant 0 : index
      %316 = vector.load %arg17[%315, %c0_188] : memref<1408x128xf32, #tpu.memory_space<vmem>>, vector<24x128xf32>
      %317 = vector.broadcast %17 : vector<1x128xf32> to vector<24x128xf32>
      %318 = arith.mulf %316, %317 : vector<24x128xf32>
      %319 = vector.broadcast %19 : vector<1x128xf32> to vector<24x128xf32>
      %320 = arith.addf %318, %319 : vector<24x128xf32>
      %c2_189 = arith.constant 2 : index
      %c2_190 = arith.constant 2 : index
      %c0_191 = arith.constant 0 : index
      %c0_192 = arith.constant 0 : index
      %321 = vector.load %arg5[%c2_189, %c2_190, %c0_191, %c0_192] : memref<3x3x128x128xf32, #tpu.memory_space<vmem>>, vector<1x1x128x128xf32>
      %322 = vector.shape_cast %321 : vector<1x1x128x128xf32> to vector<128x128xf32>
      %cst_193 = arith.constant dense<0.000000e+00> : vector<24x128xf32>
      %323 = tpu.matmul %320, %322, %cst_193 {dimension_numbers = #tpu.dot_dimension_numbers<[1], [0], [0], [1], [0, 0, 1, 1], [], []>} : vector<24x128xf32>, vector<128x128xf32>, vector<24x128xf32> -> vector<24x128xf32>
      %324 = arith.addf %310, %323 : vector<24x128xf32>
      %cst_194 = arith.constant 0.000000e+00 : f32
      %325 = vector.broadcast %cst_194 : f32 to vector<24x128xf32>
      %326 = arith.maximumf %324, %325 : vector<24x128xf32>
      %c24_i32_195 = arith.constant 24 : i32
      %327 = arith.muli %arg22, %c24_i32_195 : i32
      %c576_i32 = arith.constant 576 : i32
      %328 = arith.addi %c576_i32, %327 : i32
      %329 = arith.index_cast %328 : i32 to index
      %c0_196 = arith.constant 0 : index
      %330 = vector.load %arg18[%329, %c0_196] : memref<1152x128xf32, #tpu.memory_space<vmem>>, vector<24x128xf32>
      tpu.vector_store %arg18[%329, %c0_196], %326 {strides = array<i32>} : memref<1152x128xf32, #tpu.memory_space<vmem>>, vector<24x128xf32>,
      %cst_197 = arith.constant dense<0.000000e+00> : vector<128xf32>
      %331 = vector.multi_reduction <add>, %326, %cst_197 [0] : vector<24x128xf32> to vector<128xf32>
      %332 = vector.shape_cast %331 : vector<128xf32> to vector<1x128xf32>
      %333 = arith.addf %arg23, %332 : vector<1x128xf32>
      %334 = arith.mulf %326, %326 : vector<24x128xf32>
      %cst_198 = arith.constant dense<0.000000e+00> : vector<128xf32>
      %335 = vector.multi_reduction <add>, %334, %cst_198 [0] : vector<24x128xf32> to vector<128xf32>
      %336 = vector.shape_cast %335 : vector<128xf32> to vector<1x128xf32>
      %337 = arith.addf %arg24, %336 : vector<1x128xf32>
      scf.yield %333, %337 : vector<1x128xf32>, vector<1x128xf32>
    }
    %c24_i32_16 = arith.constant 24 : i32
    %26 = arith.addf %22, %25#0 : vector<1x128xf32>
    %27 = arith.addf %23, %25#1 : vector<1x128xf32>
    %c0_17 = arith.constant 0 : index
    %c0_18 = arith.constant 0 : index
    %28 = vector.load %arg6[%c0_17, %c0_18] : memref<1x128xf32, #tpu.memory_space<vmem>>, vector<1x128xf32>
    %c0_19 = arith.constant 0 : index
    %c0_20 = arith.constant 0 : index
    %29 = vector.load %arg7[%c0_19, %c0_20] : memref<1x128xf32, #tpu.memory_space<vmem>>, vector<1x128xf32>
    %cst_21 = arith.constant 8.68055562E-4 : f32
    %30 = vector.broadcast %cst_21 : f32 to vector<1x128xf32>
    %31 = arith.mulf %26, %30 : vector<1x128xf32>
    %cst_22 = arith.constant 8.68055562E-4 : f32
    %32 = vector.broadcast %cst_22 : f32 to vector<1x128xf32>
    %33 = arith.mulf %27, %32 : vector<1x128xf32>
    %34 = arith.mulf %31, %31 : vector<1x128xf32>
    %35 = arith.subf %33, %34 : vector<1x128xf32>
    %cst_23 = arith.constant 0.000000e+00 : f32
    %36 = vector.broadcast %cst_23 : f32 to vector<1x128xf32>
    %37 = arith.maximumf %35, %36 : vector<1x128xf32>
    %cst_24 = arith.constant 9.99999974E-6 : f32
    %38 = vector.broadcast %cst_24 : f32 to vector<1x128xf32>
    %39 = arith.addf %37, %38 : vector<1x128xf32>
    %40 = math.rsqrt %39 : vector<1x128xf32>
    %41 = arith.mulf %28, %40 : vector<1x128xf32>
    %42 = arith.mulf %31, %41 : vector<1x128xf32>
    %43 = arith.subf %29, %42 : vector<1x128xf32>
    %44 = tpu.iota {dimensions = array<i32: 0>} : vector<16x24xi32>
    %45 = tpu.iota {dimensions = array<i32: 1>} : vector<16x24xi32>
    %c12_i32 = arith.constant 12 : i32
    %46 = vector.broadcast %c12_i32 : i32 to vector<16x24xi32>
    %47 = arith.cmpi slt, %44, %46 : vector<16x24xi32>
    %c2_i32 = arith.constant 2 : i32
    %48 = vector.broadcast %c2_i32 : i32 to vector<16x24xi32>
    %49 = arith.muli %48, %44 : vector<16x24xi32>
    %50 = arith.cmpi eq, %45, %49 : vector<16x24xi32>
    %51 = arith.andi %47, %50 : vector<16x24xi1>
    %52 = arith.extui %51 : vector<16x24xi1> to vector<16x24xi32>
    %53 = arith.sitofp %52 : vector<16x24xi32> to vector<16x24xf32>
    %c12_i32_25 = arith.constant 12 : i32
    %54 = vector.broadcast %c12_i32_25 : i32 to vector<16x24xi32>
    %55 = arith.cmpi slt, %44, %54 : vector<16x24xi32>
    %c2_i32_26 = arith.constant 2 : i32
    %56 = vector.broadcast %c2_i32_26 : i32 to vector<16x24xi32>
    %57 = arith.muli %56, %44 : vector<16x24xi32>
    %c1_i32_27 = arith.constant 1 : i32
    %58 = vector.broadcast %c1_i32_27 : i32 to vector<16x24xi32>
    %59 = arith.addi %57, %58 : vector<16x24xi32>
    %60 = arith.cmpi eq, %45, %59 : vector<16x24xi32>
    %61 = arith.andi %55, %60 : vector<16x24xi1>
    %62 = arith.extui %61 : vector<16x24xi1> to vector<16x24xi32>
    %63 = arith.sitofp %62 : vector<16x24xi32> to vector<16x24xf32>
    %c0_28 = arith.constant 0 : index
    %c0_29 = arith.constant 0 : index
    %64 = vector.load %arg8[%c0_28, %c0_29] : memref<128x128xf32, #tpu.memory_space<vmem>>, vector<128x128xf32>
    %c0_i32_30 = arith.constant 0 : i32
    %c12_i32_31 = arith.constant 12 : i32
    %65 = arith.addi %c0_i32_30, %c12_i32_31 : i32
    %c1_i32_32 = arith.constant 1 : i32
    scf.for %arg22 = %c0_i32_30 to %65 step %c1_i32_32  : i32 {
      %c2_i32_106 = arith.constant 2 : i32
      %198 = arith.muli %c2_i32_106, %arg22 : i32
      %c24_i32_107 = arith.constant 24 : i32
      %199 = arith.muli %198, %c24_i32_107 : i32
      %c0_i32_108 = arith.constant 0 : i32
      %200 = arith.addi %c0_i32_108, %199 : i32
      %201 = arith.index_cast %200 : i32 to index
      %c0_109 = arith.constant 0 : index
      %202 = vector.load %arg18[%201, %c0_109] : memref<1152x128xf32, #tpu.memory_space<vmem>>, vector<24x128xf32>
      %203 = vector.broadcast %41 : vector<1x128xf32> to vector<24x128xf32>
      %204 = arith.mulf %202, %203 : vector<24x128xf32>
      %205 = vector.broadcast %43 : vector<1x128xf32> to vector<24x128xf32>
      %206 = arith.addf %204, %205 : vector<24x128xf32>
      %c2_i32_110 = arith.constant 2 : i32
      %207 = arith.muli %c2_i32_110, %arg22 : i32
      %c1_i32_111 = arith.constant 1 : i32
      %208 = arith.addi %207, %c1_i32_111 : i32
      %c24_i32_112 = arith.constant 24 : i32
      %209 = arith.muli %208, %c24_i32_112 : i32
      %c0_i32_113 = arith.constant 0 : i32
      %210 = arith.addi %c0_i32_113, %209 : i32
      %211 = arith.index_cast %210 : i32 to index
      %c0_114 = arith.constant 0 : index
      %212 = vector.load %arg18[%211, %c0_114] : memref<1152x128xf32, #tpu.memory_space<vmem>>, vector<24x128xf32>
      %213 = vector.broadcast %41 : vector<1x128xf32> to vector<24x128xf32>
      %214 = arith.mulf %212, %213 : vector<24x128xf32>
      %215 = vector.broadcast %43 : vector<1x128xf32> to vector<24x128xf32>
      %216 = arith.addf %214, %215 : vector<24x128xf32>
      %cst_115 = arith.constant dense<0.000000e+00> : vector<24x128xf32>
      %217 = tpu.matmul %206, %64, %cst_115 {dimension_numbers = #tpu.dot_dimension_numbers<[1], [0], [0], [1], [0, 0, 1, 1], [], []>} : vector<24x128xf32>, vector<128x128xf32>, vector<24x128xf32> -> vector<24x128xf32>
      %cst_116 = arith.constant dense<0.000000e+00> : vector<24x128xf32>
      %218 = tpu.matmul %216, %64, %cst_116 {dimension_numbers = #tpu.dot_dimension_numbers<[1], [0], [0], [1], [0, 0, 1, 1], [], []>} : vector<24x128xf32>, vector<128x128xf32>, vector<24x128xf32> -> vector<24x128xf32>
      %219 = arith.maximumf %217, %218 : vector<24x128xf32>
      %cst_117 = arith.constant dense<0.000000e+00> : vector<16x128xf32>
      %220 = tpu.matmul %53, %219, %cst_117 {dimension_numbers = #tpu.dot_dimension_numbers<[1], [0], [0], [1], [0, 0, 1, 1], [], []>} : vector<16x24xf32>, vector<24x128xf32>, vector<16x128xf32> -> vector<16x128xf32>
      %cst_118 = arith.constant dense<0.000000e+00> : vector<16x128xf32>
      %221 = tpu.matmul %63, %219, %cst_118 {dimension_numbers = #tpu.dot_dimension_numbers<[1], [0], [0], [1], [0, 0, 1, 1], [], []>} : vector<16x24xf32>, vector<24x128xf32>, vector<16x128xf32> -> vector<16x128xf32>
      %222 = arith.maximumf %220, %221 : vector<16x128xf32>
      %c16_i32 = arith.constant 16 : i32
      %223 = arith.muli %arg22, %c16_i32 : i32
      %c0_i32_119 = arith.constant 0 : i32
      %224 = arith.addi %c0_i32_119, %223 : i32
      %225 = arith.index_cast %224 : i32 to index
      %c0_120 = arith.constant 0 : index
      %226 = vector.load %arg19[%225, %c0_120] : memref<384x128xf32, #tpu.memory_space<vmem>>, vector<16x128xf32>
      tpu.vector_store %arg19[%225, %c0_120], %222 {strides = array<i32>} : memref<384x128xf32, #tpu.memory_space<vmem>>, vector<16x128xf32>,
    }
    %c12_i32_33 = arith.constant 12 : i32
    %c0_i32_34 = arith.constant 0 : i32
    %c12_i32_35 = arith.constant 12 : i32
    %66 = arith.addi %c0_i32_34, %c12_i32_35 : i32
    %c1_i32_36 = arith.constant 1 : i32
    scf.for %arg22 = %c0_i32_34 to %66 step %c1_i32_36  : i32 {
      %c2_i32_106 = arith.constant 2 : i32
      %198 = arith.muli %c2_i32_106, %arg22 : i32
      %c24_i32_107 = arith.constant 24 : i32
      %199 = arith.muli %198, %c24_i32_107 : i32
      %c576_i32 = arith.constant 576 : i32
      %200 = arith.addi %c576_i32, %199 : i32
      %201 = arith.index_cast %200 : i32 to index
      %c0_108 = arith.constant 0 : index
      %202 = vector.load %arg18[%201, %c0_108] : memref<1152x128xf32, #tpu.memory_space<vmem>>, vector<24x128xf32>
      %203 = vector.broadcast %41 : vector<1x128xf32> to vector<24x128xf32>
      %204 = arith.mulf %202, %203 : vector<24x128xf32>
      %205 = vector.broadcast %43 : vector<1x128xf32> to vector<24x128xf32>
      %206 = arith.addf %204, %205 : vector<24x128xf32>
      %c2_i32_109 = arith.constant 2 : i32
      %207 = arith.muli %c2_i32_109, %arg22 : i32
      %c1_i32_110 = arith.constant 1 : i32
      %208 = arith.addi %207, %c1_i32_110 : i32
      %c24_i32_111 = arith.constant 24 : i32
      %209 = arith.muli %208, %c24_i32_111 : i32
      %c576_i32_112 = arith.constant 576 : i32
      %210 = arith.addi %c576_i32_112, %209 : i32
      %211 = arith.index_cast %210 : i32 to index
      %c0_113 = arith.constant 0 : index
      %212 = vector.load %arg18[%211, %c0_113] : memref<1152x128xf32, #tpu.memory_space<vmem>>, vector<24x128xf32>
      %213 = vector.broadcast %41 : vector<1x128xf32> to vector<24x128xf32>
      %214 = arith.mulf %212, %213 : vector<24x128xf32>
      %215 = vector.broadcast %43 : vector<1x128xf32> to vector<24x128xf32>
      %216 = arith.addf %214, %215 : vector<24x128xf32>
      %cst_114 = arith.constant dense<0.000000e+00> : vector<24x128xf32>
      %217 = tpu.matmul %206, %64, %cst_114 {dimension_numbers = #tpu.dot_dimension_numbers<[1], [0], [0], [1], [0, 0, 1, 1], [], []>} : vector<24x128xf32>, vector<128x128xf32>, vector<24x128xf32> -> vector<24x128xf32>
      %cst_115 = arith.constant dense<0.000000e+00> : vector<24x128xf32>
      %218 = tpu.matmul %216, %64, %cst_115 {dimension_numbers = #tpu.dot_dimension_numbers<[1], [0], [0], [1], [0, 0, 1, 1], [], []>} : vector<24x128xf32>, vector<128x128xf32>, vector<24x128xf32> -> vector<24x128xf32>
      %219 = arith.maximumf %217, %218 : vector<24x128xf32>
      %cst_116 = arith.constant dense<0.000000e+00> : vector<16x128xf32>
      %220 = tpu.matmul %53, %219, %cst_116 {dimension_numbers = #tpu.dot_dimension_numbers<[1], [0], [0], [1], [0, 0, 1, 1], [], []>} : vector<16x24xf32>, vector<24x128xf32>, vector<16x128xf32> -> vector<16x128xf32>
      %cst_117 = arith.constant dense<0.000000e+00> : vector<16x128xf32>
      %221 = tpu.matmul %63, %219, %cst_117 {dimension_numbers = #tpu.dot_dimension_numbers<[1], [0], [0], [1], [0, 0, 1, 1], [], []>} : vector<16x24xf32>, vector<24x128xf32>, vector<16x128xf32> -> vector<16x128xf32>
      %222 = arith.maximumf %220, %221 : vector<16x128xf32>
      %c16_i32 = arith.constant 16 : i32
      %223 = arith.muli %arg22, %c16_i32 : i32
      %c192_i32 = arith.constant 192 : i32
      %224 = arith.addi %c192_i32, %223 : i32
      %225 = arith.index_cast %224 : i32 to index
      %c0_118 = arith.constant 0 : index
      %226 = vector.load %arg19[%225, %c0_118] : memref<384x128xf32, #tpu.memory_space<vmem>>, vector<16x128xf32>
      tpu.vector_store %arg19[%225, %c0_118], %222 {strides = array<i32>} : memref<384x128xf32, #tpu.memory_space<vmem>>, vector<16x128xf32>,
    }
    %c12_i32_37 = arith.constant 12 : i32
    %c0_i32_38 = arith.constant 0 : i32
    %c10_i32 = arith.constant 10 : i32
    %67 = arith.addi %c0_i32_38, %c10_i32 : i32
    %c1_i32_39 = arith.constant 1 : i32
    %68:2 = scf.for %arg22 = %c0_i32_38 to %67 step %c1_i32_39 iter_args(%arg23 = %0, %arg24 = %0) -> (vector<1x128xf32>, vector<1x128xf32>)  : i32 {
      %cst_106 = arith.constant 0.000000e+00 : f32
      %198 = vector.broadcast %cst_106 : f32 to vector<10x128xf32>
      %c0_i32_107 = arith.constant 0 : i32
      %199 = arith.addi %arg22, %c0_i32_107 : i32
      %c16_i32 = arith.constant 16 : i32
      %200 = arith.muli %199, %c16_i32 : i32
      %c0_i32_108 = arith.constant 0 : i32
      %201 = arith.addi %c0_i32_108, %200 : i32
      %c0_i32_109 = arith.constant 0 : i32
      %202 = arith.addi %201, %c0_i32_109 : i32
      %203 = arith.index_cast %202 : i32 to index
      %c0_110 = arith.constant 0 : index
      %204 = vector.load %arg19[%203, %c0_110] : memref<384x128xf32, #tpu.memory_space<vmem>>, vector<10x128xf32>
      %c0_111 = arith.constant 0 : index
      %c0_112 = arith.constant 0 : index
      %c0_113 = arith.constant 0 : index
      %c0_114 = arith.constant 0 : index
      %205 = vector.load %arg9[%c0_111, %c0_112, %c0_113, %c0_114] : memref<3x3x128x128xf32, #tpu.memory_space<vmem>>, vector<1x1x128x128xf32>
      %206 = vector.shape_cast %205 : vector<1x1x128x128xf32> to vector<128x128xf32>
      %cst_115 = arith.constant dense<0.000000e+00> : vector<10x128xf32>
      %207 = tpu.matmul %204, %206, %cst_115 {dimension_numbers = #tpu.dot_dimension_numbers<[1], [0], [0], [1], [0, 0, 1, 1], [], []>} : vector<10x128xf32>, vector<128x128xf32>, vector<10x128xf32> -> vector<10x128xf32>
      %208 = arith.addf %198, %207 : vector<10x128xf32>
      %c0_i32_116 = arith.constant 0 : i32
      %209 = arith.addi %arg22, %c0_i32_116 : i32
      %c16_i32_117 = arith.constant 16 : i32
      %210 = arith.muli %209, %c16_i32_117 : i32
      %c0_i32_118 = arith.constant 0 : i32
      %211 = arith.addi %c0_i32_118, %210 : i32
      %c1_i32_119 = arith.constant 1 : i32
      %212 = arith.addi %211, %c1_i32_119 : i32
      %213 = arith.index_cast %212 : i32 to index
      %c0_120 = arith.constant 0 : index
      %214 = vector.load %arg19[%213, %c0_120] : memref<384x128xf32, #tpu.memory_space<vmem>>, vector<10x128xf32>
      %c0_121 = arith.constant 0 : index
      %c1_122 = arith.constant 1 : index
      %c0_123 = arith.constant 0 : index
      %c0_124 = arith.constant 0 : index
      %215 = vector.load %arg9[%c0_121, %c1_122, %c0_123, %c0_124] : memref<3x3x128x128xf32, #tpu.memory_space<vmem>>, vector<1x1x128x128xf32>
      %216 = vector.shape_cast %215 : vector<1x1x128x128xf32> to vector<128x128xf32>
      %cst_125 = arith.constant dense<0.000000e+00> : vector<10x128xf32>
      %217 = tpu.matmul %214, %216, %cst_125 {dimension_numbers = #tpu.dot_dimension_numbers<[1], [0], [0], [1], [0, 0, 1, 1], [], []>} : vector<10x128xf32>, vector<128x128xf32>, vector<10x128xf32> -> vector<10x128xf32>
      %218 = arith.addf %208, %217 : vector<10x128xf32>
      %c0_i32_126 = arith.constant 0 : i32
      %219 = arith.addi %arg22, %c0_i32_126 : i32
      %c16_i32_127 = arith.constant 16 : i32
      %220 = arith.muli %219, %c16_i32_127 : i32
      %c0_i32_128 = arith.constant 0 : i32
      %221 = arith.addi %c0_i32_128, %220 : i32
      %c2_i32_129 = arith.constant 2 : i32
      %222 = arith.addi %221, %c2_i32_129 : i32
      %223 = arith.index_cast %222 : i32 to index
      %c0_130 = arith.constant 0 : index
      %224 = vector.load %arg19[%223, %c0_130] : memref<384x128xf32, #tpu.memory_space<vmem>>, vector<10x128xf32>
      %c0_131 = arith.constant 0 : index
      %c2 = arith.constant 2 : index
      %c0_132 = arith.constant 0 : index
      %c0_133 = arith.constant 0 : index
      %225 = vector.load %arg9[%c0_131, %c2, %c0_132, %c0_133] : memref<3x3x128x128xf32, #tpu.memory_space<vmem>>, vector<1x1x128x128xf32>
      %226 = vector.shape_cast %225 : vector<1x1x128x128xf32> to vector<128x128xf32>
      %cst_134 = arith.constant dense<0.000000e+00> : vector<10x128xf32>
      %227 = tpu.matmul %224, %226, %cst_134 {dimension_numbers = #tpu.dot_dimension_numbers<[1], [0], [0], [1], [0, 0, 1, 1], [], []>} : vector<10x128xf32>, vector<128x128xf32>, vector<10x128xf32> -> vector<10x128xf32>
      %228 = arith.addf %218, %227 : vector<10x128xf32>
      %c1_i32_135 = arith.constant 1 : i32
      %229 = arith.addi %arg22, %c1_i32_135 : i32
      %c16_i32_136 = arith.constant 16 : i32
      %230 = arith.muli %229, %c16_i32_136 : i32
      %c0_i32_137 = arith.constant 0 : i32
      %231 = arith.addi %c0_i32_137, %230 : i32
      %c0_i32_138 = arith.constant 0 : i32
      %232 = arith.addi %231, %c0_i32_138 : i32
      %233 = arith.index_cast %232 : i32 to index
      %c0_139 = arith.constant 0 : index
      %234 = vector.load %arg19[%233, %c0_139] : memref<384x128xf32, #tpu.memory_space<vmem>>, vector<10x128xf32>
      %c1_140 = arith.constant 1 : index
      %c0_141 = arith.constant 0 : index
      %c0_142 = arith.constant 0 : index
      %c0_143 = arith.constant 0 : index
      %235 = vector.load %arg9[%c1_140, %c0_141, %c0_142, %c0_143] : memref<3x3x128x128xf32, #tpu.memory_space<vmem>>, vector<1x1x128x128xf32>
      %236 = vector.shape_cast %235 : vector<1x1x128x128xf32> to vector<128x128xf32>
      %cst_144 = arith.constant dense<0.000000e+00> : vector<10x128xf32>
      %237 = tpu.matmul %234, %236, %cst_144 {dimension_numbers = #tpu.dot_dimension_numbers<[1], [0], [0], [1], [0, 0, 1, 1], [], []>} : vector<10x128xf32>, vector<128x128xf32>, vector<10x128xf32> -> vector<10x128xf32>
      %238 = arith.addf %228, %237 : vector<10x128xf32>
      %c1_i32_145 = arith.constant 1 : i32
      %239 = arith.addi %arg22, %c1_i32_145 : i32
      %c16_i32_146 = arith.constant 16 : i32
      %240 = arith.muli %239, %c16_i32_146 : i32
      %c0_i32_147 = arith.constant 0 : i32
      %241 = arith.addi %c0_i32_147, %240 : i32
      %c1_i32_148 = arith.constant 1 : i32
      %242 = arith.addi %241, %c1_i32_148 : i32
      %243 = arith.index_cast %242 : i32 to index
      %c0_149 = arith.constant 0 : index
      %244 = vector.load %arg19[%243, %c0_149] : memref<384x128xf32, #tpu.memory_space<vmem>>, vector<10x128xf32>
      %c1_150 = arith.constant 1 : index
      %c1_151 = arith.constant 1 : index
      %c0_152 = arith.constant 0 : index
      %c0_153 = arith.constant 0 : index
      %245 = vector.load %arg9[%c1_150, %c1_151, %c0_152, %c0_153] : memref<3x3x128x128xf32, #tpu.memory_space<vmem>>, vector<1x1x128x128xf32>
      %246 = vector.shape_cast %245 : vector<1x1x128x128xf32> to vector<128x128xf32>
      %cst_154 = arith.constant dense<0.000000e+00> : vector<10x128xf32>
      %247 = tpu.matmul %244, %246, %cst_154 {dimension_numbers = #tpu.dot_dimension_numbers<[1], [0], [0], [1], [0, 0, 1, 1], [], []>} : vector<10x128xf32>, vector<128x128xf32>, vector<10x128xf32> -> vector<10x128xf32>
      %248 = arith.addf %238, %247 : vector<10x128xf32>
      %c1_i32_155 = arith.constant 1 : i32
      %249 = arith.addi %arg22, %c1_i32_155 : i32
      %c16_i32_156 = arith.constant 16 : i32
      %250 = arith.muli %249, %c16_i32_156 : i32
      %c0_i32_157 = arith.constant 0 : i32
      %251 = arith.addi %c0_i32_157, %250 : i32
      %c2_i32_158 = arith.constant 2 : i32
      %252 = arith.addi %251, %c2_i32_158 : i32
      %253 = arith.index_cast %252 : i32 to index
      %c0_159 = arith.constant 0 : index
      %254 = vector.load %arg19[%253, %c0_159] : memref<384x128xf32, #tpu.memory_space<vmem>>, vector<10x128xf32>
      %c1_160 = arith.constant 1 : index
      %c2_161 = arith.constant 2 : index
      %c0_162 = arith.constant 0 : index
      %c0_163 = arith.constant 0 : index
      %255 = vector.load %arg9[%c1_160, %c2_161, %c0_162, %c0_163] : memref<3x3x128x128xf32, #tpu.memory_space<vmem>>, vector<1x1x128x128xf32>
      %256 = vector.shape_cast %255 : vector<1x1x128x128xf32> to vector<128x128xf32>
      %cst_164 = arith.constant dense<0.000000e+00> : vector<10x128xf32>
      %257 = tpu.matmul %254, %256, %cst_164 {dimension_numbers = #tpu.dot_dimension_numbers<[1], [0], [0], [1], [0, 0, 1, 1], [], []>} : vector<10x128xf32>, vector<128x128xf32>, vector<10x128xf32> -> vector<10x128xf32>
      %258 = arith.addf %248, %257 : vector<10x128xf32>
      %c2_i32_165 = arith.constant 2 : i32
      %259 = arith.addi %arg22, %c2_i32_165 : i32
      %c16_i32_166 = arith.constant 16 : i32
      %260 = arith.muli %259, %c16_i32_166 : i32
      %c0_i32_167 = arith.constant 0 : i32
      %261 = arith.addi %c0_i32_167, %260 : i32
      %c0_i32_168 = arith.constant 0 : i32
      %262 = arith.addi %261, %c0_i32_168 : i32
      %263 = arith.index_cast %262 : i32 to index
      %c0_169 = arith.constant 0 : index
      %264 = vector.load %arg19[%263, %c0_169] : memref<384x128xf32, #tpu.memory_space<vmem>>, vector<10x128xf32>
      %c2_170 = arith.constant 2 : index
      %c0_171 = arith.constant 0 : index
      %c0_172 = arith.constant 0 : index
      %c0_173 = arith.constant 0 : index
      %265 = vector.load %arg9[%c2_170, %c0_171, %c0_172, %c0_173] : memref<3x3x128x128xf32, #tpu.memory_space<vmem>>, vector<1x1x128x128xf32>
      %266 = vector.shape_cast %265 : vector<1x1x128x128xf32> to vector<128x128xf32>
      %cst_174 = arith.constant dense<0.000000e+00> : vector<10x128xf32>
      %267 = tpu.matmul %264, %266, %cst_174 {dimension_numbers = #tpu.dot_dimension_numbers<[1], [0], [0], [1], [0, 0, 1, 1], [], []>} : vector<10x128xf32>, vector<128x128xf32>, vector<10x128xf32> -> vector<10x128xf32>
      %268 = arith.addf %258, %267 : vector<10x128xf32>
      %c2_i32_175 = arith.constant 2 : i32
      %269 = arith.addi %arg22, %c2_i32_175 : i32
      %c16_i32_176 = arith.constant 16 : i32
      %270 = arith.muli %269, %c16_i32_176 : i32
      %c0_i32_177 = arith.constant 0 : i32
      %271 = arith.addi %c0_i32_177, %270 : i32
      %c1_i32_178 = arith.constant 1 : i32
      %272 = arith.addi %271, %c1_i32_178 : i32
      %273 = arith.index_cast %272 : i32 to index
      %c0_179 = arith.constant 0 : index
      %274 = vector.load %arg19[%273, %c0_179] : memref<384x128xf32, #tpu.memory_space<vmem>>, vector<10x128xf32>
      %c2_180 = arith.constant 2 : index
      %c1_181 = arith.constant 1 : index
      %c0_182 = arith.constant 0 : index
      %c0_183 = arith.constant 0 : index
      %275 = vector.load %arg9[%c2_180, %c1_181, %c0_182, %c0_183] : memref<3x3x128x128xf32, #tpu.memory_space<vmem>>, vector<1x1x128x128xf32>
      %276 = vector.shape_cast %275 : vector<1x1x128x128xf32> to vector<128x128xf32>
      %cst_184 = arith.constant dense<0.000000e+00> : vector<10x128xf32>
      %277 = tpu.matmul %274, %276, %cst_184 {dimension_numbers = #tpu.dot_dimension_numbers<[1], [0], [0], [1], [0, 0, 1, 1], [], []>} : vector<10x128xf32>, vector<128x128xf32>, vector<10x128xf32> -> vector<10x128xf32>
      %278 = arith.addf %268, %277 : vector<10x128xf32>
      %c2_i32_185 = arith.constant 2 : i32
      %279 = arith.addi %arg22, %c2_i32_185 : i32
      %c16_i32_186 = arith.constant 16 : i32
      %280 = arith.muli %279, %c16_i32_186 : i32
      %c0_i32_187 = arith.constant 0 : i32
      %281 = arith.addi %c0_i32_187, %280 : i32
      %c2_i32_188 = arith.constant 2 : i32
      %282 = arith.addi %281, %c2_i32_188 : i32
      %283 = arith.index_cast %282 : i32 to index
      %c0_189 = arith.constant 0 : index
      %284 = vector.load %arg19[%283, %c0_189] : memref<384x128xf32, #tpu.memory_space<vmem>>, vector<10x128xf32>
      %c2_190 = arith.constant 2 : index
      %c2_191 = arith.constant 2 : index
      %c0_192 = arith.constant 0 : index
      %c0_193 = arith.constant 0 : index
      %285 = vector.load %arg9[%c2_190, %c2_191, %c0_192, %c0_193] : memref<3x3x128x128xf32, #tpu.memory_space<vmem>>, vector<1x1x128x128xf32>
      %286 = vector.shape_cast %285 : vector<1x1x128x128xf32> to vector<128x128xf32>
      %cst_194 = arith.constant dense<0.000000e+00> : vector<10x128xf32>
      %287 = tpu.matmul %284, %286, %cst_194 {dimension_numbers = #tpu.dot_dimension_numbers<[1], [0], [0], [1], [0, 0, 1, 1], [], []>} : vector<10x128xf32>, vector<128x128xf32>, vector<10x128xf32> -> vector<10x128xf32>
      %288 = arith.addf %278, %287 : vector<10x128xf32>
      %cst_195 = arith.constant 0.000000e+00 : f32
      %289 = vector.broadcast %cst_195 : f32 to vector<10x128xf32>
      %290 = arith.maximumf %288, %289 : vector<10x128xf32>
      %c16_i32_196 = arith.constant 16 : i32
      %291 = arith.muli %arg22, %c16_i32_196 : i32
      %c0_i32_197 = arith.constant 0 : i32
      %292 = arith.addi %c0_i32_197, %291 : i32
      %293 = arith.index_cast %292 : i32 to index
      %c0_198 = arith.constant 0 : index
      %294 = vector.load %arg20[%293, %c0_198] : memref<320x128xf32, #tpu.memory_space<vmem>>, vector<10x128xf32>
      tpu.vector_store %arg20[%293, %c0_198], %290 {strides = array<i32>} : memref<320x128xf32, #tpu.memory_space<vmem>>, vector<10x128xf32>,
      %cst_199 = arith.constant dense<0.000000e+00> : vector<128xf32>
      %295 = vector.multi_reduction <add>, %290, %cst_199 [0] : vector<10x128xf32> to vector<128xf32>
      %296 = vector.shape_cast %295 : vector<128xf32> to vector<1x128xf32>
      %297 = arith.addf %arg23, %296 : vector<1x128xf32>
      %298 = arith.mulf %290, %290 : vector<10x128xf32>
      %cst_200 = arith.constant dense<0.000000e+00> : vector<128xf32>
      %299 = vector.multi_reduction <add>, %298, %cst_200 [0] : vector<10x128xf32> to vector<128xf32>
      %300 = vector.shape_cast %299 : vector<128xf32> to vector<1x128xf32>
      %301 = arith.addf %arg24, %300 : vector<1x128xf32>
      scf.yield %297, %301 : vector<1x128xf32>, vector<1x128xf32>
    }
    %c10_i32_40 = arith.constant 10 : i32
    %69 = arith.addf %0, %68#0 : vector<1x128xf32>
    %70 = arith.addf %0, %68#1 : vector<1x128xf32>
    %c0_i32_41 = arith.constant 0 : i32
    %c10_i32_42 = arith.constant 10 : i32
    %71 = arith.addi %c0_i32_41, %c10_i32_42 : i32
    %c1_i32_43 = arith.constant 1 : i32
    %72:2 = scf.for %arg22 = %c0_i32_41 to %71 step %c1_i32_43 iter_args(%arg23 = %0, %arg24 = %0) -> (vector<1x128xf32>, vector<1x128xf32>)  : i32 {
      %cst_106 = arith.constant 0.000000e+00 : f32
      %198 = vector.broadcast %cst_106 : f32 to vector<10x128xf32>
      %c0_i32_107 = arith.constant 0 : i32
      %199 = arith.addi %arg22, %c0_i32_107 : i32
      %c16_i32 = arith.constant 16 : i32
      %200 = arith.muli %199, %c16_i32 : i32
      %c192_i32 = arith.constant 192 : i32
      %201 = arith.addi %c192_i32, %200 : i32
      %c0_i32_108 = arith.constant 0 : i32
      %202 = arith.addi %201, %c0_i32_108 : i32
      %203 = arith.index_cast %202 : i32 to index
      %c0_109 = arith.constant 0 : index
      %204 = vector.load %arg19[%203, %c0_109] : memref<384x128xf32, #tpu.memory_space<vmem>>, vector<10x128xf32>
      %c0_110 = arith.constant 0 : index
      %c0_111 = arith.constant 0 : index
      %c0_112 = arith.constant 0 : index
      %c0_113 = arith.constant 0 : index
      %205 = vector.load %arg9[%c0_110, %c0_111, %c0_112, %c0_113] : memref<3x3x128x128xf32, #tpu.memory_space<vmem>>, vector<1x1x128x128xf32>
      %206 = vector.shape_cast %205 : vector<1x1x128x128xf32> to vector<128x128xf32>
      %cst_114 = arith.constant dense<0.000000e+00> : vector<10x128xf32>
      %207 = tpu.matmul %204, %206, %cst_114 {dimension_numbers = #tpu.dot_dimension_numbers<[1], [0], [0], [1], [0, 0, 1, 1], [], []>} : vector<10x128xf32>, vector<128x128xf32>, vector<10x128xf32> -> vector<10x128xf32>
      %208 = arith.addf %198, %207 : vector<10x128xf32>
      %c0_i32_115 = arith.constant 0 : i32
      %209 = arith.addi %arg22, %c0_i32_115 : i32
      %c16_i32_116 = arith.constant 16 : i32
      %210 = arith.muli %209, %c16_i32_116 : i32
      %c192_i32_117 = arith.constant 192 : i32
      %211 = arith.addi %c192_i32_117, %210 : i32
      %c1_i32_118 = arith.constant 1 : i32
      %212 = arith.addi %211, %c1_i32_118 : i32
      %213 = arith.index_cast %212 : i32 to index
      %c0_119 = arith.constant 0 : index
      %214 = vector.load %arg19[%213, %c0_119] : memref<384x128xf32, #tpu.memory_space<vmem>>, vector<10x128xf32>
      %c0_120 = arith.constant 0 : index
      %c1_121 = arith.constant 1 : index
      %c0_122 = arith.constant 0 : index
      %c0_123 = arith.constant 0 : index
      %215 = vector.load %arg9[%c0_120, %c1_121, %c0_122, %c0_123] : memref<3x3x128x128xf32, #tpu.memory_space<vmem>>, vector<1x1x128x128xf32>
      %216 = vector.shape_cast %215 : vector<1x1x128x128xf32> to vector<128x128xf32>
      %cst_124 = arith.constant dense<0.000000e+00> : vector<10x128xf32>
      %217 = tpu.matmul %214, %216, %cst_124 {dimension_numbers = #tpu.dot_dimension_numbers<[1], [0], [0], [1], [0, 0, 1, 1], [], []>} : vector<10x128xf32>, vector<128x128xf32>, vector<10x128xf32> -> vector<10x128xf32>
      %218 = arith.addf %208, %217 : vector<10x128xf32>
      %c0_i32_125 = arith.constant 0 : i32
      %219 = arith.addi %arg22, %c0_i32_125 : i32
      %c16_i32_126 = arith.constant 16 : i32
      %220 = arith.muli %219, %c16_i32_126 : i32
      %c192_i32_127 = arith.constant 192 : i32
      %221 = arith.addi %c192_i32_127, %220 : i32
      %c2_i32_128 = arith.constant 2 : i32
      %222 = arith.addi %221, %c2_i32_128 : i32
      %223 = arith.index_cast %222 : i32 to index
      %c0_129 = arith.constant 0 : index
      %224 = vector.load %arg19[%223, %c0_129] : memref<384x128xf32, #tpu.memory_space<vmem>>, vector<10x128xf32>
      %c0_130 = arith.constant 0 : index
      %c2 = arith.constant 2 : index
      %c0_131 = arith.constant 0 : index
      %c0_132 = arith.constant 0 : index
      %225 = vector.load %arg9[%c0_130, %c2, %c0_131, %c0_132] : memref<3x3x128x128xf32, #tpu.memory_space<vmem>>, vector<1x1x128x128xf32>
      %226 = vector.shape_cast %225 : vector<1x1x128x128xf32> to vector<128x128xf32>
      %cst_133 = arith.constant dense<0.000000e+00> : vector<10x128xf32>
      %227 = tpu.matmul %224, %226, %cst_133 {dimension_numbers = #tpu.dot_dimension_numbers<[1], [0], [0], [1], [0, 0, 1, 1], [], []>} : vector<10x128xf32>, vector<128x128xf32>, vector<10x128xf32> -> vector<10x128xf32>
      %228 = arith.addf %218, %227 : vector<10x128xf32>
      %c1_i32_134 = arith.constant 1 : i32
      %229 = arith.addi %arg22, %c1_i32_134 : i32
      %c16_i32_135 = arith.constant 16 : i32
      %230 = arith.muli %229, %c16_i32_135 : i32
      %c192_i32_136 = arith.constant 192 : i32
      %231 = arith.addi %c192_i32_136, %230 : i32
      %c0_i32_137 = arith.constant 0 : i32
      %232 = arith.addi %231, %c0_i32_137 : i32
      %233 = arith.index_cast %232 : i32 to index
      %c0_138 = arith.constant 0 : index
      %234 = vector.load %arg19[%233, %c0_138] : memref<384x128xf32, #tpu.memory_space<vmem>>, vector<10x128xf32>
      %c1_139 = arith.constant 1 : index
      %c0_140 = arith.constant 0 : index
      %c0_141 = arith.constant 0 : index
      %c0_142 = arith.constant 0 : index
      %235 = vector.load %arg9[%c1_139, %c0_140, %c0_141, %c0_142] : memref<3x3x128x128xf32, #tpu.memory_space<vmem>>, vector<1x1x128x128xf32>
      %236 = vector.shape_cast %235 : vector<1x1x128x128xf32> to vector<128x128xf32>
      %cst_143 = arith.constant dense<0.000000e+00> : vector<10x128xf32>
      %237 = tpu.matmul %234, %236, %cst_143 {dimension_numbers = #tpu.dot_dimension_numbers<[1], [0], [0], [1], [0, 0, 1, 1], [], []>} : vector<10x128xf32>, vector<128x128xf32>, vector<10x128xf32> -> vector<10x128xf32>
      %238 = arith.addf %228, %237 : vector<10x128xf32>
      %c1_i32_144 = arith.constant 1 : i32
      %239 = arith.addi %arg22, %c1_i32_144 : i32
      %c16_i32_145 = arith.constant 16 : i32
      %240 = arith.muli %239, %c16_i32_145 : i32
      %c192_i32_146 = arith.constant 192 : i32
      %241 = arith.addi %c192_i32_146, %240 : i32
      %c1_i32_147 = arith.constant 1 : i32
      %242 = arith.addi %241, %c1_i32_147 : i32
      %243 = arith.index_cast %242 : i32 to index
      %c0_148 = arith.constant 0 : index
      %244 = vector.load %arg19[%243, %c0_148] : memref<384x128xf32, #tpu.memory_space<vmem>>, vector<10x128xf32>
      %c1_149 = arith.constant 1 : index
      %c1_150 = arith.constant 1 : index
      %c0_151 = arith.constant 0 : index
      %c0_152 = arith.constant 0 : index
      %245 = vector.load %arg9[%c1_149, %c1_150, %c0_151, %c0_152] : memref<3x3x128x128xf32, #tpu.memory_space<vmem>>, vector<1x1x128x128xf32>
      %246 = vector.shape_cast %245 : vector<1x1x128x128xf32> to vector<128x128xf32>
      %cst_153 = arith.constant dense<0.000000e+00> : vector<10x128xf32>
      %247 = tpu.matmul %244, %246, %cst_153 {dimension_numbers = #tpu.dot_dimension_numbers<[1], [0], [0], [1], [0, 0, 1, 1], [], []>} : vector<10x128xf32>, vector<128x128xf32>, vector<10x128xf32> -> vector<10x128xf32>
      %248 = arith.addf %238, %247 : vector<10x128xf32>
      %c1_i32_154 = arith.constant 1 : i32
      %249 = arith.addi %arg22, %c1_i32_154 : i32
      %c16_i32_155 = arith.constant 16 : i32
      %250 = arith.muli %249, %c16_i32_155 : i32
      %c192_i32_156 = arith.constant 192 : i32
      %251 = arith.addi %c192_i32_156, %250 : i32
      %c2_i32_157 = arith.constant 2 : i32
      %252 = arith.addi %251, %c2_i32_157 : i32
      %253 = arith.index_cast %252 : i32 to index
      %c0_158 = arith.constant 0 : index
      %254 = vector.load %arg19[%253, %c0_158] : memref<384x128xf32, #tpu.memory_space<vmem>>, vector<10x128xf32>
      %c1_159 = arith.constant 1 : index
      %c2_160 = arith.constant 2 : index
      %c0_161 = arith.constant 0 : index
      %c0_162 = arith.constant 0 : index
      %255 = vector.load %arg9[%c1_159, %c2_160, %c0_161, %c0_162] : memref<3x3x128x128xf32, #tpu.memory_space<vmem>>, vector<1x1x128x128xf32>
      %256 = vector.shape_cast %255 : vector<1x1x128x128xf32> to vector<128x128xf32>
      %cst_163 = arith.constant dense<0.000000e+00> : vector<10x128xf32>
      %257 = tpu.matmul %254, %256, %cst_163 {dimension_numbers = #tpu.dot_dimension_numbers<[1], [0], [0], [1], [0, 0, 1, 1], [], []>} : vector<10x128xf32>, vector<128x128xf32>, vector<10x128xf32> -> vector<10x128xf32>
      %258 = arith.addf %248, %257 : vector<10x128xf32>
      %c2_i32_164 = arith.constant 2 : i32
      %259 = arith.addi %arg22, %c2_i32_164 : i32
      %c16_i32_165 = arith.constant 16 : i32
      %260 = arith.muli %259, %c16_i32_165 : i32
      %c192_i32_166 = arith.constant 192 : i32
      %261 = arith.addi %c192_i32_166, %260 : i32
      %c0_i32_167 = arith.constant 0 : i32
      %262 = arith.addi %261, %c0_i32_167 : i32
      %263 = arith.index_cast %262 : i32 to index
      %c0_168 = arith.constant 0 : index
      %264 = vector.load %arg19[%263, %c0_168] : memref<384x128xf32, #tpu.memory_space<vmem>>, vector<10x128xf32>
      %c2_169 = arith.constant 2 : index
      %c0_170 = arith.constant 0 : index
      %c0_171 = arith.constant 0 : index
      %c0_172 = arith.constant 0 : index
      %265 = vector.load %arg9[%c2_169, %c0_170, %c0_171, %c0_172] : memref<3x3x128x128xf32, #tpu.memory_space<vmem>>, vector<1x1x128x128xf32>
      %266 = vector.shape_cast %265 : vector<1x1x128x128xf32> to vector<128x128xf32>
      %cst_173 = arith.constant dense<0.000000e+00> : vector<10x128xf32>
      %267 = tpu.matmul %264, %266, %cst_173 {dimension_numbers = #tpu.dot_dimension_numbers<[1], [0], [0], [1], [0, 0, 1, 1], [], []>} : vector<10x128xf32>, vector<128x128xf32>, vector<10x128xf32> -> vector<10x128xf32>
      %268 = arith.addf %258, %267 : vector<10x128xf32>
      %c2_i32_174 = arith.constant 2 : i32
      %269 = arith.addi %arg22, %c2_i32_174 : i32
      %c16_i32_175 = arith.constant 16 : i32
      %270 = arith.muli %269, %c16_i32_175 : i32
      %c192_i32_176 = arith.constant 192 : i32
      %271 = arith.addi %c192_i32_176, %270 : i32
      %c1_i32_177 = arith.constant 1 : i32
      %272 = arith.addi %271, %c1_i32_177 : i32
      %273 = arith.index_cast %272 : i32 to index
      %c0_178 = arith.constant 0 : index
      %274 = vector.load %arg19[%273, %c0_178] : memref<384x128xf32, #tpu.memory_space<vmem>>, vector<10x128xf32>
      %c2_179 = arith.constant 2 : index
      %c1_180 = arith.constant 1 : index
      %c0_181 = arith.constant 0 : index
      %c0_182 = arith.constant 0 : index
      %275 = vector.load %arg9[%c2_179, %c1_180, %c0_181, %c0_182] : memref<3x3x128x128xf32, #tpu.memory_space<vmem>>, vector<1x1x128x128xf32>
      %276 = vector.shape_cast %275 : vector<1x1x128x128xf32> to vector<128x128xf32>
      %cst_183 = arith.constant dense<0.000000e+00> : vector<10x128xf32>
      %277 = tpu.matmul %274, %276, %cst_183 {dimension_numbers = #tpu.dot_dimension_numbers<[1], [0], [0], [1], [0, 0, 1, 1], [], []>} : vector<10x128xf32>, vector<128x128xf32>, vector<10x128xf32> -> vector<10x128xf32>
      %278 = arith.addf %268, %277 : vector<10x128xf32>
      %c2_i32_184 = arith.constant 2 : i32
      %279 = arith.addi %arg22, %c2_i32_184 : i32
      %c16_i32_185 = arith.constant 16 : i32
      %280 = arith.muli %279, %c16_i32_185 : i32
      %c192_i32_186 = arith.constant 192 : i32
      %281 = arith.addi %c192_i32_186, %280 : i32
      %c2_i32_187 = arith.constant 2 : i32
      %282 = arith.addi %281, %c2_i32_187 : i32
      %283 = arith.index_cast %282 : i32 to index
      %c0_188 = arith.constant 0 : index
      %284 = vector.load %arg19[%283, %c0_188] : memref<384x128xf32, #tpu.memory_space<vmem>>, vector<10x128xf32>
      %c2_189 = arith.constant 2 : index
      %c2_190 = arith.constant 2 : index
      %c0_191 = arith.constant 0 : index
      %c0_192 = arith.constant 0 : index
      %285 = vector.load %arg9[%c2_189, %c2_190, %c0_191, %c0_192] : memref<3x3x128x128xf32, #tpu.memory_space<vmem>>, vector<1x1x128x128xf32>
      %286 = vector.shape_cast %285 : vector<1x1x128x128xf32> to vector<128x128xf32>
      %cst_193 = arith.constant dense<0.000000e+00> : vector<10x128xf32>
      %287 = tpu.matmul %284, %286, %cst_193 {dimension_numbers = #tpu.dot_dimension_numbers<[1], [0], [0], [1], [0, 0, 1, 1], [], []>} : vector<10x128xf32>, vector<128x128xf32>, vector<10x128xf32> -> vector<10x128xf32>
      %288 = arith.addf %278, %287 : vector<10x128xf32>
      %cst_194 = arith.constant 0.000000e+00 : f32
      %289 = vector.broadcast %cst_194 : f32 to vector<10x128xf32>
      %290 = arith.maximumf %288, %289 : vector<10x128xf32>
      %c16_i32_195 = arith.constant 16 : i32
      %291 = arith.muli %arg22, %c16_i32_195 : i32
      %c160_i32 = arith.constant 160 : i32
      %292 = arith.addi %c160_i32, %291 : i32
      %293 = arith.index_cast %292 : i32 to index
      %c0_196 = arith.constant 0 : index
      %294 = vector.load %arg20[%293, %c0_196] : memref<320x128xf32, #tpu.memory_space<vmem>>, vector<10x128xf32>
      tpu.vector_store %arg20[%293, %c0_196], %290 {strides = array<i32>} : memref<320x128xf32, #tpu.memory_space<vmem>>, vector<10x128xf32>,
      %cst_197 = arith.constant dense<0.000000e+00> : vector<128xf32>
      %295 = vector.multi_reduction <add>, %290, %cst_197 [0] : vector<10x128xf32> to vector<128xf32>
      %296 = vector.shape_cast %295 : vector<128xf32> to vector<1x128xf32>
      %297 = arith.addf %arg23, %296 : vector<1x128xf32>
      %298 = arith.mulf %290, %290 : vector<10x128xf32>
      %cst_198 = arith.constant dense<0.000000e+00> : vector<128xf32>
      %299 = vector.multi_reduction <add>, %298, %cst_198 [0] : vector<10x128xf32> to vector<128xf32>
      %300 = vector.shape_cast %299 : vector<128xf32> to vector<1x128xf32>
      %301 = arith.addf %arg24, %300 : vector<1x128xf32>
      scf.yield %297, %301 : vector<1x128xf32>, vector<1x128xf32>
    }
    %c10_i32_44 = arith.constant 10 : i32
    %73 = arith.addf %69, %72#0 : vector<1x128xf32>
    %74 = arith.addf %70, %72#1 : vector<1x128xf32>
    %c0_45 = arith.constant 0 : index
    %c0_46 = arith.constant 0 : index
    %75 = vector.load %arg10[%c0_45, %c0_46] : memref<1x128xf32, #tpu.memory_space<vmem>>, vector<1x128xf32>
    %c0_47 = arith.constant 0 : index
    %c0_48 = arith.constant 0 : index
    %76 = vector.load %arg11[%c0_47, %c0_48] : memref<1x128xf32, #tpu.memory_space<vmem>>, vector<1x128xf32>
    %cst_49 = arith.constant 5.000000e-03 : f32
    %77 = vector.broadcast %cst_49 : f32 to vector<1x128xf32>
    %78 = arith.mulf %73, %77 : vector<1x128xf32>
    %cst_50 = arith.constant 5.000000e-03 : f32
    %79 = vector.broadcast %cst_50 : f32 to vector<1x128xf32>
    %80 = arith.mulf %74, %79 : vector<1x128xf32>
    %81 = arith.mulf %78, %78 : vector<1x128xf32>
    %82 = arith.subf %80, %81 : vector<1x128xf32>
    %cst_51 = arith.constant 0.000000e+00 : f32
    %83 = vector.broadcast %cst_51 : f32 to vector<1x128xf32>
    %84 = arith.maximumf %82, %83 : vector<1x128xf32>
    %cst_52 = arith.constant 9.99999974E-6 : f32
    %85 = vector.broadcast %cst_52 : f32 to vector<1x128xf32>
    %86 = arith.addf %84, %85 : vector<1x128xf32>
    %87 = math.rsqrt %86 : vector<1x128xf32>
    %88 = arith.mulf %75, %87 : vector<1x128xf32>
    %89 = arith.mulf %78, %88 : vector<1x128xf32>
    %90 = arith.subf %76, %89 : vector<1x128xf32>
    %c0_i32_53 = arith.constant 0 : i32
    %c8_i32 = arith.constant 8 : i32
    %91 = arith.addi %c0_i32_53, %c8_i32 : i32
    %c1_i32_54 = arith.constant 1 : i32
    %92:2 = scf.for %arg22 = %c0_i32_53 to %91 step %c1_i32_54 iter_args(%arg23 = %0, %arg24 = %0) -> (vector<1x128xf32>, vector<1x128xf32>)  : i32 {
      %cst_106 = arith.constant 0.000000e+00 : f32
      %198 = vector.broadcast %cst_106 : f32 to vector<8x128xf32>
      %c0_i32_107 = arith.constant 0 : i32
      %199 = arith.addi %arg22, %c0_i32_107 : i32
      %c16_i32 = arith.constant 16 : i32
      %200 = arith.muli %199, %c16_i32 : i32
      %c0_i32_108 = arith.constant 0 : i32
      %201 = arith.addi %c0_i32_108, %200 : i32
      %c0_i32_109 = arith.constant 0 : i32
      %202 = arith.addi %201, %c0_i32_109 : i32
      %203 = arith.index_cast %202 : i32 to index
      %c0_110 = arith.constant 0 : index
      %204 = vector.load %arg20[%203, %c0_110] : memref<320x128xf32, #tpu.memory_space<vmem>>, vector<8x128xf32>
      %205 = vector.broadcast %88 : vector<1x128xf32> to vector<8x128xf32>
      %206 = arith.mulf %204, %205 : vector<8x128xf32>
      %207 = vector.broadcast %90 : vector<1x128xf32> to vector<8x128xf32>
      %208 = arith.addf %206, %207 : vector<8x128xf32>
      %c0_111 = arith.constant 0 : index
      %c0_112 = arith.constant 0 : index
      %c0_113 = arith.constant 0 : index
      %c0_114 = arith.constant 0 : index
      %209 = vector.load %arg12[%c0_111, %c0_112, %c0_113, %c0_114] : memref<3x3x128x128xf32, #tpu.memory_space<vmem>>, vector<1x1x128x128xf32>
      %210 = vector.shape_cast %209 : vector<1x1x128x128xf32> to vector<128x128xf32>
      %cst_115 = arith.constant dense<0.000000e+00> : vector<8x128xf32>
      %211 = tpu.matmul %208, %210, %cst_115 {dimension_numbers = #tpu.dot_dimension_numbers<[1], [0], [0], [1], [0, 0, 1, 1], [], []>} : vector<8x128xf32>, vector<128x128xf32>, vector<8x128xf32> -> vector<8x128xf32>
      %212 = arith.addf %198, %211 : vector<8x128xf32>
      %c0_i32_116 = arith.constant 0 : i32
      %213 = arith.addi %arg22, %c0_i32_116 : i32
      %c16_i32_117 = arith.constant 16 : i32
      %214 = arith.muli %213, %c16_i32_117 : i32
      %c0_i32_118 = arith.constant 0 : i32
      %215 = arith.addi %c0_i32_118, %214 : i32
      %c1_i32_119 = arith.constant 1 : i32
      %216 = arith.addi %215, %c1_i32_119 : i32
      %217 = arith.index_cast %216 : i32 to index
      %c0_120 = arith.constant 0 : index
      %218 = vector.load %arg20[%217, %c0_120] : memref<320x128xf32, #tpu.memory_space<vmem>>, vector<8x128xf32>
      %219 = vector.broadcast %88 : vector<1x128xf32> to vector<8x128xf32>
      %220 = arith.mulf %218, %219 : vector<8x128xf32>
      %221 = vector.broadcast %90 : vector<1x128xf32> to vector<8x128xf32>
      %222 = arith.addf %220, %221 : vector<8x128xf32>
      %c0_121 = arith.constant 0 : index
      %c1_122 = arith.constant 1 : index
      %c0_123 = arith.constant 0 : index
      %c0_124 = arith.constant 0 : index
      %223 = vector.load %arg12[%c0_121, %c1_122, %c0_123, %c0_124] : memref<3x3x128x128xf32, #tpu.memory_space<vmem>>, vector<1x1x128x128xf32>
      %224 = vector.shape_cast %223 : vector<1x1x128x128xf32> to vector<128x128xf32>
      %cst_125 = arith.constant dense<0.000000e+00> : vector<8x128xf32>
      %225 = tpu.matmul %222, %224, %cst_125 {dimension_numbers = #tpu.dot_dimension_numbers<[1], [0], [0], [1], [0, 0, 1, 1], [], []>} : vector<8x128xf32>, vector<128x128xf32>, vector<8x128xf32> -> vector<8x128xf32>
      %226 = arith.addf %212, %225 : vector<8x128xf32>
      %c0_i32_126 = arith.constant 0 : i32
      %227 = arith.addi %arg22, %c0_i32_126 : i32
      %c16_i32_127 = arith.constant 16 : i32
      %228 = arith.muli %227, %c16_i32_127 : i32
      %c0_i32_128 = arith.constant 0 : i32
      %229 = arith.addi %c0_i32_128, %228 : i32
      %c2_i32_129 = arith.constant 2 : i32
      %230 = arith.addi %229, %c2_i32_129 : i32
      %231 = arith.index_cast %230 : i32 to index
      %c0_130 = arith.constant 0 : index
      %232 = vector.load %arg20[%231, %c0_130] : memref<320x128xf32, #tpu.memory_space<vmem>>, vector<8x128xf32>
      %233 = vector.broadcast %88 : vector<1x128xf32> to vector<8x128xf32>
      %234 = arith.mulf %232, %233 : vector<8x128xf32>
      %235 = vector.broadcast %90 : vector<1x128xf32> to vector<8x128xf32>
      %236 = arith.addf %234, %235 : vector<8x128xf32>
      %c0_131 = arith.constant 0 : index
      %c2 = arith.constant 2 : index
      %c0_132 = arith.constant 0 : index
      %c0_133 = arith.constant 0 : index
      %237 = vector.load %arg12[%c0_131, %c2, %c0_132, %c0_133] : memref<3x3x128x128xf32, #tpu.memory_space<vmem>>, vector<1x1x128x128xf32>
      %238 = vector.shape_cast %237 : vector<1x1x128x128xf32> to vector<128x128xf32>
      %cst_134 = arith.constant dense<0.000000e+00> : vector<8x128xf32>
      %239 = tpu.matmul %236, %238, %cst_134 {dimension_numbers = #tpu.dot_dimension_numbers<[1], [0], [0], [1], [0, 0, 1, 1], [], []>} : vector<8x128xf32>, vector<128x128xf32>, vector<8x128xf32> -> vector<8x128xf32>
      %240 = arith.addf %226, %239 : vector<8x128xf32>
      %c1_i32_135 = arith.constant 1 : i32
      %241 = arith.addi %arg22, %c1_i32_135 : i32
      %c16_i32_136 = arith.constant 16 : i32
      %242 = arith.muli %241, %c16_i32_136 : i32
      %c0_i32_137 = arith.constant 0 : i32
      %243 = arith.addi %c0_i32_137, %242 : i32
      %c0_i32_138 = arith.constant 0 : i32
      %244 = arith.addi %243, %c0_i32_138 : i32
      %245 = arith.index_cast %244 : i32 to index
      %c0_139 = arith.constant 0 : index
      %246 = vector.load %arg20[%245, %c0_139] : memref<320x128xf32, #tpu.memory_space<vmem>>, vector<8x128xf32>
      %247 = vector.broadcast %88 : vector<1x128xf32> to vector<8x128xf32>
      %248 = arith.mulf %246, %247 : vector<8x128xf32>
      %249 = vector.broadcast %90 : vector<1x128xf32> to vector<8x128xf32>
      %250 = arith.addf %248, %249 : vector<8x128xf32>
      %c1_140 = arith.constant 1 : index
      %c0_141 = arith.constant 0 : index
      %c0_142 = arith.constant 0 : index
      %c0_143 = arith.constant 0 : index
      %251 = vector.load %arg12[%c1_140, %c0_141, %c0_142, %c0_143] : memref<3x3x128x128xf32, #tpu.memory_space<vmem>>, vector<1x1x128x128xf32>
      %252 = vector.shape_cast %251 : vector<1x1x128x128xf32> to vector<128x128xf32>
      %cst_144 = arith.constant dense<0.000000e+00> : vector<8x128xf32>
      %253 = tpu.matmul %250, %252, %cst_144 {dimension_numbers = #tpu.dot_dimension_numbers<[1], [0], [0], [1], [0, 0, 1, 1], [], []>} : vector<8x128xf32>, vector<128x128xf32>, vector<8x128xf32> -> vector<8x128xf32>
      %254 = arith.addf %240, %253 : vector<8x128xf32>
      %c1_i32_145 = arith.constant 1 : i32
      %255 = arith.addi %arg22, %c1_i32_145 : i32
      %c16_i32_146 = arith.constant 16 : i32
      %256 = arith.muli %255, %c16_i32_146 : i32
      %c0_i32_147 = arith.constant 0 : i32
      %257 = arith.addi %c0_i32_147, %256 : i32
      %c1_i32_148 = arith.constant 1 : i32
      %258 = arith.addi %257, %c1_i32_148 : i32
      %259 = arith.index_cast %258 : i32 to index
      %c0_149 = arith.constant 0 : index
      %260 = vector.load %arg20[%259, %c0_149] : memref<320x128xf32, #tpu.memory_space<vmem>>, vector<8x128xf32>
      %261 = vector.broadcast %88 : vector<1x128xf32> to vector<8x128xf32>
      %262 = arith.mulf %260, %261 : vector<8x128xf32>
      %263 = vector.broadcast %90 : vector<1x128xf32> to vector<8x128xf32>
      %264 = arith.addf %262, %263 : vector<8x128xf32>
      %c1_150 = arith.constant 1 : index
      %c1_151 = arith.constant 1 : index
      %c0_152 = arith.constant 0 : index
      %c0_153 = arith.constant 0 : index
      %265 = vector.load %arg12[%c1_150, %c1_151, %c0_152, %c0_153] : memref<3x3x128x128xf32, #tpu.memory_space<vmem>>, vector<1x1x128x128xf32>
      %266 = vector.shape_cast %265 : vector<1x1x128x128xf32> to vector<128x128xf32>
      %cst_154 = arith.constant dense<0.000000e+00> : vector<8x128xf32>
      %267 = tpu.matmul %264, %266, %cst_154 {dimension_numbers = #tpu.dot_dimension_numbers<[1], [0], [0], [1], [0, 0, 1, 1], [], []>} : vector<8x128xf32>, vector<128x128xf32>, vector<8x128xf32> -> vector<8x128xf32>
      %268 = arith.addf %254, %267 : vector<8x128xf32>
      %c1_i32_155 = arith.constant 1 : i32
      %269 = arith.addi %arg22, %c1_i32_155 : i32
      %c16_i32_156 = arith.constant 16 : i32
      %270 = arith.muli %269, %c16_i32_156 : i32
      %c0_i32_157 = arith.constant 0 : i32
      %271 = arith.addi %c0_i32_157, %270 : i32
      %c2_i32_158 = arith.constant 2 : i32
      %272 = arith.addi %271, %c2_i32_158 : i32
      %273 = arith.index_cast %272 : i32 to index
      %c0_159 = arith.constant 0 : index
      %274 = vector.load %arg20[%273, %c0_159] : memref<320x128xf32, #tpu.memory_space<vmem>>, vector<8x128xf32>
      %275 = vector.broadcast %88 : vector<1x128xf32> to vector<8x128xf32>
      %276 = arith.mulf %274, %275 : vector<8x128xf32>
      %277 = vector.broadcast %90 : vector<1x128xf32> to vector<8x128xf32>
      %278 = arith.addf %276, %277 : vector<8x128xf32>
      %c1_160 = arith.constant 1 : index
      %c2_161 = arith.constant 2 : index
      %c0_162 = arith.constant 0 : index
      %c0_163 = arith.constant 0 : index
      %279 = vector.load %arg12[%c1_160, %c2_161, %c0_162, %c0_163] : memref<3x3x128x128xf32, #tpu.memory_space<vmem>>, vector<1x1x128x128xf32>
      %280 = vector.shape_cast %279 : vector<1x1x128x128xf32> to vector<128x128xf32>
      %cst_164 = arith.constant dense<0.000000e+00> : vector<8x128xf32>
      %281 = tpu.matmul %278, %280, %cst_164 {dimension_numbers = #tpu.dot_dimension_numbers<[1], [0], [0], [1], [0, 0, 1, 1], [], []>} : vector<8x128xf32>, vector<128x128xf32>, vector<8x128xf32> -> vector<8x128xf32>
      %282 = arith.addf %268, %281 : vector<8x128xf32>
      %c2_i32_165 = arith.constant 2 : i32
      %283 = arith.addi %arg22, %c2_i32_165 : i32
      %c16_i32_166 = arith.constant 16 : i32
      %284 = arith.muli %283, %c16_i32_166 : i32
      %c0_i32_167 = arith.constant 0 : i32
      %285 = arith.addi %c0_i32_167, %284 : i32
      %c0_i32_168 = arith.constant 0 : i32
      %286 = arith.addi %285, %c0_i32_168 : i32
      %287 = arith.index_cast %286 : i32 to index
      %c0_169 = arith.constant 0 : index
      %288 = vector.load %arg20[%287, %c0_169] : memref<320x128xf32, #tpu.memory_space<vmem>>, vector<8x128xf32>
      %289 = vector.broadcast %88 : vector<1x128xf32> to vector<8x128xf32>
      %290 = arith.mulf %288, %289 : vector<8x128xf32>
      %291 = vector.broadcast %90 : vector<1x128xf32> to vector<8x128xf32>
      %292 = arith.addf %290, %291 : vector<8x128xf32>
      %c2_170 = arith.constant 2 : index
      %c0_171 = arith.constant 0 : index
      %c0_172 = arith.constant 0 : index
      %c0_173 = arith.constant 0 : index
      %293 = vector.load %arg12[%c2_170, %c0_171, %c0_172, %c0_173] : memref<3x3x128x128xf32, #tpu.memory_space<vmem>>, vector<1x1x128x128xf32>
      %294 = vector.shape_cast %293 : vector<1x1x128x128xf32> to vector<128x128xf32>
      %cst_174 = arith.constant dense<0.000000e+00> : vector<8x128xf32>
      %295 = tpu.matmul %292, %294, %cst_174 {dimension_numbers = #tpu.dot_dimension_numbers<[1], [0], [0], [1], [0, 0, 1, 1], [], []>} : vector<8x128xf32>, vector<128x128xf32>, vector<8x128xf32> -> vector<8x128xf32>
      %296 = arith.addf %282, %295 : vector<8x128xf32>
      %c2_i32_175 = arith.constant 2 : i32
      %297 = arith.addi %arg22, %c2_i32_175 : i32
      %c16_i32_176 = arith.constant 16 : i32
      %298 = arith.muli %297, %c16_i32_176 : i32
      %c0_i32_177 = arith.constant 0 : i32
      %299 = arith.addi %c0_i32_177, %298 : i32
      %c1_i32_178 = arith.constant 1 : i32
      %300 = arith.addi %299, %c1_i32_178 : i32
      %301 = arith.index_cast %300 : i32 to index
      %c0_179 = arith.constant 0 : index
      %302 = vector.load %arg20[%301, %c0_179] : memref<320x128xf32, #tpu.memory_space<vmem>>, vector<8x128xf32>
      %303 = vector.broadcast %88 : vector<1x128xf32> to vector<8x128xf32>
      %304 = arith.mulf %302, %303 : vector<8x128xf32>
      %305 = vector.broadcast %90 : vector<1x128xf32> to vector<8x128xf32>
      %306 = arith.addf %304, %305 : vector<8x128xf32>
      %c2_180 = arith.constant 2 : index
      %c1_181 = arith.constant 1 : index
      %c0_182 = arith.constant 0 : index
      %c0_183 = arith.constant 0 : index
      %307 = vector.load %arg12[%c2_180, %c1_181, %c0_182, %c0_183] : memref<3x3x128x128xf32, #tpu.memory_space<vmem>>, vector<1x1x128x128xf32>
      %308 = vector.shape_cast %307 : vector<1x1x128x128xf32> to vector<128x128xf32>
      %cst_184 = arith.constant dense<0.000000e+00> : vector<8x128xf32>
      %309 = tpu.matmul %306, %308, %cst_184 {dimension_numbers = #tpu.dot_dimension_numbers<[1], [0], [0], [1], [0, 0, 1, 1], [], []>} : vector<8x128xf32>, vector<128x128xf32>, vector<8x128xf32> -> vector<8x128xf32>
      %310 = arith.addf %296, %309 : vector<8x128xf32>
      %c2_i32_185 = arith.constant 2 : i32
      %311 = arith.addi %arg22, %c2_i32_185 : i32
      %c16_i32_186 = arith.constant 16 : i32
      %312 = arith.muli %311, %c16_i32_186 : i32
      %c0_i32_187 = arith.constant 0 : i32
      %313 = arith.addi %c0_i32_187, %312 : i32
      %c2_i32_188 = arith.constant 2 : i32
      %314 = arith.addi %313, %c2_i32_188 : i32
      %315 = arith.index_cast %314 : i32 to index
      %c0_189 = arith.constant 0 : index
      %316 = vector.load %arg20[%315, %c0_189] : memref<320x128xf32, #tpu.memory_space<vmem>>, vector<8x128xf32>
      %317 = vector.broadcast %88 : vector<1x128xf32> to vector<8x128xf32>
      %318 = arith.mulf %316, %317 : vector<8x128xf32>
      %319 = vector.broadcast %90 : vector<1x128xf32> to vector<8x128xf32>
      %320 = arith.addf %318, %319 : vector<8x128xf32>
      %c2_190 = arith.constant 2 : index
      %c2_191 = arith.constant 2 : index
      %c0_192 = arith.constant 0 : index
      %c0_193 = arith.constant 0 : index
      %321 = vector.load %arg12[%c2_190, %c2_191, %c0_192, %c0_193] : memref<3x3x128x128xf32, #tpu.memory_space<vmem>>, vector<1x1x128x128xf32>
      %322 = vector.shape_cast %321 : vector<1x1x128x128xf32> to vector<128x128xf32>
      %cst_194 = arith.constant dense<0.000000e+00> : vector<8x128xf32>
      %323 = tpu.matmul %320, %322, %cst_194 {dimension_numbers = #tpu.dot_dimension_numbers<[1], [0], [0], [1], [0, 0, 1, 1], [], []>} : vector<8x128xf32>, vector<128x128xf32>, vector<8x128xf32> -> vector<8x128xf32>
      %324 = arith.addf %310, %323 : vector<8x128xf32>
      %cst_195 = arith.constant 0.000000e+00 : f32
      %325 = vector.broadcast %cst_195 : f32 to vector<8x128xf32>
      %326 = arith.maximumf %324, %325 : vector<8x128xf32>
      %c8_i32_196 = arith.constant 8 : i32
      %327 = arith.muli %arg22, %c8_i32_196 : i32
      %c0_i32_197 = arith.constant 0 : i32
      %328 = arith.addi %c0_i32_197, %327 : i32
      %329 = arith.index_cast %328 : i32 to index
      %c0_198 = arith.constant 0 : index
      %330 = vector.load %arg21[%329, %c0_198] : memref<128x128xf32, #tpu.memory_space<vmem>>, vector<8x128xf32>
      tpu.vector_store %arg21[%329, %c0_198], %326 {strides = array<i32>} : memref<128x128xf32, #tpu.memory_space<vmem>>, vector<8x128xf32>,
      %cst_199 = arith.constant dense<0.000000e+00> : vector<128xf32>
      %331 = vector.multi_reduction <add>, %326, %cst_199 [0] : vector<8x128xf32> to vector<128xf32>
      %332 = vector.shape_cast %331 : vector<128xf32> to vector<1x128xf32>
      %333 = arith.addf %arg23, %332 : vector<1x128xf32>
      %334 = arith.mulf %326, %326 : vector<8x128xf32>
      %cst_200 = arith.constant dense<0.000000e+00> : vector<128xf32>
      %335 = vector.multi_reduction <add>, %334, %cst_200 [0] : vector<8x128xf32> to vector<128xf32>
      %336 = vector.shape_cast %335 : vector<128xf32> to vector<1x128xf32>
      %337 = arith.addf %arg24, %336 : vector<1x128xf32>
      scf.yield %333, %337 : vector<1x128xf32>, vector<1x128xf32>
    }
    %c8_i32_55 = arith.constant 8 : i32
    %93 = arith.addf %0, %92#0 : vector<1x128xf32>
    %94 = arith.addf %0, %92#1 : vector<1x128xf32>
    %c0_i32_56 = arith.constant 0 : i32
    %c8_i32_57 = arith.constant 8 : i32
    %95 = arith.addi %c0_i32_56, %c8_i32_57 : i32
    %c1_i32_58 = arith.constant 1 : i32
    %96:2 = scf.for %arg22 = %c0_i32_56 to %95 step %c1_i32_58 iter_args(%arg23 = %0, %arg24 = %0) -> (vector<1x128xf32>, vector<1x128xf32>)  : i32 {
      %cst_106 = arith.constant 0.000000e+00 : f32
      %198 = vector.broadcast %cst_106 : f32 to vector<8x128xf32>
      %c0_i32_107 = arith.constant 0 : i32
      %199 = arith.addi %arg22, %c0_i32_107 : i32
      %c16_i32 = arith.constant 16 : i32
      %200 = arith.muli %199, %c16_i32 : i32
      %c160_i32 = arith.constant 160 : i32
      %201 = arith.addi %c160_i32, %200 : i32
      %c0_i32_108 = arith.constant 0 : i32
      %202 = arith.addi %201, %c0_i32_108 : i32
      %203 = arith.index_cast %202 : i32 to index
      %c0_109 = arith.constant 0 : index
      %204 = vector.load %arg20[%203, %c0_109] : memref<320x128xf32, #tpu.memory_space<vmem>>, vector<8x128xf32>
      %205 = vector.broadcast %88 : vector<1x128xf32> to vector<8x128xf32>
      %206 = arith.mulf %204, %205 : vector<8x128xf32>
      %207 = vector.broadcast %90 : vector<1x128xf32> to vector<8x128xf32>
      %208 = arith.addf %206, %207 : vector<8x128xf32>
      %c0_110 = arith.constant 0 : index
      %c0_111 = arith.constant 0 : index
      %c0_112 = arith.constant 0 : index
      %c0_113 = arith.constant 0 : index
      %209 = vector.load %arg12[%c0_110, %c0_111, %c0_112, %c0_113] : memref<3x3x128x128xf32, #tpu.memory_space<vmem>>, vector<1x1x128x128xf32>
      %210 = vector.shape_cast %209 : vector<1x1x128x128xf32> to vector<128x128xf32>
      %cst_114 = arith.constant dense<0.000000e+00> : vector<8x128xf32>
      %211 = tpu.matmul %208, %210, %cst_114 {dimension_numbers = #tpu.dot_dimension_numbers<[1], [0], [0], [1], [0, 0, 1, 1], [], []>} : vector<8x128xf32>, vector<128x128xf32>, vector<8x128xf32> -> vector<8x128xf32>
      %212 = arith.addf %198, %211 : vector<8x128xf32>
      %c0_i32_115 = arith.constant 0 : i32
      %213 = arith.addi %arg22, %c0_i32_115 : i32
      %c16_i32_116 = arith.constant 16 : i32
      %214 = arith.muli %213, %c16_i32_116 : i32
      %c160_i32_117 = arith.constant 160 : i32
      %215 = arith.addi %c160_i32_117, %214 : i32
      %c1_i32_118 = arith.constant 1 : i32
      %216 = arith.addi %215, %c1_i32_118 : i32
      %217 = arith.index_cast %216 : i32 to index
      %c0_119 = arith.constant 0 : index
      %218 = vector.load %arg20[%217, %c0_119] : memref<320x128xf32, #tpu.memory_space<vmem>>, vector<8x128xf32>
      %219 = vector.broadcast %88 : vector<1x128xf32> to vector<8x128xf32>
      %220 = arith.mulf %218, %219 : vector<8x128xf32>
      %221 = vector.broadcast %90 : vector<1x128xf32> to vector<8x128xf32>
      %222 = arith.addf %220, %221 : vector<8x128xf32>
      %c0_120 = arith.constant 0 : index
      %c1_121 = arith.constant 1 : index
      %c0_122 = arith.constant 0 : index
      %c0_123 = arith.constant 0 : index
      %223 = vector.load %arg12[%c0_120, %c1_121, %c0_122, %c0_123] : memref<3x3x128x128xf32, #tpu.memory_space<vmem>>, vector<1x1x128x128xf32>
      %224 = vector.shape_cast %223 : vector<1x1x128x128xf32> to vector<128x128xf32>
      %cst_124 = arith.constant dense<0.000000e+00> : vector<8x128xf32>
      %225 = tpu.matmul %222, %224, %cst_124 {dimension_numbers = #tpu.dot_dimension_numbers<[1], [0], [0], [1], [0, 0, 1, 1], [], []>} : vector<8x128xf32>, vector<128x128xf32>, vector<8x128xf32> -> vector<8x128xf32>
      %226 = arith.addf %212, %225 : vector<8x128xf32>
      %c0_i32_125 = arith.constant 0 : i32
      %227 = arith.addi %arg22, %c0_i32_125 : i32
      %c16_i32_126 = arith.constant 16 : i32
      %228 = arith.muli %227, %c16_i32_126 : i32
      %c160_i32_127 = arith.constant 160 : i32
      %229 = arith.addi %c160_i32_127, %228 : i32
      %c2_i32_128 = arith.constant 2 : i32
      %230 = arith.addi %229, %c2_i32_128 : i32
      %231 = arith.index_cast %230 : i32 to index
      %c0_129 = arith.constant 0 : index
      %232 = vector.load %arg20[%231, %c0_129] : memref<320x128xf32, #tpu.memory_space<vmem>>, vector<8x128xf32>
      %233 = vector.broadcast %88 : vector<1x128xf32> to vector<8x128xf32>
      %234 = arith.mulf %232, %233 : vector<8x128xf32>
      %235 = vector.broadcast %90 : vector<1x128xf32> to vector<8x128xf32>
      %236 = arith.addf %234, %235 : vector<8x128xf32>
      %c0_130 = arith.constant 0 : index
      %c2 = arith.constant 2 : index
      %c0_131 = arith.constant 0 : index
      %c0_132 = arith.constant 0 : index
      %237 = vector.load %arg12[%c0_130, %c2, %c0_131, %c0_132] : memref<3x3x128x128xf32, #tpu.memory_space<vmem>>, vector<1x1x128x128xf32>
      %238 = vector.shape_cast %237 : vector<1x1x128x128xf32> to vector<128x128xf32>
      %cst_133 = arith.constant dense<0.000000e+00> : vector<8x128xf32>
      %239 = tpu.matmul %236, %238, %cst_133 {dimension_numbers = #tpu.dot_dimension_numbers<[1], [0], [0], [1], [0, 0, 1, 1], [], []>} : vector<8x128xf32>, vector<128x128xf32>, vector<8x128xf32> -> vector<8x128xf32>
      %240 = arith.addf %226, %239 : vector<8x128xf32>
      %c1_i32_134 = arith.constant 1 : i32
      %241 = arith.addi %arg22, %c1_i32_134 : i32
      %c16_i32_135 = arith.constant 16 : i32
      %242 = arith.muli %241, %c16_i32_135 : i32
      %c160_i32_136 = arith.constant 160 : i32
      %243 = arith.addi %c160_i32_136, %242 : i32
      %c0_i32_137 = arith.constant 0 : i32
      %244 = arith.addi %243, %c0_i32_137 : i32
      %245 = arith.index_cast %244 : i32 to index
      %c0_138 = arith.constant 0 : index
      %246 = vector.load %arg20[%245, %c0_138] : memref<320x128xf32, #tpu.memory_space<vmem>>, vector<8x128xf32>
      %247 = vector.broadcast %88 : vector<1x128xf32> to vector<8x128xf32>
      %248 = arith.mulf %246, %247 : vector<8x128xf32>
      %249 = vector.broadcast %90 : vector<1x128xf32> to vector<8x128xf32>
      %250 = arith.addf %248, %249 : vector<8x128xf32>
      %c1_139 = arith.constant 1 : index
      %c0_140 = arith.constant 0 : index
      %c0_141 = arith.constant 0 : index
      %c0_142 = arith.constant 0 : index
      %251 = vector.load %arg12[%c1_139, %c0_140, %c0_141, %c0_142] : memref<3x3x128x128xf32, #tpu.memory_space<vmem>>, vector<1x1x128x128xf32>
      %252 = vector.shape_cast %251 : vector<1x1x128x128xf32> to vector<128x128xf32>
      %cst_143 = arith.constant dense<0.000000e+00> : vector<8x128xf32>
      %253 = tpu.matmul %250, %252, %cst_143 {dimension_numbers = #tpu.dot_dimension_numbers<[1], [0], [0], [1], [0, 0, 1, 1], [], []>} : vector<8x128xf32>, vector<128x128xf32>, vector<8x128xf32> -> vector<8x128xf32>
      %254 = arith.addf %240, %253 : vector<8x128xf32>
      %c1_i32_144 = arith.constant 1 : i32
      %255 = arith.addi %arg22, %c1_i32_144 : i32
      %c16_i32_145 = arith.constant 16 : i32
      %256 = arith.muli %255, %c16_i32_145 : i32
      %c160_i32_146 = arith.constant 160 : i32
      %257 = arith.addi %c160_i32_146, %256 : i32
      %c1_i32_147 = arith.constant 1 : i32
      %258 = arith.addi %257, %c1_i32_147 : i32
      %259 = arith.index_cast %258 : i32 to index
      %c0_148 = arith.constant 0 : index
      %260 = vector.load %arg20[%259, %c0_148] : memref<320x128xf32, #tpu.memory_space<vmem>>, vector<8x128xf32>
      %261 = vector.broadcast %88 : vector<1x128xf32> to vector<8x128xf32>
      %262 = arith.mulf %260, %261 : vector<8x128xf32>
      %263 = vector.broadcast %90 : vector<1x128xf32> to vector<8x128xf32>
      %264 = arith.addf %262, %263 : vector<8x128xf32>
      %c1_149 = arith.constant 1 : index
      %c1_150 = arith.constant 1 : index
      %c0_151 = arith.constant 0 : index
      %c0_152 = arith.constant 0 : index
      %265 = vector.load %arg12[%c1_149, %c1_150, %c0_151, %c0_152] : memref<3x3x128x128xf32, #tpu.memory_space<vmem>>, vector<1x1x128x128xf32>
      %266 = vector.shape_cast %265 : vector<1x1x128x128xf32> to vector<128x128xf32>
      %cst_153 = arith.constant dense<0.000000e+00> : vector<8x128xf32>
      %267 = tpu.matmul %264, %266, %cst_153 {dimension_numbers = #tpu.dot_dimension_numbers<[1], [0], [0], [1], [0, 0, 1, 1], [], []>} : vector<8x128xf32>, vector<128x128xf32>, vector<8x128xf32> -> vector<8x128xf32>
      %268 = arith.addf %254, %267 : vector<8x128xf32>
      %c1_i32_154 = arith.constant 1 : i32
      %269 = arith.addi %arg22, %c1_i32_154 : i32
      %c16_i32_155 = arith.constant 16 : i32
      %270 = arith.muli %269, %c16_i32_155 : i32
      %c160_i32_156 = arith.constant 160 : i32
      %271 = arith.addi %c160_i32_156, %270 : i32
      %c2_i32_157 = arith.constant 2 : i32
      %272 = arith.addi %271, %c2_i32_157 : i32
      %273 = arith.index_cast %272 : i32 to index
      %c0_158 = arith.constant 0 : index
      %274 = vector.load %arg20[%273, %c0_158] : memref<320x128xf32, #tpu.memory_space<vmem>>, vector<8x128xf32>
      %275 = vector.broadcast %88 : vector<1x128xf32> to vector<8x128xf32>
      %276 = arith.mulf %274, %275 : vector<8x128xf32>
      %277 = vector.broadcast %90 : vector<1x128xf32> to vector<8x128xf32>
      %278 = arith.addf %276, %277 : vector<8x128xf32>
      %c1_159 = arith.constant 1 : index
      %c2_160 = arith.constant 2 : index
      %c0_161 = arith.constant 0 : index
      %c0_162 = arith.constant 0 : index
      %279 = vector.load %arg12[%c1_159, %c2_160, %c0_161, %c0_162] : memref<3x3x128x128xf32, #tpu.memory_space<vmem>>, vector<1x1x128x128xf32>
      %280 = vector.shape_cast %279 : vector<1x1x128x128xf32> to vector<128x128xf32>
      %cst_163 = arith.constant dense<0.000000e+00> : vector<8x128xf32>
      %281 = tpu.matmul %278, %280, %cst_163 {dimension_numbers = #tpu.dot_dimension_numbers<[1], [0], [0], [1], [0, 0, 1, 1], [], []>} : vector<8x128xf32>, vector<128x128xf32>, vector<8x128xf32> -> vector<8x128xf32>
      %282 = arith.addf %268, %281 : vector<8x128xf32>
      %c2_i32_164 = arith.constant 2 : i32
      %283 = arith.addi %arg22, %c2_i32_164 : i32
      %c16_i32_165 = arith.constant 16 : i32
      %284 = arith.muli %283, %c16_i32_165 : i32
      %c160_i32_166 = arith.constant 160 : i32
      %285 = arith.addi %c160_i32_166, %284 : i32
      %c0_i32_167 = arith.constant 0 : i32
      %286 = arith.addi %285, %c0_i32_167 : i32
      %287 = arith.index_cast %286 : i32 to index
      %c0_168 = arith.constant 0 : index
      %288 = vector.load %arg20[%287, %c0_168] : memref<320x128xf32, #tpu.memory_space<vmem>>, vector<8x128xf32>
      %289 = vector.broadcast %88 : vector<1x128xf32> to vector<8x128xf32>
      %290 = arith.mulf %288, %289 : vector<8x128xf32>
      %291 = vector.broadcast %90 : vector<1x128xf32> to vector<8x128xf32>
      %292 = arith.addf %290, %291 : vector<8x128xf32>
      %c2_169 = arith.constant 2 : index
      %c0_170 = arith.constant 0 : index
      %c0_171 = arith.constant 0 : index
      %c0_172 = arith.constant 0 : index
      %293 = vector.load %arg12[%c2_169, %c0_170, %c0_171, %c0_172] : memref<3x3x128x128xf32, #tpu.memory_space<vmem>>, vector<1x1x128x128xf32>
      %294 = vector.shape_cast %293 : vector<1x1x128x128xf32> to vector<128x128xf32>
      %cst_173 = arith.constant dense<0.000000e+00> : vector<8x128xf32>
      %295 = tpu.matmul %292, %294, %cst_173 {dimension_numbers = #tpu.dot_dimension_numbers<[1], [0], [0], [1], [0, 0, 1, 1], [], []>} : vector<8x128xf32>, vector<128x128xf32>, vector<8x128xf32> -> vector<8x128xf32>
      %296 = arith.addf %282, %295 : vector<8x128xf32>
      %c2_i32_174 = arith.constant 2 : i32
      %297 = arith.addi %arg22, %c2_i32_174 : i32
      %c16_i32_175 = arith.constant 16 : i32
      %298 = arith.muli %297, %c16_i32_175 : i32
      %c160_i32_176 = arith.constant 160 : i32
      %299 = arith.addi %c160_i32_176, %298 : i32
      %c1_i32_177 = arith.constant 1 : i32
      %300 = arith.addi %299, %c1_i32_177 : i32
      %301 = arith.index_cast %300 : i32 to index
      %c0_178 = arith.constant 0 : index
      %302 = vector.load %arg20[%301, %c0_178] : memref<320x128xf32, #tpu.memory_space<vmem>>, vector<8x128xf32>
      %303 = vector.broadcast %88 : vector<1x128xf32> to vector<8x128xf32>
      %304 = arith.mulf %302, %303 : vector<8x128xf32>
      %305 = vector.broadcast %90 : vector<1x128xf32> to vector<8x128xf32>
      %306 = arith.addf %304, %305 : vector<8x128xf32>
      %c2_179 = arith.constant 2 : index
      %c1_180 = arith.constant 1 : index
      %c0_181 = arith.constant 0 : index
      %c0_182 = arith.constant 0 : index
      %307 = vector.load %arg12[%c2_179, %c1_180, %c0_181, %c0_182] : memref<3x3x128x128xf32, #tpu.memory_space<vmem>>, vector<1x1x128x128xf32>
      %308 = vector.shape_cast %307 : vector<1x1x128x128xf32> to vector<128x128xf32>
      %cst_183 = arith.constant dense<0.000000e+00> : vector<8x128xf32>
      %309 = tpu.matmul %306, %308, %cst_183 {dimension_numbers = #tpu.dot_dimension_numbers<[1], [0], [0], [1], [0, 0, 1, 1], [], []>} : vector<8x128xf32>, vector<128x128xf32>, vector<8x128xf32> -> vector<8x128xf32>
      %310 = arith.addf %296, %309 : vector<8x128xf32>
      %c2_i32_184 = arith.constant 2 : i32
      %311 = arith.addi %arg22, %c2_i32_184 : i32
      %c16_i32_185 = arith.constant 16 : i32
      %312 = arith.muli %311, %c16_i32_185 : i32
      %c160_i32_186 = arith.constant 160 : i32
      %313 = arith.addi %c160_i32_186, %312 : i32
      %c2_i32_187 = arith.constant 2 : i32
      %314 = arith.addi %313, %c2_i32_187 : i32
      %315 = arith.index_cast %314 : i32 to index
      %c0_188 = arith.constant 0 : index
      %316 = vector.load %arg20[%315, %c0_188] : memref<320x128xf32, #tpu.memory_space<vmem>>, vector<8x128xf32>
      %317 = vector.broadcast %88 : vector<1x128xf32> to vector<8x128xf32>
      %318 = arith.mulf %316, %317 : vector<8x128xf32>
      %319 = vector.broadcast %90 : vector<1x128xf32> to vector<8x128xf32>
      %320 = arith.addf %318, %319 : vector<8x128xf32>
      %c2_189 = arith.constant 2 : index
      %c2_190 = arith.constant 2 : index
      %c0_191 = arith.constant 0 : index
      %c0_192 = arith.constant 0 : index
      %321 = vector.load %arg12[%c2_189, %c2_190, %c0_191, %c0_192] : memref<3x3x128x128xf32, #tpu.memory_space<vmem>>, vector<1x1x128x128xf32>
      %322 = vector.shape_cast %321 : vector<1x1x128x128xf32> to vector<128x128xf32>
      %cst_193 = arith.constant dense<0.000000e+00> : vector<8x128xf32>
      %323 = tpu.matmul %320, %322, %cst_193 {dimension_numbers = #tpu.dot_dimension_numbers<[1], [0], [0], [1], [0, 0, 1, 1], [], []>} : vector<8x128xf32>, vector<128x128xf32>, vector<8x128xf32> -> vector<8x128xf32>
      %324 = arith.addf %310, %323 : vector<8x128xf32>
      %cst_194 = arith.constant 0.000000e+00 : f32
      %325 = vector.broadcast %cst_194 : f32 to vector<8x128xf32>
      %326 = arith.maximumf %324, %325 : vector<8x128xf32>
      %c8_i32_195 = arith.constant 8 : i32
      %327 = arith.muli %arg22, %c8_i32_195 : i32
      %c64_i32 = arith.constant 64 : i32
      %328 = arith.addi %c64_i32, %327 : i32
      %329 = arith.index_cast %328 : i32 to index
      %c0_196 = arith.constant 0 : index
      %330 = vector.load %arg21[%329, %c0_196] : memref<128x128xf32, #tpu.memory_space<vmem>>, vector<8x128xf32>
      tpu.vector_store %arg21[%329, %c0_196], %326 {strides = array<i32>} : memref<128x128xf32, #tpu.memory_space<vmem>>, vector<8x128xf32>,
      %cst_197 = arith.constant dense<0.000000e+00> : vector<128xf32>
      %331 = vector.multi_reduction <add>, %326, %cst_197 [0] : vector<8x128xf32> to vector<128xf32>
      %332 = vector.shape_cast %331 : vector<128xf32> to vector<1x128xf32>
      %333 = arith.addf %arg23, %332 : vector<1x128xf32>
      %334 = arith.mulf %326, %326 : vector<8x128xf32>
      %cst_198 = arith.constant dense<0.000000e+00> : vector<128xf32>
      %335 = vector.multi_reduction <add>, %334, %cst_198 [0] : vector<8x128xf32> to vector<128xf32>
      %336 = vector.shape_cast %335 : vector<128xf32> to vector<1x128xf32>
      %337 = arith.addf %arg24, %336 : vector<1x128xf32>
      scf.yield %333, %337 : vector<1x128xf32>, vector<1x128xf32>
    }
    %c8_i32_59 = arith.constant 8 : i32
    %97 = arith.addf %93, %96#0 : vector<1x128xf32>
    %98 = arith.addf %94, %96#1 : vector<1x128xf32>
    %c0_60 = arith.constant 0 : index
    %c0_61 = arith.constant 0 : index
    %99 = vector.load %arg13[%c0_60, %c0_61] : memref<1x128xf32, #tpu.memory_space<vmem>>, vector<1x128xf32>
    %c0_62 = arith.constant 0 : index
    %c0_63 = arith.constant 0 : index
    %100 = vector.load %arg14[%c0_62, %c0_63] : memref<1x128xf32, #tpu.memory_space<vmem>>, vector<1x128xf32>
    %cst_64 = arith.constant 7.812500e-03 : f32
    %101 = vector.broadcast %cst_64 : f32 to vector<1x128xf32>
    %102 = arith.mulf %97, %101 : vector<1x128xf32>
    %cst_65 = arith.constant 7.812500e-03 : f32
    %103 = vector.broadcast %cst_65 : f32 to vector<1x128xf32>
    %104 = arith.mulf %98, %103 : vector<1x128xf32>
    %105 = arith.mulf %102, %102 : vector<1x128xf32>
    %106 = arith.subf %104, %105 : vector<1x128xf32>
    %cst_66 = arith.constant 0.000000e+00 : f32
    %107 = vector.broadcast %cst_66 : f32 to vector<1x128xf32>
    %108 = arith.maximumf %106, %107 : vector<1x128xf32>
    %cst_67 = arith.constant 9.99999974E-6 : f32
    %109 = vector.broadcast %cst_67 : f32 to vector<1x128xf32>
    %110 = arith.addf %108, %109 : vector<1x128xf32>
    %111 = math.rsqrt %110 : vector<1x128xf32>
    %112 = arith.mulf %99, %111 : vector<1x128xf32>
    %113 = arith.mulf %102, %112 : vector<1x128xf32>
    %114 = arith.subf %100, %113 : vector<1x128xf32>
    %c0_68 = arith.constant 0 : index
    %c0_69 = arith.constant 0 : index
    %115 = vector.load %arg15[%c0_68, %c0_69] : memref<128x128xf32, #tpu.memory_space<vmem>>, vector<128x128xf32>
    %c0_70 = arith.constant 0 : index
    %c0_71 = arith.constant 0 : index
    %116 = vector.load %arg21[%c0_70, %c0_71] : memref<128x128xf32, #tpu.memory_space<vmem>>, vector<6x128xf32>
    %cst_72 = arith.constant dense<0.000000e+00> : vector<128xf32>
    %117 = vector.multi_reduction <add>, %116, %cst_72 [0] : vector<6x128xf32> to vector<128xf32>
    %118 = vector.shape_cast %117 : vector<128xf32> to vector<1x128xf32>
    %119 = arith.addf %0, %118 : vector<1x128xf32>
    %c8 = arith.constant 8 : index
    %c0_73 = arith.constant 0 : index
    %120 = vector.load %arg21[%c8, %c0_73] : memref<128x128xf32, #tpu.memory_space<vmem>>, vector<6x128xf32>
    %cst_74 = arith.constant dense<0.000000e+00> : vector<128xf32>
    %121 = vector.multi_reduction <add>, %120, %cst_74 [0] : vector<6x128xf32> to vector<128xf32>
    %122 = vector.shape_cast %121 : vector<128xf32> to vector<1x128xf32>
    %123 = arith.addf %119, %122 : vector<1x128xf32>
    %c16 = arith.constant 16 : index
    %c0_75 = arith.constant 0 : index
    %124 = vector.load %arg21[%c16, %c0_75] : memref<128x128xf32, #tpu.memory_space<vmem>>, vector<6x128xf32>
    %cst_76 = arith.constant dense<0.000000e+00> : vector<128xf32>
    %125 = vector.multi_reduction <add>, %124, %cst_76 [0] : vector<6x128xf32> to vector<128xf32>
    %126 = vector.shape_cast %125 : vector<128xf32> to vector<1x128xf32>
    %127 = arith.addf %123, %126 : vector<1x128xf32>
    %c24 = arith.constant 24 : index
    %c0_77 = arith.constant 0 : index
    %128 = vector.load %arg21[%c24, %c0_77] : memref<128x128xf32, #tpu.memory_space<vmem>>, vector<6x128xf32>
    %cst_78 = arith.constant dense<0.000000e+00> : vector<128xf32>
    %129 = vector.multi_reduction <add>, %128, %cst_78 [0] : vector<6x128xf32> to vector<128xf32>
    %130 = vector.shape_cast %129 : vector<128xf32> to vector<1x128xf32>
    %131 = arith.addf %127, %130 : vector<1x128xf32>
    %c32 = arith.constant 32 : index
    %c0_79 = arith.constant 0 : index
    %132 = vector.load %arg21[%c32, %c0_79] : memref<128x128xf32, #tpu.memory_space<vmem>>, vector<6x128xf32>
    %cst_80 = arith.constant dense<0.000000e+00> : vector<128xf32>
    %133 = vector.multi_reduction <add>, %132, %cst_80 [0] : vector<6x128xf32> to vector<128xf32>
    %134 = vector.shape_cast %133 : vector<128xf32> to vector<1x128xf32>
    %135 = arith.addf %131, %134 : vector<1x128xf32>
    %c40 = arith.constant 40 : index
    %c0_81 = arith.constant 0 : index
    %136 = vector.load %arg21[%c40, %c0_81] : memref<128x128xf32, #tpu.memory_space<vmem>>, vector<6x128xf32>
    %cst_82 = arith.constant dense<0.000000e+00> : vector<128xf32>
    %137 = vector.multi_reduction <add>, %136, %cst_82 [0] : vector<6x128xf32> to vector<128xf32>
    %138 = vector.shape_cast %137 : vector<128xf32> to vector<1x128xf32>
    %139 = arith.addf %135, %138 : vector<1x128xf32>
    %cst_83 = arith.constant 0.027777778 : f32
    %140 = vector.broadcast %cst_83 : f32 to vector<1x128xf32>
    %141 = arith.mulf %139, %140 : vector<1x128xf32>
    %142 = arith.mulf %141, %112 : vector<1x128xf32>
    %143 = arith.addf %142, %114 : vector<1x128xf32>
    %cst_84 = arith.constant dense<0.000000e+00> : vector<1x128xf32>
    %144 = tpu.matmul %143, %115, %cst_84 {dimension_numbers = #tpu.dot_dimension_numbers<[1], [0], [0], [1], [0, 0, 1, 1], [], []>} : vector<1x128xf32>, vector<128x128xf32>, vector<1x128xf32> -> vector<1x128xf32>
    %145 = vector.extract_strided_slice %144 {offsets = [0, 0], sizes = [1, 10], strides = [1, 1]} : vector<1x128xf32> to vector<1x10xf32>
    %cst_85 = arith.constant dense<0xFF800000> : vector<1xf32>
    %146 = vector.multi_reduction <maximumf>, %145, %cst_85 [1] : vector<1x10xf32> to vector<1xf32>
    %147 = vector.shape_cast %146 : vector<1xf32> to vector<1x1xf32>
    %148 = vector.broadcast %147 : vector<1x1xf32> to vector<1x10xf32>
    %149 = arith.subf %145, %148 : vector<1x10xf32>
    %150 = math.exp %149 : vector<1x10xf32>
    %cst_86 = arith.constant dense<0.000000e+00> : vector<1xf32>
    %151 = vector.multi_reduction <add>, %150, %cst_86 [1] : vector<1x10xf32> to vector<1xf32>
    %152 = vector.shape_cast %151 : vector<1xf32> to vector<1x1xf32>
    %153 = math.log %152 : vector<1x1xf32>
    %154 = vector.broadcast %153 : vector<1x1xf32> to vector<1x10xf32>
    %155 = arith.subf %149, %154 : vector<1x10xf32>
    %c0_87 = arith.constant 0 : index
    %c0_88 = arith.constant 0 : index
    %156 = vector.load %arg16[%c0_87, %c0_88] : memref<2x10xf32, #tpu.memory_space<vmem>>, vector<1x10xf32>
    tpu.vector_store %arg16[%c0_87, %c0_88], %155 {strides = array<i32>} : memref<2x10xf32, #tpu.memory_space<vmem>>, vector<1x10xf32>,
    %c64 = arith.constant 64 : index
    %c0_89 = arith.constant 0 : index
    %157 = vector.load %arg21[%c64, %c0_89] : memref<128x128xf32, #tpu.memory_space<vmem>>, vector<6x128xf32>
    %cst_90 = arith.constant dense<0.000000e+00> : vector<128xf32>
    %158 = vector.multi_reduction <add>, %157, %cst_90 [0] : vector<6x128xf32> to vector<128xf32>
    %159 = vector.shape_cast %158 : vector<128xf32> to vector<1x128xf32>
    %160 = arith.addf %0, %159 : vector<1x128xf32>
    %c72 = arith.constant 72 : index
    %c0_91 = arith.constant 0 : index
    %161 = vector.load %arg21[%c72, %c0_91] : memref<128x128xf32, #tpu.memory_space<vmem>>, vector<6x128xf32>
    %cst_92 = arith.constant dense<0.000000e+00> : vector<128xf32>
    %162 = vector.multi_reduction <add>, %161, %cst_92 [0] : vector<6x128xf32> to vector<128xf32>
    %163 = vector.shape_cast %162 : vector<128xf32> to vector<1x128xf32>
    %164 = arith.addf %160, %163 : vector<1x128xf32>
    %c80 = arith.constant 80 : index
    %c0_93 = arith.constant 0 : index
    %165 = vector.load %arg21[%c80, %c0_93] : memref<128x128xf32, #tpu.memory_space<vmem>>, vector<6x128xf32>
    %cst_94 = arith.constant dense<0.000000e+00> : vector<128xf32>
    %166 = vector.multi_reduction <add>, %165, %cst_94 [0] : vector<6x128xf32> to vector<128xf32>
    %167 = vector.shape_cast %166 : vector<128xf32> to vector<1x128xf32>
    %168 = arith.addf %164, %167 : vector<1x128xf32>
    %c88 = arith.constant 88 : index
    %c0_95 = arith.constant 0 : index
    %169 = vector.load %arg21[%c88, %c0_95] : memref<128x128xf32, #tpu.memory_space<vmem>>, vector<6x128xf32>
    %cst_96 = arith.constant dense<0.000000e+00> : vector<128xf32>
    %170 = vector.multi_reduction <add>, %169, %cst_96 [0] : vector<6x128xf32> to vector<128xf32>
    %171 = vector.shape_cast %170 : vector<128xf32> to vector<1x128xf32>
    %172 = arith.addf %168, %171 : vector<1x128xf32>
    %c96 = arith.constant 96 : index
    %c0_97 = arith.constant 0 : index
    %173 = vector.load %arg21[%c96, %c0_97] : memref<128x128xf32, #tpu.memory_space<vmem>>, vector<6x128xf32>
    %cst_98 = arith.constant dense<0.000000e+00> : vector<128xf32>
    %174 = vector.multi_reduction <add>, %173, %cst_98 [0] : vector<6x128xf32> to vector<128xf32>
    %175 = vector.shape_cast %174 : vector<128xf32> to vector<1x128xf32>
    %176 = arith.addf %172, %175 : vector<1x128xf32>
    %c104 = arith.constant 104 : index
    %c0_99 = arith.constant 0 : index
    %177 = vector.load %arg21[%c104, %c0_99] : memref<128x128xf32, #tpu.memory_space<vmem>>, vector<6x128xf32>
    %cst_100 = arith.constant dense<0.000000e+00> : vector<128xf32>
    %178 = vector.multi_reduction <add>, %177, %cst_100 [0] : vector<6x128xf32> to vector<128xf32>
    %179 = vector.shape_cast %178 : vector<128xf32> to vector<1x128xf32>
    %180 = arith.addf %176, %179 : vector<1x128xf32>
    %cst_101 = arith.constant 0.027777778 : f32
    %181 = vector.broadcast %cst_101 : f32 to vector<1x128xf32>
    %182 = arith.mulf %180, %181 : vector<1x128xf32>
    %183 = arith.mulf %182, %112 : vector<1x128xf32>
    %184 = arith.addf %183, %114 : vector<1x128xf32>
    %cst_102 = arith.constant dense<0.000000e+00> : vector<1x128xf32>
    %185 = tpu.matmul %184, %115, %cst_102 {dimension_numbers = #tpu.dot_dimension_numbers<[1], [0], [0], [1], [0, 0, 1, 1], [], []>} : vector<1x128xf32>, vector<128x128xf32>, vector<1x128xf32> -> vector<1x128xf32>
    %186 = vector.extract_strided_slice %185 {offsets = [0, 0], sizes = [1, 10], strides = [1, 1]} : vector<1x128xf32> to vector<1x10xf32>
    %cst_103 = arith.constant dense<0xFF800000> : vector<1xf32>
    %187 = vector.multi_reduction <maximumf>, %186, %cst_103 [1] : vector<1x10xf32> to vector<1xf32>
    %188 = vector.shape_cast %187 : vector<1xf32> to vector<1x1xf32>
    %189 = vector.broadcast %188 : vector<1x1xf32> to vector<1x10xf32>
    %190 = arith.subf %186, %189 : vector<1x10xf32>
    %191 = math.exp %190 : vector<1x10xf32>
    %cst_104 = arith.constant dense<0.000000e+00> : vector<1xf32>
    %192 = vector.multi_reduction <add>, %191, %cst_104 [1] : vector<1x10xf32> to vector<1xf32>
    %193 = vector.shape_cast %192 : vector<1xf32> to vector<1x1xf32>
    %194 = math.log %193 : vector<1x1xf32>
    %195 = vector.broadcast %194 : vector<1x1xf32> to vector<1x10xf32>
    %196 = arith.subf %190, %195 : vector<1x10xf32>
    %c1 = arith.constant 1 : index
    %c0_105 = arith.constant 0 : index
    %197 = vector.load %arg16[%c1, %c0_105] : memref<2x10xf32, #tpu.memory_space<vmem>>, vector<1x10xf32>
    tpu.vector_store %arg16[%c1, %c0_105], %196 {strides = array<i32>} : memref<2x10xf32, #tpu.memory_space<vmem>>, vector<1x10xf32>,
    return
  }
  func.func @transform_0(%arg0: i32) -> (i32, i32) {
    %c0_i32 = arith.constant 0 : i32
    %c0_i32_0 = arith.constant 0 : i32
    %c0_i32_1 = arith.constant 0 : i32
    return %c0_i32, %c0_i32_0 : i32, i32
  }
  func.func @transform_1(%arg0: i32) -> (i32, i32) {
    %c0_i32 = arith.constant 0 : i32
    %c0_i32_0 = arith.constant 0 : i32
    %c0_i32_1 = arith.constant 0 : i32
    return %c0_i32, %c0_i32_0 : i32, i32
  }
  func.func @transform_2(%arg0: i32) -> (i32, i32) {
    %c0_i32 = arith.constant 0 : i32
    %c0_i32_0 = arith.constant 0 : i32
    %c0_i32_1 = arith.constant 0 : i32
    return %c0_i32, %c0_i32_0 : i32, i32
  }
  func.func @transform_3(%arg0: i32) -> (i32, i32) {
    %c0_i32 = arith.constant 0 : i32
    %c0_i32_0 = arith.constant 0 : i32
    %c0_i32_1 = arith.constant 0 : i32
    return %c0_i32, %c0_i32_0 : i32, i32
  }
  func.func @transform_4(%arg0: i32) -> (i32, i32, i32, i32) {
    %c0_i32 = arith.constant 0 : i32
    %c0_i32_0 = arith.constant 0 : i32
    %c0_i32_1 = arith.constant 0 : i32
    %c0_i32_2 = arith.constant 0 : i32
    %c0_i32_3 = arith.constant 0 : i32
    return %c0_i32, %c0_i32_0, %c0_i32_1, %c0_i32_2 : i32, i32, i32, i32
  }
  func.func @transform_5(%arg0: i32) -> (i32, i32) {
    %c0_i32 = arith.constant 0 : i32
    %c0_i32_0 = arith.constant 0 : i32
    %c0_i32_1 = arith.constant 0 : i32
    return %c0_i32, %c0_i32_0 : i32, i32
  }
  func.func @transform_6(%arg0: i32) -> (i32, i32) {
    %c0_i32 = arith.constant 0 : i32
    %c0_i32_0 = arith.constant 0 : i32
    %c0_i32_1 = arith.constant 0 : i32
    return %c0_i32, %c0_i32_0 : i32, i32
  }
  func.func @transform_7(%arg0: i32) -> (i32, i32) {
    %c0_i32 = arith.constant 0 : i32
    %c0_i32_0 = arith.constant 0 : i32
    %c0_i32_1 = arith.constant 0 : i32
    return %c0_i32, %c0_i32_0 : i32, i32
  }
  func.func @transform_8(%arg0: i32) -> (i32, i32, i32, i32) {
    %c0_i32 = arith.constant 0 : i32
    %c0_i32_0 = arith.constant 0 : i32
    %c0_i32_1 = arith.constant 0 : i32
    %c0_i32_2 = arith.constant 0 : i32
    %c0_i32_3 = arith.constant 0 : i32
    return %c0_i32, %c0_i32_0, %c0_i32_1, %c0_i32_2 : i32, i32, i32, i32
  }
  func.func @transform_9(%arg0: i32) -> (i32, i32) {
    %c0_i32 = arith.constant 0 : i32
    %c0_i32_0 = arith.constant 0 : i32
    %c0_i32_1 = arith.constant 0 : i32
    return %c0_i32, %c0_i32_0 : i32, i32
  }
  func.func @transform_10(%arg0: i32) -> (i32, i32) {
    %c0_i32 = arith.constant 0 : i32
    %c0_i32_0 = arith.constant 0 : i32
    %c0_i32_1 = arith.constant 0 : i32
    return %c0_i32, %c0_i32_0 : i32, i32
  }
  func.func @transform_11(%arg0: i32) -> (i32, i32, i32, i32) {
    %c0_i32 = arith.constant 0 : i32
    %c0_i32_0 = arith.constant 0 : i32
    %c0_i32_1 = arith.constant 0 : i32
    %c0_i32_2 = arith.constant 0 : i32
    %c0_i32_3 = arith.constant 0 : i32
    return %c0_i32, %c0_i32_0, %c0_i32_1, %c0_i32_2 : i32, i32, i32, i32
  }
  func.func @transform_12(%arg0: i32) -> (i32, i32) {
    %c0_i32 = arith.constant 0 : i32
    %c0_i32_0 = arith.constant 0 : i32
    %c0_i32_1 = arith.constant 0 : i32
    return %c0_i32, %c0_i32_0 : i32, i32
  }
  func.func @transform_13(%arg0: i32) -> (i32, i32) {
    %c0_i32 = arith.constant 0 : i32
    %c0_i32_0 = arith.constant 0 : i32
    %c0_i32_1 = arith.constant 0 : i32
    return %c0_i32, %c0_i32_0 : i32, i32
  }
  func.func @transform_14(%arg0: i32) -> (i32, i32) {
    %c0_i32 = arith.constant 0 : i32
    %c0_i32_0 = arith.constant 0 : i32
    %c0_i32_1 = arith.constant 0 : i32
    return %c0_i32, %c0_i32_0 : i32, i32
  }
  func.func @transform_15(%arg0: i32) -> (i32, i32) {
    %c0_i32 = arith.constant 0 : i32
    %c0_i32_0 = arith.constant 0 : i32
    %c0_i32_1 = arith.constant 0 : i32
    return %c0_i32, %c0_i32_0 : i32, i32
  }
}

</mosaic_0001>

<llo_original>
// kernel: model4_forward.1
$region0: #{model4_forward.1}
  #allocation0 [shape = 'u32[]', space=smem, size = 0x4, offset = 0x4, fixed_abs, tag = 'smem constant byte address 0x4 - core index']
  #allocation1 [shape = 'u32[144,128]{1,0:T(1,128)}', space=vmem, size = 0x12000, scoped, tag = 'internal scratch']
  #allocation2 [shape = 'f32[1408,128]{1,0:T(8,128)}', space=vmem, size = 0xb0000, scoped, tag = 'scratch operand']
  #allocation3 [shape = 'f32[1152,128]{1,0:T(8,128)}', space=vmem, size = 0x90000, scoped, tag = 'scratch operand']
  #allocation4 [shape = 'f32[384,128]{1,0:T(8,128)}', space=vmem, size = 0x30000, scoped, tag = 'scratch operand']
  #allocation5 [shape = 'f32[320,128]{1,0:T(8,128)}', space=vmem, size = 0x28000, scoped, tag = 'scratch operand']
  #allocation6 [shape = 'f32[128,128]{1,0:T(8,128)}', space=vmem, size = 0x10000, scoped, tag = 'scratch operand']
  %s0 = inlined_call_operand.vmem [shape: f32[1408,16], index: 0, kind: input, shape index: {}]
  %s1 = inlined_call_operand.vmem [shape: f32[16,128], index: 1, kind: input, shape index: {}]
  %s2 = inlined_call_operand.vmem [shape: f32[1,128], index: 2, kind: input, shape index: {}]
  %s3 = inlined_call_operand.vmem [shape: f32[1,128], index: 3, kind: input, shape index: {}]
  %s4 = inlined_call_operand.vmem [shape: f32[3,3,128,128], index: 4, kind: input, shape index: {}]
  %s5 = inlined_call_operand.vmem [shape: f32[1,128], index: 5, kind: input, shape index: {}]
  %s6 = inlined_call_operand.vmem [shape: f32[1,128], index: 6, kind: input, shape index: {}]
  %s7 = inlined_call_operand.vmem [shape: f32[128,128], index: 7, kind: input, shape index: {}]
  %s8 = inlined_call_operand.vmem [shape: f32[3,3,128,128], index: 8, kind: input, shape index: {}]
  %s9 = inlined_call_operand.vmem [shape: f32[1,128], index: 9, kind: input, shape index: {}]
  %s10 = inlined_call_operand.vmem [shape: f32[1,128], index: 10, kind: input, shape index: {}]
  %s11 = inlined_call_operand.vmem [shape: f32[3,3,128,128], index: 11, kind: input, shape index: {}]
  %s12 = inlined_call_operand.vmem [shape: f32[1,128], index: 12, kind: input, shape index: {}]
  %s13 = inlined_call_operand.vmem [shape: f32[1,128], index: 13, kind: input, shape index: {}]
  %s14 = inlined_call_operand.vmem [shape: f32[128,128], index: 14, kind: input, shape index: {}]
  %s15 = inlined_call_operand.hbm [shape: f32[2,10], index: 15, kind: output, shape index: {}]
  %s16 = sld [smem:[#allocation0]]
  $region133: #{model4_forward.1} parent=0
    _
  %s18 = ssub.s32 1, %s16
  %s19 = scalar_select 0, %s18, %s16
  $region1: #{model4_forward.1} parent=0
    #allocation7 [shape = 'u8[1024]{0}', space=vmem, size = 0x400, scoped, tag = 'output window, operand 0, single buffered']
    #allocation8 [shape = 's32[1]{0}', space=sflag, size = 0x4, scoped, tag = 'scoped memory for model4_forward.1']
    %20 = vsyncpa [#allocation8], 0
    // Predicated region
    $region2: #{model4_forward.1} parent=1 // pred_check
      _
    $region3: #{model4_forward.1} parent=1 // pred_check_branch
      %22 = sbr.rel (0) target = $region5
    $region4: #{model4_forward.1} parent=1 // pred_region
      _
    $region5: #{model4_forward.1} parent=1 // pred_fallthru
      _
    // Predicated region
    $region6: #{model4_forward.1} parent=1 // pred_check
      _
    $region7: #{model4_forward.1} parent=1 // pred_check_branch
      %24 = sbr.rel (0) target = $region9
    $region8: #{model4_forward.1} parent=1 // pred_region
      _
    $region9: #{model4_forward.1} parent=1 // pred_fallthru
      _
    // Predicated region
    $region10: #{model4_forward.1} parent=1 // pred_check
      _
    $region11: #{model4_forward.1} parent=1 // pred_check_branch
      %26 = sbr.rel (0) target = $region13
    $region12: #{model4_forward.1} parent=1 // pred_region
      _
    $region13: #{model4_forward.1} parent=1 // pred_fallthru
      _
    // Predicated region
    $region14: #{model4_forward.1} parent=1 // pred_check
      _
    $region15: #{model4_forward.1} parent=1 // pred_check_branch
      %28 = sbr.rel (0) target = $region17
    $region16: #{model4_forward.1} parent=1 // pred_region
      _
    $region17: #{model4_forward.1} parent=1 // pred_fallthru
      _
    // Predicated region
    $region18: #{model4_forward.1} parent=1 // pred_check
      _
    $region19: #{model4_forward.1} parent=1 // pred_check_branch
      %30 = sbr.rel (0) target = $region21
    $region20: #{model4_forward.1} parent=1 // pred_region
      _
    $region21: #{model4_forward.1} parent=1 // pred_fallthru
      _
    // Predicated region
    $region22: #{model4_forward.1} parent=1 // pred_check
      _
    $region23: #{model4_forward.1} parent=1 // pred_check_branch
      %32 = sbr.rel (0) target = $region25
    $region24: #{model4_forward.1} parent=1 // pred_region
      _
    $region25: #{model4_forward.1} parent=1 // pred_fallthru
      _
    // Predicated region
    $region26: #{model4_forward.1} parent=1 // pred_check
      _
    $region27: #{model4_forward.1} parent=1 // pred_check_branch
      %34 = sbr.rel (0) target = $region29
    $region28: #{model4_forward.1} parent=1 // pred_region
      _
    $region29: #{model4_forward.1} parent=1 // pred_fallthru
      _
    // Predicated region
    $region30: #{model4_forward.1} parent=1 // pred_check
      _
    $region31: #{model4_forward.1} parent=1 // pred_check_branch
      %36 = sbr.rel (0) target = $region33
    $region32: #{model4_forward.1} parent=1 // pred_region
      _
    $region33: #{model4_forward.1} parent=1 // pred_fallthru
      _
    // Predicated region
    $region34: #{model4_forward.1} parent=1 // pred_check
      _
    $region35: #{model4_forward.1} parent=1 // pred_check_branch
      %38 = sbr.rel (0) target = $region37
    $region36: #{model4_forward.1} parent=1 // pred_region
      _
    $region37: #{model4_forward.1} parent=1 // pred_fallthru
      _
    // Predicated region
    $region38: #{model4_forward.1} parent=1 // pred_check
      _
    $region39: #{model4_forward.1} parent=1 // pred_check_branch
      %40 = sbr.rel (0) target = $region41
    $region40: #{model4_forward.1} parent=1 // pred_region
      _
    $region41: #{model4_forward.1} parent=1 // pred_fallthru
      _
    // Predicated region
    $region42: #{model4_forward.1} parent=1 // pred_check
      _
    $region43: #{model4_forward.1} parent=1 // pred_check_branch
      %42 = sbr.rel (0) target = $region45
    $region44: #{model4_forward.1} parent=1 // pred_region
      _
    $region45: #{model4_forward.1} parent=1 // pred_fallthru
      _
    // Predicated region
    $region46: #{model4_forward.1} parent=1 // pred_check
      _
    $region47: #{model4_forward.1} parent=1 // pred_check_branch
      %44 = sbr.rel (0) target = $region49
    $region48: #{model4_forward.1} parent=1 // pred_region
      _
    $region49: #{model4_forward.1} parent=1 // pred_fallthru
      _
    // Predicated region
    $region50: #{model4_forward.1} parent=1 // pred_check
      _
    $region51: #{model4_forward.1} parent=1 // pred_check_branch
      %46 = sbr.rel (0) target = $region53
    $region52: #{model4_forward.1} parent=1 // pred_region
      _
    $region53: #{model4_forward.1} parent=1 // pred_fallthru
      _
    // Predicated region
    $region54: #{model4_forward.1} parent=1 // pred_check
      _
    $region55: #{model4_forward.1} parent=1 // pred_check_branch
      %48 = sbr.rel (0) target = $region57
    $region56: #{model4_forward.1} parent=1 // pred_region
      _
    $region57: #{model4_forward.1} parent=1 // pred_fallthru
      _
    // Predicated region
    $region58: #{model4_forward.1} parent=1 // pred_check
      _
    $region59: #{model4_forward.1} parent=1 // pred_check_branch
      %50 = sbr.rel (0) target = $region61
    $region60: #{model4_forward.1} parent=1 // pred_region
      _
    $region61: #{model4_forward.1} parent=1 // pred_fallthru
      _
    %v51 = vld [vmem:[%s1] sm:$0xff]
    %v52 = vld [vmem:[%s1 + $0x8] sm:$0xff]
    loop: start=0, step=1, limit=11
    $region62: #{model4_forward.1} parent=1 // loop_pre_header
      _
    $region63: #{model4_forward.1} parent=1 // loop_header
      %s54 = sphi 0, %s58
      %p55 = scmp.ge.s32.totalorder %s54, 11
      %v59 = vphi 0.0, %v327
      %v60 = vphi 0.0, %v365
    $region64: #{model4_forward.1} parent=1 // loop_header_branch
      %57 = sbr.rel (%p55) target = $region68
    $region65: #{model4_forward.1} parent=1 // loop_body
      %s61 = smul.u32 %s54, 128
      %s62 = scalar_lea.vmem %s0, %s61
      %v63 = vld [vmem:[%s62] sm:$0xff]
      %v64 = vld [vmem:[%s62 + $0x8] sm:$0xff]
      %v65 = vld [vmem:[%s62 + $0x10] sm:$0xff]
      %v66 = vld [vmem:[%s62 + $0x18] sm:$0xff]
      %v67 = vld [vmem:[%s62 + $0x20] sm:$0xff]
      %v68 = vld [vmem:[%s62 + $0x28] sm:$0xff]
      %v69 = vld [vmem:[%s62 + $0x30] sm:$0xff]
      %v70 = vld [vmem:[%s62 + $0x38] sm:$0xff]
      %v71 = vld [vmem:[%s62 + $0x40] sm:$0xff]
      %v72 = vld [vmem:[%s62 + $0x48] sm:$0xff]
      %v73 = vld [vmem:[%s62 + $0x50] sm:$0xff]
      %v74 = vld [vmem:[%s62 + $0x58] sm:$0xff]
      %v75 = vld [vmem:[%s62 + $0x60] sm:$0xff]
      %v76 = vld [vmem:[%s62 + $0x68] sm:$0xff]
      %v77 = vld [vmem:[%s62 + $0x70] sm:$0xff]
      %v78 = vld [vmem:[%s62 + $0x78] sm:$0xff]
      %vm79 = vcmask 130048
      %v81 = vsel %vm79, %v63, 0
      %v84 = vsel %vm79, %v64, 0
      %v87 = vsel %vm79, %v65, 0
      %v90 = vsel %vm79, %v66, 0
      %v93 = vsel %vm79, %v67, 0
      %v96 = vsel %vm79, %v68, 0
      %v99 = vsel %vm79, %v69, 0
      %v102 = vsel %vm79, %v70, 0
      %v105 = vsel %vm79, %v71, 0
      %v108 = vsel %vm79, %v72, 0
      %v111 = vsel %vm79, %v73, 0
      %v114 = vsel %vm79, %v74, 0
      %v117 = vsel %vm79, %v75, 0
      %v120 = vsel %vm79, %v76, 0
      %v123 = vsel %vm79, %v77, 0
      %v126 = vsel %vm79, %v78, 0
      %128 = vmatprep.subr.mxu0 0.0
      %129 = vmatpush1.msra.mxu0 0.0
      %130 = vmatprep.subr.mxu0 0.0
      %131 = vmatpush1.msra.mxu0 0.0
      %132 = vmatprep.subr.mxu0 0.0
      %133 = vmatpush1.msra.mxu0 0.0
      %134 = vmatprep.subr.mxu0 0.0
      %135 = vmatpush1.msra.mxu0 0.0
      %136 = vmatprep.subr.mxu0 0.0
      %137 = vmatpush1.msra.mxu0 0.0
      %138 = vmatprep.subr.mxu0 0.0
      %139 = vmatpush1.msra.mxu0 0.0
      %140 = vmatprep.subr.mxu0 0.0
      %141 = vmatpush1.msra.mxu0 0.0
      %142 = vmatprep.subr.mxu0 0.0
      %143 = vmatpush1.msra.mxu0 0.0
      %144 = vmatprep.subr.mxu0 0.0
      %145 = vmatpush1.msra.mxu0 0.0
      %146 = vmatprep.subr.mxu0 0.0
      %147 = vmatpush1.msra.mxu0 0.0
      %148 = vmatprep.subr.mxu0 0.0
      %149 = vmatpush1.msra.mxu0 0.0
      %150 = vmatprep.subr.mxu0 0.0
      %151 = vmatpush1.msra.mxu0 0.0
      %152 = vmatprep.subr.mxu0 0.0
      %153 = vmatpush1.msra.mxu0 0.0
      %154 = vmatprep.subr.mxu0 0.0
      %155 = vmatpush1.msra.mxu0 0.0
      %156 = vmatprep.subr.mxu0 0.0
      %157 = vmatpush1.msra.mxu0 %v52
      %158 = vmatprep.subr.mxu0 0.0
      %159 = vmatpush1.msra.mxu0 %v51
      %160 = vmatprep.subr.mxu0 0.0
      %161 = vmatpush2.msra.mxu0 0.0
      %162 = vmatprep.subr.mxu0 0.0
      %163 = vmatpush2.msra.mxu0 0.0
      %164 = vmatprep.subr.mxu0 0.0
      %165 = vmatpush2.msra.mxu0 0.0
      %166 = vmatprep.subr.mxu0 0.0
      %167 = vmatpush2.msra.mxu0 0.0
      %168 = vmatprep.subr.mxu0 0.0
      %169 = vmatpush2.msra.mxu0 0.0
      %170 = vmatprep.subr.mxu0 0.0
      %171 = vmatpush2.msra.mxu0 0.0
      %172 = vmatprep.subr.mxu0 0.0
      %173 = vmatpush2.msra.mxu0 0.0
      %174 = vmatprep.subr.mxu0 0.0
      %175 = vmatpush2.msra.mxu0 0.0
      %176 = vmatprep.subr.mxu0 0.0
      %177 = vmatpush2.msra.mxu0 0.0
      %178 = vmatprep.subr.mxu0 0.0
      %179 = vmatpush2.msra.mxu0 0.0
      %180 = vmatprep.subr.mxu0 0.0
      %181 = vmatpush2.msra.mxu0 0.0
      %182 = vmatprep.subr.mxu0 0.0
      %183 = vmatpush2.msra.mxu0 0.0
      %184 = vmatprep.subr.mxu0 0.0
      %185 = vmatpush2.msra.mxu0 0.0
      %186 = vmatprep.subr.mxu0 0.0
      %187 = vmatpush2.msra.mxu0 0.0
      %188 = vmatprep.subr.mxu0 0.0
      %189 = vmatpush2.msra.mxu0 0.0
      %190 = vmatprep.subr.mxu0 0.0
      %191 = vmatpush2.msra.mxu0 0.0
      %192 = vmatprep.mubr.f32.mxu0 0.0
      %193 = vmatmul.mubr.f32.gmra.mxu0 %v81
      %v194 = vpop.f32.mrf.mxu0
      %v195 = vadd.f32 0.0, %v194
      %v196 = vpop.f32.mrf.mxu0
      %197 = vmatprep.mubr.f32.mxu0 0.0
      %198 = vmatmul.mubr.f32.gmra.mxu0 %v84
      %v199 = vpop.f32.mrf.mxu0
      %v200 = vadd.f32 0.0, %v199
      %v201 = vpop.f32.mrf.mxu0
      %202 = vmatprep.mubr.f32.mxu0 0.0
      %203 = vmatmul.mubr.f32.gmra.mxu0 %v87
      %v204 = vpop.f32.mrf.mxu0
      %v205 = vadd.f32 0.0, %v204
      %v206 = vpop.f32.mrf.mxu0
      %207 = vmatprep.mubr.f32.mxu0 0.0
      %208 = vmatmul.mubr.f32.gmra.mxu0 %v90
      %v209 = vpop.f32.mrf.mxu0
      %v210 = vadd.f32 0.0, %v209
      %v211 = vpop.f32.mrf.mxu0
      %212 = vmatprep.mubr.f32.mxu0 0.0
      %213 = vmatmul.mubr.f32.gmra.mxu0 %v93
      %v214 = vpop.f32.mrf.mxu0
      %v215 = vadd.f32 0.0, %v214
      %v216 = vpop.f32.mrf.mxu0
      %217 = vmatprep.mubr.f32.mxu0 0.0
      %218 = vmatmul.mubr.f32.gmra.mxu0 %v96
      %v219 = vpop.f32.mrf.mxu0
      %v220 = vadd.f32 0.0, %v219
      %v221 = vpop.f32.mrf.mxu0
      %222 = vmatprep.mubr.f32.mxu0 0.0
      %223 = vmatmul.mubr.f32.gmra.mxu0 %v99
      %v224 = vpop.f32.mrf.mxu0
      %v225 = vadd.f32 0.0, %v224
      %v226 = vpop.f32.mrf.mxu0
      %227 = vmatprep.mubr.f32.mxu0 0.0
      %228 = vmatmul.mubr.f32.gmra.mxu0 %v102
      %v229 = vpop.f32.mrf.mxu0
      %v230 = vadd.f32 0.0, %v229
      %v231 = vpop.f32.mrf.mxu0
      %232 = vmatprep.mubr.f32.mxu0 0.0
      %233 = vmatmul.mubr.f32.gmra.mxu0 %v105
      %v234 = vpop.f32.mrf.mxu0
      %v235 = vadd.f32 0.0, %v234
      %v236 = vpop.f32.mrf.mxu0
      %237 = vmatprep.mubr.f32.mxu0 0.0
      %238 = vmatmul.mubr.f32.gmra.mxu0 %v108
      %v239 = vpop.f32.mrf.mxu0
      %v240 = vadd.f32 0.0, %v239
      %v241 = vpop.f32.mrf.mxu0
      %242 = vmatprep.mubr.f32.mxu0 0.0
      %243 = vmatmul.mubr.f32.gmra.mxu0 %v111
      %v244 = vpop.f32.mrf.mxu0
      %v245 = vadd.f32 0.0, %v244
      %v246 = vpop.f32.mrf.mxu0
      %247 = vmatprep.mubr.f32.mxu0 0.0
      %248 = vmatmul.mubr.f32.gmra.mxu0 %v114
      %v249 = vpop.f32.mrf.mxu0
      %v250 = vadd.f32 0.0, %v249
      %v251 = vpop.f32.mrf.mxu0
      %252 = vmatprep.mubr.f32.mxu0 0.0
      %253 = vmatmul.mubr.f32.gmra.mxu0 %v117
      %v254 = vpop.f32.mrf.mxu0
      %v255 = vadd.f32 0.0, %v254
      %v256 = vpop.f32.mrf.mxu0
      %257 = vmatprep.mubr.f32.mxu0 0.0
      %258 = vmatmul.mubr.f32.gmra.mxu0 %v120
      %v259 = vpop.f32.mrf.mxu0
      %v260 = vadd.f32 0.0, %v259
      %v261 = vpop.f32.mrf.mxu0
      %262 = vmatprep.mubr.f32.mxu0 0.0
      %263 = vmatmul.mubr.f32.gmra.mxu0 %v123
      %v264 = vpop.f32.mrf.mxu0
      %v265 = vadd.f32 0.0, %v264
      %v266 = vpop.f32.mrf.mxu0
      %267 = vmatprep.mubr.f32.mxu0 0.0
      %268 = vmatmul.mubr.f32.gmra.mxu0 %v126
      %v269 = vpop.f32.mrf.mxu0
      %v270 = vadd.f32 0.0, %v269
      %v271 = vpop.f32.mrf.mxu0
      %272 = vdwg.mxu0
      %v273 = vmax.f32 %v195, 0.0
      %v274 = vmax.f32 %v200, 0.0
      %v275 = vmax.f32 %v205, 0.0
      %v276 = vmax.f32 %v210, 0.0
      %v277 = vmax.f32 %v215, 0.0
      %v278 = vmax.f32 %v220, 0.0
      %v279 = vmax.f32 %v225, 0.0
      %v280 = vmax.f32 %v230, 0.0
      %v281 = vmax.f32 %v235, 0.0
      %v282 = vmax.f32 %v240, 0.0
      %v283 = vmax.f32 %v245, 0.0
      %v284 = vmax.f32 %v250, 0.0
      %v285 = vmax.f32 %v255, 0.0
      %v286 = vmax.f32 %v260, 0.0
      %v287 = vmax.f32 %v265, 0.0
      %v288 = vmax.f32 %v270, 0.0
      %s289 = scalar_lea.vmem [#allocation2], %s61
      %290 = vst [vmem:[%s289] sm:$0xff] %v273
      %291 = vst [vmem:[%s289 + $0x8] sm:$0xff] %v274
      %292 = vst [vmem:[%s289 + $0x10] sm:$0xff] %v275
      %293 = vst [vmem:[%s289 + $0x18] sm:$0xff] %v276
      %294 = vst [vmem:[%s289 + $0x20] sm:$0xff] %v277
      %295 = vst [vmem:[%s289 + $0x28] sm:$0xff] %v278
      %296 = vst [vmem:[%s289 + $0x30] sm:$0xff] %v279
      %297 = vst [vmem:[%s289 + $0x38] sm:$0xff] %v280
      %298 = vst [vmem:[%s289 + $0x40] sm:$0xff] %v281
      %299 = vst [vmem:[%s289 + $0x48] sm:$0xff] %v282
      %300 = vst [vmem:[%s289 + $0x50] sm:$0xff] %v283
      %301 = vst [vmem:[%s289 + $0x58] sm:$0xff] %v284
      %302 = vst [vmem:[%s289 + $0x60] sm:$0xff] %v285
      %303 = vst [vmem:[%s289 + $0x68] sm:$0xff] %v286
      %304 = vst [vmem:[%s289 + $0x70] sm:$0xff] %v287
      %305 = vst [vmem:[%s289 + $0x78] sm:$0xff] %v288
      %v306 = vadd.f32 %v273, %v274
      %v307 = vadd.f32 %v306, %v275
      %v308 = vadd.f32 %v307, %v276
      %v309 = vadd.f32 %v308, %v277
      %v310 = vadd.f32 %v309, %v278
      %v311 = vadd.f32 %v310, %v279
      %v312 = vadd.f32 %v311, %v280
      %v313 = vadd.f32 %v312, %v281
      %v314 = vadd.f32 %v313, %v282
      %v315 = vadd.f32 %v314, %v283
      %v316 = vadd.f32 %v315, %v284
      %v317 = vadd.f32 %v316, %v285
      %v318 = vadd.f32 %v317, %v286
      %v319 = vadd.f32 %v318, %v287
      %v320 = vadd.f32 %v319, %v288
      %v321 = vrot.slane %v320, 4
      %v322 = vadd.f32 %v320, %v321
      %v323 = vrot.slane %v322, 2
      %v324 = vadd.f32 %v322, %v323
      %v325 = vrot.slane %v324, 1
      %v326 = vadd.f32 %v324, %v325
      %v327 = vadd.f32 %v59, %v326
      %v328 = vmul.f32 %v273, %v273
      %v329 = vmul.f32 %v274, %v274
      %v330 = vmul.f32 %v275, %v275
      %v331 = vmul.f32 %v276, %v276
      %v332 = vmul.f32 %v277, %v277
      %v333 = vmul.f32 %v278, %v278
      %v334 = vmul.f32 %v279, %v279
      %v335 = vmul.f32 %v280, %v280
      %v336 = vmul.f32 %v281, %v281
      %v337 = vmul.f32 %v282, %v282
      %v338 = vmul.f32 %v283, %v283
      %v339 = vmul.f32 %v284, %v284
      %v340 = vmul.f32 %v285, %v285
      %v341 = vmul.f32 %v286, %v286
      %v342 = vmul.f32 %v287, %v287
      %v343 = vmul.f32 %v288, %v288
      %v344 = vadd.f32 %v328, %v329
      %v345 = vadd.f32 %v344, %v330
      %v346 = vadd.f32 %v345, %v331
      %v347 = vadd.f32 %v346, %v332
      %v348 = vadd.f32 %v347, %v333
      %v349 = vadd.f32 %v348, %v334
      %v350 = vadd.f32 %v349, %v335
      %v351 = vadd.f32 %v350, %v336
      %v352 = vadd.f32 %v351, %v337
      %v353 = vadd.f32 %v352, %v338
      %v354 = vadd.f32 %v353, %v339
      %v355 = vadd.f32 %v354, %v340
      %v356 = vadd.f32 %v355, %v341
      %v357 = vadd.f32 %v356, %v342
      %v358 = vadd.f32 %v357, %v343
      %v359 = vrot.slane %v358, 4
      %v360 = vadd.f32 %v358, %v359
      %v361 = vrot.slane %v360, 2
      %v362 = vadd.f32 %v360, %v361
      %v363 = vrot.slane %v362, 1
      %v364 = vadd.f32 %v362, %v363
      %v365 = vadd.f32 %v60, %v364
    $region66: #{model4_forward.1} parent=1 // loop_footer
      %s58 = sadd.s32 1, %s54
    $region67: #{model4_forward.1} parent=1 // loop_footer_branch
      %53 = sbr.rel target = $region63
    $region68: #{model4_forward.1} parent=1 // loop_exit
      _
    %v366 = vld [vmem:[%s2] sm:$0x1]
    %v367 = vld [vmem:[%s3] sm:$0x1]
    %v368 = vmul.f32 %v59, 0.000739645
    %v369 = vmul.f32 %v60, 0.000739645
    %v370 = vmul.f32 %v368, %v368
    %v371 = vsub.f32 %v369, %v370
    %v372 = vmax.f32 %v371, 0.0
    %v373 = vadd.f32 %v372, 1e-05
    %v374 = vrsqrt.pop %v373
    %v375 = vmul.f32 %v366, %v374
    %v376 = vmul.f32 %v368, %v375
    %v377 = vsub.f32 %v367, %v376
    loop: start=0, step=1, limit=24
    $region69: #{model4_forward.1} parent=1 // loop_pre_header
      _
    $region70: #{model4_forward.1} parent=1 // loop_header
      %s379 = sphi 0, %s383
      %p380 = scmp.ge.s32.totalorder %s379, 24
      %v384 = vphi 0.0, %v1408
      %v385 = vphi 0.0, %v1420
    $region71: #{model4_forward.1} parent=1 // loop_header_branch
      %382 = sbr.rel (%p380) target = $region75
    $region72: #{model4_forward.1} parent=1 // loop_body
      %s386 = smul.u32 %s379, 26
      %s387 = scalar_lea.vmem [#allocation2], %s386
      %v388 = vld [vmem:[%s387] sm:$0xff]
      %v389 = vld [vmem:[%s387 + $0x8] sm:$0xff]
      %v390 = vld [vmem:[%s387 + $0x10] sm:$0xff]
      %v392 = vlaneseq
      %v393 = vshrl.u32 %v392, 7
      %v394 = vsub.s32 0, %v393
      %v395 = vrot.slane %v375, %v394
      %v397 = vmul.f32 %v388, %v395
      %v398 = vmul.f32 %v389, %v395
      %v399 = vmul.f32 %v390, %v395
      %v401 = vlaneseq
      %v402 = vshrl.u32 %v401, 7
      %v403 = vsub.s32 0, %v402
      %v404 = vrot.slane %v377, %v403
      %v406 = vadd.f32 %v397, %v404
      %v407 = vadd.f32 %v398, %v404
      %v408 = vadd.f32 %v399, %v404
      %v409 = vld [vmem:[%s4] sm:$0xff]
      %v410 = vld [vmem:[%s4 + $0x8] sm:$0xff]
      %v411 = vld [vmem:[%s4 + $0x10] sm:$0xff]
      %v412 = vld [vmem:[%s4 + $0x18] sm:$0xff]
      %v413 = vld [vmem:[%s4 + $0x20] sm:$0xff]
      %v414 = vld [vmem:[%s4 + $0x28] sm:$0xff]
      %v415 = vld [vmem:[%s4 + $0x30] sm:$0xff]
      %v416 = vld [vmem:[%s4 + $0x38] sm:$0xff]
      %v417 = vld [vmem:[%s4 + $0x40] sm:$0xff]
      %v418 = vld [vmem:[%s4 + $0x48] sm:$0xff]
      %v419 = vld [vmem:[%s4 + $0x50] sm:$0xff]
      %v420 = vld [vmem:[%s4 + $0x58] sm:$0xff]
      %v421 = vld [vmem:[%s4 + $0x60] sm:$0xff]
      %v422 = vld [vmem:[%s4 + $0x68] sm:$0xff]
      %v423 = vld [vmem:[%s4 + $0x70] sm:$0xff]
      %v424 = vld [vmem:[%s4 + $0x78] sm:$0xff]
      %s425 = sadd.s32 %s386, 1
      %s426 = scalar_lea.vmem [#allocation2], %s425
      %v427 = vld [vmem:[%s426] sm:$0xff]
      %v428 = vld [vmem:[%s426 + $0x8] sm:$0xff]
      %v429 = vld [vmem:[%s426 + $0x10] sm:$0xff]
      %v430 = vmul.f32 %v427, %v395
      %v431 = vmul.f32 %v428, %v395
      %v432 = vmul.f32 %v429, %v395
      %v433 = vadd.f32 %v430, %v404
      %v434 = vadd.f32 %v431, %v404
      %v435 = vadd.f32 %v432, %v404
      %s436 = scalar_lea.vmem %s4, 128
      %v437 = vld [vmem:[%s436] sm:$0xff]
      %v438 = vld [vmem:[%s436 + $0x8] sm:$0xff]
      %v439 = vld [vmem:[%s436 + $0x10] sm:$0xff]
      %v440 = vld [vmem:[%s436 + $0x18] sm:$0xff]
      %v441 = vld [vmem:[%s436 + $0x20] sm:$0xff]
      %v442 = vld [vmem:[%s436 + $0x28] sm:$0xff]
      %v443 = vld [vmem:[%s436 + $0x30] sm:$0xff]
      %v444 = vld [vmem:[%s436 + $0x38] sm:$0xff]
      %v445 = vld [vmem:[%s436 + $0x40] sm:$0xff]
      %v446 = vld [vmem:[%s436 + $0x48] sm:$0xff]
      %v447 = vld [vmem:[%s436 + $0x50] sm:$0xff]
      %v448 = vld [vmem:[%s436 + $0x58] sm:$0xff]
      %v449 = vld [vmem:[%s436 + $0x60] sm:$0xff]
      %v450 = vld [vmem:[%s436 + $0x68] sm:$0xff]
      %v451 = vld [vmem:[%s436 + $0x70] sm:$0xff]
      %v452 = vld [vmem:[%s436 + $0x78] sm:$0xff]
      %453 = vmatprep.subr.mxu0 0.0
      %454 = vmatpush1.msra.mxu0 %v452
      %455 = vmatprep.subr.mxu0 0.0
      %456 = vmatpush1.msra.mxu0 %v451
      %457 = vmatprep.subr.mxu0 0.0
      %458 = vmatpush1.msra.mxu0 %v450
      %459 = vmatprep.subr.mxu0 0.0
      %460 = vmatpush1.msra.mxu0 %v449
      %461 = vmatprep.subr.mxu0 0.0
      %462 = vmatpush1.msra.mxu0 %v448
      %463 = vmatprep.subr.mxu0 0.0
      %464 = vmatpush1.msra.mxu0 %v447
      %465 = vmatprep.subr.mxu0 0.0
      %466 = vmatpush1.msra.mxu0 %v446
      %467 = vmatprep.subr.mxu0 0.0
      %468 = vmatpush1.msra.mxu0 %v445
      %469 = vmatprep.subr.mxu0 0.0
      %470 = vmatpush1.msra.mxu0 %v444
      %471 = vmatprep.subr.mxu0 0.0
      %472 = vmatpush1.msra.mxu0 %v443
      %473 = vmatprep.subr.mxu0 0.0
      %474 = vmatpush1.msra.mxu0 %v442
      %475 = vmatprep.subr.mxu0 0.0
      %476 = vmatpush1.msra.mxu0 %v441
      %477 = vmatprep.subr.mxu0 0.0
      %478 = vmatpush1.msra.mxu0 %v440
      %479 = vmatprep.subr.mxu0 0.0
      %480 = vmatpush1.msra.mxu0 %v439
      %481 = vmatprep.subr.mxu0 0.0
      %482 = vmatpush1.msra.mxu0 %v438
      %483 = vmatprep.subr.mxu0 0.0
      %484 = vmatpush1.msra.mxu0 %v437
      %485 = vmatprep.subr.mxu0 0.0
      %486 = vmatpush2.msra.mxu0 0.0
      %487 = vmatprep.subr.mxu0 0.0
      %488 = vmatpush2.msra.mxu0 0.0
      %489 = vmatprep.subr.mxu0 0.0
      %490 = vmatpush2.msra.mxu0 0.0
      %491 = vmatprep.subr.mxu0 0.0
      %492 = vmatpush2.msra.mxu0 0.0
      %493 = vmatprep.subr.mxu0 0.0
      %494 = vmatpush2.msra.mxu0 0.0
      %495 = vmatprep.subr.mxu0 0.0
      %496 = vmatpush2.msra.mxu0 0.0
      %497 = vmatprep.subr.mxu0 0.0
      %498 = vmatpush2.msra.mxu0 0.0
      %499 = vmatprep.subr.mxu0 0.0
      %500 = vmatpush2.msra.mxu0 0.0
      %501 = vmatprep.subr.mxu0 0.0
      %502 = vmatpush2.msra.mxu0 0.0
      %503 = vmatprep.subr.mxu0 0.0
      %504 = vmatpush2.msra.mxu0 0.0
      %505 = vmatprep.subr.mxu0 0.0
      %506 = vmatpush2.msra.mxu0 0.0
      %507 = vmatprep.subr.mxu0 0.0
      %508 = vmatpush2.msra.mxu0 0.0
      %509 = vmatprep.subr.mxu0 0.0
      %510 = vmatpush2.msra.mxu0 0.0
      %511 = vmatprep.subr.mxu0 0.0
      %512 = vmatpush2.msra.mxu0 0.0
      %513 = vmatprep.subr.mxu0 0.0
      %514 = vmatpush2.msra.mxu0 0.0
      %515 = vmatprep.subr.mxu0 0.0
      %516 = vmatpush2.msra.mxu0 0.0
      %517 = vmatprep.mubr.f32.mxu0 0.0
      %518 = vmatmul.mubr.f32.gmra.mxu0 %v433
      %v519 = vpop.f32.mrf.mxu0
      %v520 = vadd.f32 0.0, %v519
      %v521 = vpop.f32.mrf.mxu0
      %522 = vmatprep.mubr.f32.mxu0 0.0
      %523 = vmatmul.mubr.f32.gmra.mxu0 %v434
      %v524 = vpop.f32.mrf.mxu0
      %v525 = vadd.f32 0.0, %v524
      %v526 = vpop.f32.mrf.mxu0
      %527 = vmatprep.mubr.f32.mxu0 0.0
      %528 = vmatmul.mubr.f32.gmra.mxu0 %v435
      %v529 = vpop.f32.mrf.mxu0
      %v530 = vadd.f32 0.0, %v529
      %v531 = vpop.f32.mrf.mxu0
      %532 = vdwg.mxu0
      %533 = vmatprep.subr.mxu0 0.0
      %534 = vmatpush1.msra.mxu0 %v424
      %535 = vmatprep.subr.mxu0 0.0
      %536 = vmatpush1.msra.mxu0 %v423
      %537 = vmatprep.subr.mxu0 0.0
      %538 = vmatpush1.msra.mxu0 %v422
      %539 = vmatprep.subr.mxu0 0.0
      %540 = vmatpush1.msra.mxu0 %v421
      %541 = vmatprep.subr.mxu0 0.0
      %542 = vmatpush1.msra.mxu0 %v420
      %543 = vmatprep.subr.mxu0 0.0
      %544 = vmatpush1.msra.mxu0 %v419
      %545 = vmatprep.subr.mxu0 0.0
      %546 = vmatpush1.msra.mxu0 %v418
      %547 = vmatprep.subr.mxu0 0.0
      %548 = vmatpush1.msra.mxu0 %v417
      %549 = vmatprep.subr.mxu0 0.0
      %550 = vmatpush1.msra.mxu0 %v416
      %551 = vmatprep.subr.mxu0 0.0
      %552 = vmatpush1.msra.mxu0 %v415
      %553 = vmatprep.subr.mxu0 0.0
      %554 = vmatpush1.msra.mxu0 %v414
      %555 = vmatprep.subr.mxu0 0.0
      %556 = vmatpush1.msra.mxu0 %v413
      %557 = vmatprep.subr.mxu0 0.0
      %558 = vmatpush1.msra.mxu0 %v412
      %559 = vmatprep.subr.mxu0 0.0
      %560 = vmatpush1.msra.mxu0 %v411
      %561 = vmatprep.subr.mxu0 0.0
      %562 = vmatpush1.msra.mxu0 %v410
      %563 = vmatprep.subr.mxu0 0.0
      %564 = vmatpush1.msra.mxu0 %v409
      %565 = vmatprep.subr.mxu0 0.0
      %566 = vmatpush2.msra.mxu0 0.0
      %567 = vmatprep.subr.mxu0 0.0
      %568 = vmatpush2.msra.mxu0 0.0
      %569 = vmatprep.subr.mxu0 0.0
      %570 = vmatpush2.msra.mxu0 0.0
      %571 = vmatprep.subr.mxu0 0.0
      %572 = vmatpush2.msra.mxu0 0.0
      %573 = vmatprep.subr.mxu0 0.0
      %574 = vmatpush2.msra.mxu0 0.0
      %575 = vmatprep.subr.mxu0 0.0
      %576 = vmatpush2.msra.mxu0 0.0
      %577 = vmatprep.subr.mxu0 0.0
      %578 = vmatpush2.msra.mxu0 0.0
      %579 = vmatprep.subr.mxu0 0.0
      %580 = vmatpush2.msra.mxu0 0.0
      %581 = vmatprep.subr.mxu0 0.0
      %582 = vmatpush2.msra.mxu0 0.0
      %583 = vmatprep.subr.mxu0 0.0
      %584 = vmatpush2.msra.mxu0 0.0
      %585 = vmatprep.subr.mxu0 0.0
      %586 = vmatpush2.msra.mxu0 0.0
      %587 = vmatprep.subr.mxu0 0.0
      %588 = vmatpush2.msra.mxu0 0.0
      %589 = vmatprep.subr.mxu0 0.0
      %590 = vmatpush2.msra.mxu0 0.0
      %591 = vmatprep.subr.mxu0 0.0
      %592 = vmatpush2.msra.mxu0 0.0
      %593 = vmatprep.subr.mxu0 0.0
      %594 = vmatpush2.msra.mxu0 0.0
      %595 = vmatprep.subr.mxu0 0.0
      %596 = vmatpush2.msra.mxu0 0.0
      %597 = vmatprep.mubr.f32.mxu0 0.0
      %598 = vmatmul.mubr.f32.gmra.mxu0 %v406
      %v599 = vpop.f32.mrf.mxu0
      %v600 = vadd.f32 %v520, %v599
      %v601 = vpop.f32.mrf.mxu0
      %602 = vmatprep.mubr.f32.mxu0 0.0
      %603 = vmatmul.mubr.f32.gmra.mxu0 %v407
      %v604 = vpop.f32.mrf.mxu0
      %v605 = vadd.f32 %v525, %v604
      %v606 = vpop.f32.mrf.mxu0
      %607 = vmatprep.mubr.f32.mxu0 0.0
      %608 = vmatmul.mubr.f32.gmra.mxu0 %v408
      %v609 = vpop.f32.mrf.mxu0
      %v610 = vadd.f32 %v530, %v609
      %v611 = vpop.f32.mrf.mxu0
      %612 = vdwg.mxu0
      %s613 = sadd.s32 %s386, 2
      %s614 = scalar_lea.vmem [#allocation2], %s613
      %v615 = vld [vmem:[%s614] sm:$0xff]
      %v616 = vld [vmem:[%s614 + $0x8] sm:$0xff]
      %v617 = vld [vmem:[%s614 + $0x10] sm:$0xff]
      %v618 = vmul.f32 %v615, %v395
      %v619 = vmul.f32 %v616, %v395
      %v620 = vmul.f32 %v617, %v395
      %v621 = vadd.f32 %v618, %v404
      %v622 = vadd.f32 %v619, %v404
      %v623 = vadd.f32 %v620, %v404
      %s624 = scalar_lea.vmem %s4, 256
      %v625 = vld [vmem:[%s624] sm:$0xff]
      %v626 = vld [vmem:[%s624 + $0x8] sm:$0xff]
      %v627 = vld [vmem:[%s624 + $0x10] sm:$0xff]
      %v628 = vld [vmem:[%s624 + $0x18] sm:$0xff]
      %v629 = vld [vmem:[%s624 + $0x20] sm:$0xff]
      %v630 = vld [vmem:[%s624 + $0x28] sm:$0xff]
      %v631 = vld [vmem:[%s624 + $0x30] sm:$0xff]
      %v632 = vld [vmem:[%s624 + $0x38] sm:$0xff]
      %v633 = vld [vmem:[%s624 + $0x40] sm:$0xff]
      %v634 = vld [vmem:[%s624 + $0x48] sm:$0xff]
      %v635 = vld [vmem:[%s624 + $0x50] sm:$0xff]
      %v636 = vld [vmem:[%s624 + $0x58] sm:$0xff]
      %v637 = vld [vmem:[%s624 + $0x60] sm:$0xff]
      %v638 = vld [vmem:[%s624 + $0x68] sm:$0xff]
      %v639 = vld [vmem:[%s624 + $0x70] sm:$0xff]
      %v640 = vld [vmem:[%s624 + $0x78] sm:$0xff]
      %641 = vmatprep.subr.mxu0 0.0
      %642 = vmatpush1.msra.mxu0 %v640
      %643 = vmatprep.subr.mxu0 0.0
      %644 = vmatpush1.msra.mxu0 %v639
      %645 = vmatprep.subr.mxu0 0.0
      %646 = vmatpush1.msra.mxu0 %v638
      %647 = vmatprep.subr.mxu0 0.0
      %648 = vmatpush1.msra.mxu0 %v637
      %649 = vmatprep.subr.mxu0 0.0
      %650 = vmatpush1.msra.mxu0 %v636
      %651 = vmatprep.subr.mxu0 0.0
      %652 = vmatpush1.msra.mxu0 %v635
      %653 = vmatprep.subr.mxu0 0.0
      %654 = vmatpush1.msra.mxu0 %v634
      %655 = vmatprep.subr.mxu0 0.0
      %656 = vmatpush1.msra.mxu0 %v633
      %657 = vmatprep.subr.mxu0 0.0
      %658 = vmatpush1.msra.mxu0 %v632
      %659 = vmatprep.subr.mxu0 0.0
      %660 = vmatpush1.msra.mxu0 %v631
      %661 = vmatprep.subr.mxu0 0.0
      %662 = vmatpush1.msra.mxu0 %v630
      %663 = vmatprep.subr.mxu0 0.0
      %664 = vmatpush1.msra.mxu0 %v629
      %665 = vmatprep.subr.mxu0 0.0
      %666 = vmatpush1.msra.mxu0 %v628
      %667 = vmatprep.subr.mxu0 0.0
      %668 = vmatpush1.msra.mxu0 %v627
      %669 = vmatprep.subr.mxu0 0.0
      %670 = vmatpush1.msra.mxu0 %v626
      %671 = vmatprep.subr.mxu0 0.0
      %672 = vmatpush1.msra.mxu0 %v625
      %673 = vmatprep.subr.mxu0 0.0
      %674 = vmatpush2.msra.mxu0 0.0
      %675 = vmatprep.subr.mxu0 0.0
      %676 = vmatpush2.msra.mxu0 0.0
      %677 = vmatprep.subr.mxu0 0.0
      %678 = vmatpush2.msra.mxu0 0.0
      %679 = vmatprep.subr.mxu0 0.0
      %680 = vmatpush2.msra.mxu0 0.0
      %681 = vmatprep.subr.mxu0 0.0
      %682 = vmatpush2.msra.mxu0 0.0
      %683 = vmatprep.subr.mxu0 0.0
      %684 = vmatpush2.msra.mxu0 0.0
      %685 = vmatprep.subr.mxu0 0.0
      %686 = vmatpush2.msra.mxu0 0.0
      %687 = vmatprep.subr.mxu0 0.0
      %688 = vmatpush2.msra.mxu0 0.0
      %689 = vmatprep.subr.mxu0 0.0
      %690 = vmatpush2.msra.mxu0 0.0
      %691 = vmatprep.subr.mxu0 0.0
      %692 = vmatpush2.msra.mxu0 0.0
      %693 = vmatprep.subr.mxu0 0.0
      %694 = vmatpush2.msra.mxu0 0.0
      %695 = vmatprep.subr.mxu0 0.0
      %696 = vmatpush2.msra.mxu0 0.0
      %697 = vmatprep.subr.mxu0 0.0
      %698 = vmatpush2.msra.mxu0 0.0
      %699 = vmatprep.subr.mxu0 0.0
      %700 = vmatpush2.msra.mxu0 0.0
      %701 = vmatprep.subr.mxu0 0.0
      %702 = vmatpush2.msra.mxu0 0.0
      %703 = vmatprep.subr.mxu0 0.0
      %704 = vmatpush2.msra.mxu0 0.0
      %705 = vmatprep.mubr.f32.mxu0 0.0
      %706 = vmatmul.mubr.f32.gmra.mxu0 %v621
      %v707 = vpop.f32.mrf.mxu0
      %v708 = vadd.f32 0.0, %v707
      %v709 = vpop.f32.mrf.mxu0
      %710 = vmatprep.mubr.f32.mxu0 0.0
      %711 = vmatmul.mubr.f32.gmra.mxu0 %v622
      %v712 = vpop.f32.mrf.mxu0
      %v713 = vadd.f32 0.0, %v712
      %v714 = vpop.f32.mrf.mxu0
      %715 = vmatprep.mubr.f32.mxu0 0.0
      %716 = vmatmul.mubr.f32.gmra.mxu0 %v623
      %v717 = vpop.f32.mrf.mxu0
      %v718 = vadd.f32 0.0, %v717
      %v719 = vpop.f32.mrf.mxu0
      %720 = vdwg.mxu0
      %v721 = vadd.f32 %v600, %v708
      %v722 = vadd.f32 %v605, %v713
      %v723 = vadd.f32 %v610, %v718
      %s724 = sadd.s32 %s379, 1
      %s725 = smul.u32 %s724, 26
      %s726 = scalar_lea.vmem [#allocation2], %s725
      %v727 = vld [vmem:[%s726] sm:$0xff]
      %v728 = vld [vmem:[%s726 + $0x8] sm:$0xff]
      %v729 = vld [vmem:[%s726 + $0x10] sm:$0xff]
      %v730 = vmul.f32 %v727, %v395
      %v731 = vmul.f32 %v728, %v395
      %v732 = vmul.f32 %v729, %v395
      %v733 = vadd.f32 %v730, %v404
      %v734 = vadd.f32 %v731, %v404
      %v735 = vadd.f32 %v732, %v404
      %s736 = scalar_lea.vmem %s4, 384
      %v737 = vld [vmem:[%s736] sm:$0xff]
      %v738 = vld [vmem:[%s736 + $0x8] sm:$0xff]
      %v739 = vld [vmem:[%s736 + $0x10] sm:$0xff]
      %v740 = vld [vmem:[%s736 + $0x18] sm:$0xff]
      %v741 = vld [vmem:[%s736 + $0x20] sm:$0xff]
      %v742 = vld [vmem:[%s736 + $0x28] sm:$0xff]
      %v743 = vld [vmem:[%s736 + $0x30] sm:$0xff]
      %v744 = vld [vmem:[%s736 + $0x38] sm:$0xff]
      %v745 = vld [vmem:[%s736 + $0x40] sm:$0xff]
      %v746 = vld [vmem:[%s736 + $0x48] sm:$0xff]
      %v747 = vld [vmem:[%s736 + $0x50] sm:$0xff]
      %v748 = vld [vmem:[%s736 + $0x58] sm:$0xff]
      %v749 = vld [vmem:[%s736 + $0x60] sm:$0xff]
      %v750 = vld [vmem:[%s736 + $0x68] sm:$0xff]
      %v751 = vld [vmem:[%s736 + $0x70] sm:$0xff]
      %v752 = vld [vmem:[%s736 + $0x78] sm:$0xff]
      %753 = vmatprep.subr.mxu0 0.0
      %754 = vmatpush1.msra.mxu0 %v752
      %755 = vmatprep.subr.mxu0 0.0
      %756 = vmatpush1.msra.mxu0 %v751
      %757 = vmatprep.subr.mxu0 0.0
      %758 = vmatpush1.msra.mxu0 %v750
      %759 = vmatprep.subr.mxu0 0.0
      %760 = vmatpush1.msra.mxu0 %v749
      %761 = vmatprep.subr.mxu0 0.0
      %762 = vmatpush1.msra.mxu0 %v748
      %763 = vmatprep.subr.mxu0 0.0
      %764 = vmatpush1.msra.mxu0 %v747
      %765 = vmatprep.subr.mxu0 0.0
      %766 = vmatpush1.msra.mxu0 %v746
      %767 = vmatprep.subr.mxu0 0.0
      %768 = vmatpush1.msra.mxu0 %v745
      %769 = vmatprep.subr.mxu0 0.0
      %770 = vmatpush1.msra.mxu0 %v744
      %771 = vmatprep.subr.mxu0 0.0
      %772 = vmatpush1.msra.mxu0 %v743
      %773 = vmatprep.subr.mxu0 0.0
      %774 = vmatpush1.msra.mxu0 %v742
      %775 = vmatprep.subr.mxu0 0.0
      %776 = vmatpush1.msra.mxu0 %v741
      %777 = vmatprep.subr.mxu0 0.0
      %778 = vmatpush1.msra.mxu0 %v740
      %779 = vmatprep.subr.mxu0 0.0
      %780 = vmatpush1.msra.mxu0 %v739
      %781 = vmatprep.subr.mxu0 0.0
      %782 = vmatpush1.msra.mxu0 %v738
      %783 = vmatprep.subr.mxu0 0.0
      %784 = vmatpush1.msra.mxu0 %v737
      %785 = vmatprep.subr.mxu0 0.0
      %786 = vmatpush2.msra.mxu0 0.0
      %787 = vmatprep.subr.mxu0 0.0
      %788 = vmatpush2.msra.mxu0 0.0
      %789 = vmatprep.subr.mxu0 0.0
      %790 = vmatpush2.msra.mxu0 0.0
      %791 = vmatprep.subr.mxu0 0.0
      %792 = vmatpush2.msra.mxu0 0.0
      %793 = vmatprep.subr.mxu0 0.0
      %794 = vmatpush2.msra.mxu0 0.0
      %795 = vmatprep.subr.mxu0 0.0
      %796 = vmatpush2.msra.mxu0 0.0
      %797 = vmatprep.subr.mxu0 0.0
      %798 = vmatpush2.msra.mxu0 0.0
      %799 = vmatprep.subr.mxu0 0.0
      %800 = vmatpush2.msra.mxu0 0.0
      %801 = vmatprep.subr.mxu0 0.0
      %802 = vmatpush2.msra.mxu0 0.0
      %803 = vmatprep.subr.mxu0 0.0
      %804 = vmatpush2.msra.mxu0 0.0
      %805 = vmatprep.subr.mxu0 0.0
      %806 = vmatpush2.msra.mxu0 0.0
      %807 = vmatprep.subr.mxu0 0.0
      %808 = vmatpush2.msra.mxu0 0.0
      %809 = vmatprep.subr.mxu0 0.0
      %810 = vmatpush2.msra.mxu0 0.0
      %811 = vmatprep.subr.mxu0 0.0
      %812 = vmatpush2.msra.mxu0 0.0
      %813 = vmatprep.subr.mxu0 0.0
      %814 = vmatpush2.msra.mxu0 0.0
      %815 = vmatprep.subr.mxu0 0.0
      %816 = vmatpush2.msra.mxu0 0.0
      %817 = vmatprep.mubr.f32.mxu0 0.0
      %818 = vmatmul.mubr.f32.gmra.mxu0 %v733
      %v819 = vpop.f32.mrf.mxu0
      %v820 = vadd.f32 0.0, %v819
      %v821 = vpop.f32.mrf.mxu0
      %822 = vmatprep.mubr.f32.mxu0 0.0
      %823 = vmatmul.mubr.f32.gmra.mxu0 %v734
      %v824 = vpop.f32.mrf.mxu0
      %v825 = vadd.f32 0.0, %v824
      %v826 = vpop.f32.mrf.mxu0
      %827 = vmatprep.mubr.f32.mxu0 0.0
      %828 = vmatmul.mubr.f32.gmra.mxu0 %v735
      %v829 = vpop.f32.mrf.mxu0
      %v830 = vadd.f32 0.0, %v829
      %v831 = vpop.f32.mrf.mxu0
      %832 = vdwg.mxu0
      %v833 = vadd.f32 %v721, %v820
      %v834 = vadd.f32 %v722, %v825
      %v835 = vadd.f32 %v723, %v830
      %s836 = sadd.s32 %s725, 1
      %s837 = scalar_lea.vmem [#allocation2], %s836
      %v838 = vld [vmem:[%s837] sm:$0xff]
      %v839 = vld [vmem:[%s837 + $0x8] sm:$0xff]
      %v840 = vld [vmem:[%s837 + $0x10] sm:$0xff]
      %v841 = vmul.f32 %v838, %v395
      %v842 = vmul.f32 %v839, %v395
      %v843 = vmul.f32 %v840, %v395
      %v844 = vadd.f32 %v841, %v404
      %v845 = vadd.f32 %v842, %v404
      %v846 = vadd.f32 %v843, %v404
      %s847 = scalar_lea.vmem %s4, 512
      %v848 = vld [vmem:[%s847] sm:$0xff]
      %v849 = vld [vmem:[%s847 + $0x8] sm:$0xff]
      %v850 = vld [vmem:[%s847 + $0x10] sm:$0xff]
      %v851 = vld [vmem:[%s847 + $0x18] sm:$0xff]
      %v852 = vld [vmem:[%s847 + $0x20] sm:$0xff]
      %v853 = vld [vmem:[%s847 + $0x28] sm:$0xff]
      %v854 = vld [vmem:[%s847 + $0x30] sm:$0xff]
      %v855 = vld [vmem:[%s847 + $0x38] sm:$0xff]
      %v856 = vld [vmem:[%s847 + $0x40] sm:$0xff]
      %v857 = vld [vmem:[%s847 + $0x48] sm:$0xff]
      %v858 = vld [vmem:[%s847 + $0x50] sm:$0xff]
      %v859 = vld [vmem:[%s847 + $0x58] sm:$0xff]
      %v860 = vld [vmem:[%s847 + $0x60] sm:$0xff]
      %v861 = vld [vmem:[%s847 + $0x68] sm:$0xff]
      %v862 = vld [vmem:[%s847 + $0x70] sm:$0xff]
      %v863 = vld [vmem:[%s847 + $0x78] sm:$0xff]
      %864 = vmatprep.subr.mxu0 0.0
      %865 = vmatpush1.msra.mxu0 %v863
      %866 = vmatprep.subr.mxu0 0.0
      %867 = vmatpush1.msra.mxu0 %v862
      %868 = vmatprep.subr.mxu0 0.0
      %869 = vmatpush1.msra.mxu0 %v861
      %870 = vmatprep.subr.mxu0 0.0
      %871 = vmatpush1.msra.mxu0 %v860
      %872 = vmatprep.subr.mxu0 0.0
      %873 = vmatpush1.msra.mxu0 %v859
      %874 = vmatprep.subr.mxu0 0.0
      %875 = vmatpush1.msra.mxu0 %v858
      %876 = vmatprep.subr.mxu0 0.0
      %877 = vmatpush1.msra.mxu0 %v857
      %878 = vmatprep.subr.mxu0 0.0
      %879 = vmatpush1.msra.mxu0 %v856
      %880 = vmatprep.subr.mxu0 0.0
      %881 = vmatpush1.msra.mxu0 %v855
      %882 = vmatprep.subr.mxu0 0.0
      %883 = vmatpush1.msra.mxu0 %v854
      %884 = vmatprep.subr.mxu0 0.0
      %885 = vmatpush1.msra.mxu0 %v853
      %886 = vmatprep.subr.mxu0 0.0
      %887 = vmatpush1.msra.mxu0 %v852
      %888 = vmatprep.subr.mxu0 0.0
      %889 = vmatpush1.msra.mxu0 %v851
      %890 = vmatprep.subr.mxu0 0.0
      %891 = vmatpush1.msra.mxu0 %v850
      %892 = vmatprep.subr.mxu0 0.0
      %893 = vmatpush1.msra.mxu0 %v849
      %894 = vmatprep.subr.mxu0 0.0
      %895 = vmatpush1.msra.mxu0 %v848
      %896 = vmatprep.subr.mxu0 0.0
      %897 = vmatpush2.msra.mxu0 0.0
      %898 = vmatprep.subr.mxu0 0.0
      %899 = vmatpush2.msra.mxu0 0.0
      %900 = vmatprep.subr.mxu0 0.0
      %901 = vmatpush2.msra.mxu0 0.0
      %902 = vmatprep.subr.mxu0 0.0
      %903 = vmatpush2.msra.mxu0 0.0
      %904 = vmatprep.subr.mxu0 0.0
      %905 = vmatpush2.msra.mxu0 0.0
      %906 = vmatprep.subr.mxu0 0.0
      %907 = vmatpush2.msra.mxu0 0.0
      %908 = vmatprep.subr.mxu0 0.0
      %909 = vmatpush2.msra.mxu0 0.0
      %910 = vmatprep.subr.mxu0 0.0
      %911 = vmatpush2.msra.mxu0 0.0
      %912 = vmatprep.subr.mxu0 0.0
      %913 = vmatpush2.msra.mxu0 0.0
      %914 = vmatprep.subr.mxu0 0.0
      %915 = vmatpush2.msra.mxu0 0.0
      %916 = vmatprep.subr.mxu0 0.0
      %917 = vmatpush2.msra.mxu0 0.0
      %918 = vmatprep.subr.mxu0 0.0
      %919 = vmatpush2.msra.mxu0 0.0
      %920 = vmatprep.subr.mxu0 0.0
      %921 = vmatpush2.msra.mxu0 0.0
      %922 = vmatprep.subr.mxu0 0.0
      %923 = vmatpush2.msra.mxu0 0.0
      %924 = vmatprep.subr.mxu0 0.0
      %925 = vmatpush2.msra.mxu0 0.0
      %926 = vmatprep.subr.mxu0 0.0
      %927 = vmatpush2.msra.mxu0 0.0
      %928 = vmatprep.mubr.f32.mxu0 0.0
      %929 = vmatmul.mubr.f32.gmra.mxu0 %v844
      %v930 = vpop.f32.mrf.mxu0
      %v931 = vadd.f32 0.0, %v930
      %v932 = vpop.f32.mrf.mxu0
      %933 = vmatprep.mubr.f32.mxu0 0.0
      %934 = vmatmul.mubr.f32.gmra.mxu0 %v845
      %v935 = vpop.f32.mrf.mxu0
      %v936 = vadd.f32 0.0, %v935
      %v937 = vpop.f32.mrf.mxu0
      %938 = vmatprep.mubr.f32.mxu0 0.0
      %939 = vmatmul.mubr.f32.gmra.mxu0 %v846
      %v940 = vpop.f32.mrf.mxu0
      %v941 = vadd.f32 0.0, %v940
      %v942 = vpop.f32.mrf.mxu0
      %943 = vdwg.mxu0
      %v944 = vadd.f32 %v833, %v931
      %v945 = vadd.f32 %v834, %v936
      %v946 = vadd.f32 %v835, %v941
      %s947 = sadd.s32 %s725, 2
      %s948 = scalar_lea.vmem [#allocation2], %s947
      %v949 = vld [vmem:[%s948] sm:$0xff]
      %v950 = vld [vmem:[%s948 + $0x8] sm:$0xff]
      %v951 = vld [vmem:[%s948 + $0x10] sm:$0xff]
      %v952 = vmul.f32 %v949, %v395
      %v953 = vmul.f32 %v950, %v395
      %v954 = vmul.f32 %v951, %v395
      %v955 = vadd.f32 %v952, %v404
      %v956 = vadd.f32 %v953, %v404
      %v957 = vadd.f32 %v954, %v404
      %s958 = scalar_lea.vmem %s4, 640
      %v959 = vld [vmem:[%s958] sm:$0xff]
      %v960 = vld [vmem:[%s958 + $0x8] sm:$0xff]
      %v961 = vld [vmem:[%s958 + $0x10] sm:$0xff]
      %v962 = vld [vmem:[%s958 + $0x18] sm:$0xff]
      %v963 = vld [vmem:[%s958 + $0x20] sm:$0xff]
      %v964 = vld [vmem:[%s958 + $0x28] sm:$0xff]
      %v965 = vld [vmem:[%s958 + $0x30] sm:$0xff]
      %v966 = vld [vmem:[%s958 + $0x38] sm:$0xff]
      %v967 = vld [vmem:[%s958 + $0x40] sm:$0xff]
      %v968 = vld [vmem:[%s958 + $0x48] sm:$0xff]
      %v969 = vld [vmem:[%s958 + $0x50] sm:$0xff]
      %v970 = vld [vmem:[%s958 + $0x58] sm:$0xff]
      %v971 = vld [vmem:[%s958 + $0x60] sm:$0xff]
      %v972 = vld [vmem:[%s958 + $0x68] sm:$0xff]
      %v973 = vld [vmem:[%s958 + $0x70] sm:$0xff]
      %v974 = vld [vmem:[%s958 + $0x78] sm:$0xff]
      %975 = vmatprep.subr.mxu0 0.0
      %976 = vmatpush1.msra.mxu0 %v974
      %977 = vmatprep.subr.mxu0 0.0
      %978 = vmatpush1.msra.mxu0 %v973
      %979 = vmatprep.subr.mxu0 0.0
      %980 = vmatpush1.msra.mxu0 %v972
      %981 = vmatprep.subr.mxu0 0.0
      %982 = vmatpush1.msra.mxu0 %v971
      %983 = vmatprep.subr.mxu0 0.0
      %984 = vmatpush1.msra.mxu0 %v970
      %985 = vmatprep.subr.mxu0 0.0
      %986 = vmatpush1.msra.mxu0 %v969
      %987 = vmatprep.subr.mxu0 0.0
      %988 = vmatpush1.msra.mxu0 %v968
      %989 = vmatprep.subr.mxu0 0.0
      %990 = vmatpush1.msra.mxu0 %v967
      %991 = vmatprep.subr.mxu0 0.0
      %992 = vmatpush1.msra.mxu0 %v966
      %993 = vmatprep.subr.mxu0 0.0
      %994 = vmatpush1.msra.mxu0 %v965
      %995 = vmatprep.subr.mxu0 0.0
      %996 = vmatpush1.msra.mxu0 %v964
      %997 = vmatprep.subr.mxu0 0.0
      %998 = vmatpush1.msra.mxu0 %v963
      %999 = vmatprep.subr.mxu0 0.0
      %1000 = vmatpush1.msra.mxu0 %v962
      %1001 = vmatprep.subr.mxu0 0.0
      %1002 = vmatpush1.msra.mxu0 %v961
      %1003 = vmatprep.subr.mxu0 0.0
      %1004 = vmatpush1.msra.mxu0 %v960
      %1005 = vmatprep.subr.mxu0 0.0
      %1006 = vmatpush1.msra.mxu0 %v959
      %1007 = vmatprep.subr.mxu0 0.0
      %1008 = vmatpush2.msra.mxu0 0.0
      %1009 = vmatprep.subr.mxu0 0.0
      %1010 = vmatpush2.msra.mxu0 0.0
      %1011 = vmatprep.subr.mxu0 0.0
      %1012 = vmatpush2.msra.mxu0 0.0
      %1013 = vmatprep.subr.mxu0 0.0
      %1014 = vmatpush2.msra.mxu0 0.0
      %1015 = vmatprep.subr.mxu0 0.0
      %1016 = vmatpush2.msra.mxu0 0.0
      %1017 = vmatprep.subr.mxu0 0.0
      %1018 = vmatpush2.msra.mxu0 0.0
      %1019 = vmatprep.subr.mxu0 0.0
      %1020 = vmatpush2.msra.mxu0 0.0
      %1021 = vmatprep.subr.mxu0 0.0
      %1022 = vmatpush2.msra.mxu0 0.0
      %1023 = vmatprep.subr.mxu0 0.0
      %1024 = vmatpush2.msra.mxu0 0.0
      %1025 = vmatprep.subr.mxu0 0.0
      %1026 = vmatpush2.msra.mxu0 0.0
      %1027 = vmatprep.subr.mxu0 0.0
      %1028 = vmatpush2.msra.mxu0 0.0
      %1029 = vmatprep.subr.mxu0 0.0
      %1030 = vmatpush2.msra.mxu0 0.0
      %1031 = vmatprep.subr.mxu0 0.0
      %1032 = vmatpush2.msra.mxu0 0.0
      %1033 = vmatprep.subr.mxu0 0.0
      %1034 = vmatpush2.msra.mxu0 0.0
      %1035 = vmatprep.subr.mxu0 0.0
      %1036 = vmatpush2.msra.mxu0 0.0
      %1037 = vmatprep.subr.mxu0 0.0
      %1038 = vmatpush2.msra.mxu0 0.0
      %1039 = vmatprep.mubr.f32.mxu0 0.0
      %1040 = vmatmul.mubr.f32.gmra.mxu0 %v955
      %v1041 = vpop.f32.mrf.mxu0
      %v1042 = vadd.f32 0.0, %v1041
      %v1043 = vpop.f32.mrf.mxu0
      %1044 = vmatprep.mubr.f32.mxu0 0.0
      %1045 = vmatmul.mubr.f32.gmra.mxu0 %v956
      %v1046 = vpop.f32.mrf.mxu0
      %v1047 = vadd.f32 0.0, %v1046
      %v1048 = vpop.f32.mrf.mxu0
      %1049 = vmatprep.mubr.f32.mxu0 0.0
      %1050 = vmatmul.mubr.f32.gmra.mxu0 %v957
      %v1051 = vpop.f32.mrf.mxu0
      %v1052 = vadd.f32 0.0, %v1051
      %v1053 = vpop.f32.mrf.mxu0
      %1054 = vdwg.mxu0
      %v1055 = vadd.f32 %v944, %v1042
      %v1056 = vadd.f32 %v945, %v1047
      %v1057 = vadd.f32 %v946, %v1052
      %s1058 = sadd.s32 %s379, 2
      %s1059 = smul.u32 %s1058, 26
      %s1060 = scalar_lea.vmem [#allocation2], %s1059
      %v1061 = vld [vmem:[%s1060] sm:$0xff]
      %v1062 = vld [vmem:[%s1060 + $0x8] sm:$0xff]
      %v1063 = vld [vmem:[%s1060 + $0x10] sm:$0xff]
      %v1064 = vmul.f32 %v1061, %v395
      %v1065 = vmul.f32 %v1062, %v395
      %v1066 = vmul.f32 %v1063, %v395
      %v1067 = vadd.f32 %v1064, %v404
      %v1068 = vadd.f32 %v1065, %v404
      %v1069 = vadd.f32 %v1066, %v404
      %s1070 = scalar_lea.vmem %s4, 768
      %v1071 = vld [vmem:[%s1070] sm:$0xff]
      %v1072 = vld [vmem:[%s1070 + $0x8] sm:$0xff]
      %v1073 = vld [vmem:[%s1070 + $0x10] sm:$0xff]
      %v1074 = vld [vmem:[%s1070 + $0x18] sm:$0xff]
      %v1075 = vld [vmem:[%s1070 + $0x20] sm:$0xff]
      %v1076 = vld [vmem:[%s1070 + $0x28] sm:$0xff]
      %v1077 = vld [vmem:[%s1070 + $0x30] sm:$0xff]
      %v1078 = vld [vmem:[%s1070 + $0x38] sm:$0xff]
      %v1079 = vld [vmem:[%s1070 + $0x40] sm:$0xff]
      %v1080 = vld [vmem:[%s1070 + $0x48] sm:$0xff]
      %v1081 = vld [vmem:[%s1070 + $0x50] sm:$0xff]
      %v1082 = vld [vmem:[%s1070 + $0x58] sm:$0xff]
      %v1083 = vld [vmem:[%s1070 + $0x60] sm:$0xff]
      %v1084 = vld [vmem:[%s1070 + $0x68] sm:$0xff]
      %v1085 = vld [vmem:[%s1070 + $0x70] sm:$0xff]
      %v1086 = vld [vmem:[%s1070 + $0x78] sm:$0xff]
      %1087 = vmatprep.subr.mxu0 0.0
      %1088 = vmatpush1.msra.mxu0 %v1086
      %1089 = vmatprep.subr.mxu0 0.0
      %1090 = vmatpush1.msra.mxu0 %v1085
      %1091 = vmatprep.subr.mxu0 0.0
      %1092 = vmatpush1.msra.mxu0 %v1084
      %1093 = vmatprep.subr.mxu0 0.0
      %1094 = vmatpush1.msra.mxu0 %v1083
      %1095 = vmatprep.subr.mxu0 0.0
      %1096 = vmatpush1.msra.mxu0 %v1082
      %1097 = vmatprep.subr.mxu0 0.0
      %1098 = vmatpush1.msra.mxu0 %v1081
      %1099 = vmatprep.subr.mxu0 0.0
      %1100 = vmatpush1.msra.mxu0 %v1080
      %1101 = vmatprep.subr.mxu0 0.0
      %1102 = vmatpush1.msra.mxu0 %v1079
      %1103 = vmatprep.subr.mxu0 0.0
      %1104 = vmatpush1.msra.mxu0 %v1078
      %1105 = vmatprep.subr.mxu0 0.0
      %1106 = vmatpush1.msra.mxu0 %v1077
      %1107 = vmatprep.subr.mxu0 0.0
      %1108 = vmatpush1.msra.mxu0 %v1076
      %1109 = vmatprep.subr.mxu0 0.0
      %1110 = vmatpush1.msra.mxu0 %v1075
      %1111 = vmatprep.subr.mxu0 0.0
      %1112 = vmatpush1.msra.mxu0 %v1074
      %1113 = vmatprep.subr.mxu0 0.0
      %1114 = vmatpush1.msra.mxu0 %v1073
      %1115 = vmatprep.subr.mxu0 0.0
      %1116 = vmatpush1.msra.mxu0 %v1072
      %1117 = vmatprep.subr.mxu0 0.0
      %1118 = vmatpush1.msra.mxu0 %v1071
      %1119 = vmatprep.subr.mxu0 0.0
      %1120 = vmatpush2.msra.mxu0 0.0
      %1121 = vmatprep.subr.mxu0 0.0
      %1122 = vmatpush2.msra.mxu0 0.0
      %1123 = vmatprep.subr.mxu0 0.0
      %1124 = vmatpush2.msra.mxu0 0.0
      %1125 = vmatprep.subr.mxu0 0.0
      %1126 = vmatpush2.msra.mxu0 0.0
      %1127 = vmatprep.subr.mxu0 0.0
      %1128 = vmatpush2.msra.mxu0 0.0
      %1129 = vmatprep.subr.mxu0 0.0
      %1130 = vmatpush2.msra.mxu0 0.0
      %1131 = vmatprep.subr.mxu0 0.0
      %1132 = vmatpush2.msra.mxu0 0.0
      %1133 = vmatprep.subr.mxu0 0.0
      %1134 = vmatpush2.msra.mxu0 0.0
      %1135 = vmatprep.subr.mxu0 0.0
      %1136 = vmatpush2.msra.mxu0 0.0
      %1137 = vmatprep.subr.mxu0 0.0
      %1138 = vmatpush2.msra.mxu0 0.0
      %1139 = vmatprep.subr.mxu0 0.0
      %1140 = vmatpush2.msra.mxu0 0.0
      %1141 = vmatprep.subr.mxu0 0.0
      %1142 = vmatpush2.msra.mxu0 0.0
      %1143 = vmatprep.subr.mxu0 0.0
      %1144 = vmatpush2.msra.mxu0 0.0
      %1145 = vmatprep.subr.mxu0 0.0
      %1146 = vmatpush2.msra.mxu0 0.0
      %1147 = vmatprep.subr.mxu0 0.0
      %1148 = vmatpush2.msra.mxu0 0.0
      %1149 = vmatprep.subr.mxu0 0.0
      %1150 = vmatpush2.msra.mxu0 0.0
      %1151 = vmatprep.mubr.f32.mxu0 0.0
      %1152 = vmatmul.mubr.f32.gmra.mxu0 %v1067
      %v1153 = vpop.f32.mrf.mxu0
      %v1154 = vadd.f32 0.0, %v1153
      %v1155 = vpop.f32.mrf.mxu0
      %1156 = vmatprep.mubr.f32.mxu0 0.0
      %1157 = vmatmul.mubr.f32.gmra.mxu0 %v1068
      %v1158 = vpop.f32.mrf.mxu0
      %v1159 = vadd.f32 0.0, %v1158
      %v1160 = vpop.f32.mrf.mxu0
      %1161 = vmatprep.mubr.f32.mxu0 0.0
      %1162 = vmatmul.mubr.f32.gmra.mxu0 %v1069
      %v1163 = vpop.f32.mrf.mxu0
      %v1164 = vadd.f32 0.0, %v1163
      %v1165 = vpop.f32.mrf.mxu0
      %1166 = vdwg.mxu0
      %v1167 = vadd.f32 %v1055, %v1154
      %v1168 = vadd.f32 %v1056, %v1159
      %v1169 = vadd.f32 %v1057, %v1164
      %s1170 = sadd.s32 %s1059, 1
      %s1171 = scalar_lea.vmem [#allocation2], %s1170
      %v1172 = vld [vmem:[%s1171] sm:$0xff]
      %v1173 = vld [vmem:[%s1171 + $0x8] sm:$0xff]
      %v1174 = vld [vmem:[%s1171 + $0x10] sm:$0xff]
      %v1175 = vmul.f32 %v1172, %v395
      %v1176 = vmul.f32 %v1173, %v395
      %v1177 = vmul.f32 %v1174, %v395
      %v1178 = vadd.f32 %v1175, %v404
      %v1179 = vadd.f32 %v1176, %v404
      %v1180 = vadd.f32 %v1177, %v404
      %s1181 = scalar_lea.vmem %s4, 896
      %v1182 = vld [vmem:[%s1181] sm:$0xff]
      %v1183 = vld [vmem:[%s1181 + $0x8] sm:$0xff]
      %v1184 = vld [vmem:[%s1181 + $0x10] sm:$0xff]
      %v1185 = vld [vmem:[%s1181 + $0x18] sm:$0xff]
      %v1186 = vld [vmem:[%s1181 + $0x20] sm:$0xff]
      %v1187 = vld [vmem:[%s1181 + $0x28] sm:$0xff]
      %v1188 = vld [vmem:[%s1181 + $0x30] sm:$0xff]
      %v1189 = vld [vmem:[%s1181 + $0x38] sm:$0xff]
      %v1190 = vld [vmem:[%s1181 + $0x40] sm:$0xff]
      %v1191 = vld [vmem:[%s1181 + $0x48] sm:$0xff]
      %v1192 = vld [vmem:[%s1181 + $0x50] sm:$0xff]
      %v1193 = vld [vmem:[%s1181 + $0x58] sm:$0xff]
      %v1194 = vld [vmem:[%s1181 + $0x60] sm:$0xff]
      %v1195 = vld [vmem:[%s1181 + $0x68] sm:$0xff]
      %v1196 = vld [vmem:[%s1181 + $0x70] sm:$0xff]
      %v1197 = vld [vmem:[%s1181 + $0x78] sm:$0xff]
      %1198 = vmatprep.subr.mxu0 0.0
      %1199 = vmatpush1.msra.mxu0 %v1197
      %1200 = vmatprep.subr.mxu0 0.0
      %1201 = vmatpush1.msra.mxu0 %v1196
      %1202 = vmatprep.subr.mxu0 0.0
      %1203 = vmatpush1.msra.mxu0 %v1195
      %1204 = vmatprep.subr.mxu0 0.0
      %1205 = vmatpush1.msra.mxu0 %v1194
      %1206 = vmatprep.subr.mxu0 0.0
      %1207 = vmatpush1.msra.mxu0 %v1193
      %1208 = vmatprep.subr.mxu0 0.0
      %1209 = vmatpush1.msra.mxu0 %v1192
      %1210 = vmatprep.subr.mxu0 0.0
      %1211 = vmatpush1.msra.mxu0 %v1191
      %1212 = vmatprep.subr.mxu0 0.0
      %1213 = vmatpush1.msra.mxu0 %v1190
      %1214 = vmatprep.subr.mxu0 0.0
      %1215 = vmatpush1.msra.mxu0 %v1189
      %1216 = vmatprep.subr.mxu0 0.0
      %1217 = vmatpush1.msra.mxu0 %v1188
      %1218 = vmatprep.subr.mxu0 0.0
      %1219 = vmatpush1.msra.mxu0 %v1187
      %1220 = vmatprep.subr.mxu0 0.0
      %1221 = vmatpush1.msra.mxu0 %v1186
      %1222 = vmatprep.subr.mxu0 0.0
      %1223 = vmatpush1.msra.mxu0 %v1185
      %1224 = vmatprep.subr.mxu0 0.0
      %1225 = vmatpush1.msra.mxu0 %v1184
      %1226 = vmatprep.subr.mxu0 0.0
      %1227 = vmatpush1.msra.mxu0 %v1183
      %1228 = vmatprep.subr.mxu0 0.0
      %1229 = vmatpush1.msra.mxu0 %v1182
      %1230 = vmatprep.subr.mxu0 0.0
      %1231 = vmatpush2.msra.mxu0 0.0
      %1232 = vmatprep.subr.mxu0 0.0
      %1233 = vmatpush2.msra.mxu0 0.0
      %1234 = vmatprep.subr.mxu0 0.0
      %1235 = vmatpush2.msra.mxu0 0.0
      %1236 = vmatprep.subr.mxu0 0.0
      %1237 = vmatpush2.msra.mxu0 0.0
      %1238 = vmatprep.subr.mxu0 0.0
      %1239 = vmatpush2.msra.mxu0 0.0
      %1240 = vmatprep.subr.mxu0 0.0
      %1241 = vmatpush2.msra.mxu0 0.0
      %1242 = vmatprep.subr.mxu0 0.0
      %1243 = vmatpush2.msra.mxu0 0.0
      %1244 = vmatprep.subr.mxu0 0.0
      %1245 = vmatpush2.msra.mxu0 0.0
      %1246 = vmatprep.subr.mxu0 0.0
      %1247 = vmatpush2.msra.mxu0 0.0
      %1248 = vmatprep.subr.mxu0 0.0
      %1249 = vmatpush2.msra.mxu0 0.0
      %1250 = vmatprep.subr.mxu0 0.0
      %1251 = vmatpush2.msra.mxu0 0.0
      %1252 = vmatprep.subr.mxu0 0.0
      %1253 = vmatpush2.msra.mxu0 0.0
      %1254 = vmatprep.subr.mxu0 0.0
      %1255 = vmatpush2.msra.mxu0 0.0
      %1256 = vmatprep.subr.mxu0 0.0
      %1257 = vmatpush2.msra.mxu0 0.0
      %1258 = vmatprep.subr.mxu0 0.0
      %1259 = vmatpush2.msra.mxu0 0.0
      %1260 = vmatprep.subr.mxu0 0.0
      %1261 = vmatpush2.msra.mxu0 0.0
      %1262 = vmatprep.mubr.f32.mxu0 0.0
      %1263 = vmatmul.mubr.f32.gmra.mxu0 %v1178
      %v1264 = vpop.f32.mrf.mxu0
      %v1265 = vadd.f32 0.0, %v1264
      %v1266 = vpop.f32.mrf.mxu0
      %1267 = vmatprep.mubr.f32.mxu0 0.0
      %1268 = vmatmul.mubr.f32.gmra.mxu0 %v1179
      %v1269 = vpop.f32.mrf.mxu0
      %v1270 = vadd.f32 0.0, %v1269
      %v1271 = vpop.f32.mrf.mxu0
      %1272 = vmatprep.mubr.f32.mxu0 0.0
      %1273 = vmatmul.mubr.f32.gmra.mxu0 %v1180
      %v1274 = vpop.f32.mrf.mxu0
      %v1275 = vadd.f32 0.0, %v1274
      %v1276 = vpop.f32.mrf.mxu0
      %1277 = vdwg.mxu0
      %v1278 = vadd.f32 %v1167, %v1265
      %v1279 = vadd.f32 %v1168, %v1270
      %v1280 = vadd.f32 %v1169, %v1275
      %s1281 = sadd.s32 %s1059, 2
      %s1282 = scalar_lea.vmem [#allocation2], %s1281
      %v1283 = vld [vmem:[%s1282] sm:$0xff]
      %v1284 = vld [vmem:[%s1282 + $0x8] sm:$0xff]
      %v1285 = vld [vmem:[%s1282 + $0x10] sm:$0xff]
      %v1286 = vmul.f32 %v1283, %v395
      %v1287 = vmul.f32 %v1284, %v395
      %v1288 = vmul.f32 %v1285, %v395
      %v1289 = vadd.f32 %v1286, %v404
      %v1290 = vadd.f32 %v1287, %v404
      %v1291 = vadd.f32 %v1288, %v404
      %s1292 = scalar_lea.vmem %s4, 1024
      %v1293 = vld [vmem:[%s1292] sm:$0xff]
      %v1294 = vld [vmem:[%s1292 + $0x8] sm:$0xff]
      %v1295 = vld [vmem:[%s1292 + $0x10] sm:$0xff]
      %v1296 = vld [vmem:[%s1292 + $0x18] sm:$0xff]
      %v1297 = vld [vmem:[%s1292 + $0x20] sm:$0xff]
      %v1298 = vld [vmem:[%s1292 + $0x28] sm:$0xff]
      %v1299 = vld [vmem:[%s1292 + $0x30] sm:$0xff]
      %v1300 = vld [vmem:[%s1292 + $0x38] sm:$0xff]
      %v1301 = vld [vmem:[%s1292 + $0x40] sm:$0xff]
      %v1302 = vld [vmem:[%s1292 + $0x48] sm:$0xff]
      %v1303 = vld [vmem:[%s1292 + $0x50] sm:$0xff]
      %v1304 = vld [vmem:[%s1292 + $0x58] sm:$0xff]
      %v1305 = vld [vmem:[%s1292 + $0x60] sm:$0xff]
      %v1306 = vld [vmem:[%s1292 + $0x68] sm:$0xff]
      %v1307 = vld [vmem:[%s1292 + $0x70] sm:$0xff]
      %v1308 = vld [vmem:[%s1292 + $0x78] sm:$0xff]
      %1309 = vmatprep.subr.mxu0 0.0
      %1310 = vmatpush1.msra.mxu0 %v1308
      %1311 = vmatprep.subr.mxu0 0.0
      %1312 = vmatpush1.msra.mxu0 %v1307
      %1313 = vmatprep.subr.mxu0 0.0
      %1314 = vmatpush1.msra.mxu0 %v1306
      %1315 = vmatprep.subr.mxu0 0.0
      %1316 = vmatpush1.msra.mxu0 %v1305
      %1317 = vmatprep.subr.mxu0 0.0
      %1318 = vmatpush1.msra.mxu0 %v1304
      %1319 = vmatprep.subr.mxu0 0.0
      %1320 = vmatpush1.msra.mxu0 %v1303
      %1321 = vmatprep.subr.mxu0 0.0
      %1322 = vmatpush1.msra.mxu0 %v1302
      %1323 = vmatprep.subr.mxu0 0.0
      %1324 = vmatpush1.msra.mxu0 %v1301
      %1325 = vmatprep.subr.mxu0 0.0
      %1326 = vmatpush1.msra.mxu0 %v1300
      %1327 = vmatprep.subr.mxu0 0.0
      %1328 = vmatpush1.msra.mxu0 %v1299
      %1329 = vmatprep.subr.mxu0 0.0
      %1330 = vmatpush1.msra.mxu0 %v1298
      %1331 = vmatprep.subr.mxu0 0.0
      %1332 = vmatpush1.msra.mxu0 %v1297
      %1333 = vmatprep.subr.mxu0 0.0
      %1334 = vmatpush1.msra.mxu0 %v1296
      %1335 = vmatprep.subr.mxu0 0.0
      %1336 = vmatpush1.msra.mxu0 %v1295
      %1337 = vmatprep.subr.mxu0 0.0
      %1338 = vmatpush1.msra.mxu0 %v1294
      %1339 = vmatprep.subr.mxu0 0.0
      %1340 = vmatpush1.msra.mxu0 %v1293
      %1341 = vmatprep.subr.mxu0 0.0
      %1342 = vmatpush2.msra.mxu0 0.0
      %1343 = vmatprep.subr.mxu0 0.0
      %1344 = vmatpush2.msra.mxu0 0.0
      %1345 = vmatprep.subr.mxu0 0.0
      %1346 = vmatpush2.msra.mxu0 0.0
      %1347 = vmatprep.subr.mxu0 0.0
      %1348 = vmatpush2.msra.mxu0 0.0
      %1349 = vmatprep.subr.mxu0 0.0
      %1350 = vmatpush2.msra.mxu0 0.0
      %1351 = vmatprep.subr.mxu0 0.0
      %1352 = vmatpush2.msra.mxu0 0.0
      %1353 = vmatprep.subr.mxu0 0.0
      %1354 = vmatpush2.msra.mxu0 0.0
      %1355 = vmatprep.subr.mxu0 0.0
      %1356 = vmatpush2.msra.mxu0 0.0
      %1357 = vmatprep.subr.mxu0 0.0
      %1358 = vmatpush2.msra.mxu0 0.0
      %1359 = vmatprep.subr.mxu0 0.0
      %1360 = vmatpush2.msra.mxu0 0.0
      %1361 = vmatprep.subr.mxu0 0.0
      %1362 = vmatpush2.msra.mxu0 0.0
      %1363 = vmatprep.subr.mxu0 0.0
      %1364 = vmatpush2.msra.mxu0 0.0
      %1365 = vmatprep.subr.mxu0 0.0
      %1366 = vmatpush2.msra.mxu0 0.0
      %1367 = vmatprep.subr.mxu0 0.0
      %1368 = vmatpush2.msra.mxu0 0.0
      %1369 = vmatprep.subr.mxu0 0.0
      %1370 = vmatpush2.msra.mxu0 0.0
      %1371 = vmatprep.subr.mxu0 0.0
      %1372 = vmatpush2.msra.mxu0 0.0
      %1373 = vmatprep.mubr.f32.mxu0 0.0
      %1374 = vmatmul.mubr.f32.gmra.mxu0 %v1289
      %v1375 = vpop.f32.mrf.mxu0
      %v1376 = vadd.f32 0.0, %v1375
      %v1377 = vpop.f32.mrf.mxu0
      %1378 = vmatprep.mubr.f32.mxu0 0.0
      %1379 = vmatmul.mubr.f32.gmra.mxu0 %v1290
      %v1380 = vpop.f32.mrf.mxu0
      %v1381 = vadd.f32 0.0, %v1380
      %v1382 = vpop.f32.mrf.mxu0
      %1383 = vmatprep.mubr.f32.mxu0 0.0
      %1384 = vmatmul.mubr.f32.gmra.mxu0 %v1291
      %v1385 = vpop.f32.mrf.mxu0
      %v1386 = vadd.f32 0.0, %v1385
      %v1387 = vpop.f32.mrf.mxu0
      %1388 = vdwg.mxu0
      %v1389 = vadd.f32 %v1278, %v1376
      %v1390 = vadd.f32 %v1279, %v1381
      %v1391 = vadd.f32 %v1280, %v1386
      %v1392 = vmax.f32 %v1389, 0.0
      %v1393 = vmax.f32 %v1390, 0.0
      %v1394 = vmax.f32 %v1391, 0.0
      %s1395 = smul.u32 %s379, 24
      %s1396 = scalar_lea.vmem [#allocation3], %s1395
      %1397 = vst [vmem:[%s1396] sm:$0xff] %v1392
      %1398 = vst [vmem:[%s1396 + $0x8] sm:$0xff] %v1393
      %1399 = vst [vmem:[%s1396 + $0x10] sm:$0xff] %v1394
      %v1400 = vadd.f32 %v1392, %v1393
      %v1401 = vadd.f32 %v1400, %v1394
      %v1402 = vrot.slane %v1401, 4
      %v1403 = vadd.f32 %v1401, %v1402
      %v1404 = vrot.slane %v1403, 2
      %v1405 = vadd.f32 %v1403, %v1404
      %v1406 = vrot.slane %v1405, 1
      %v1407 = vadd.f32 %v1405, %v1406
      %v1408 = vadd.f32 %v384, %v1407
      %v1409 = vmul.f32 %v1392, %v1392
      %v1410 = vmul.f32 %v1393, %v1393
      %v1411 = vmul.f32 %v1394, %v1394
      %v1412 = vadd.f32 %v1409, %v1410
      %v1413 = vadd.f32 %v1412, %v1411
      %v1414 = vrot.slane %v1413, 4
      %v1415 = vadd.f32 %v1413, %v1414
      %v1416 = vrot.slane %v1415, 2
      %v1417 = vadd.f32 %v1415, %v1416
      %v1418 = vrot.slane %v1417, 1
      %v1419 = vadd.f32 %v1417, %v1418
      %v1420 = vadd.f32 %v385, %v1419
    $region73: #{model4_forward.1} parent=1 // loop_footer
      %s383 = sadd.s32 1, %s379
    $region74: #{model4_forward.1} parent=1 // loop_footer_branch
      %378 = sbr.rel target = $region70
    $region75: #{model4_forward.1} parent=1 // loop_exit
      _
    %v1421 = vadd.f32 %v384, 0.0
    %v1422 = vadd.f32 %v385, 0.0
    loop: start=0, step=1, limit=24
    $region76: #{model4_forward.1} parent=1 // loop_pre_header
      _
    $region77: #{model4_forward.1} parent=1 // loop_header
      %s1424 = sphi 0, %s1428
      %p1425 = scmp.ge.s32.totalorder %s1424, 24
      %v1429 = vphi 0.0, %v2457
      %v1430 = vphi 0.0, %v2469
    $region78: #{model4_forward.1} parent=1 // loop_header_branch
      %1427 = sbr.rel (%p1425) target = $region82
    $region79: #{model4_forward.1} parent=1 // loop_body
      %s1431 = smul.u32 %s1424, 26
      %s1432 = sadd.s32 %s1431, 676
      %s1433 = scalar_lea.vmem [#allocation2], %s1432
      %v1434 = vld [vmem:[%s1433] sm:$0xff]
      %v1435 = vld [vmem:[%s1433 + $0x8] sm:$0xff]
      %v1436 = vld [vmem:[%s1433 + $0x10] sm:$0xff]
      %v1438 = vlaneseq
      %v1439 = vshrl.u32 %v1438, 7
      %v1440 = vsub.s32 0, %v1439
      %v1441 = vrot.slane %v375, %v1440
      %v1443 = vmul.f32 %v1434, %v1441
      %v1444 = vmul.f32 %v1435, %v1441
      %v1445 = vmul.f32 %v1436, %v1441
      %v1447 = vlaneseq
      %v1448 = vshrl.u32 %v1447, 7
      %v1449 = vsub.s32 0, %v1448
      %v1450 = vrot.slane %v377, %v1449
      %v1452 = vadd.f32 %v1443, %v1450
      %v1453 = vadd.f32 %v1444, %v1450
      %v1454 = vadd.f32 %v1445, %v1450
      %v1455 = vld [vmem:[%s4] sm:$0xff]
      %v1456 = vld [vmem:[%s4 + $0x8] sm:$0xff]
      %v1457 = vld [vmem:[%s4 + $0x10] sm:$0xff]
      %v1458 = vld [vmem:[%s4 + $0x18] sm:$0xff]
      %v1459 = vld [vmem:[%s4 + $0x20] sm:$0xff]
      %v1460 = vld [vmem:[%s4 + $0x28] sm:$0xff]
      %v1461 = vld [vmem:[%s4 + $0x30] sm:$0xff]
      %v1462 = vld [vmem:[%s4 + $0x38] sm:$0xff]
      %v1463 = vld [vmem:[%s4 + $0x40] sm:$0xff]
      %v1464 = vld [vmem:[%s4 + $0x48] sm:$0xff]
      %v1465 = vld [vmem:[%s4 + $0x50] sm:$0xff]
      %v1466 = vld [vmem:[%s4 + $0x58] sm:$0xff]
      %v1467 = vld [vmem:[%s4 + $0x60] sm:$0xff]
      %v1468 = vld [vmem:[%s4 + $0x68] sm:$0xff]
      %v1469 = vld [vmem:[%s4 + $0x70] sm:$0xff]
      %v1470 = vld [vmem:[%s4 + $0x78] sm:$0xff]
      %s1471 = sadd.s32 %s1431, 677
      %s1472 = scalar_lea.vmem [#allocation2], %s1471
      %v1473 = vld [vmem:[%s1472] sm:$0xff]
      %v1474 = vld [vmem:[%s1472 + $0x8] sm:$0xff]
      %v1475 = vld [vmem:[%s1472 + $0x10] sm:$0xff]
      %v1476 = vmul.f32 %v1473, %v1441
      %v1477 = vmul.f32 %v1474, %v1441
      %v1478 = vmul.f32 %v1475, %v1441
      %v1479 = vadd.f32 %v1476, %v1450
      %v1480 = vadd.f32 %v1477, %v1450
      %v1481 = vadd.f32 %v1478, %v1450
      %s1482 = scalar_lea.vmem %s4, 128
      %v1483 = vld [vmem:[%s1482] sm:$0xff]
      %v1484 = vld [vmem:[%s1482 + $0x8] sm:$0xff]
      %v1485 = vld [vmem:[%s1482 + $0x10] sm:$0xff]
      %v1486 = vld [vmem:[%s1482 + $0x18] sm:$0xff]
      %v1487 = vld [vmem:[%s1482 + $0x20] sm:$0xff]
      %v1488 = vld [vmem:[%s1482 + $0x28] sm:$0xff]
      %v1489 = vld [vmem:[%s1482 + $0x30] sm:$0xff]
      %v1490 = vld [vmem:[%s1482 + $0x38] sm:$0xff]
      %v1491 = vld [vmem:[%s1482 + $0x40] sm:$0xff]
      %v1492 = vld [vmem:[%s1482 + $0x48] sm:$0xff]
      %v1493 = vld [vmem:[%s1482 + $0x50] sm:$0xff]
      %v1494 = vld [vmem:[%s1482 + $0x58] sm:$0xff]
      %v1495 = vld [vmem:[%s1482 + $0x60] sm:$0xff]
      %v1496 = vld [vmem:[%s1482 + $0x68] sm:$0xff]
      %v1497 = vld [vmem:[%s1482 + $0x70] sm:$0xff]
      %v1498 = vld [vmem:[%s1482 + $0x78] sm:$0xff]
      %1499 = vmatprep.subr.mxu0 0.0
      %1500 = vmatpush1.msra.mxu0 %v1498
      %1501 = vmatprep.subr.mxu0 0.0
      %1502 = vmatpush1.msra.mxu0 %v1497
      %1503 = vmatprep.subr.mxu0 0.0
      %1504 = vmatpush1.msra.mxu0 %v1496
      %1505 = vmatprep.subr.mxu0 0.0
      %1506 = vmatpush1.msra.mxu0 %v1495
      %1507 = vmatprep.subr.mxu0 0.0
      %1508 = vmatpush1.msra.mxu0 %v1494
      %1509 = vmatprep.subr.mxu0 0.0
      %1510 = vmatpush1.msra.mxu0 %v1493
      %1511 = vmatprep.subr.mxu0 0.0
      %1512 = vmatpush1.msra.mxu0 %v1492
      %1513 = vmatprep.subr.mxu0 0.0
      %1514 = vmatpush1.msra.mxu0 %v1491
      %1515 = vmatprep.subr.mxu0 0.0
      %1516 = vmatpush1.msra.mxu0 %v1490
      %1517 = vmatprep.subr.mxu0 0.0
      %1518 = vmatpush1.msra.mxu0 %v1489
      %1519 = vmatprep.subr.mxu0 0.0
      %1520 = vmatpush1.msra.mxu0 %v1488
      %1521 = vmatprep.subr.mxu0 0.0
      %1522 = vmatpush1.msra.mxu0 %v1487
      %1523 = vmatprep.subr.mxu0 0.0
      %1524 = vmatpush1.msra.mxu0 %v1486
      %1525 = vmatprep.subr.mxu0 0.0
      %1526 = vmatpush1.msra.mxu0 %v1485
      %1527 = vmatprep.subr.mxu0 0.0
      %1528 = vmatpush1.msra.mxu0 %v1484
      %1529 = vmatprep.subr.mxu0 0.0
      %1530 = vmatpush1.msra.mxu0 %v1483
      %1531 = vmatprep.subr.mxu0 0.0
      %1532 = vmatpush2.msra.mxu0 0.0
      %1533 = vmatprep.subr.mxu0 0.0
      %1534 = vmatpush2.msra.mxu0 0.0
      %1535 = vmatprep.subr.mxu0 0.0
      %1536 = vmatpush2.msra.mxu0 0.0
      %1537 = vmatprep.subr.mxu0 0.0
      %1538 = vmatpush2.msra.mxu0 0.0
      %1539 = vmatprep.subr.mxu0 0.0
      %1540 = vmatpush2.msra.mxu0 0.0
      %1541 = vmatprep.subr.mxu0 0.0
      %1542 = vmatpush2.msra.mxu0 0.0
      %1543 = vmatprep.subr.mxu0 0.0
      %1544 = vmatpush2.msra.mxu0 0.0
      %1545 = vmatprep.subr.mxu0 0.0
      %1546 = vmatpush2.msra.mxu0 0.0
      %1547 = vmatprep.subr.mxu0 0.0
      %1548 = vmatpush2.msra.mxu0 0.0
      %1549 = vmatprep.subr.mxu0 0.0
      %1550 = vmatpush2.msra.mxu0 0.0
      %1551 = vmatprep.subr.mxu0 0.0
      %1552 = vmatpush2.msra.mxu0 0.0
      %1553 = vmatprep.subr.mxu0 0.0
      %1554 = vmatpush2.msra.mxu0 0.0
      %1555 = vmatprep.subr.mxu0 0.0
      %1556 = vmatpush2.msra.mxu0 0.0
      %1557 = vmatprep.subr.mxu0 0.0
      %1558 = vmatpush2.msra.mxu0 0.0
      %1559 = vmatprep.subr.mxu0 0.0
      %1560 = vmatpush2.msra.mxu0 0.0
      %1561 = vmatprep.subr.mxu0 0.0
      %1562 = vmatpush2.msra.mxu0 0.0
      %1563 = vmatprep.mubr.f32.mxu0 0.0
      %1564 = vmatmul.mubr.f32.gmra.mxu0 %v1479
      %v1565 = vpop.f32.mrf.mxu0
      %v1566 = vadd.f32 0.0, %v1565
      %v1567 = vpop.f32.mrf.mxu0
      %1568 = vmatprep.mubr.f32.mxu0 0.0
      %1569 = vmatmul.mubr.f32.gmra.mxu0 %v1480
      %v1570 = vpop.f32.mrf.mxu0
      %v1571 = vadd.f32 0.0, %v1570
      %v1572 = vpop.f32.mrf.mxu0
      %1573 = vmatprep.mubr.f32.mxu0 0.0
      %1574 = vmatmul.mubr.f32.gmra.mxu0 %v1481
      %v1575 = vpop.f32.mrf.mxu0
      %v1576 = vadd.f32 0.0, %v1575
      %v1577 = vpop.f32.mrf.mxu0
      %1578 = vdwg.mxu0
      %1579 = vmatprep.subr.mxu0 0.0
      %1580 = vmatpush1.msra.mxu0 %v1470
      %1581 = vmatprep.subr.mxu0 0.0
      %1582 = vmatpush1.msra.mxu0 %v1469
      %1583 = vmatprep.subr.mxu0 0.0
      %1584 = vmatpush1.msra.mxu0 %v1468
      %1585 = vmatprep.subr.mxu0 0.0
      %1586 = vmatpush1.msra.mxu0 %v1467
      %1587 = vmatprep.subr.mxu0 0.0
      %1588 = vmatpush1.msra.mxu0 %v1466
      %1589 = vmatprep.subr.mxu0 0.0
      %1590 = vmatpush1.msra.mxu0 %v1465
      %1591 = vmatprep.subr.mxu0 0.0
      %1592 = vmatpush1.msra.mxu0 %v1464
      %1593 = vmatprep.subr.mxu0 0.0
      %1594 = vmatpush1.msra.mxu0 %v1463
      %1595 = vmatprep.subr.mxu0 0.0
      %1596 = vmatpush1.msra.mxu0 %v1462
      %1597 = vmatprep.subr.mxu0 0.0
      %1598 = vmatpush1.msra.mxu0 %v1461
      %1599 = vmatprep.subr.mxu0 0.0
      %1600 = vmatpush1.msra.mxu0 %v1460
      %1601 = vmatprep.subr.mxu0 0.0
      %1602 = vmatpush1.msra.mxu0 %v1459
      %1603 = vmatprep.subr.mxu0 0.0
      %1604 = vmatpush1.msra.mxu0 %v1458
      %1605 = vmatprep.subr.mxu0 0.0
      %1606 = vmatpush1.msra.mxu0 %v1457
      %1607 = vmatprep.subr.mxu0 0.0
      %1608 = vmatpush1.msra.mxu0 %v1456
      %1609 = vmatprep.subr.mxu0 0.0
      %1610 = vmatpush1.msra.mxu0 %v1455
      %1611 = vmatprep.subr.mxu0 0.0
      %1612 = vmatpush2.msra.mxu0 0.0
      %1613 = vmatprep.subr.mxu0 0.0
      %1614 = vmatpush2.msra.mxu0 0.0
      %1615 = vmatprep.subr.mxu0 0.0
      %1616 = vmatpush2.msra.mxu0 0.0
      %1617 = vmatprep.subr.mxu0 0.0
      %1618 = vmatpush2.msra.mxu0 0.0
      %1619 = vmatprep.subr.mxu0 0.0
      %1620 = vmatpush2.msra.mxu0 0.0
      %1621 = vmatprep.subr.mxu0 0.0
      %1622 = vmatpush2.msra.mxu0 0.0
      %1623 = vmatprep.subr.mxu0 0.0
      %1624 = vmatpush2.msra.mxu0 0.0
      %1625 = vmatprep.subr.mxu0 0.0
      %1626 = vmatpush2.msra.mxu0 0.0
      %1627 = vmatprep.subr.mxu0 0.0
      %1628 = vmatpush2.msra.mxu0 0.0
      %1629 = vmatprep.subr.mxu0 0.0
      %1630 = vmatpush2.msra.mxu0 0.0
      %1631 = vmatprep.subr.mxu0 0.0
      %1632 = vmatpush2.msra.mxu0 0.0
      %1633 = vmatprep.subr.mxu0 0.0
      %1634 = vmatpush2.msra.mxu0 0.0
      %1635 = vmatprep.subr.mxu0 0.0
      %1636 = vmatpush2.msra.mxu0 0.0
      %1637 = vmatprep.subr.mxu0 0.0
      %1638 = vmatpush2.msra.mxu0 0.0
      %1639 = vmatprep.subr.mxu0 0.0
      %1640 = vmatpush2.msra.mxu0 0.0
      %1641 = vmatprep.subr.mxu0 0.0
      %1642 = vmatpush2.msra.mxu0 0.0
      %1643 = vmatprep.mubr.f32.mxu0 0.0
      %1644 = vmatmul.mubr.f32.gmra.mxu0 %v1452
      %v1645 = vpop.f32.mrf.mxu0
      %v1646 = vadd.f32 %v1566, %v1645
      %v1647 = vpop.f32.mrf.mxu0
      %1648 = vmatprep.mubr.f32.mxu0 0.0
      %1649 = vmatmul.mubr.f32.gmra.mxu0 %v1453
      %v1650 = vpop.f32.mrf.mxu0
      %v1651 = vadd.f32 %v1571, %v1650
      %v1652 = vpop.f32.mrf.mxu0
      %1653 = vmatprep.mubr.f32.mxu0 0.0
      %1654 = vmatmul.mubr.f32.gmra.mxu0 %v1454
      %v1655 = vpop.f32.mrf.mxu0
      %v1656 = vadd.f32 %v1576, %v1655
      %v1657 = vpop.f32.mrf.mxu0
      %1658 = vdwg.mxu0
      %s1659 = sadd.s32 %s1431, 678
      %s1660 = scalar_lea.vmem [#allocation2], %s1659
      %v1661 = vld [vmem:[%s1660] sm:$0xff]
      %v1662 = vld [vmem:[%s1660 + $0x8] sm:$0xff]
      %v1663 = vld [vmem:[%s1660 + $0x10] sm:$0xff]
      %v1664 = vmul.f32 %v1661, %v1441
      %v1665 = vmul.f32 %v1662, %v1441
      %v1666 = vmul.f32 %v1663, %v1441
      %v1667 = vadd.f32 %v1664, %v1450
      %v1668 = vadd.f32 %v1665, %v1450
      %v1669 = vadd.f32 %v1666, %v1450
      %s1670 = scalar_lea.vmem %s4, 256
      %v1671 = vld [vmem:[%s1670] sm:$0xff]
      %v1672 = vld [vmem:[%s1670 + $0x8] sm:$0xff]
      %v1673 = vld [vmem:[%s1670 + $0x10] sm:$0xff]
      %v1674 = vld [vmem:[%s1670 + $0x18] sm:$0xff]
      %v1675 = vld [vmem:[%s1670 + $0x20] sm:$0xff]
      %v1676 = vld [vmem:[%s1670 + $0x28] sm:$0xff]
      %v1677 = vld [vmem:[%s1670 + $0x30] sm:$0xff]
      %v1678 = vld [vmem:[%s1670 + $0x38] sm:$0xff]
      %v1679 = vld [vmem:[%s1670 + $0x40] sm:$0xff]
      %v1680 = vld [vmem:[%s1670 + $0x48] sm:$0xff]
      %v1681 = vld [vmem:[%s1670 + $0x50] sm:$0xff]
      %v1682 = vld [vmem:[%s1670 + $0x58] sm:$0xff]
      %v1683 = vld [vmem:[%s1670 + $0x60] sm:$0xff]
      %v1684 = vld [vmem:[%s1670 + $0x68] sm:$0xff]
      %v1685 = vld [vmem:[%s1670 + $0x70] sm:$0xff]
      %v1686 = vld [vmem:[%s1670 + $0x78] sm:$0xff]
      %1687 = vmatprep.subr.mxu0 0.0
      %1688 = vmatpush1.msra.mxu0 %v1686
      %1689 = vmatprep.subr.mxu0 0.0
      %1690 = vmatpush1.msra.mxu0 %v1685
      %1691 = vmatprep.subr.mxu0 0.0
      %1692 = vmatpush1.msra.mxu0 %v1684
      %1693 = vmatprep.subr.mxu0 0.0
      %1694 = vmatpush1.msra.mxu0 %v1683
      %1695 = vmatprep.subr.mxu0 0.0
      %1696 = vmatpush1.msra.mxu0 %v1682
      %1697 = vmatprep.subr.mxu0 0.0
      %1698 = vmatpush1.msra.mxu0 %v1681
      %1699 = vmatprep.subr.mxu0 0.0
      %1700 = vmatpush1.msra.mxu0 %v1680
      %1701 = vmatprep.subr.mxu0 0.0
      %1702 = vmatpush1.msra.mxu0 %v1679
      %1703 = vmatprep.subr.mxu0 0.0
      %1704 = vmatpush1.msra.mxu0 %v1678
      %1705 = vmatprep.subr.mxu0 0.0
      %1706 = vmatpush1.msra.mxu0 %v1677
      %1707 = vmatprep.subr.mxu0 0.0
      %1708 = vmatpush1.msra.mxu0 %v1676
      %1709 = vmatprep.subr.mxu0 0.0
      %1710 = vmatpush1.msra.mxu0 %v1675
      %1711 = vmatprep.subr.mxu0 0.0
      %1712 = vmatpush1.msra.mxu0 %v1674
      %1713 = vmatprep.subr.mxu0 0.0
      %1714 = vmatpush1.msra.mxu0 %v1673
      %1715 = vmatprep.subr.mxu0 0.0
      %1716 = vmatpush1.msra.mxu0 %v1672
      %1717 = vmatprep.subr.mxu0 0.0
      %1718 = vmatpush1.msra.mxu0 %v1671
      %1719 = vmatprep.subr.mxu0 0.0
      %1720 = vmatpush2.msra.mxu0 0.0
      %1721 = vmatprep.subr.mxu0 0.0
      %1722 = vmatpush2.msra.mxu0 0.0
      %1723 = vmatprep.subr.mxu0 0.0
      %1724 = vmatpush2.msra.mxu0 0.0
      %1725 = vmatprep.subr.mxu0 0.0
      %1726 = vmatpush2.msra.mxu0 0.0
      %1727 = vmatprep.subr.mxu0 0.0
      %1728 = vmatpush2.msra.mxu0 0.0
      %1729 = vmatprep.subr.mxu0 0.0
      %1730 = vmatpush2.msra.mxu0 0.0
      %1731 = vmatprep.subr.mxu0 0.0
      %1732 = vmatpush2.msra.mxu0 0.0
      %1733 = vmatprep.subr.mxu0 0.0
      %1734 = vmatpush2.msra.mxu0 0.0
      %1735 = vmatprep.subr.mxu0 0.0
      %1736 = vmatpush2.msra.mxu0 0.0
      %1737 = vmatprep.subr.mxu0 0.0
      %1738 = vmatpush2.msra.mxu0 0.0
      %1739 = vmatprep.subr.mxu0 0.0
      %1740 = vmatpush2.msra.mxu0 0.0
      %1741 = vmatprep.subr.mxu0 0.0
      %1742 = vmatpush2.msra.mxu0 0.0
      %1743 = vmatprep.subr.mxu0 0.0
      %1744 = vmatpush2.msra.mxu0 0.0
      %1745 = vmatprep.subr.mxu0 0.0
      %1746 = vmatpush2.msra.mxu0 0.0
      %1747 = vmatprep.subr.mxu0 0.0
      %1748 = vmatpush2.msra.mxu0 0.0
      %1749 = vmatprep.subr.mxu0 0.0
      %1750 = vmatpush2.msra.mxu0 0.0
      %1751 = vmatprep.mubr.f32.mxu0 0.0
      %1752 = vmatmul.mubr.f32.gmra.mxu0 %v1667
      %v1753 = vpop.f32.mrf.mxu0
      %v1754 = vadd.f32 0.0, %v1753
      %v1755 = vpop.f32.mrf.mxu0
      %1756 = vmatprep.mubr.f32.mxu0 0.0
      %1757 = vmatmul.mubr.f32.gmra.mxu0 %v1668
      %v1758 = vpop.f32.mrf.mxu0
      %v1759 = vadd.f32 0.0, %v1758
      %v1760 = vpop.f32.mrf.mxu0
      %1761 = vmatprep.mubr.f32.mxu0 0.0
      %1762 = vmatmul.mubr.f32.gmra.mxu0 %v1669
      %v1763 = vpop.f32.mrf.mxu0
      %v1764 = vadd.f32 0.0, %v1763
      %v1765 = vpop.f32.mrf.mxu0
      %1766 = vdwg.mxu0
      %v1767 = vadd.f32 %v1646, %v1754
      %v1768 = vadd.f32 %v1651, %v1759
      %v1769 = vadd.f32 %v1656, %v1764
      %s1770 = sadd.s32 %s1424, 1
      %s1771 = smul.u32 %s1770, 26
      %s1772 = sadd.s32 %s1771, 676
      %s1773 = scalar_lea.vmem [#allocation2], %s1772
      %v1774 = vld [vmem:[%s1773] sm:$0xff]
      %v1775 = vld [vmem:[%s1773 + $0x8] sm:$0xff]
      %v1776 = vld [vmem:[%s1773 + $0x10] sm:$0xff]
      %v1777 = vmul.f32 %v1774, %v1441
      %v1778 = vmul.f32 %v1775, %v1441
      %v1779 = vmul.f32 %v1776, %v1441
      %v1780 = vadd.f32 %v1777, %v1450
      %v1781 = vadd.f32 %v1778, %v1450
      %v1782 = vadd.f32 %v1779, %v1450
      %s1783 = scalar_lea.vmem %s4, 384
      %v1784 = vld [vmem:[%s1783] sm:$0xff]
      %v1785 = vld [vmem:[%s1783 + $0x8] sm:$0xff]
      %v1786 = vld [vmem:[%s1783 + $0x10] sm:$0xff]
      %v1787 = vld [vmem:[%s1783 + $0x18] sm:$0xff]
      %v1788 = vld [vmem:[%s1783 + $0x20] sm:$0xff]
      %v1789 = vld [vmem:[%s1783 + $0x28] sm:$0xff]
      %v1790 = vld [vmem:[%s1783 + $0x30] sm:$0xff]
      %v1791 = vld [vmem:[%s1783 + $0x38] sm:$0xff]
      %v1792 = vld [vmem:[%s1783 + $0x40] sm:$0xff]
      %v1793 = vld [vmem:[%s1783 + $0x48] sm:$0xff]
      %v1794 = vld [vmem:[%s1783 + $0x50] sm:$0xff]
      %v1795 = vld [vmem:[%s1783 + $0x58] sm:$0xff]
      %v1796 = vld [vmem:[%s1783 + $0x60] sm:$0xff]
      %v1797 = vld [vmem:[%s1783 + $0x68] sm:$0xff]
      %v1798 = vld [vmem:[%s1783 + $0x70] sm:$0xff]
      %v1799 = vld [vmem:[%s1783 + $0x78] sm:$0xff]
      %1800 = vmatprep.subr.mxu0 0.0
      %1801 = vmatpush1.msra.mxu0 %v1799
      %1802 = vmatprep.subr.mxu0 0.0
      %1803 = vmatpush1.msra.mxu0 %v1798
      %1804 = vmatprep.subr.mxu0 0.0
      %1805 = vmatpush1.msra.mxu0 %v1797
      %1806 = vmatprep.subr.mxu0 0.0
      %1807 = vmatpush1.msra.mxu0 %v1796
      %1808 = vmatprep.subr.mxu0 0.0
      %1809 = vmatpush1.msra.mxu0 %v1795
      %1810 = vmatprep.subr.mxu0 0.0
      %1811 = vmatpush1.msra.mxu0 %v1794
      %1812 = vmatprep.subr.mxu0 0.0
      %1813 = vmatpush1.msra.mxu0 %v1793
      %1814 = vmatprep.subr.mxu0 0.0
      %1815 = vmatpush1.msra.mxu0 %v1792
      %1816 = vmatprep.subr.mxu0 0.0
      %1817 = vmatpush1.msra.mxu0 %v1791
      %1818 = vmatprep.subr.mxu0 0.0
      %1819 = vmatpush1.msra.mxu0 %v1790
      %1820 = vmatprep.subr.mxu0 0.0
      %1821 = vmatpush1.msra.mxu0 %v1789
      %1822 = vmatprep.subr.mxu0 0.0
      %1823 = vmatpush1.msra.mxu0 %v1788
      %1824 = vmatprep.subr.mxu0 0.0
      %1825 = vmatpush1.msra.mxu0 %v1787
      %1826 = vmatprep.subr.mxu0 0.0
      %1827 = vmatpush1.msra.mxu0 %v1786
      %1828 = vmatprep.subr.mxu0 0.0
      %1829 = vmatpush1.msra.mxu0 %v1785
      %1830 = vmatprep.subr.mxu0 0.0
      %1831 = vmatpush1.msra.mxu0 %v1784
      %1832 = vmatprep.subr.mxu0 0.0
      %1833 = vmatpush2.msra.mxu0 0.0
      %1834 = vmatprep.subr.mxu0 0.0
      %1835 = vmatpush2.msra.mxu0 0.0
      %1836 = vmatprep.subr.mxu0 0.0
      %1837 = vmatpush2.msra.mxu0 0.0
      %1838 = vmatprep.subr.mxu0 0.0
      %1839 = vmatpush2.msra.mxu0 0.0
      %1840 = vmatprep.subr.mxu0 0.0
      %1841 = vmatpush2.msra.mxu0 0.0
      %1842 = vmatprep.subr.mxu0 0.0
      %1843 = vmatpush2.msra.mxu0 0.0
      %1844 = vmatprep.subr.mxu0 0.0
      %1845 = vmatpush2.msra.mxu0 0.0
      %1846 = vmatprep.subr.mxu0 0.0
      %1847 = vmatpush2.msra.mxu0 0.0
      %1848 = vmatprep.subr.mxu0 0.0
      %1849 = vmatpush2.msra.mxu0 0.0
      %1850 = vmatprep.subr.mxu0 0.0
      %1851 = vmatpush2.msra.mxu0 0.0
      %1852 = vmatprep.subr.mxu0 0.0
      %1853 = vmatpush2.msra.mxu0 0.0
      %1854 = vmatprep.subr.mxu0 0.0
      %1855 = vmatpush2.msra.mxu0 0.0
      %1856 = vmatprep.subr.mxu0 0.0
      %1857 = vmatpush2.msra.mxu0 0.0
      %1858 = vmatprep.subr.mxu0 0.0
      %1859 = vmatpush2.msra.mxu0 0.0
      %1860 = vmatprep.subr.mxu0 0.0
      %1861 = vmatpush2.msra.mxu0 0.0
      %1862 = vmatprep.subr.mxu0 0.0
      %1863 = vmatpush2.msra.mxu0 0.0
      %1864 = vmatprep.mubr.f32.mxu0 0.0
      %1865 = vmatmul.mubr.f32.gmra.mxu0 %v1780
      %v1866 = vpop.f32.mrf.mxu0
      %v1867 = vadd.f32 0.0, %v1866
      %v1868 = vpop.f32.mrf.mxu0
      %1869 = vmatprep.mubr.f32.mxu0 0.0
      %1870 = vmatmul.mubr.f32.gmra.mxu0 %v1781
      %v1871 = vpop.f32.mrf.mxu0
      %v1872 = vadd.f32 0.0, %v1871
      %v1873 = vpop.f32.mrf.mxu0
      %1874 = vmatprep.mubr.f32.mxu0 0.0
      %1875 = vmatmul.mubr.f32.gmra.mxu0 %v1782
      %v1876 = vpop.f32.mrf.mxu0
      %v1877 = vadd.f32 0.0, %v1876
      %v1878 = vpop.f32.mrf.mxu0
      %1879 = vdwg.mxu0
      %v1880 = vadd.f32 %v1767, %v1867
      %v1881 = vadd.f32 %v1768, %v1872
      %v1882 = vadd.f32 %v1769, %v1877
      %s1883 = sadd.s32 %s1771, 677
      %s1884 = scalar_lea.vmem [#allocation2], %s1883
      %v1885 = vld [vmem:[%s1884] sm:$0xff]
      %v1886 = vld [vmem:[%s1884 + $0x8] sm:$0xff]
      %v1887 = vld [vmem:[%s1884 + $0x10] sm:$0xff]
      %v1888 = vmul.f32 %v1885, %v1441
      %v1889 = vmul.f32 %v1886, %v1441
      %v1890 = vmul.f32 %v1887, %v1441
      %v1891 = vadd.f32 %v1888, %v1450
      %v1892 = vadd.f32 %v1889, %v1450
      %v1893 = vadd.f32 %v1890, %v1450
      %s1894 = scalar_lea.vmem %s4, 512
      %v1895 = vld [vmem:[%s1894] sm:$0xff]
      %v1896 = vld [vmem:[%s1894 + $0x8] sm:$0xff]
      %v1897 = vld [vmem:[%s1894 + $0x10] sm:$0xff]
      %v1898 = vld [vmem:[%s1894 + $0x18] sm:$0xff]
      %v1899 = vld [vmem:[%s1894 + $0x20] sm:$0xff]
      %v1900 = vld [vmem:[%s1894 + $0x28] sm:$0xff]
      %v1901 = vld [vmem:[%s1894 + $0x30] sm:$0xff]
      %v1902 = vld [vmem:[%s1894 + $0x38] sm:$0xff]
      %v1903 = vld [vmem:[%s1894 + $0x40] sm:$0xff]
      %v1904 = vld [vmem:[%s1894 + $0x48] sm:$0xff]
      %v1905 = vld [vmem:[%s1894 + $0x50] sm:$0xff]
      %v1906 = vld [vmem:[%s1894 + $0x58] sm:$0xff]
      %v1907 = vld [vmem:[%s1894 + $0x60] sm:$0xff]
      %v1908 = vld [vmem:[%s1894 + $0x68] sm:$0xff]
      %v1909 = vld [vmem:[%s1894 + $0x70] sm:$0xff]
      %v1910 = vld [vmem:[%s1894 + $0x78] sm:$0xff]
      %1911 = vmatprep.subr.mxu0 0.0
      %1912 = vmatpush1.msra.mxu0 %v1910
      %1913 = vmatprep.subr.mxu0 0.0
      %1914 = vmatpush1.msra.mxu0 %v1909
      %1915 = vmatprep.subr.mxu0 0.0
      %1916 = vmatpush1.msra.mxu0 %v1908
      %1917 = vmatprep.subr.mxu0 0.0
      %1918 = vmatpush1.msra.mxu0 %v1907
      %1919 = vmatprep.subr.mxu0 0.0
      %1920 = vmatpush1.msra.mxu0 %v1906
      %1921 = vmatprep.subr.mxu0 0.0
      %1922 = vmatpush1.msra.mxu0 %v1905
      %1923 = vmatprep.subr.mxu0 0.0
      %1924 = vmatpush1.msra.mxu0 %v1904
      %1925 = vmatprep.subr.mxu0 0.0
      %1926 = vmatpush1.msra.mxu0 %v1903
      %1927 = vmatprep.subr.mxu0 0.0
      %1928 = vmatpush1.msra.mxu0 %v1902
      %1929 = vmatprep.subr.mxu0 0.0
      %1930 = vmatpush1.msra.mxu0 %v1901
      %1931 = vmatprep.subr.mxu0 0.0
      %1932 = vmatpush1.msra.mxu0 %v1900
      %1933 = vmatprep.subr.mxu0 0.0
      %1934 = vmatpush1.msra.mxu0 %v1899
      %1935 = vmatprep.subr.mxu0 0.0
      %1936 = vmatpush1.msra.mxu0 %v1898
      %1937 = vmatprep.subr.mxu0 0.0
      %1938 = vmatpush1.msra.mxu0 %v1897
      %1939 = vmatprep.subr.mxu0 0.0
      %1940 = vmatpush1.msra.mxu0 %v1896
      %1941 = vmatprep.subr.mxu0 0.0
      %1942 = vmatpush1.msra.mxu0 %v1895
      %1943 = vmatprep.subr.mxu0 0.0
      %1944 = vmatpush2.msra.mxu0 0.0
      %1945 = vmatprep.subr.mxu0 0.0
      %1946 = vmatpush2.msra.mxu0 0.0
      %1947 = vmatprep.subr.mxu0 0.0
      %1948 = vmatpush2.msra.mxu0 0.0
      %1949 = vmatprep.subr.mxu0 0.0
      %1950 = vmatpush2.msra.mxu0 0.0
      %1951 = vmatprep.subr.mxu0 0.0
      %1952 = vmatpush2.msra.mxu0 0.0
      %1953 = vmatprep.subr.mxu0 0.0
      %1954 = vmatpush2.msra.mxu0 0.0
      %1955 = vmatprep.subr.mxu0 0.0
      %1956 = vmatpush2.msra.mxu0 0.0
      %1957 = vmatprep.subr.mxu0 0.0
      %1958 = vmatpush2.msra.mxu0 0.0
      %1959 = vmatprep.subr.mxu0 0.0
      %1960 = vmatpush2.msra.mxu0 0.0
      %1961 = vmatprep.subr.mxu0 0.0
      %1962 = vmatpush2.msra.mxu0 0.0
      %1963 = vmatprep.subr.mxu0 0.0
      %1964 = vmatpush2.msra.mxu0 0.0
      %1965 = vmatprep.subr.mxu0 0.0
      %1966 = vmatpush2.msra.mxu0 0.0
      %1967 = vmatprep.subr.mxu0 0.0
      %1968 = vmatpush2.msra.mxu0 0.0
      %1969 = vmatprep.subr.mxu0 0.0
      %1970 = vmatpush2.msra.mxu0 0.0
      %1971 = vmatprep.subr.mxu0 0.0
      %1972 = vmatpush2.msra.mxu0 0.0
      %1973 = vmatprep.subr.mxu0 0.0
      %1974 = vmatpush2.msra.mxu0 0.0
      %1975 = vmatprep.mubr.f32.mxu0 0.0
      %1976 = vmatmul.mubr.f32.gmra.mxu0 %v1891
      %v1977 = vpop.f32.mrf.mxu0
      %v1978 = vadd.f32 0.0, %v1977
      %v1979 = vpop.f32.mrf.mxu0
      %1980 = vmatprep.mubr.f32.mxu0 0.0
      %1981 = vmatmul.mubr.f32.gmra.mxu0 %v1892
      %v1982 = vpop.f32.mrf.mxu0
      %v1983 = vadd.f32 0.0, %v1982
      %v1984 = vpop.f32.mrf.mxu0
      %1985 = vmatprep.mubr.f32.mxu0 0.0
      %1986 = vmatmul.mubr.f32.gmra.mxu0 %v1893
      %v1987 = vpop.f32.mrf.mxu0
      %v1988 = vadd.f32 0.0, %v1987
      %v1989 = vpop.f32.mrf.mxu0
      %1990 = vdwg.mxu0
      %v1991 = vadd.f32 %v1880, %v1978
      %v1992 = vadd.f32 %v1881, %v1983
      %v1993 = vadd.f32 %v1882, %v1988
      %s1994 = sadd.s32 %s1771, 678
      %s1995 = scalar_lea.vmem [#allocation2], %s1994
      %v1996 = vld [vmem:[%s1995] sm:$0xff]
      %v1997 = vld [vmem:[%s1995 + $0x8] sm:$0xff]
      %v1998 = vld [vmem:[%s1995 + $0x10] sm:$0xff]
      %v1999 = vmul.f32 %v1996, %v1441
      %v2000 = vmul.f32 %v1997, %v1441
      %v2001 = vmul.f32 %v1998, %v1441
      %v2002 = vadd.f32 %v1999, %v1450
      %v2003 = vadd.f32 %v2000, %v1450
      %v2004 = vadd.f32 %v2001, %v1450
      %s2005 = scalar_lea.vmem %s4, 640
      %v2006 = vld [vmem:[%s2005] sm:$0xff]
      %v2007 = vld [vmem:[%s2005 + $0x8] sm:$0xff]
      %v2008 = vld [vmem:[%s2005 + $0x10] sm:$0xff]
      %v2009 = vld [vmem:[%s2005 + $0x18] sm:$0xff]
      %v2010 = vld [vmem:[%s2005 + $0x20] sm:$0xff]
      %v2011 = vld [vmem:[%s2005 + $0x28] sm:$0xff]
      %v2012 = vld [vmem:[%s2005 + $0x30] sm:$0xff]
      %v2013 = vld [vmem:[%s2005 + $0x38] sm:$0xff]
      %v2014 = vld [vmem:[%s2005 + $0x40] sm:$0xff]
      %v2015 = vld [vmem:[%s2005 + $0x48] sm:$0xff]
      %v2016 = vld [vmem:[%s2005 + $0x50] sm:$0xff]
      %v2017 = vld [vmem:[%s2005 + $0x58] sm:$0xff]
      %v2018 = vld [vmem:[%s2005 + $0x60] sm:$0xff]
      %v2019 = vld [vmem:[%s2005 + $0x68] sm:$0xff]
      %v2020 = vld [vmem:[%s2005 + $0x70] sm:$0xff]
      %v2021 = vld [vmem:[%s2005 + $0x78] sm:$0xff]
      %2022 = vmatprep.subr.mxu0 0.0
      %2023 = vmatpush1.msra.mxu0 %v2021
      %2024 = vmatprep.subr.mxu0 0.0
      %2025 = vmatpush1.msra.mxu0 %v2020
      %2026 = vmatprep.subr.mxu0 0.0
      %2027 = vmatpush1.msra.mxu0 %v2019
      %2028 = vmatprep.subr.mxu0 0.0
      %2029 = vmatpush1.msra.mxu0 %v2018
      %2030 = vmatprep.subr.mxu0 0.0
      %2031 = vmatpush1.msra.mxu0 %v2017
      %2032 = vmatprep.subr.mxu0 0.0
      %2033 = vmatpush1.msra.mxu0 %v2016
      %2034 = vmatprep.subr.mxu0 0.0
      %2035 = vmatpush1.msra.mxu0 %v2015
      %2036 = vmatprep.subr.mxu0 0.0
      %2037 = vmatpush1.msra.mxu0 %v2014
      %2038 = vmatprep.subr.mxu0 0.0
      %2039 = vmatpush1.msra.mxu0 %v2013
      %2040 = vmatprep.subr.mxu0 0.0
      %2041 = vmatpush1.msra.mxu0 %v2012
      %2042 = vmatprep.subr.mxu0 0.0
      %2043 = vmatpush1.msra.mxu0 %v2011
      %2044 = vmatprep.subr.mxu0 0.0
      %2045 = vmatpush1.msra.mxu0 %v2010
      %2046 = vmatprep.subr.mxu0 0.0
      %2047 = vmatpush1.msra.mxu0 %v2009
      %2048 = vmatprep.subr.mxu0 0.0
      %2049 = vmatpush1.msra.mxu0 %v2008
      %2050 = vmatprep.subr.mxu0 0.0
      %2051 = vmatpush1.msra.mxu0 %v2007
      %2052 = vmatprep.subr.mxu0 0.0
      %2053 = vmatpush1.msra.mxu0 %v2006
      %2054 = vmatprep.subr.mxu0 0.0
      %2055 = vmatpush2.msra.mxu0 0.0
      %2056 = vmatprep.subr.mxu0 0.0
      %2057 = vmatpush2.msra.mxu0 0.0
      %2058 = vmatprep.subr.mxu0 0.0
      %2059 = vmatpush2.msra.mxu0 0.0
      %2060 = vmatprep.subr.mxu0 0.0
      %2061 = vmatpush2.msra.mxu0 0.0
      %2062 = vmatprep.subr.mxu0 0.0
      %2063 = vmatpush2.msra.mxu0 0.0
      %2064 = vmatprep.subr.mxu0 0.0
      %2065 = vmatpush2.msra.mxu0 0.0
      %2066 = vmatprep.subr.mxu0 0.0
      %2067 = vmatpush2.msra.mxu0 0.0
      %2068 = vmatprep.subr.mxu0 0.0
      %2069 = vmatpush2.msra.mxu0 0.0
      %2070 = vmatprep.subr.mxu0 0.0
      %2071 = vmatpush2.msra.mxu0 0.0
      %2072 = vmatprep.subr.mxu0 0.0
      %2073 = vmatpush2.msra.mxu0 0.0
      %2074 = vmatprep.subr.mxu0 0.0
      %2075 = vmatpush2.msra.mxu0 0.0
      %2076 = vmatprep.subr.mxu0 0.0
      %2077 = vmatpush2.msra.mxu0 0.0
      %2078 = vmatprep.subr.mxu0 0.0
      %2079 = vmatpush2.msra.mxu0 0.0
      %2080 = vmatprep.subr.mxu0 0.0
      %2081 = vmatpush2.msra.mxu0 0.0
      %2082 = vmatprep.subr.mxu0 0.0
      %2083 = vmatpush2.msra.mxu0 0.0
      %2084 = vmatprep.subr.mxu0 0.0
      %2085 = vmatpush2.msra.mxu0 0.0
      %2086 = vmatprep.mubr.f32.mxu0 0.0
      %2087 = vmatmul.mubr.f32.gmra.mxu0 %v2002
      %v2088 = vpop.f32.mrf.mxu0
      %v2089 = vadd.f32 0.0, %v2088
      %v2090 = vpop.f32.mrf.mxu0
      %2091 = vmatprep.mubr.f32.mxu0 0.0
      %2092 = vmatmul.mubr.f32.gmra.mxu0 %v2003
      %v2093 = vpop.f32.mrf.mxu0
      %v2094 = vadd.f32 0.0, %v2093
      %v2095 = vpop.f32.mrf.mxu0
      %2096 = vmatprep.mubr.f32.mxu0 0.0
      %2097 = vmatmul.mubr.f32.gmra.mxu0 %v2004
      %v2098 = vpop.f32.mrf.mxu0
      %v2099 = vadd.f32 0.0, %v2098
      %v2100 = vpop.f32.mrf.mxu0
      %2101 = vdwg.mxu0
      %v2102 = vadd.f32 %v1991, %v2089
      %v2103 = vadd.f32 %v1992, %v2094
      %v2104 = vadd.f32 %v1993, %v2099
      %s2105 = sadd.s32 %s1424, 2
      %s2106 = smul.u32 %s2105, 26
      %s2107 = sadd.s32 %s2106, 676
      %s2108 = scalar_lea.vmem [#allocation2], %s2107
      %v2109 = vld [vmem:[%s2108] sm:$0xff]
      %v2110 = vld [vmem:[%s2108 + $0x8] sm:$0xff]
      %v2111 = vld [vmem:[%s2108 + $0x10] sm:$0xff]
      %v2112 = vmul.f32 %v2109, %v1441
      %v2113 = vmul.f32 %v2110, %v1441
      %v2114 = vmul.f32 %v2111, %v1441
      %v2115 = vadd.f32 %v2112, %v1450
      %v2116 = vadd.f32 %v2113, %v1450
      %v2117 = vadd.f32 %v2114, %v1450
      %s2118 = scalar_lea.vmem %s4, 768
      %v2119 = vld [vmem:[%s2118] sm:$0xff]
      %v2120 = vld [vmem:[%s2118 + $0x8] sm:$0xff]
      %v2121 = vld [vmem:[%s2118 + $0x10] sm:$0xff]
      %v2122 = vld [vmem:[%s2118 + $0x18] sm:$0xff]
      %v2123 = vld [vmem:[%s2118 + $0x20] sm:$0xff]
      %v2124 = vld [vmem:[%s2118 + $0x28] sm:$0xff]
      %v2125 = vld [vmem:[%s2118 + $0x30] sm:$0xff]
      %v2126 = vld [vmem:[%s2118 + $0x38] sm:$0xff]
      %v2127 = vld [vmem:[%s2118 + $0x40] sm:$0xff]
      %v2128 = vld [vmem:[%s2118 + $0x48] sm:$0xff]
      %v2129 = vld [vmem:[%s2118 + $0x50] sm:$0xff]
      %v2130 = vld [vmem:[%s2118 + $0x58] sm:$0xff]
      %v2131 = vld [vmem:[%s2118 + $0x60] sm:$0xff]
      %v2132 = vld [vmem:[%s2118 + $0x68] sm:$0xff]
      %v2133 = vld [vmem:[%s2118 + $0x70] sm:$0xff]
      %v2134 = vld [vmem:[%s2118 + $0x78] sm:$0xff]
      %2135 = vmatprep.subr.mxu0 0.0
      %2136 = vmatpush1.msra.mxu0 %v2134
      %2137 = vmatprep.subr.mxu0 0.0
      %2138 = vmatpush1.msra.mxu0 %v2133
      %2139 = vmatprep.subr.mxu0 0.0
      %2140 = vmatpush1.msra.mxu0 %v2132
      %2141 = vmatprep.subr.mxu0 0.0
      %2142 = vmatpush1.msra.mxu0 %v2131
      %2143 = vmatprep.subr.mxu0 0.0
      %2144 = vmatpush1.msra.mxu0 %v2130
      %2145 = vmatprep.subr.mxu0 0.0
      %2146 = vmatpush1.msra.mxu0 %v2129
      %2147 = vmatprep.subr.mxu0 0.0
      %2148 = vmatpush1.msra.mxu0 %v2128
      %2149 = vmatprep.subr.mxu0 0.0
      %2150 = vmatpush1.msra.mxu0 %v2127
      %2151 = vmatprep.subr.mxu0 0.0
      %2152 = vmatpush1.msra.mxu0 %v2126
      %2153 = vmatprep.subr.mxu0 0.0
      %2154 = vmatpush1.msra.mxu0 %v2125
      %2155 = vmatprep.subr.mxu0 0.0
      %2156 = vmatpush1.msra.mxu0 %v2124
      %2157 = vmatprep.subr.mxu0 0.0
      %2158 = vmatpush1.msra.mxu0 %v2123
      %2159 = vmatprep.subr.mxu0 0.0
      %2160 = vmatpush1.msra.mxu0 %v2122
      %2161 = vmatprep.subr.mxu0 0.0
      %2162 = vmatpush1.msra.mxu0 %v2121
      %2163 = vmatprep.subr.mxu0 0.0
      %2164 = vmatpush1.msra.mxu0 %v2120
      %2165 = vmatprep.subr.mxu0 0.0
      %2166 = vmatpush1.msra.mxu0 %v2119
      %2167 = vmatprep.subr.mxu0 0.0
      %2168 = vmatpush2.msra.mxu0 0.0
      %2169 = vmatprep.subr.mxu0 0.0
      %2170 = vmatpush2.msra.mxu0 0.0
      %2171 = vmatprep.subr.mxu0 0.0
      %2172 = vmatpush2.msra.mxu0 0.0
      %2173 = vmatprep.subr.mxu0 0.0
      %2174 = vmatpush2.msra.mxu0 0.0
      %2175 = vmatprep.subr.mxu0 0.0
      %2176 = vmatpush2.msra.mxu0 0.0
      %2177 = vmatprep.subr.mxu0 0.0
      %2178 = vmatpush2.msra.mxu0 0.0
      %2179 = vmatprep.subr.mxu0 0.0
      %2180 = vmatpush2.msra.mxu0 0.0
      %2181 = vmatprep.subr.mxu0 0.0
      %2182 = vmatpush2.msra.mxu0 0.0
      %2183 = vmatprep.subr.mxu0 0.0
      %2184 = vmatpush2.msra.mxu0 0.0
      %2185 = vmatprep.subr.mxu0 0.0
      %2186 = vmatpush2.msra.mxu0 0.0
      %2187 = vmatprep.subr.mxu0 0.0
      %2188 = vmatpush2.msra.mxu0 0.0
      %2189 = vmatprep.subr.mxu0 0.0
      %2190 = vmatpush2.msra.mxu0 0.0
      %2191 = vmatprep.subr.mxu0 0.0
      %2192 = vmatpush2.msra.mxu0 0.0
      %2193 = vmatprep.subr.mxu0 0.0
      %2194 = vmatpush2.msra.mxu0 0.0
      %2195 = vmatprep.subr.mxu0 0.0
      %2196 = vmatpush2.msra.mxu0 0.0
      %2197 = vmatprep.subr.mxu0 0.0
      %2198 = vmatpush2.msra.mxu0 0.0
      %2199 = vmatprep.mubr.f32.mxu0 0.0
      %2200 = vmatmul.mubr.f32.gmra.mxu0 %v2115
      %v2201 = vpop.f32.mrf.mxu0
      %v2202 = vadd.f32 0.0, %v2201
      %v2203 = vpop.f32.mrf.mxu0
      %2204 = vmatprep.mubr.f32.mxu0 0.0
      %2205 = vmatmul.mubr.f32.gmra.mxu0 %v2116
      %v2206 = vpop.f32.mrf.mxu0
      %v2207 = vadd.f32 0.0, %v2206
      %v2208 = vpop.f32.mrf.mxu0
      %2209 = vmatprep.mubr.f32.mxu0 0.0
      %2210 = vmatmul.mubr.f32.gmra.mxu0 %v2117
      %v2211 = vpop.f32.mrf.mxu0
      %v2212 = vadd.f32 0.0, %v2211
      %v2213 = vpop.f32.mrf.mxu0
      %2214 = vdwg.mxu0
      %v2215 = vadd.f32 %v2102, %v2202
      %v2216 = vadd.f32 %v2103, %v2207
      %v2217 = vadd.f32 %v2104, %v2212
      %s2218 = sadd.s32 %s2106, 677
      %s2219 = scalar_lea.vmem [#allocation2], %s2218
      %v2220 = vld [vmem:[%s2219] sm:$0xff]
      %v2221 = vld [vmem:[%s2219 + $0x8] sm:$0xff]
      %v2222 = vld [vmem:[%s2219 + $0x10] sm:$0xff]
      %v2223 = vmul.f32 %v2220, %v1441
      %v2224 = vmul.f32 %v2221, %v1441
      %v2225 = vmul.f32 %v2222, %v1441
      %v2226 = vadd.f32 %v2223, %v1450
      %v2227 = vadd.f32 %v2224, %v1450
      %v2228 = vadd.f32 %v2225, %v1450
      %s2229 = scalar_lea.vmem %s4, 896
      %v2230 = vld [vmem:[%s2229] sm:$0xff]
      %v2231 = vld [vmem:[%s2229 + $0x8] sm:$0xff]
      %v2232 = vld [vmem:[%s2229 + $0x10] sm:$0xff]
      %v2233 = vld [vmem:[%s2229 + $0x18] sm:$0xff]
      %v2234 = vld [vmem:[%s2229 + $0x20] sm:$0xff]
      %v2235 = vld [vmem:[%s2229 + $0x28] sm:$0xff]
      %v2236 = vld [vmem:[%s2229 + $0x30] sm:$0xff]
      %v2237 = vld [vmem:[%s2229 + $0x38] sm:$0xff]
      %v2238 = vld [vmem:[%s2229 + $0x40] sm:$0xff]
      %v2239 = vld [vmem:[%s2229 + $0x48] sm:$0xff]
      %v2240 = vld [vmem:[%s2229 + $0x50] sm:$0xff]
      %v2241 = vld [vmem:[%s2229 + $0x58] sm:$0xff]
      %v2242 = vld [vmem:[%s2229 + $0x60] sm:$0xff]
      %v2243 = vld [vmem:[%s2229 + $0x68] sm:$0xff]
      %v2244 = vld [vmem:[%s2229 + $0x70] sm:$0xff]
      %v2245 = vld [vmem:[%s2229 + $0x78] sm:$0xff]
      %2246 = vmatprep.subr.mxu0 0.0
      %2247 = vmatpush1.msra.mxu0 %v2245
      %2248 = vmatprep.subr.mxu0 0.0
      %2249 = vmatpush1.msra.mxu0 %v2244
      %2250 = vmatprep.subr.mxu0 0.0
      %2251 = vmatpush1.msra.mxu0 %v2243
      %2252 = vmatprep.subr.mxu0 0.0
      %2253 = vmatpush1.msra.mxu0 %v2242
      %2254 = vmatprep.subr.mxu0 0.0
      %2255 = vmatpush1.msra.mxu0 %v2241
      %2256 = vmatprep.subr.mxu0 0.0
      %2257 = vmatpush1.msra.mxu0 %v2240
      %2258 = vmatprep.subr.mxu0 0.0
      %2259 = vmatpush1.msra.mxu0 %v2239
      %2260 = vmatprep.subr.mxu0 0.0
      %2261 = vmatpush1.msra.mxu0 %v2238
      %2262 = vmatprep.subr.mxu0 0.0
      %2263 = vmatpush1.msra.mxu0 %v2237
      %2264 = vmatprep.subr.mxu0 0.0
      %2265 = vmatpush1.msra.mxu0 %v2236
      %2266 = vmatprep.subr.mxu0 0.0
      %2267 = vmatpush1.msra.mxu0 %v2235
      %2268 = vmatprep.subr.mxu0 0.0
      %2269 = vmatpush1.msra.mxu0 %v2234
      %2270 = vmatprep.subr.mxu0 0.0
      %2271 = vmatpush1.msra.mxu0 %v2233
      %2272 = vmatprep.subr.mxu0 0.0
      %2273 = vmatpush1.msra.mxu0 %v2232
      %2274 = vmatprep.subr.mxu0 0.0
      %2275 = vmatpush1.msra.mxu0 %v2231
      %2276 = vmatprep.subr.mxu0 0.0
      %2277 = vmatpush1.msra.mxu0 %v2230
      %2278 = vmatprep.subr.mxu0 0.0
      %2279 = vmatpush2.msra.mxu0 0.0
      %2280 = vmatprep.subr.mxu0 0.0
      %2281 = vmatpush2.msra.mxu0 0.0
      %2282 = vmatprep.subr.mxu0 0.0
      %2283 = vmatpush2.msra.mxu0 0.0
      %2284 = vmatprep.subr.mxu0 0.0
      %2285 = vmatpush2.msra.mxu0 0.0
      %2286 = vmatprep.subr.mxu0 0.0
      %2287 = vmatpush2.msra.mxu0 0.0
      %2288 = vmatprep.subr.mxu0 0.0
      %2289 = vmatpush2.msra.mxu0 0.0
      %2290 = vmatprep.subr.mxu0 0.0
      %2291 = vmatpush2.msra.mxu0 0.0
      %2292 = vmatprep.subr.mxu0 0.0
      %2293 = vmatpush2.msra.mxu0 0.0
      %2294 = vmatprep.subr.mxu0 0.0
      %2295 = vmatpush2.msra.mxu0 0.0
      %2296 = vmatprep.subr.mxu0 0.0
      %2297 = vmatpush2.msra.mxu0 0.0
      %2298 = vmatprep.subr.mxu0 0.0
      %2299 = vmatpush2.msra.mxu0 0.0
      %2300 = vmatprep.subr.mxu0 0.0
      %2301 = vmatpush2.msra.mxu0 0.0
      %2302 = vmatprep.subr.mxu0 0.0
      %2303 = vmatpush2.msra.mxu0 0.0
      %2304 = vmatprep.subr.mxu0 0.0
      %2305 = vmatpush2.msra.mxu0 0.0
      %2306 = vmatprep.subr.mxu0 0.0
      %2307 = vmatpush2.msra.mxu0 0.0
      %2308 = vmatprep.subr.mxu0 0.0
      %2309 = vmatpush2.msra.mxu0 0.0
      %2310 = vmatprep.mubr.f32.mxu0 0.0
      %2311 = vmatmul.mubr.f32.gmra.mxu0 %v2226
      %v2312 = vpop.f32.mrf.mxu0
      %v2313 = vadd.f32 0.0, %v2312
      %v2314 = vpop.f32.mrf.mxu0
      %2315 = vmatprep.mubr.f32.mxu0 0.0
      %2316 = vmatmul.mubr.f32.gmra.mxu0 %v2227
      %v2317 = vpop.f32.mrf.mxu0
      %v2318 = vadd.f32 0.0, %v2317
      %v2319 = vpop.f32.mrf.mxu0
      %2320 = vmatprep.mubr.f32.mxu0 0.0
      %2321 = vmatmul.mubr.f32.gmra.mxu0 %v2228
      %v2322 = vpop.f32.mrf.mxu0
      %v2323 = vadd.f32 0.0, %v2322
      %v2324 = vpop.f32.mrf.mxu0
      %2325 = vdwg.mxu0
      %v2326 = vadd.f32 %v2215, %v2313
      %v2327 = vadd.f32 %v2216, %v2318
      %v2328 = vadd.f32 %v2217, %v2323
      %s2329 = sadd.s32 %s2106, 678
      %s2330 = scalar_lea.vmem [#allocation2], %s2329
      %v2331 = vld [vmem:[%s2330] sm:$0xff]
      %v2332 = vld [vmem:[%s2330 + $0x8] sm:$0xff]
      %v2333 = vld [vmem:[%s2330 + $0x10] sm:$0xff]
      %v2334 = vmul.f32 %v2331, %v1441
      %v2335 = vmul.f32 %v2332, %v1441
      %v2336 = vmul.f32 %v2333, %v1441
      %v2337 = vadd.f32 %v2334, %v1450
      %v2338 = vadd.f32 %v2335, %v1450
      %v2339 = vadd.f32 %v2336, %v1450
      %s2340 = scalar_lea.vmem %s4, 1024
      %v2341 = vld [vmem:[%s2340] sm:$0xff]
      %v2342 = vld [vmem:[%s2340 + $0x8] sm:$0xff]
      %v2343 = vld [vmem:[%s2340 + $0x10] sm:$0xff]
      %v2344 = vld [vmem:[%s2340 + $0x18] sm:$0xff]
      %v2345 = vld [vmem:[%s2340 + $0x20] sm:$0xff]
      %v2346 = vld [vmem:[%s2340 + $0x28] sm:$0xff]
      %v2347 = vld [vmem:[%s2340 + $0x30] sm:$0xff]
      %v2348 = vld [vmem:[%s2340 + $0x38] sm:$0xff]
      %v2349 = vld [vmem:[%s2340 + $0x40] sm:$0xff]
      %v2350 = vld [vmem:[%s2340 + $0x48] sm:$0xff]
      %v2351 = vld [vmem:[%s2340 + $0x50] sm:$0xff]
      %v2352 = vld [vmem:[%s2340 + $0x58] sm:$0xff]
      %v2353 = vld [vmem:[%s2340 + $0x60] sm:$0xff]
      %v2354 = vld [vmem:[%s2340 + $0x68] sm:$0xff]
      %v2355 = vld [vmem:[%s2340 + $0x70] sm:$0xff]
      %v2356 = vld [vmem:[%s2340 + $0x78] sm:$0xff]
      %2357 = vmatprep.subr.mxu0 0.0
      %2358 = vmatpush1.msra.mxu0 %v2356
      %2359 = vmatprep.subr.mxu0 0.0
      %2360 = vmatpush1.msra.mxu0 %v2355
      %2361 = vmatprep.subr.mxu0 0.0
      %2362 = vmatpush1.msra.mxu0 %v2354
      %2363 = vmatprep.subr.mxu0 0.0
      %2364 = vmatpush1.msra.mxu0 %v2353
      %2365 = vmatprep.subr.mxu0 0.0
      %2366 = vmatpush1.msra.mxu0 %v2352
      %2367 = vmatprep.subr.mxu0 0.0
      %2368 = vmatpush1.msra.mxu0 %v2351
      %2369 = vmatprep.subr.mxu0 0.0
      %2370 = vmatpush1.msra.mxu0 %v2350
      %2371 = vmatprep.subr.mxu0 0.0
      %2372 = vmatpush1.msra.mxu0 %v2349
      %2373 = vmatprep.subr.mxu0 0.0
      %2374 = vmatpush1.msra.mxu0 %v2348
      %2375 = vmatprep.subr.mxu0 0.0
      %2376 = vmatpush1.msra.mxu0 %v2347
      %2377 = vmatprep.subr.mxu0 0.0
      %2378 = vmatpush1.msra.mxu0 %v2346
      %2379 = vmatprep.subr.mxu0 0.0
      %2380 = vmatpush1.msra.mxu0 %v2345
      %2381 = vmatprep.subr.mxu0 0.0
      %2382 = vmatpush1.msra.mxu0 %v2344
      %2383 = vmatprep.subr.mxu0 0.0
      %2384 = vmatpush1.msra.mxu0 %v2343
      %2385 = vmatprep.subr.mxu0 0.0
      %2386 = vmatpush1.msra.mxu0 %v2342
      %2387 = vmatprep.subr.mxu0 0.0
      %2388 = vmatpush1.msra.mxu0 %v2341
      %2389 = vmatprep.subr.mxu0 0.0
      %2390 = vmatpush2.msra.mxu0 0.0
      %2391 = vmatprep.subr.mxu0 0.0
      %2392 = vmatpush2.msra.mxu0 0.0
      %2393 = vmatprep.subr.mxu0 0.0
      %2394 = vmatpush2.msra.mxu0 0.0
      %2395 = vmatprep.subr.mxu0 0.0
      %2396 = vmatpush2.msra.mxu0 0.0
      %2397 = vmatprep.subr.mxu0 0.0
      %2398 = vmatpush2.msra.mxu0 0.0
      %2399 = vmatprep.subr.mxu0 0.0
      %2400 = vmatpush2.msra.mxu0 0.0
      %2401 = vmatprep.subr.mxu0 0.0
      %2402 = vmatpush2.msra.mxu0 0.0
      %2403 = vmatprep.subr.mxu0 0.0
      %2404 = vmatpush2.msra.mxu0 0.0
      %2405 = vmatprep.subr.mxu0 0.0
      %2406 = vmatpush2.msra.mxu0 0.0
      %2407 = vmatprep.subr.mxu0 0.0
      %2408 = vmatpush2.msra.mxu0 0.0
      %2409 = vmatprep.subr.mxu0 0.0
      %2410 = vmatpush2.msra.mxu0 0.0
      %2411 = vmatprep.subr.mxu0 0.0
      %2412 = vmatpush2.msra.mxu0 0.0
      %2413 = vmatprep.subr.mxu0 0.0
      %2414 = vmatpush2.msra.mxu0 0.0
      %2415 = vmatprep.subr.mxu0 0.0
      %2416 = vmatpush2.msra.mxu0 0.0
      %2417 = vmatprep.subr.mxu0 0.0
      %2418 = vmatpush2.msra.mxu0 0.0
      %2419 = vmatprep.subr.mxu0 0.0
      %2420 = vmatpush2.msra.mxu0 0.0
      %2421 = vmatprep.mubr.f32.mxu0 0.0
      %2422 = vmatmul.mubr.f32.gmra.mxu0 %v2337
      %v2423 = vpop.f32.mrf.mxu0
      %v2424 = vadd.f32 0.0, %v2423
      %v2425 = vpop.f32.mrf.mxu0
      %2426 = vmatprep.mubr.f32.mxu0 0.0
      %2427 = vmatmul.mubr.f32.gmra.mxu0 %v2338
      %v2428 = vpop.f32.mrf.mxu0
      %v2429 = vadd.f32 0.0, %v2428
      %v2430 = vpop.f32.mrf.mxu0
      %2431 = vmatprep.mubr.f32.mxu0 0.0
      %2432 = vmatmul.mubr.f32.gmra.mxu0 %v2339
      %v2433 = vpop.f32.mrf.mxu0
      %v2434 = vadd.f32 0.0, %v2433
      %v2435 = vpop.f32.mrf.mxu0
      %2436 = vdwg.mxu0
      %v2437 = vadd.f32 %v2326, %v2424
      %v2438 = vadd.f32 %v2327, %v2429
      %v2439 = vadd.f32 %v2328, %v2434
      %v2440 = vmax.f32 %v2437, 0.0
      %v2441 = vmax.f32 %v2438, 0.0
      %v2442 = vmax.f32 %v2439, 0.0
      %s2443 = smul.u32 %s1424, 24
      %s2444 = sadd.s32 %s2443, 576
      %s2445 = scalar_lea.vmem [#allocation3], %s2444
      %2446 = vst [vmem:[%s2445] sm:$0xff] %v2440
      %2447 = vst [vmem:[%s2445 + $0x8] sm:$0xff] %v2441
      %2448 = vst [vmem:[%s2445 + $0x10] sm:$0xff] %v2442
      %v2449 = vadd.f32 %v2440, %v2441
      %v2450 = vadd.f32 %v2449, %v2442
      %v2451 = vrot.slane %v2450, 4
      %v2452 = vadd.f32 %v2450, %v2451
      %v2453 = vrot.slane %v2452, 2
      %v2454 = vadd.f32 %v2452, %v2453
      %v2455 = vrot.slane %v2454, 1
      %v2456 = vadd.f32 %v2454, %v2455
      %v2457 = vadd.f32 %v1429, %v2456
      %v2458 = vmul.f32 %v2440, %v2440
      %v2459 = vmul.f32 %v2441, %v2441
      %v2460 = vmul.f32 %v2442, %v2442
      %v2461 = vadd.f32 %v2458, %v2459
      %v2462 = vadd.f32 %v2461, %v2460
      %v2463 = vrot.slane %v2462, 4
      %v2464 = vadd.f32 %v2462, %v2463
      %v2465 = vrot.slane %v2464, 2
      %v2466 = vadd.f32 %v2464, %v2465
      %v2467 = vrot.slane %v2466, 1
      %v2468 = vadd.f32 %v2466, %v2467
      %v2469 = vadd.f32 %v1430, %v2468
    $region80: #{model4_forward.1} parent=1 // loop_footer
      %s1428 = sadd.s32 1, %s1424
    $region81: #{model4_forward.1} parent=1 // loop_footer_branch
      %1423 = sbr.rel target = $region77
    $region82: #{model4_forward.1} parent=1 // loop_exit
      _
    %v2470 = vadd.f32 %v1421, %v1429
    %v2471 = vadd.f32 %v1422, %v1430
    %v2472 = vld [vmem:[%s5] sm:$0x1]
    %v2473 = vld [vmem:[%s6] sm:$0x1]
    %v2474 = vmul.f32 %v2470, 0.00086805556
    %v2475 = vmul.f32 %v2471, 0.00086805556
    %v2476 = vmul.f32 %v2474, %v2474
    %v2477 = vsub.f32 %v2475, %v2476
    %v2478 = vmax.f32 %v2477, 0.0
    %v2479 = vadd.f32 %v2478, 1e-05
    %v2480 = vrsqrt.pop %v2479
    %v2481 = vmul.f32 %v2472, %v2480
    %v2482 = vmul.f32 %v2474, %v2481
    %v2483 = vsub.f32 %v2473, %v2482
    %v2484 = vlaneseq
    %v2485 = vshrl.u32 %v2484, 7
    %v2486 = vadd.s32 %v2485, 8
    %v2487 = vlaneseq
    %v2488 = vand.u32 %v2487, 127
    %vm2489 = vcmp.lt.s32.totalorder %v2485, 12
    %vm2490 = vcmp.lt.s32.totalorder %v2486, 12
    %v2491 = vmul.u32 %v2485, 2
    %v2492 = vmul.u32 %v2486, 2
    %vm2493 = vcmp.eq.s32.totalorder %v2488, %v2491
    %vm2494 = vcmp.eq.s32.totalorder %v2488, %v2492
    %vm2495 = vmand %vm2489, %vm2493
    %vm2496 = vmand %vm2490, %vm2494
    %v2497 = vsel %vm2495, 1, 0
    %v2498 = vsel %vm2496, 1, 0
    %v2499 = vcvt.s32.f32 %v2497
    %v2500 = vcvt.s32.f32 %v2498
    %v2501 = vadd.s32 %v2491, 1
    %v2502 = vadd.s32 %v2492, 1
    %vm2503 = vcmp.eq.s32.totalorder %v2488, %v2501
    %vm2504 = vcmp.eq.s32.totalorder %v2488, %v2502
    %vm2505 = vmand %vm2489, %vm2503
    %vm2506 = vmand %vm2490, %vm2504
    %v2507 = vsel %vm2505, 1, 0
    %v2508 = vsel %vm2506, 1, 0
    %v2509 = vcvt.s32.f32 %v2507
    %v2510 = vcvt.s32.f32 %v2508
    %v2511 = vld [vmem:[%s7] sm:$0xff]
    %v2512 = vld [vmem:[%s7 + $0x8] sm:$0xff]
    %v2513 = vld [vmem:[%s7 + $0x10] sm:$0xff]
    %v2514 = vld [vmem:[%s7 + $0x18] sm:$0xff]
    %v2515 = vld [vmem:[%s7 + $0x20] sm:$0xff]
    %v2516 = vld [vmem:[%s7 + $0x28] sm:$0xff]
    %v2517 = vld [vmem:[%s7 + $0x30] sm:$0xff]
    %v2518 = vld [vmem:[%s7 + $0x38] sm:$0xff]
    %v2519 = vld [vmem:[%s7 + $0x40] sm:$0xff]
    %v2520 = vld [vmem:[%s7 + $0x48] sm:$0xff]
    %v2521 = vld [vmem:[%s7 + $0x50] sm:$0xff]
    %v2522 = vld [vmem:[%s7 + $0x58] sm:$0xff]
    %v2523 = vld [vmem:[%s7 + $0x60] sm:$0xff]
    %v2524 = vld [vmem:[%s7 + $0x68] sm:$0xff]
    %v2525 = vld [vmem:[%s7 + $0x70] sm:$0xff]
    %v2526 = vld [vmem:[%s7 + $0x78] sm:$0xff]
    loop: start=0, step=1, limit=12
    $region83: #{model4_forward.1} parent=1 // loop_pre_header
      _
    $region84: #{model4_forward.1} parent=1 // loop_header
      %s2528 = sphi 0, %s2532
      %p2529 = scmp.ge.s32.totalorder %s2528, 12
    $region85: #{model4_forward.1} parent=1 // loop_header_branch
      %2531 = sbr.rel (%p2529) target = $region89
    $region86: #{model4_forward.1} parent=1 // loop_body
      %s2533 = smul.u32 %s2528, 48
      %s2534 = scalar_lea.vmem [#allocation3], %s2533
      %v2535 = vld [vmem:[%s2534] sm:$0xff]
      %v2536 = vld [vmem:[%s2534 + $0x8] sm:$0xff]
      %v2537 = vld [vmem:[%s2534 + $0x10] sm:$0xff]
      %v2539 = vlaneseq
      %v2540 = vshrl.u32 %v2539, 7
      %v2541 = vsub.s32 0, %v2540
      %v2542 = vrot.slane %v2481, %v2541
      %v2544 = vmul.f32 %v2535, %v2542
      %v2545 = vmul.f32 %v2536, %v2542
      %v2546 = vmul.f32 %v2537, %v2542
      %v2548 = vlaneseq
      %v2549 = vshrl.u32 %v2548, 7
      %v2550 = vsub.s32 0, %v2549
      %v2551 = vrot.slane %v2483, %v2550
      %v2553 = vadd.f32 %v2544, %v2551
      %v2554 = vadd.f32 %v2545, %v2551
      %v2555 = vadd.f32 %v2546, %v2551
      %s2556 = smul.u32 %s2528, 2
      %s2557 = sadd.s32 %s2556, 1
      %s2558 = smul.u32 %s2557, 24
      %s2559 = scalar_lea.vmem [#allocation3], %s2558
      %v2560 = vld [vmem:[%s2559] sm:$0xff]
      %v2561 = vld [vmem:[%s2559 + $0x8] sm:$0xff]
      %v2562 = vld [vmem:[%s2559 + $0x10] sm:$0xff]
      %v2563 = vmul.f32 %v2560, %v2542
      %v2564 = vmul.f32 %v2561, %v2542
      %v2565 = vmul.f32 %v2562, %v2542
      %v2566 = vadd.f32 %v2563, %v2551
      %v2567 = vadd.f32 %v2564, %v2551
      %v2568 = vadd.f32 %v2565, %v2551
      %2569 = vmatprep.subr.mxu0 0.0
      %2570 = vmatpush1.msra.mxu0 %v2526
      %2571 = vmatprep.subr.mxu0 0.0
      %2572 = vmatpush1.msra.mxu0 %v2525
      %2573 = vmatprep.subr.mxu0 0.0
      %2574 = vmatpush1.msra.mxu0 %v2524
      %2575 = vmatprep.subr.mxu0 0.0
      %2576 = vmatpush1.msra.mxu0 %v2523
      %2577 = vmatprep.subr.mxu0 0.0
      %2578 = vmatpush1.msra.mxu0 %v2522
      %2579 = vmatprep.subr.mxu0 0.0
      %2580 = vmatpush1.msra.mxu0 %v2521
      %2581 = vmatprep.subr.mxu0 0.0
      %2582 = vmatpush1.msra.mxu0 %v2520
      %2583 = vmatprep.subr.mxu0 0.0
      %2584 = vmatpush1.msra.mxu0 %v2519
      %2585 = vmatprep.subr.mxu0 0.0
      %2586 = vmatpush1.msra.mxu0 %v2518
      %2587 = vmatprep.subr.mxu0 0.0
      %2588 = vmatpush1.msra.mxu0 %v2517
      %2589 = vmatprep.subr.mxu0 0.0
      %2590 = vmatpush1.msra.mxu0 %v2516
      %2591 = vmatprep.subr.mxu0 0.0
      %2592 = vmatpush1.msra.mxu0 %v2515
      %2593 = vmatprep.subr.mxu0 0.0
      %2594 = vmatpush1.msra.mxu0 %v2514
      %2595 = vmatprep.subr.mxu0 0.0
      %2596 = vmatpush1.msra.mxu0 %v2513
      %2597 = vmatprep.subr.mxu0 0.0
      %2598 = vmatpush1.msra.mxu0 %v2512
      %2599 = vmatprep.subr.mxu0 0.0
      %2600 = vmatpush1.msra.mxu0 %v2511
      %2601 = vmatprep.subr.mxu0 0.0
      %2602 = vmatpush2.msra.mxu0 0.0
      %2603 = vmatprep.subr.mxu0 0.0
      %2604 = vmatpush2.msra.mxu0 0.0
      %2605 = vmatprep.subr.mxu0 0.0
      %2606 = vmatpush2.msra.mxu0 0.0
      %2607 = vmatprep.subr.mxu0 0.0
      %2608 = vmatpush2.msra.mxu0 0.0
      %2609 = vmatprep.subr.mxu0 0.0
      %2610 = vmatpush2.msra.mxu0 0.0
      %2611 = vmatprep.subr.mxu0 0.0
      %2612 = vmatpush2.msra.mxu0 0.0
      %2613 = vmatprep.subr.mxu0 0.0
      %2614 = vmatpush2.msra.mxu0 0.0
      %2615 = vmatprep.subr.mxu0 0.0
      %2616 = vmatpush2.msra.mxu0 0.0
      %2617 = vmatprep.subr.mxu0 0.0
      %2618 = vmatpush2.msra.mxu0 0.0
      %2619 = vmatprep.subr.mxu0 0.0
      %2620 = vmatpush2.msra.mxu0 0.0
      %2621 = vmatprep.subr.mxu0 0.0
      %2622 = vmatpush2.msra.mxu0 0.0
      %2623 = vmatprep.subr.mxu0 0.0
      %2624 = vmatpush2.msra.mxu0 0.0
      %2625 = vmatprep.subr.mxu0 0.0
      %2626 = vmatpush2.msra.mxu0 0.0
      %2627 = vmatprep.subr.mxu0 0.0
      %2628 = vmatpush2.msra.mxu0 0.0
      %2629 = vmatprep.subr.mxu0 0.0
      %2630 = vmatpush2.msra.mxu0 0.0
      %2631 = vmatprep.subr.mxu0 0.0
      %2632 = vmatpush2.msra.mxu0 0.0
      %2633 = vmatprep.mubr.f32.mxu0 0.0
      %2634 = vmatmul.mubr.f32.gmra.mxu0 %v2553
      %v2635 = vpop.f32.mrf.mxu0
      %v2636 = vadd.f32 0.0, %v2635
      %v2637 = vpop.f32.mrf.mxu0
      %2638 = vmatprep.mubr.f32.mxu0 0.0
      %2639 = vmatmul.mubr.f32.gmra.mxu0 %v2554
      %v2640 = vpop.f32.mrf.mxu0
      %v2641 = vadd.f32 0.0, %v2640
      %v2642 = vpop.f32.mrf.mxu0
      %2643 = vmatprep.mubr.f32.mxu0 0.0
      %2644 = vmatmul.mubr.f32.gmra.mxu0 %v2555
      %v2645 = vpop.f32.mrf.mxu0
      %v2646 = vadd.f32 0.0, %v2645
      %v2647 = vpop.f32.mrf.mxu0
      %2648 = vdwg.mxu0
      %2649 = vmatprep.subr.mxu0 0.0
      %2650 = vmatpush1.msra.mxu0 %v2526
      %2651 = vmatprep.subr.mxu0 0.0
      %2652 = vmatpush1.msra.mxu0 %v2525
      %2653 = vmatprep.subr.mxu0 0.0
      %2654 = vmatpush1.msra.mxu0 %v2524
      %2655 = vmatprep.subr.mxu0 0.0
      %2656 = vmatpush1.msra.mxu0 %v2523
      %2657 = vmatprep.subr.mxu0 0.0
      %2658 = vmatpush1.msra.mxu0 %v2522
      %2659 = vmatprep.subr.mxu0 0.0
      %2660 = vmatpush1.msra.mxu0 %v2521
      %2661 = vmatprep.subr.mxu0 0.0
      %2662 = vmatpush1.msra.mxu0 %v2520
      %2663 = vmatprep.subr.mxu0 0.0
      %2664 = vmatpush1.msra.mxu0 %v2519
      %2665 = vmatprep.subr.mxu0 0.0
      %2666 = vmatpush1.msra.mxu0 %v2518
      %2667 = vmatprep.subr.mxu0 0.0
      %2668 = vmatpush1.msra.mxu0 %v2517
      %2669 = vmatprep.subr.mxu0 0.0
      %2670 = vmatpush1.msra.mxu0 %v2516
      %2671 = vmatprep.subr.mxu0 0.0
      %2672 = vmatpush1.msra.mxu0 %v2515
      %2673 = vmatprep.subr.mxu0 0.0
      %2674 = vmatpush1.msra.mxu0 %v2514
      %2675 = vmatprep.subr.mxu0 0.0
      %2676 = vmatpush1.msra.mxu0 %v2513
      %2677 = vmatprep.subr.mxu0 0.0
      %2678 = vmatpush1.msra.mxu0 %v2512
      %2679 = vmatprep.subr.mxu0 0.0
      %2680 = vmatpush1.msra.mxu0 %v2511
      %2681 = vmatprep.subr.mxu0 0.0
      %2682 = vmatpush2.msra.mxu0 0.0
      %2683 = vmatprep.subr.mxu0 0.0
      %2684 = vmatpush2.msra.mxu0 0.0
      %2685 = vmatprep.subr.mxu0 0.0
      %2686 = vmatpush2.msra.mxu0 0.0
      %2687 = vmatprep.subr.mxu0 0.0
      %2688 = vmatpush2.msra.mxu0 0.0
      %2689 = vmatprep.subr.mxu0 0.0
      %2690 = vmatpush2.msra.mxu0 0.0
      %2691 = vmatprep.subr.mxu0 0.0
      %2692 = vmatpush2.msra.mxu0 0.0
      %2693 = vmatprep.subr.mxu0 0.0
      %2694 = vmatpush2.msra.mxu0 0.0
      %2695 = vmatprep.subr.mxu0 0.0
      %2696 = vmatpush2.msra.mxu0 0.0
      %2697 = vmatprep.subr.mxu0 0.0
      %2698 = vmatpush2.msra.mxu0 0.0
      %2699 = vmatprep.subr.mxu0 0.0
      %2700 = vmatpush2.msra.mxu0 0.0
      %2701 = vmatprep.subr.mxu0 0.0
      %2702 = vmatpush2.msra.mxu0 0.0
      %2703 = vmatprep.subr.mxu0 0.0
      %2704 = vmatpush2.msra.mxu0 0.0
      %2705 = vmatprep.subr.mxu0 0.0
      %2706 = vmatpush2.msra.mxu0 0.0
      %2707 = vmatprep.subr.mxu0 0.0
      %2708 = vmatpush2.msra.mxu0 0.0
      %2709 = vmatprep.subr.mxu0 0.0
      %2710 = vmatpush2.msra.mxu0 0.0
      %2711 = vmatprep.subr.mxu0 0.0
      %2712 = vmatpush2.msra.mxu0 0.0
      %2713 = vmatprep.mubr.f32.mxu0 0.0
      %2714 = vmatmul.mubr.f32.gmra.mxu0 %v2566
      %v2715 = vpop.f32.mrf.mxu0
      %v2716 = vadd.f32 0.0, %v2715
      %v2717 = vpop.f32.mrf.mxu0
      %2718 = vmatprep.mubr.f32.mxu0 0.0
      %2719 = vmatmul.mubr.f32.gmra.mxu0 %v2567
      %v2720 = vpop.f32.mrf.mxu0
      %v2721 = vadd.f32 0.0, %v2720
      %v2722 = vpop.f32.mrf.mxu0
      %2723 = vmatprep.mubr.f32.mxu0 0.0
      %2724 = vmatmul.mubr.f32.gmra.mxu0 %v2568
      %v2725 = vpop.f32.mrf.mxu0
      %v2726 = vadd.f32 0.0, %v2725
      %v2727 = vpop.f32.mrf.mxu0
      %2728 = vdwg.mxu0
      %v2729 = vmax.f32 %v2636, %v2716
      %v2730 = vmax.f32 %v2641, %v2721
      %v2731 = vmax.f32 %v2646, %v2726
      %vm2732 = vcmask 195584
      %v2734 = vsel %vm2732, %v2499, 0
      %v2737 = vsel %vm2732, %v2500, 0
      %2739 = vmatprep.subr.mxu0 0.0
      %2740 = vmatpush1.msra.mxu0 0.0
      %2741 = vmatprep.subr.mxu0 0.0
      %2742 = vmatpush1.msra.mxu0 0.0
      %2743 = vmatprep.subr.mxu0 0.0
      %2744 = vmatpush1.msra.mxu0 0.0
      %2745 = vmatprep.subr.mxu0 0.0
      %2746 = vmatpush1.msra.mxu0 0.0
      %2747 = vmatprep.subr.mxu0 0.0
      %2748 = vmatpush1.msra.mxu0 0.0
      %2749 = vmatprep.subr.mxu0 0.0
      %2750 = vmatpush1.msra.mxu0 0.0
      %2751 = vmatprep.subr.mxu0 0.0
      %2752 = vmatpush1.msra.mxu0 0.0
      %2753 = vmatprep.subr.mxu0 0.0
      %2754 = vmatpush1.msra.mxu0 0.0
      %2755 = vmatprep.subr.mxu0 0.0
      %2756 = vmatpush1.msra.mxu0 0.0
      %2757 = vmatprep.subr.mxu0 0.0
      %2758 = vmatpush1.msra.mxu0 0.0
      %2759 = vmatprep.subr.mxu0 0.0
      %2760 = vmatpush1.msra.mxu0 0.0
      %2761 = vmatprep.subr.mxu0 0.0
      %2762 = vmatpush1.msra.mxu0 0.0
      %2763 = vmatprep.subr.mxu0 0.0
      %2764 = vmatpush1.msra.mxu0 0.0
      %2765 = vmatprep.subr.mxu0 0.0
      %2766 = vmatpush1.msra.mxu0 %v2731
      %2767 = vmatprep.subr.mxu0 0.0
      %2768 = vmatpush1.msra.mxu0 %v2730
      %2769 = vmatprep.subr.mxu0 0.0
      %2770 = vmatpush1.msra.mxu0 %v2729
      %2771 = vmatprep.subr.mxu0 0.0
      %2772 = vmatpush2.msra.mxu0 0.0
      %2773 = vmatprep.subr.mxu0 0.0
      %2774 = vmatpush2.msra.mxu0 0.0
      %2775 = vmatprep.subr.mxu0 0.0
      %2776 = vmatpush2.msra.mxu0 0.0
      %2777 = vmatprep.subr.mxu0 0.0
      %2778 = vmatpush2.msra.mxu0 0.0
      %2779 = vmatprep.subr.mxu0 0.0
      %2780 = vmatpush2.msra.mxu0 0.0
      %2781 = vmatprep.subr.mxu0 0.0
      %2782 = vmatpush2.msra.mxu0 0.0
      %2783 = vmatprep.subr.mxu0 0.0
      %2784 = vmatpush2.msra.mxu0 0.0
      %2785 = vmatprep.subr.mxu0 0.0
      %2786 = vmatpush2.msra.mxu0 0.0
      %2787 = vmatprep.subr.mxu0 0.0
      %2788 = vmatpush2.msra.mxu0 0.0
      %2789 = vmatprep.subr.mxu0 0.0
      %2790 = vmatpush2.msra.mxu0 0.0
      %2791 = vmatprep.subr.mxu0 0.0
      %2792 = vmatpush2.msra.mxu0 0.0
      %2793 = vmatprep.subr.mxu0 0.0
      %2794 = vmatpush2.msra.mxu0 0.0
      %2795 = vmatprep.subr.mxu0 0.0
      %2796 = vmatpush2.msra.mxu0 0.0
      %2797 = vmatprep.subr.mxu0 0.0
      %2798 = vmatpush2.msra.mxu0 0.0
      %2799 = vmatprep.subr.mxu0 0.0
      %2800 = vmatpush2.msra.mxu0 0.0
      %2801 = vmatprep.subr.mxu0 0.0
      %2802 = vmatpush2.msra.mxu0 0.0
      %2803 = vmatprep.mubr.f32.mxu0 0.0
      %2804 = vmatmul.mubr.f32.gmra.mxu0 %v2734
      %v2805 = vpop.f32.mrf.mxu0
      %v2806 = vadd.f32 0.0, %v2805
      %v2807 = vpop.f32.mrf.mxu0
      %2808 = vmatprep.mubr.f32.mxu0 0.0
      %2809 = vmatmul.mubr.f32.gmra.mxu0 %v2737
      %v2810 = vpop.f32.mrf.mxu0
      %v2811 = vadd.f32 0.0, %v2810
      %v2812 = vpop.f32.mrf.mxu0
      %2813 = vdwg.mxu0
      %v2815 = vsel %vm2732, %v2509, 0
      %v2818 = vsel %vm2732, %v2510, 0
      %2820 = vmatprep.subr.mxu0 0.0
      %2821 = vmatpush1.msra.mxu0 0.0
      %2822 = vmatprep.subr.mxu0 0.0
      %2823 = vmatpush1.msra.mxu0 0.0
      %2824 = vmatprep.subr.mxu0 0.0
      %2825 = vmatpush1.msra.mxu0 0.0
      %2826 = vmatprep.subr.mxu0 0.0
      %2827 = vmatpush1.msra.mxu0 0.0
      %2828 = vmatprep.subr.mxu0 0.0
      %2829 = vmatpush1.msra.mxu0 0.0
      %2830 = vmatprep.subr.mxu0 0.0
      %2831 = vmatpush1.msra.mxu0 0.0
      %2832 = vmatprep.subr.mxu0 0.0
      %2833 = vmatpush1.msra.mxu0 0.0
      %2834 = vmatprep.subr.mxu0 0.0
      %2835 = vmatpush1.msra.mxu0 0.0
      %2836 = vmatprep.subr.mxu0 0.0
      %2837 = vmatpush1.msra.mxu0 0.0
      %2838 = vmatprep.subr.mxu0 0.0
      %2839 = vmatpush1.msra.mxu0 0.0
      %2840 = vmatprep.subr.mxu0 0.0
      %2841 = vmatpush1.msra.mxu0 0.0
      %2842 = vmatprep.subr.mxu0 0.0
      %2843 = vmatpush1.msra.mxu0 0.0
      %2844 = vmatprep.subr.mxu0 0.0
      %2845 = vmatpush1.msra.mxu0 0.0
      %2846 = vmatprep.subr.mxu0 0.0
      %2847 = vmatpush1.msra.mxu0 %v2731
      %2848 = vmatprep.subr.mxu0 0.0
      %2849 = vmatpush1.msra.mxu0 %v2730
      %2850 = vmatprep.subr.mxu0 0.0
      %2851 = vmatpush1.msra.mxu0 %v2729
      %2852 = vmatprep.subr.mxu0 0.0
      %2853 = vmatpush2.msra.mxu0 0.0
      %2854 = vmatprep.subr.mxu0 0.0
      %2855 = vmatpush2.msra.mxu0 0.0
      %2856 = vmatprep.subr.mxu0 0.0
      %2857 = vmatpush2.msra.mxu0 0.0
      %2858 = vmatprep.subr.mxu0 0.0
      %2859 = vmatpush2.msra.mxu0 0.0
      %2860 = vmatprep.subr.mxu0 0.0
      %2861 = vmatpush2.msra.mxu0 0.0
      %2862 = vmatprep.subr.mxu0 0.0
      %2863 = vmatpush2.msra.mxu0 0.0
      %2864 = vmatprep.subr.mxu0 0.0
      %2865 = vmatpush2.msra.mxu0 0.0
      %2866 = vmatprep.subr.mxu0 0.0
      %2867 = vmatpush2.msra.mxu0 0.0
      %2868 = vmatprep.subr.mxu0 0.0
      %2869 = vmatpush2.msra.mxu0 0.0
      %2870 = vmatprep.subr.mxu0 0.0
      %2871 = vmatpush2.msra.mxu0 0.0
      %2872 = vmatprep.subr.mxu0 0.0
      %2873 = vmatpush2.msra.mxu0 0.0
      %2874 = vmatprep.subr.mxu0 0.0
      %2875 = vmatpush2.msra.mxu0 0.0
      %2876 = vmatprep.subr.mxu0 0.0
      %2877 = vmatpush2.msra.mxu0 0.0
      %2878 = vmatprep.subr.mxu0 0.0
      %2879 = vmatpush2.msra.mxu0 0.0
      %2880 = vmatprep.subr.mxu0 0.0
      %2881 = vmatpush2.msra.mxu0 0.0
      %2882 = vmatprep.subr.mxu0 0.0
      %2883 = vmatpush2.msra.mxu0 0.0
      %2884 = vmatprep.mubr.f32.mxu0 0.0
      %2885 = vmatmul.mubr.f32.gmra.mxu0 %v2815
      %v2886 = vpop.f32.mrf.mxu0
      %v2887 = vadd.f32 0.0, %v2886
      %v2888 = vpop.f32.mrf.mxu0
      %2889 = vmatprep.mubr.f32.mxu0 0.0
      %2890 = vmatmul.mubr.f32.gmra.mxu0 %v2818
      %v2891 = vpop.f32.mrf.mxu0
      %v2892 = vadd.f32 0.0, %v2891
      %v2893 = vpop.f32.mrf.mxu0
      %2894 = vdwg.mxu0
      %v2895 = vmax.f32 %v2806, %v2887
      %v2896 = vmax.f32 %v2811, %v2892
      %s2897 = smul.u32 %s2528, 16
      %s2898 = scalar_lea.vmem [#allocation4], %s2897
      %2899 = vst [vmem:[%s2898] sm:$0xff] %v2895
      %2900 = vst [vmem:[%s2898 + $0x8] sm:$0xff] %v2896
    $region87: #{model4_forward.1} parent=1 // loop_footer
      %s2532 = sadd.s32 1, %s2528
    $region88: #{model4_forward.1} parent=1 // loop_footer_branch
      %2527 = sbr.rel target = $region84
    $region89: #{model4_forward.1} parent=1 // loop_exit
      _
    loop: start=0, step=1, limit=12
    $region90: #{model4_forward.1} parent=1 // loop_pre_header
      _
    $region91: #{model4_forward.1} parent=1 // loop_header
      %s2902 = sphi 0, %s2906
      %p2903 = scmp.ge.s32.totalorder %s2902, 12
    $region92: #{model4_forward.1} parent=1 // loop_header_branch
      %2905 = sbr.rel (%p2903) target = $region96
    $region93: #{model4_forward.1} parent=1 // loop_body
      %s2907 = smul.u32 %s2902, 48
      %s2908 = sadd.s32 %s2907, 576
      %s2909 = scalar_lea.vmem [#allocation3], %s2908
      %v2910 = vld [vmem:[%s2909] sm:$0xff]
      %v2911 = vld [vmem:[%s2909 + $0x8] sm:$0xff]
      %v2912 = vld [vmem:[%s2909 + $0x10] sm:$0xff]
      %v2914 = vlaneseq
      %v2915 = vshrl.u32 %v2914, 7
      %v2916 = vsub.s32 0, %v2915
      %v2917 = vrot.slane %v2481, %v2916
      %v2919 = vmul.f32 %v2910, %v2917
      %v2920 = vmul.f32 %v2911, %v2917
      %v2921 = vmul.f32 %v2912, %v2917
      %v2923 = vlaneseq
      %v2924 = vshrl.u32 %v2923, 7
      %v2925 = vsub.s32 0, %v2924
      %v2926 = vrot.slane %v2483, %v2925
      %v2928 = vadd.f32 %v2919, %v2926
      %v2929 = vadd.f32 %v2920, %v2926
      %v2930 = vadd.f32 %v2921, %v2926
      %s2931 = smul.u32 %s2902, 2
      %s2932 = sadd.s32 %s2931, 1
      %s2933 = smul.u32 %s2932, 24
      %s2934 = sadd.s32 %s2933, 576
      %s2935 = scalar_lea.vmem [#allocation3], %s2934
      %v2936 = vld [vmem:[%s2935] sm:$0xff]
      %v2937 = vld [vmem:[%s2935 + $0x8] sm:$0xff]
      %v2938 = vld [vmem:[%s2935 + $0x10] sm:$0xff]
      %v2939 = vmul.f32 %v2936, %v2917
      %v2940 = vmul.f32 %v2937, %v2917
      %v2941 = vmul.f32 %v2938, %v2917
      %v2942 = vadd.f32 %v2939, %v2926
      %v2943 = vadd.f32 %v2940, %v2926
      %v2944 = vadd.f32 %v2941, %v2926
      %2945 = vmatprep.subr.mxu0 0.0
      %2946 = vmatpush1.msra.mxu0 %v2526
      %2947 = vmatprep.subr.mxu0 0.0
      %2948 = vmatpush1.msra.mxu0 %v2525
      %2949 = vmatprep.subr.mxu0 0.0
      %2950 = vmatpush1.msra.mxu0 %v2524
      %2951 = vmatprep.subr.mxu0 0.0
      %2952 = vmatpush1.msra.mxu0 %v2523
      %2953 = vmatprep.subr.mxu0 0.0
      %2954 = vmatpush1.msra.mxu0 %v2522
      %2955 = vmatprep.subr.mxu0 0.0
      %2956 = vmatpush1.msra.mxu0 %v2521
      %2957 = vmatprep.subr.mxu0 0.0
      %2958 = vmatpush1.msra.mxu0 %v2520
      %2959 = vmatprep.subr.mxu0 0.0
      %2960 = vmatpush1.msra.mxu0 %v2519
      %2961 = vmatprep.subr.mxu0 0.0
      %2962 = vmatpush1.msra.mxu0 %v2518
      %2963 = vmatprep.subr.mxu0 0.0
      %2964 = vmatpush1.msra.mxu0 %v2517
      %2965 = vmatprep.subr.mxu0 0.0
      %2966 = vmatpush1.msra.mxu0 %v2516
      %2967 = vmatprep.subr.mxu0 0.0
      %2968 = vmatpush1.msra.mxu0 %v2515
      %2969 = vmatprep.subr.mxu0 0.0
      %2970 = vmatpush1.msra.mxu0 %v2514
      %2971 = vmatprep.subr.mxu0 0.0
      %2972 = vmatpush1.msra.mxu0 %v2513
      %2973 = vmatprep.subr.mxu0 0.0
      %2974 = vmatpush1.msra.mxu0 %v2512
      %2975 = vmatprep.subr.mxu0 0.0
      %2976 = vmatpush1.msra.mxu0 %v2511
      %2977 = vmatprep.subr.mxu0 0.0
      %2978 = vmatpush2.msra.mxu0 0.0
      %2979 = vmatprep.subr.mxu0 0.0
      %2980 = vmatpush2.msra.mxu0 0.0
      %2981 = vmatprep.subr.mxu0 0.0
      %2982 = vmatpush2.msra.mxu0 0.0
      %2983 = vmatprep.subr.mxu0 0.0
      %2984 = vmatpush2.msra.mxu0 0.0
      %2985 = vmatprep.subr.mxu0 0.0
      %2986 = vmatpush2.msra.mxu0 0.0
      %2987 = vmatprep.subr.mxu0 0.0
      %2988 = vmatpush2.msra.mxu0 0.0
      %2989 = vmatprep.subr.mxu0 0.0
      %2990 = vmatpush2.msra.mxu0 0.0
      %2991 = vmatprep.subr.mxu0 0.0
      %2992 = vmatpush2.msra.mxu0 0.0
      %2993 = vmatprep.subr.mxu0 0.0
      %2994 = vmatpush2.msra.mxu0 0.0
      %2995 = vmatprep.subr.mxu0 0.0
      %2996 = vmatpush2.msra.mxu0 0.0
      %2997 = vmatprep.subr.mxu0 0.0
      %2998 = vmatpush2.msra.mxu0 0.0
      %2999 = vmatprep.subr.mxu0 0.0
      %3000 = vmatpush2.msra.mxu0 0.0
      %3001 = vmatprep.subr.mxu0 0.0
      %3002 = vmatpush2.msra.mxu0 0.0
      %3003 = vmatprep.subr.mxu0 0.0
      %3004 = vmatpush2.msra.mxu0 0.0
      %3005 = vmatprep.subr.mxu0 0.0
      %3006 = vmatpush2.msra.mxu0 0.0
      %3007 = vmatprep.subr.mxu0 0.0
      %3008 = vmatpush2.msra.mxu0 0.0
      %3009 = vmatprep.mubr.f32.mxu0 0.0
      %3010 = vmatmul.mubr.f32.gmra.mxu0 %v2928
      %v3011 = vpop.f32.mrf.mxu0
      %v3012 = vadd.f32 0.0, %v3011
      %v3013 = vpop.f32.mrf.mxu0
      %3014 = vmatprep.mubr.f32.mxu0 0.0
      %3015 = vmatmul.mubr.f32.gmra.mxu0 %v2929
      %v3016 = vpop.f32.mrf.mxu0
      %v3017 = vadd.f32 0.0, %v3016
      %v3018 = vpop.f32.mrf.mxu0
      %3019 = vmatprep.mubr.f32.mxu0 0.0
      %3020 = vmatmul.mubr.f32.gmra.mxu0 %v2930
      %v3021 = vpop.f32.mrf.mxu0
      %v3022 = vadd.f32 0.0, %v3021
      %v3023 = vpop.f32.mrf.mxu0
      %3024 = vdwg.mxu0
      %3025 = vmatprep.subr.mxu0 0.0
      %3026 = vmatpush1.msra.mxu0 %v2526
      %3027 = vmatprep.subr.mxu0 0.0
      %3028 = vmatpush1.msra.mxu0 %v2525
      %3029 = vmatprep.subr.mxu0 0.0
      %3030 = vmatpush1.msra.mxu0 %v2524
      %3031 = vmatprep.subr.mxu0 0.0
      %3032 = vmatpush1.msra.mxu0 %v2523
      %3033 = vmatprep.subr.mxu0 0.0
      %3034 = vmatpush1.msra.mxu0 %v2522
      %3035 = vmatprep.subr.mxu0 0.0
      %3036 = vmatpush1.msra.mxu0 %v2521
      %3037 = vmatprep.subr.mxu0 0.0
      %3038 = vmatpush1.msra.mxu0 %v2520
      %3039 = vmatprep.subr.mxu0 0.0
      %3040 = vmatpush1.msra.mxu0 %v2519
      %3041 = vmatprep.subr.mxu0 0.0
      %3042 = vmatpush1.msra.mxu0 %v2518
      %3043 = vmatprep.subr.mxu0 0.0
      %3044 = vmatpush1.msra.mxu0 %v2517
      %3045 = vmatprep.subr.mxu0 0.0
      %3046 = vmatpush1.msra.mxu0 %v2516
      %3047 = vmatprep.subr.mxu0 0.0
      %3048 = vmatpush1.msra.mxu0 %v2515
      %3049 = vmatprep.subr.mxu0 0.0
      %3050 = vmatpush1.msra.mxu0 %v2514
      %3051 = vmatprep.subr.mxu0 0.0
      %3052 = vmatpush1.msra.mxu0 %v2513
      %3053 = vmatprep.subr.mxu0 0.0
      %3054 = vmatpush1.msra.mxu0 %v2512
      %3055 = vmatprep.subr.mxu0 0.0
      %3056 = vmatpush1.msra.mxu0 %v2511
      %3057 = vmatprep.subr.mxu0 0.0
      %3058 = vmatpush2.msra.mxu0 0.0
      %3059 = vmatprep.subr.mxu0 0.0
      %3060 = vmatpush2.msra.mxu0 0.0
      %3061 = vmatprep.subr.mxu0 0.0
      %3062 = vmatpush2.msra.mxu0 0.0
      %3063 = vmatprep.subr.mxu0 0.0
      %3064 = vmatpush2.msra.mxu0 0.0
      %3065 = vmatprep.subr.mxu0 0.0
      %3066 = vmatpush2.msra.mxu0 0.0
      %3067 = vmatprep.subr.mxu0 0.0
      %3068 = vmatpush2.msra.mxu0 0.0
      %3069 = vmatprep.subr.mxu0 0.0
      %3070 = vmatpush2.msra.mxu0 0.0
      %3071 = vmatprep.subr.mxu0 0.0
      %3072 = vmatpush2.msra.mxu0 0.0
      %3073 = vmatprep.subr.mxu0 0.0
      %3074 = vmatpush2.msra.mxu0 0.0
      %3075 = vmatprep.subr.mxu0 0.0
      %3076 = vmatpush2.msra.mxu0 0.0
      %3077 = vmatprep.subr.mxu0 0.0
      %3078 = vmatpush2.msra.mxu0 0.0
      %3079 = vmatprep.subr.mxu0 0.0
      %3080 = vmatpush2.msra.mxu0 0.0
      %3081 = vmatprep.subr.mxu0 0.0
      %3082 = vmatpush2.msra.mxu0 0.0
      %3083 = vmatprep.subr.mxu0 0.0
      %3084 = vmatpush2.msra.mxu0 0.0
      %3085 = vmatprep.subr.mxu0 0.0
      %3086 = vmatpush2.msra.mxu0 0.0
      %3087 = vmatprep.subr.mxu0 0.0
      %3088 = vmatpush2.msra.mxu0 0.0
      %3089 = vmatprep.mubr.f32.mxu0 0.0
      %3090 = vmatmul.mubr.f32.gmra.mxu0 %v2942
      %v3091 = vpop.f32.mrf.mxu0
      %v3092 = vadd.f32 0.0, %v3091
      %v3093 = vpop.f32.mrf.mxu0
      %3094 = vmatprep.mubr.f32.mxu0 0.0
      %3095 = vmatmul.mubr.f32.gmra.mxu0 %v2943
      %v3096 = vpop.f32.mrf.mxu0
      %v3097 = vadd.f32 0.0, %v3096
      %v3098 = vpop.f32.mrf.mxu0
      %3099 = vmatprep.mubr.f32.mxu0 0.0
      %3100 = vmatmul.mubr.f32.gmra.mxu0 %v2944
      %v3101 = vpop.f32.mrf.mxu0
      %v3102 = vadd.f32 0.0, %v3101
      %v3103 = vpop.f32.mrf.mxu0
      %3104 = vdwg.mxu0
      %v3105 = vmax.f32 %v3012, %v3092
      %v3106 = vmax.f32 %v3017, %v3097
      %v3107 = vmax.f32 %v3022, %v3102
      %vm3108 = vcmask 195584
      %v3110 = vsel %vm3108, %v2499, 0
      %v3113 = vsel %vm3108, %v2500, 0
      %3115 = vmatprep.subr.mxu0 0.0
      %3116 = vmatpush1.msra.mxu0 0.0
      %3117 = vmatprep.subr.mxu0 0.0
      %3118 = vmatpush1.msra.mxu0 0.0
      %3119 = vmatprep.subr.mxu0 0.0
      %3120 = vmatpush1.msra.mxu0 0.0
      %3121 = vmatprep.subr.mxu0 0.0
      %3122 = vmatpush1.msra.mxu0 0.0
      %3123 = vmatprep.subr.mxu0 0.0
      %3124 = vmatpush1.msra.mxu0 0.0
      %3125 = vmatprep.subr.mxu0 0.0
      %3126 = vmatpush1.msra.mxu0 0.0
      %3127 = vmatprep.subr.mxu0 0.0
      %3128 = vmatpush1.msra.mxu0 0.0
      %3129 = vmatprep.subr.mxu0 0.0
      %3130 = vmatpush1.msra.mxu0 0.0
      %3131 = vmatprep.subr.mxu0 0.0
      %3132 = vmatpush1.msra.mxu0 0.0
      %3133 = vmatprep.subr.mxu0 0.0
      %3134 = vmatpush1.msra.mxu0 0.0
      %3135 = vmatprep.subr.mxu0 0.0
      %3136 = vmatpush1.msra.mxu0 0.0
      %3137 = vmatprep.subr.mxu0 0.0
      %3138 = vmatpush1.msra.mxu0 0.0
      %3139 = vmatprep.subr.mxu0 0.0
      %3140 = vmatpush1.msra.mxu0 0.0
      %3141 = vmatprep.subr.mxu0 0.0
      %3142 = vmatpush1.msra.mxu0 %v3107
      %3143 = vmatprep.subr.mxu0 0.0
      %3144 = vmatpush1.msra.mxu0 %v3106
      %3145 = vmatprep.subr.mxu0 0.0
      %3146 = vmatpush1.msra.mxu0 %v3105
      %3147 = vmatprep.subr.mxu0 0.0
      %3148 = vmatpush2.msra.mxu0 0.0
      %3149 = vmatprep.subr.mxu0 0.0
      %3150 = vmatpush2.msra.mxu0 0.0
      %3151 = vmatprep.subr.mxu0 0.0
      %3152 = vmatpush2.msra.mxu0 0.0
      %3153 = vmatprep.subr.mxu0 0.0
      %3154 = vmatpush2.msra.mxu0 0.0
      %3155 = vmatprep.subr.mxu0 0.0
      %3156 = vmatpush2.msra.mxu0 0.0
      %3157 = vmatprep.subr.mxu0 0.0
      %3158 = vmatpush2.msra.mxu0 0.0
      %3159 = vmatprep.subr.mxu0 0.0
      %3160 = vmatpush2.msra.mxu0 0.0
      %3161 = vmatprep.subr.mxu0 0.0
      %3162 = vmatpush2.msra.mxu0 0.0
      %3163 = vmatprep.subr.mxu0 0.0
      %3164 = vmatpush2.msra.mxu0 0.0
      %3165 = vmatprep.subr.mxu0 0.0
      %3166 = vmatpush2.msra.mxu0 0.0
      %3167 = vmatprep.subr.mxu0 0.0
      %3168 = vmatpush2.msra.mxu0 0.0
      %3169 = vmatprep.subr.mxu0 0.0
      %3170 = vmatpush2.msra.mxu0 0.0
      %3171 = vmatprep.subr.mxu0 0.0
      %3172 = vmatpush2.msra.mxu0 0.0
      %3173 = vmatprep.subr.mxu0 0.0
      %3174 = vmatpush2.msra.mxu0 0.0
      %3175 = vmatprep.subr.mxu0 0.0
      %3176 = vmatpush2.msra.mxu0 0.0
      %3177 = vmatprep.subr.mxu0 0.0
      %3178 = vmatpush2.msra.mxu0 0.0
      %3179 = vmatprep.mubr.f32.mxu0 0.0
      %3180 = vmatmul.mubr.f32.gmra.mxu0 %v3110
      %v3181 = vpop.f32.mrf.mxu0
      %v3182 = vadd.f32 0.0, %v3181
      %v3183 = vpop.f32.mrf.mxu0
      %3184 = vmatprep.mubr.f32.mxu0 0.0
      %3185 = vmatmul.mubr.f32.gmra.mxu0 %v3113
      %v3186 = vpop.f32.mrf.mxu0
      %v3187 = vadd.f32 0.0, %v3186
      %v3188 = vpop.f32.mrf.mxu0
      %3189 = vdwg.mxu0
      %v3191 = vsel %vm3108, %v2509, 0
      %v3194 = vsel %vm3108, %v2510, 0
      %3196 = vmatprep.subr.mxu0 0.0
      %3197 = vmatpush1.msra.mxu0 0.0
      %3198 = vmatprep.subr.mxu0 0.0
      %3199 = vmatpush1.msra.mxu0 0.0
      %3200 = vmatprep.subr.mxu0 0.0
      %3201 = vmatpush1.msra.mxu0 0.0
      %3202 = vmatprep.subr.mxu0 0.0
      %3203 = vmatpush1.msra.mxu0 0.0
      %3204 = vmatprep.subr.mxu0 0.0
      %3205 = vmatpush1.msra.mxu0 0.0
      %3206 = vmatprep.subr.mxu0 0.0
      %3207 = vmatpush1.msra.mxu0 0.0
      %3208 = vmatprep.subr.mxu0 0.0
      %3209 = vmatpush1.msra.mxu0 0.0
      %3210 = vmatprep.subr.mxu0 0.0
      %3211 = vmatpush1.msra.mxu0 0.0
      %3212 = vmatprep.subr.mxu0 0.0
      %3213 = vmatpush1.msra.mxu0 0.0
      %3214 = vmatprep.subr.mxu0 0.0
      %3215 = vmatpush1.msra.mxu0 0.0
      %3216 = vmatprep.subr.mxu0 0.0
      %3217 = vmatpush1.msra.mxu0 0.0
      %3218 = vmatprep.subr.mxu0 0.0
      %3219 = vmatpush1.msra.mxu0 0.0
      %3220 = vmatprep.subr.mxu0 0.0
      %3221 = vmatpush1.msra.mxu0 0.0
      %3222 = vmatprep.subr.mxu0 0.0
      %3223 = vmatpush1.msra.mxu0 %v3107
      %3224 = vmatprep.subr.mxu0 0.0
      %3225 = vmatpush1.msra.mxu0 %v3106
      %3226 = vmatprep.subr.mxu0 0.0
      %3227 = vmatpush1.msra.mxu0 %v3105
      %3228 = vmatprep.subr.mxu0 0.0
      %3229 = vmatpush2.msra.mxu0 0.0
      %3230 = vmatprep.subr.mxu0 0.0
      %3231 = vmatpush2.msra.mxu0 0.0
      %3232 = vmatprep.subr.mxu0 0.0
      %3233 = vmatpush2.msra.mxu0 0.0
      %3234 = vmatprep.subr.mxu0 0.0
      %3235 = vmatpush2.msra.mxu0 0.0
      %3236 = vmatprep.subr.mxu0 0.0
      %3237 = vmatpush2.msra.mxu0 0.0
      %3238 = vmatprep.subr.mxu0 0.0
      %3239 = vmatpush2.msra.mxu0 0.0
      %3240 = vmatprep.subr.mxu0 0.0
      %3241 = vmatpush2.msra.mxu0 0.0
      %3242 = vmatprep.subr.mxu0 0.0
      %3243 = vmatpush2.msra.mxu0 0.0
      %3244 = vmatprep.subr.mxu0 0.0
      %3245 = vmatpush2.msra.mxu0 0.0
      %3246 = vmatprep.subr.mxu0 0.0
      %3247 = vmatpush2.msra.mxu0 0.0
      %3248 = vmatprep.subr.mxu0 0.0
      %3249 = vmatpush2.msra.mxu0 0.0
      %3250 = vmatprep.subr.mxu0 0.0
      %3251 = vmatpush2.msra.mxu0 0.0
      %3252 = vmatprep.subr.mxu0 0.0
      %3253 = vmatpush2.msra.mxu0 0.0
      %3254 = vmatprep.subr.mxu0 0.0
      %3255 = vmatpush2.msra.mxu0 0.0
      %3256 = vmatprep.subr.mxu0 0.0
      %3257 = vmatpush2.msra.mxu0 0.0
      %3258 = vmatprep.subr.mxu0 0.0
      %3259 = vmatpush2.msra.mxu0 0.0
      %3260 = vmatprep.mubr.f32.mxu0 0.0
      %3261 = vmatmul.mubr.f32.gmra.mxu0 %v3191
      %v3262 = vpop.f32.mrf.mxu0
      %v3263 = vadd.f32 0.0, %v3262
      %v3264 = vpop.f32.mrf.mxu0
      %3265 = vmatprep.mubr.f32.mxu0 0.0
      %3266 = vmatmul.mubr.f32.gmra.mxu0 %v3194
      %v3267 = vpop.f32.mrf.mxu0
      %v3268 = vadd.f32 0.0, %v3267
      %v3269 = vpop.f32.mrf.mxu0
      %3270 = vdwg.mxu0
      %v3271 = vmax.f32 %v3182, %v3263
      %v3272 = vmax.f32 %v3187, %v3268
      %s3273 = smul.u32 %s2902, 16
      %s3274 = sadd.s32 %s3273, 192
      %s3275 = scalar_lea.vmem [#allocation4], %s3274
      %3276 = vst [vmem:[%s3275] sm:$0xff] %v3271
      %3277 = vst [vmem:[%s3275 + $0x8] sm:$0xff] %v3272
    $region94: #{model4_forward.1} parent=1 // loop_footer
      %s2906 = sadd.s32 1, %s2902
    $region95: #{model4_forward.1} parent=1 // loop_footer_branch
      %2901 = sbr.rel target = $region91
    $region96: #{model4_forward.1} parent=1 // loop_exit
      _
    loop: start=0, step=1, limit=10
    $region97: #{model4_forward.1} parent=1 // loop_pre_header
      _
    $region98: #{model4_forward.1} parent=1 // loop_header
      %s3279 = sphi 0, %s3283
      %p3280 = scmp.ge.s32.totalorder %s3279, 10
      %v3284 = vphi 0.0, %v4179
      %v3285 = vphi 0.0, %v4190
    $region99: #{model4_forward.1} parent=1 // loop_header_branch
      %3282 = sbr.rel (%p3280) target = $region103
    $region100: #{model4_forward.1} parent=1 // loop_body
      %s3286 = smul.u32 %s3279, 16
      %s3287 = scalar_lea.vmem [#allocation4], %s3286
      %v3288 = vld [vmem:[%s3287] sm:$0xff]
      %v3289 = vld [vmem:[%s3287 + $0x8] sm:$0x3]
      %v3290 = vld [vmem:[%s8] sm:$0xff]
      %v3291 = vld [vmem:[%s8 + $0x8] sm:$0xff]
      %v3292 = vld [vmem:[%s8 + $0x10] sm:$0xff]
      %v3293 = vld [vmem:[%s8 + $0x18] sm:$0xff]
      %v3294 = vld [vmem:[%s8 + $0x20] sm:$0xff]
      %v3295 = vld [vmem:[%s8 + $0x28] sm:$0xff]
      %v3296 = vld [vmem:[%s8 + $0x30] sm:$0xff]
      %v3297 = vld [vmem:[%s8 + $0x38] sm:$0xff]
      %v3298 = vld [vmem:[%s8 + $0x40] sm:$0xff]
      %v3299 = vld [vmem:[%s8 + $0x48] sm:$0xff]
      %v3300 = vld [vmem:[%s8 + $0x50] sm:$0xff]
      %v3301 = vld [vmem:[%s8 + $0x58] sm:$0xff]
      %v3302 = vld [vmem:[%s8 + $0x60] sm:$0xff]
      %v3303 = vld [vmem:[%s8 + $0x68] sm:$0xff]
      %v3304 = vld [vmem:[%s8 + $0x70] sm:$0xff]
      %v3305 = vld [vmem:[%s8 + $0x78] sm:$0xff]
      %s3306 = sadd.s32 %s3286, 1
      %s3307 = scalar_lea.vmem [#allocation4], %s3306
      %v3308 = vld [vmem:[%s3307] sm:$0xff]
      %v3309 = vld [vmem:[%s3307 + $0x8] sm:$0x3]
      %s3310 = scalar_lea.vmem %s8, 128
      %v3311 = vld [vmem:[%s3310] sm:$0xff]
      %v3312 = vld [vmem:[%s3310 + $0x8] sm:$0xff]
      %v3313 = vld [vmem:[%s3310 + $0x10] sm:$0xff]
      %v3314 = vld [vmem:[%s3310 + $0x18] sm:$0xff]
      %v3315 = vld [vmem:[%s3310 + $0x20] sm:$0xff]
      %v3316 = vld [vmem:[%s3310 + $0x28] sm:$0xff]
      %v3317 = vld [vmem:[%s3310 + $0x30] sm:$0xff]
      %v3318 = vld [vmem:[%s3310 + $0x38] sm:$0xff]
      %v3319 = vld [vmem:[%s3310 + $0x40] sm:$0xff]
      %v3320 = vld [vmem:[%s3310 + $0x48] sm:$0xff]
      %v3321 = vld [vmem:[%s3310 + $0x50] sm:$0xff]
      %v3322 = vld [vmem:[%s3310 + $0x58] sm:$0xff]
      %v3323 = vld [vmem:[%s3310 + $0x60] sm:$0xff]
      %v3324 = vld [vmem:[%s3310 + $0x68] sm:$0xff]
      %v3325 = vld [vmem:[%s3310 + $0x70] sm:$0xff]
      %v3326 = vld [vmem:[%s3310 + $0x78] sm:$0xff]
      %3327 = vmatprep.subr.mxu0 0.0
      %3328 = vmatpush1.msra.mxu0 %v3326
      %3329 = vmatprep.subr.mxu0 0.0
      %3330 = vmatpush1.msra.mxu0 %v3325
      %3331 = vmatprep.subr.mxu0 0.0
      %3332 = vmatpush1.msra.mxu0 %v3324
      %3333 = vmatprep.subr.mxu0 0.0
      %3334 = vmatpush1.msra.mxu0 %v3323
      %3335 = vmatprep.subr.mxu0 0.0
      %3336 = vmatpush1.msra.mxu0 %v3322
      %3337 = vmatprep.subr.mxu0 0.0
      %3338 = vmatpush1.msra.mxu0 %v3321
      %3339 = vmatprep.subr.mxu0 0.0
      %3340 = vmatpush1.msra.mxu0 %v3320
      %3341 = vmatprep.subr.mxu0 0.0
      %3342 = vmatpush1.msra.mxu0 %v3319
      %3343 = vmatprep.subr.mxu0 0.0
      %3344 = vmatpush1.msra.mxu0 %v3318
      %3345 = vmatprep.subr.mxu0 0.0
      %3346 = vmatpush1.msra.mxu0 %v3317
      %3347 = vmatprep.subr.mxu0 0.0
      %3348 = vmatpush1.msra.mxu0 %v3316
      %3349 = vmatprep.subr.mxu0 0.0
      %3350 = vmatpush1.msra.mxu0 %v3315
      %3351 = vmatprep.subr.mxu0 0.0
      %3352 = vmatpush1.msra.mxu0 %v3314
      %3353 = vmatprep.subr.mxu0 0.0
      %3354 = vmatpush1.msra.mxu0 %v3313
      %3355 = vmatprep.subr.mxu0 0.0
      %3356 = vmatpush1.msra.mxu0 %v3312
      %3357 = vmatprep.subr.mxu0 0.0
      %3358 = vmatpush1.msra.mxu0 %v3311
      %3359 = vmatprep.subr.mxu0 0.0
      %3360 = vmatpush2.msra.mxu0 0.0
      %3361 = vmatprep.subr.mxu0 0.0
      %3362 = vmatpush2.msra.mxu0 0.0
      %3363 = vmatprep.subr.mxu0 0.0
      %3364 = vmatpush2.msra.mxu0 0.0
      %3365 = vmatprep.subr.mxu0 0.0
      %3366 = vmatpush2.msra.mxu0 0.0
      %3367 = vmatprep.subr.mxu0 0.0
      %3368 = vmatpush2.msra.mxu0 0.0
      %3369 = vmatprep.subr.mxu0 0.0
      %3370 = vmatpush2.msra.mxu0 0.0
      %3371 = vmatprep.subr.mxu0 0.0
      %3372 = vmatpush2.msra.mxu0 0.0
      %3373 = vmatprep.subr.mxu0 0.0
      %3374 = vmatpush2.msra.mxu0 0.0
      %3375 = vmatprep.subr.mxu0 0.0
      %3376 = vmatpush2.msra.mxu0 0.0
      %3377 = vmatprep.subr.mxu0 0.0
      %3378 = vmatpush2.msra.mxu0 0.0
      %3379 = vmatprep.subr.mxu0 0.0
      %3380 = vmatpush2.msra.mxu0 0.0
      %3381 = vmatprep.subr.mxu0 0.0
      %3382 = vmatpush2.msra.mxu0 0.0
      %3383 = vmatprep.subr.mxu0 0.0
      %3384 = vmatpush2.msra.mxu0 0.0
      %3385 = vmatprep.subr.mxu0 0.0
      %3386 = vmatpush2.msra.mxu0 0.0
      %3387 = vmatprep.subr.mxu0 0.0
      %3388 = vmatpush2.msra.mxu0 0.0
      %3389 = vmatprep.subr.mxu0 0.0
      %3390 = vmatpush2.msra.mxu0 0.0
      %3391 = vmatprep.mubr.f32.mxu0 0.0
      %3392 = vmatmul.mubr.f32.gmra.mxu0 %v3308
      %v3393 = vpop.f32.mrf.mxu0
      %v3394 = vadd.f32 0.0, %v3393
      %v3395 = vpop.f32.mrf.mxu0
      %3396 = vmatprep.mubr.f32.mxu0 0.0
      %3397 = vmatmul.mubr.f32.gmra.mxu0 %v3309
      %v3398 = vpop.f32.mrf.mxu0
      %v3399 = vadd.f32 0.0, %v3398
      %v3400 = vpop.f32.mrf.mxu0
      %3401 = vdwg.mxu0
      %3402 = vmatprep.subr.mxu0 0.0
      %3403 = vmatpush1.msra.mxu0 %v3305
      %3404 = vmatprep.subr.mxu0 0.0
      %3405 = vmatpush1.msra.mxu0 %v3304
      %3406 = vmatprep.subr.mxu0 0.0
      %3407 = vmatpush1.msra.mxu0 %v3303
      %3408 = vmatprep.subr.mxu0 0.0
      %3409 = vmatpush1.msra.mxu0 %v3302
      %3410 = vmatprep.subr.mxu0 0.0
      %3411 = vmatpush1.msra.mxu0 %v3301
      %3412 = vmatprep.subr.mxu0 0.0
      %3413 = vmatpush1.msra.mxu0 %v3300
      %3414 = vmatprep.subr.mxu0 0.0
      %3415 = vmatpush1.msra.mxu0 %v3299
      %3416 = vmatprep.subr.mxu0 0.0
      %3417 = vmatpush1.msra.mxu0 %v3298
      %3418 = vmatprep.subr.mxu0 0.0
      %3419 = vmatpush1.msra.mxu0 %v3297
      %3420 = vmatprep.subr.mxu0 0.0
      %3421 = vmatpush1.msra.mxu0 %v3296
      %3422 = vmatprep.subr.mxu0 0.0
      %3423 = vmatpush1.msra.mxu0 %v3295
      %3424 = vmatprep.subr.mxu0 0.0
      %3425 = vmatpush1.msra.mxu0 %v3294
      %3426 = vmatprep.subr.mxu0 0.0
      %3427 = vmatpush1.msra.mxu0 %v3293
      %3428 = vmatprep.subr.mxu0 0.0
      %3429 = vmatpush1.msra.mxu0 %v3292
      %3430 = vmatprep.subr.mxu0 0.0
      %3431 = vmatpush1.msra.mxu0 %v3291
      %3432 = vmatprep.subr.mxu0 0.0
      %3433 = vmatpush1.msra.mxu0 %v3290
      %3434 = vmatprep.subr.mxu0 0.0
      %3435 = vmatpush2.msra.mxu0 0.0
      %3436 = vmatprep.subr.mxu0 0.0
      %3437 = vmatpush2.msra.mxu0 0.0
      %3438 = vmatprep.subr.mxu0 0.0
      %3439 = vmatpush2.msra.mxu0 0.0
      %3440 = vmatprep.subr.mxu0 0.0
      %3441 = vmatpush2.msra.mxu0 0.0
      %3442 = vmatprep.subr.mxu0 0.0
      %3443 = vmatpush2.msra.mxu0 0.0
      %3444 = vmatprep.subr.mxu0 0.0
      %3445 = vmatpush2.msra.mxu0 0.0
      %3446 = vmatprep.subr.mxu0 0.0
      %3447 = vmatpush2.msra.mxu0 0.0
      %3448 = vmatprep.subr.mxu0 0.0
      %3449 = vmatpush2.msra.mxu0 0.0
      %3450 = vmatprep.subr.mxu0 0.0
      %3451 = vmatpush2.msra.mxu0 0.0
      %3452 = vmatprep.subr.mxu0 0.0
      %3453 = vmatpush2.msra.mxu0 0.0
      %3454 = vmatprep.subr.mxu0 0.0
      %3455 = vmatpush2.msra.mxu0 0.0
      %3456 = vmatprep.subr.mxu0 0.0
      %3457 = vmatpush2.msra.mxu0 0.0
      %3458 = vmatprep.subr.mxu0 0.0
      %3459 = vmatpush2.msra.mxu0 0.0
      %3460 = vmatprep.subr.mxu0 0.0
      %3461 = vmatpush2.msra.mxu0 0.0
      %3462 = vmatprep.subr.mxu0 0.0
      %3463 = vmatpush2.msra.mxu0 0.0
      %3464 = vmatprep.subr.mxu0 0.0
      %3465 = vmatpush2.msra.mxu0 0.0
      %3466 = vmatprep.mubr.f32.mxu0 0.0
      %3467 = vmatmul.mubr.f32.gmra.mxu0 %v3288
      %v3468 = vpop.f32.mrf.mxu0
      %v3469 = vadd.f32 %v3394, %v3468
      %v3470 = vpop.f32.mrf.mxu0
      %3471 = vmatprep.mubr.f32.mxu0 0.0
      %3472 = vmatmul.mubr.f32.gmra.mxu0 %v3289
      %v3473 = vpop.f32.mrf.mxu0
      %v3474 = vadd.f32 %v3399, %v3473
      %v3475 = vpop.f32.mrf.mxu0
      %3476 = vdwg.mxu0
      %s3477 = sadd.s32 %s3286, 2
      %s3478 = scalar_lea.vmem [#allocation4], %s3477
      %v3479 = vld [vmem:[%s3478] sm:$0xff]
      %v3480 = vld [vmem:[%s3478 + $0x8] sm:$0x3]
      %s3481 = scalar_lea.vmem %s8, 256
      %v3482 = vld [vmem:[%s3481] sm:$0xff]
      %v3483 = vld [vmem:[%s3481 + $0x8] sm:$0xff]
      %v3484 = vld [vmem:[%s3481 + $0x10] sm:$0xff]
      %v3485 = vld [vmem:[%s3481 + $0x18] sm:$0xff]
      %v3486 = vld [vmem:[%s3481 + $0x20] sm:$0xff]
      %v3487 = vld [vmem:[%s3481 + $0x28] sm:$0xff]
      %v3488 = vld [vmem:[%s3481 + $0x30] sm:$0xff]
      %v3489 = vld [vmem:[%s3481 + $0x38] sm:$0xff]
      %v3490 = vld [vmem:[%s3481 + $0x40] sm:$0xff]
      %v3491 = vld [vmem:[%s3481 + $0x48] sm:$0xff]
      %v3492 = vld [vmem:[%s3481 + $0x50] sm:$0xff]
      %v3493 = vld [vmem:[%s3481 + $0x58] sm:$0xff]
      %v3494 = vld [vmem:[%s3481 + $0x60] sm:$0xff]
      %v3495 = vld [vmem:[%s3481 + $0x68] sm:$0xff]
      %v3496 = vld [vmem:[%s3481 + $0x70] sm:$0xff]
      %v3497 = vld [vmem:[%s3481 + $0x78] sm:$0xff]
      %3498 = vmatprep.subr.mxu0 0.0
      %3499 = vmatpush1.msra.mxu0 %v3497
      %3500 = vmatprep.subr.mxu0 0.0
      %3501 = vmatpush1.msra.mxu0 %v3496
      %3502 = vmatprep.subr.mxu0 0.0
      %3503 = vmatpush1.msra.mxu0 %v3495
      %3504 = vmatprep.subr.mxu0 0.0
      %3505 = vmatpush1.msra.mxu0 %v3494
      %3506 = vmatprep.subr.mxu0 0.0
      %3507 = vmatpush1.msra.mxu0 %v3493
      %3508 = vmatprep.subr.mxu0 0.0
      %3509 = vmatpush1.msra.mxu0 %v3492
      %3510 = vmatprep.subr.mxu0 0.0
      %3511 = vmatpush1.msra.mxu0 %v3491
      %3512 = vmatprep.subr.mxu0 0.0
      %3513 = vmatpush1.msra.mxu0 %v3490
      %3514 = vmatprep.subr.mxu0 0.0
      %3515 = vmatpush1.msra.mxu0 %v3489
      %3516 = vmatprep.subr.mxu0 0.0
      %3517 = vmatpush1.msra.mxu0 %v3488
      %3518 = vmatprep.subr.mxu0 0.0
      %3519 = vmatpush1.msra.mxu0 %v3487
      %3520 = vmatprep.subr.mxu0 0.0
      %3521 = vmatpush1.msra.mxu0 %v3486
      %3522 = vmatprep.subr.mxu0 0.0
      %3523 = vmatpush1.msra.mxu0 %v3485
      %3524 = vmatprep.subr.mxu0 0.0
      %3525 = vmatpush1.msra.mxu0 %v3484
      %3526 = vmatprep.subr.mxu0 0.0
      %3527 = vmatpush1.msra.mxu0 %v3483
      %3528 = vmatprep.subr.mxu0 0.0
      %3529 = vmatpush1.msra.mxu0 %v3482
      %3530 = vmatprep.subr.mxu0 0.0
      %3531 = vmatpush2.msra.mxu0 0.0
      %3532 = vmatprep.subr.mxu0 0.0
      %3533 = vmatpush2.msra.mxu0 0.0
      %3534 = vmatprep.subr.mxu0 0.0
      %3535 = vmatpush2.msra.mxu0 0.0
      %3536 = vmatprep.subr.mxu0 0.0
      %3537 = vmatpush2.msra.mxu0 0.0
      %3538 = vmatprep.subr.mxu0 0.0
      %3539 = vmatpush2.msra.mxu0 0.0
      %3540 = vmatprep.subr.mxu0 0.0
      %3541 = vmatpush2.msra.mxu0 0.0
      %3542 = vmatprep.subr.mxu0 0.0
      %3543 = vmatpush2.msra.mxu0 0.0
      %3544 = vmatprep.subr.mxu0 0.0
      %3545 = vmatpush2.msra.mxu0 0.0
      %3546 = vmatprep.subr.mxu0 0.0
      %3547 = vmatpush2.msra.mxu0 0.0
      %3548 = vmatprep.subr.mxu0 0.0
      %3549 = vmatpush2.msra.mxu0 0.0
      %3550 = vmatprep.subr.mxu0 0.0
      %3551 = vmatpush2.msra.mxu0 0.0
      %3552 = vmatprep.subr.mxu0 0.0
      %3553 = vmatpush2.msra.mxu0 0.0
      %3554 = vmatprep.subr.mxu0 0.0
      %3555 = vmatpush2.msra.mxu0 0.0
      %3556 = vmatprep.subr.mxu0 0.0
      %3557 = vmatpush2.msra.mxu0 0.0
      %3558 = vmatprep.subr.mxu0 0.0
      %3559 = vmatpush2.msra.mxu0 0.0
      %3560 = vmatprep.subr.mxu0 0.0
      %3561 = vmatpush2.msra.mxu0 0.0
      %3562 = vmatprep.mubr.f32.mxu0 0.0
      %3563 = vmatmul.mubr.f32.gmra.mxu0 %v3479
      %v3564 = vpop.f32.mrf.mxu0
      %v3565 = vadd.f32 0.0, %v3564
      %v3566 = vpop.f32.mrf.mxu0
      %3567 = vmatprep.mubr.f32.mxu0 0.0
      %3568 = vmatmul.mubr.f32.gmra.mxu0 %v3480
      %v3569 = vpop.f32.mrf.mxu0
      %v3570 = vadd.f32 0.0, %v3569
      %v3571 = vpop.f32.mrf.mxu0
      %3572 = vdwg.mxu0
      %v3573 = vadd.f32 %v3469, %v3565
      %v3574 = vadd.f32 %v3474, %v3570
      %s3575 = sadd.s32 %s3279, 1
      %s3576 = smul.u32 %s3575, 16
      %s3577 = scalar_lea.vmem [#allocation4], %s3576
      %v3578 = vld [vmem:[%s3577] sm:$0xff]
      %v3579 = vld [vmem:[%s3577 + $0x8] sm:$0x3]
      %s3580 = scalar_lea.vmem %s8, 384
      %v3581 = vld [vmem:[%s3580] sm:$0xff]
      %v3582 = vld [vmem:[%s3580 + $0x8] sm:$0xff]
      %v3583 = vld [vmem:[%s3580 + $0x10] sm:$0xff]
      %v3584 = vld [vmem:[%s3580 + $0x18] sm:$0xff]
      %v3585 = vld [vmem:[%s3580 + $0x20] sm:$0xff]
      %v3586 = vld [vmem:[%s3580 + $0x28] sm:$0xff]
      %v3587 = vld [vmem:[%s3580 + $0x30] sm:$0xff]
      %v3588 = vld [vmem:[%s3580 + $0x38] sm:$0xff]
      %v3589 = vld [vmem:[%s3580 + $0x40] sm:$0xff]
      %v3590 = vld [vmem:[%s3580 + $0x48] sm:$0xff]
      %v3591 = vld [vmem:[%s3580 + $0x50] sm:$0xff]
      %v3592 = vld [vmem:[%s3580 + $0x58] sm:$0xff]
      %v3593 = vld [vmem:[%s3580 + $0x60] sm:$0xff]
      %v3594 = vld [vmem:[%s3580 + $0x68] sm:$0xff]
      %v3595 = vld [vmem:[%s3580 + $0x70] sm:$0xff]
      %v3596 = vld [vmem:[%s3580 + $0x78] sm:$0xff]
      %3597 = vmatprep.subr.mxu0 0.0
      %3598 = vmatpush1.msra.mxu0 %v3596
      %3599 = vmatprep.subr.mxu0 0.0
      %3600 = vmatpush1.msra.mxu0 %v3595
      %3601 = vmatprep.subr.mxu0 0.0
      %3602 = vmatpush1.msra.mxu0 %v3594
      %3603 = vmatprep.subr.mxu0 0.0
      %3604 = vmatpush1.msra.mxu0 %v3593
      %3605 = vmatprep.subr.mxu0 0.0
      %3606 = vmatpush1.msra.mxu0 %v3592
      %3607 = vmatprep.subr.mxu0 0.0
      %3608 = vmatpush1.msra.mxu0 %v3591
      %3609 = vmatprep.subr.mxu0 0.0
      %3610 = vmatpush1.msra.mxu0 %v3590
      %3611 = vmatprep.subr.mxu0 0.0
      %3612 = vmatpush1.msra.mxu0 %v3589
      %3613 = vmatprep.subr.mxu0 0.0
      %3614 = vmatpush1.msra.mxu0 %v3588
      %3615 = vmatprep.subr.mxu0 0.0
      %3616 = vmatpush1.msra.mxu0 %v3587
      %3617 = vmatprep.subr.mxu0 0.0
      %3618 = vmatpush1.msra.mxu0 %v3586
      %3619 = vmatprep.subr.mxu0 0.0
      %3620 = vmatpush1.msra.mxu0 %v3585
      %3621 = vmatprep.subr.mxu0 0.0
      %3622 = vmatpush1.msra.mxu0 %v3584
      %3623 = vmatprep.subr.mxu0 0.0
      %3624 = vmatpush1.msra.mxu0 %v3583
      %3625 = vmatprep.subr.mxu0 0.0
      %3626 = vmatpush1.msra.mxu0 %v3582
      %3627 = vmatprep.subr.mxu0 0.0
      %3628 = vmatpush1.msra.mxu0 %v3581
      %3629 = vmatprep.subr.mxu0 0.0
      %3630 = vmatpush2.msra.mxu0 0.0
      %3631 = vmatprep.subr.mxu0 0.0
      %3632 = vmatpush2.msra.mxu0 0.0
      %3633 = vmatprep.subr.mxu0 0.0
      %3634 = vmatpush2.msra.mxu0 0.0
      %3635 = vmatprep.subr.mxu0 0.0
      %3636 = vmatpush2.msra.mxu0 0.0
      %3637 = vmatprep.subr.mxu0 0.0
      %3638 = vmatpush2.msra.mxu0 0.0
      %3639 = vmatprep.subr.mxu0 0.0
      %3640 = vmatpush2.msra.mxu0 0.0
      %3641 = vmatprep.subr.mxu0 0.0
      %3642 = vmatpush2.msra.mxu0 0.0
      %3643 = vmatprep.subr.mxu0 0.0
      %3644 = vmatpush2.msra.mxu0 0.0
      %3645 = vmatprep.subr.mxu0 0.0
      %3646 = vmatpush2.msra.mxu0 0.0
      %3647 = vmatprep.subr.mxu0 0.0
      %3648 = vmatpush2.msra.mxu0 0.0
      %3649 = vmatprep.subr.mxu0 0.0
      %3650 = vmatpush2.msra.mxu0 0.0
      %3651 = vmatprep.subr.mxu0 0.0
      %3652 = vmatpush2.msra.mxu0 0.0
      %3653 = vmatprep.subr.mxu0 0.0
      %3654 = vmatpush2.msra.mxu0 0.0
      %3655 = vmatprep.subr.mxu0 0.0
      %3656 = vmatpush2.msra.mxu0 0.0
      %3657 = vmatprep.subr.mxu0 0.0
      %3658 = vmatpush2.msra.mxu0 0.0
      %3659 = vmatprep.subr.mxu0 0.0
      %3660 = vmatpush2.msra.mxu0 0.0
      %3661 = vmatprep.mubr.f32.mxu0 0.0
      %3662 = vmatmul.mubr.f32.gmra.mxu0 %v3578
      %v3663 = vpop.f32.mrf.mxu0
      %v3664 = vadd.f32 0.0, %v3663
      %v3665 = vpop.f32.mrf.mxu0
      %3666 = vmatprep.mubr.f32.mxu0 0.0
      %3667 = vmatmul.mubr.f32.gmra.mxu0 %v3579
      %v3668 = vpop.f32.mrf.mxu0
      %v3669 = vadd.f32 0.0, %v3668
      %v3670 = vpop.f32.mrf.mxu0
      %3671 = vdwg.mxu0
      %v3672 = vadd.f32 %v3573, %v3664
      %v3673 = vadd.f32 %v3574, %v3669
      %s3674 = sadd.s32 %s3576, 1
      %s3675 = scalar_lea.vmem [#allocation4], %s3674
      %v3676 = vld [vmem:[%s3675] sm:$0xff]
      %v3677 = vld [vmem:[%s3675 + $0x8] sm:$0x3]
      %s3678 = scalar_lea.vmem %s8, 512
      %v3679 = vld [vmem:[%s3678] sm:$0xff]
      %v3680 = vld [vmem:[%s3678 + $0x8] sm:$0xff]
      %v3681 = vld [vmem:[%s3678 + $0x10] sm:$0xff]
      %v3682 = vld [vmem:[%s3678 + $0x18] sm:$0xff]
      %v3683 = vld [vmem:[%s3678 + $0x20] sm:$0xff]
      %v3684 = vld [vmem:[%s3678 + $0x28] sm:$0xff]
      %v3685 = vld [vmem:[%s3678 + $0x30] sm:$0xff]
      %v3686 = vld [vmem:[%s3678 + $0x38] sm:$0xff]
      %v3687 = vld [vmem:[%s3678 + $0x40] sm:$0xff]
      %v3688 = vld [vmem:[%s3678 + $0x48] sm:$0xff]
      %v3689 = vld [vmem:[%s3678 + $0x50] sm:$0xff]
      %v3690 = vld [vmem:[%s3678 + $0x58] sm:$0xff]
      %v3691 = vld [vmem:[%s3678 + $0x60] sm:$0xff]
      %v3692 = vld [vmem:[%s3678 + $0x68] sm:$0xff]
      %v3693 = vld [vmem:[%s3678 + $0x70] sm:$0xff]
      %v3694 = vld [vmem:[%s3678 + $0x78] sm:$0xff]
      %3695 = vmatprep.subr.mxu0 0.0
      %3696 = vmatpush1.msra.mxu0 %v3694
      %3697 = vmatprep.subr.mxu0 0.0
      %3698 = vmatpush1.msra.mxu0 %v3693
      %3699 = vmatprep.subr.mxu0 0.0
      %3700 = vmatpush1.msra.mxu0 %v3692
      %3701 = vmatprep.subr.mxu0 0.0
      %3702 = vmatpush1.msra.mxu0 %v3691
      %3703 = vmatprep.subr.mxu0 0.0
      %3704 = vmatpush1.msra.mxu0 %v3690
      %3705 = vmatprep.subr.mxu0 0.0
      %3706 = vmatpush1.msra.mxu0 %v3689
      %3707 = vmatprep.subr.mxu0 0.0
      %3708 = vmatpush1.msra.mxu0 %v3688
      %3709 = vmatprep.subr.mxu0 0.0
      %3710 = vmatpush1.msra.mxu0 %v3687
      %3711 = vmatprep.subr.mxu0 0.0
      %3712 = vmatpush1.msra.mxu0 %v3686
      %3713 = vmatprep.subr.mxu0 0.0
      %3714 = vmatpush1.msra.mxu0 %v3685
      %3715 = vmatprep.subr.mxu0 0.0
      %3716 = vmatpush1.msra.mxu0 %v3684
      %3717 = vmatprep.subr.mxu0 0.0
      %3718 = vmatpush1.msra.mxu0 %v3683
      %3719 = vmatprep.subr.mxu0 0.0
      %3720 = vmatpush1.msra.mxu0 %v3682
      %3721 = vmatprep.subr.mxu0 0.0
      %3722 = vmatpush1.msra.mxu0 %v3681
      %3723 = vmatprep.subr.mxu0 0.0
      %3724 = vmatpush1.msra.mxu0 %v3680
      %3725 = vmatprep.subr.mxu0 0.0
      %3726 = vmatpush1.msra.mxu0 %v3679
      %3727 = vmatprep.subr.mxu0 0.0
      %3728 = vmatpush2.msra.mxu0 0.0
      %3729 = vmatprep.subr.mxu0 0.0
      %3730 = vmatpush2.msra.mxu0 0.0
      %3731 = vmatprep.subr.mxu0 0.0
      %3732 = vmatpush2.msra.mxu0 0.0
      %3733 = vmatprep.subr.mxu0 0.0
      %3734 = vmatpush2.msra.mxu0 0.0
      %3735 = vmatprep.subr.mxu0 0.0
      %3736 = vmatpush2.msra.mxu0 0.0
      %3737 = vmatprep.subr.mxu0 0.0
      %3738 = vmatpush2.msra.mxu0 0.0
      %3739 = vmatprep.subr.mxu0 0.0
      %3740 = vmatpush2.msra.mxu0 0.0
      %3741 = vmatprep.subr.mxu0 0.0
      %3742 = vmatpush2.msra.mxu0 0.0
      %3743 = vmatprep.subr.mxu0 0.0
      %3744 = vmatpush2.msra.mxu0 0.0
      %3745 = vmatprep.subr.mxu0 0.0
      %3746 = vmatpush2.msra.mxu0 0.0
      %3747 = vmatprep.subr.mxu0 0.0
      %3748 = vmatpush2.msra.mxu0 0.0
      %3749 = vmatprep.subr.mxu0 0.0
      %3750 = vmatpush2.msra.mxu0 0.0
      %3751 = vmatprep.subr.mxu0 0.0
      %3752 = vmatpush2.msra.mxu0 0.0
      %3753 = vmatprep.subr.mxu0 0.0
      %3754 = vmatpush2.msra.mxu0 0.0
      %3755 = vmatprep.subr.mxu0 0.0
      %3756 = vmatpush2.msra.mxu0 0.0
      %3757 = vmatprep.subr.mxu0 0.0
      %3758 = vmatpush2.msra.mxu0 0.0
      %3759 = vmatprep.mubr.f32.mxu0 0.0
      %3760 = vmatmul.mubr.f32.gmra.mxu0 %v3676
      %v3761 = vpop.f32.mrf.mxu0
      %v3762 = vadd.f32 0.0, %v3761
      %v3763 = vpop.f32.mrf.mxu0
      %3764 = vmatprep.mubr.f32.mxu0 0.0
      %3765 = vmatmul.mubr.f32.gmra.mxu0 %v3677
      %v3766 = vpop.f32.mrf.mxu0
      %v3767 = vadd.f32 0.0, %v3766
      %v3768 = vpop.f32.mrf.mxu0
      %3769 = vdwg.mxu0
      %v3770 = vadd.f32 %v3672, %v3762
      %v3771 = vadd.f32 %v3673, %v3767
      %s3772 = sadd.s32 %s3576, 2
      %s3773 = scalar_lea.vmem [#allocation4], %s3772
      %v3774 = vld [vmem:[%s3773] sm:$0xff]
      %v3775 = vld [vmem:[%s3773 + $0x8] sm:$0x3]
      %s3776 = scalar_lea.vmem %s8, 640
      %v3777 = vld [vmem:[%s3776] sm:$0xff]
      %v3778 = vld [vmem:[%s3776 + $0x8] sm:$0xff]
      %v3779 = vld [vmem:[%s3776 + $0x10] sm:$0xff]
      %v3780 = vld [vmem:[%s3776 + $0x18] sm:$0xff]
      %v3781 = vld [vmem:[%s3776 + $0x20] sm:$0xff]
      %v3782 = vld [vmem:[%s3776 + $0x28] sm:$0xff]
      %v3783 = vld [vmem:[%s3776 + $0x30] sm:$0xff]
      %v3784 = vld [vmem:[%s3776 + $0x38] sm:$0xff]
      %v3785 = vld [vmem:[%s3776 + $0x40] sm:$0xff]
      %v3786 = vld [vmem:[%s3776 + $0x48] sm:$0xff]
      %v3787 = vld [vmem:[%s3776 + $0x50] sm:$0xff]
      %v3788 = vld [vmem:[%s3776 + $0x58] sm:$0xff]
      %v3789 = vld [vmem:[%s3776 + $0x60] sm:$0xff]
      %v3790 = vld [vmem:[%s3776 + $0x68] sm:$0xff]
      %v3791 = vld [vmem:[%s3776 + $0x70] sm:$0xff]
      %v3792 = vld [vmem:[%s3776 + $0x78] sm:$0xff]
      %3793 = vmatprep.subr.mxu0 0.0
      %3794 = vmatpush1.msra.mxu0 %v3792
      %3795 = vmatprep.subr.mxu0 0.0
      %3796 = vmatpush1.msra.mxu0 %v3791
      %3797 = vmatprep.subr.mxu0 0.0
      %3798 = vmatpush1.msra.mxu0 %v3790
      %3799 = vmatprep.subr.mxu0 0.0
      %3800 = vmatpush1.msra.mxu0 %v3789
      %3801 = vmatprep.subr.mxu0 0.0
      %3802 = vmatpush1.msra.mxu0 %v3788
      %3803 = vmatprep.subr.mxu0 0.0
      %3804 = vmatpush1.msra.mxu0 %v3787
      %3805 = vmatprep.subr.mxu0 0.0
      %3806 = vmatpush1.msra.mxu0 %v3786
      %3807 = vmatprep.subr.mxu0 0.0
      %3808 = vmatpush1.msra.mxu0 %v3785
      %3809 = vmatprep.subr.mxu0 0.0
      %3810 = vmatpush1.msra.mxu0 %v3784
      %3811 = vmatprep.subr.mxu0 0.0
      %3812 = vmatpush1.msra.mxu0 %v3783
      %3813 = vmatprep.subr.mxu0 0.0
      %3814 = vmatpush1.msra.mxu0 %v3782
      %3815 = vmatprep.subr.mxu0 0.0
      %3816 = vmatpush1.msra.mxu0 %v3781
      %3817 = vmatprep.subr.mxu0 0.0
      %3818 = vmatpush1.msra.mxu0 %v3780
      %3819 = vmatprep.subr.mxu0 0.0
      %3820 = vmatpush1.msra.mxu0 %v3779
      %3821 = vmatprep.subr.mxu0 0.0
      %3822 = vmatpush1.msra.mxu0 %v3778
      %3823 = vmatprep.subr.mxu0 0.0
      %3824 = vmatpush1.msra.mxu0 %v3777
      %3825 = vmatprep.subr.mxu0 0.0
      %3826 = vmatpush2.msra.mxu0 0.0
      %3827 = vmatprep.subr.mxu0 0.0
      %3828 = vmatpush2.msra.mxu0 0.0
      %3829 = vmatprep.subr.mxu0 0.0
      %3830 = vmatpush2.msra.mxu0 0.0
      %3831 = vmatprep.subr.mxu0 0.0
      %3832 = vmatpush2.msra.mxu0 0.0
      %3833 = vmatprep.subr.mxu0 0.0
      %3834 = vmatpush2.msra.mxu0 0.0
      %3835 = vmatprep.subr.mxu0 0.0
      %3836 = vmatpush2.msra.mxu0 0.0
      %3837 = vmatprep.subr.mxu0 0.0
      %3838 = vmatpush2.msra.mxu0 0.0
      %3839 = vmatprep.subr.mxu0 0.0
      %3840 = vmatpush2.msra.mxu0 0.0
      %3841 = vmatprep.subr.mxu0 0.0
      %3842 = vmatpush2.msra.mxu0 0.0
      %3843 = vmatprep.subr.mxu0 0.0
      %3844 = vmatpush2.msra.mxu0 0.0
      %3845 = vmatprep.subr.mxu0 0.0
      %3846 = vmatpush2.msra.mxu0 0.0
      %3847 = vmatprep.subr.mxu0 0.0
      %3848 = vmatpush2.msra.mxu0 0.0
      %3849 = vmatprep.subr.mxu0 0.0
      %3850 = vmatpush2.msra.mxu0 0.0
      %3851 = vmatprep.subr.mxu0 0.0
      %3852 = vmatpush2.msra.mxu0 0.0
      %3853 = vmatprep.subr.mxu0 0.0
      %3854 = vmatpush2.msra.mxu0 0.0
      %3855 = vmatprep.subr.mxu0 0.0
      %3856 = vmatpush2.msra.mxu0 0.0
      %3857 = vmatprep.mubr.f32.mxu0 0.0
      %3858 = vmatmul.mubr.f32.gmra.mxu0 %v3774
      %v3859 = vpop.f32.mrf.mxu0
      %v3860 = vadd.f32 0.0, %v3859
      %v3861 = vpop.f32.mrf.mxu0
      %3862 = vmatprep.mubr.f32.mxu0 0.0
      %3863 = vmatmul.mubr.f32.gmra.mxu0 %v3775
      %v3864 = vpop.f32.mrf.mxu0
      %v3865 = vadd.f32 0.0, %v3864
      %v3866 = vpop.f32.mrf.mxu0
      %3867 = vdwg.mxu0
      %v3868 = vadd.f32 %v3770, %v3860
      %v3869 = vadd.f32 %v3771, %v3865
      %s3870 = sadd.s32 %s3279, 2
      %s3871 = smul.u32 %s3870, 16
      %s3872 = scalar_lea.vmem [#allocation4], %s3871
      %v3873 = vld [vmem:[%s3872] sm:$0xff]
      %v3874 = vld [vmem:[%s3872 + $0x8] sm:$0x3]
      %s3875 = scalar_lea.vmem %s8, 768
      %v3876 = vld [vmem:[%s3875] sm:$0xff]
      %v3877 = vld [vmem:[%s3875 + $0x8] sm:$0xff]
      %v3878 = vld [vmem:[%s3875 + $0x10] sm:$0xff]
      %v3879 = vld [vmem:[%s3875 + $0x18] sm:$0xff]
      %v3880 = vld [vmem:[%s3875 + $0x20] sm:$0xff]
      %v3881 = vld [vmem:[%s3875 + $0x28] sm:$0xff]
      %v3882 = vld [vmem:[%s3875 + $0x30] sm:$0xff]
      %v3883 = vld [vmem:[%s3875 + $0x38] sm:$0xff]
      %v3884 = vld [vmem:[%s3875 + $0x40] sm:$0xff]
      %v3885 = vld [vmem:[%s3875 + $0x48] sm:$0xff]
      %v3886 = vld [vmem:[%s3875 + $0x50] sm:$0xff]
      %v3887 = vld [vmem:[%s3875 + $0x58] sm:$0xff]
      %v3888 = vld [vmem:[%s3875 + $0x60] sm:$0xff]
      %v3889 = vld [vmem:[%s3875 + $0x68] sm:$0xff]
      %v3890 = vld [vmem:[%s3875 + $0x70] sm:$0xff]
      %v3891 = vld [vmem:[%s3875 + $0x78] sm:$0xff]
      %3892 = vmatprep.subr.mxu0 0.0
      %3893 = vmatpush1.msra.mxu0 %v3891
      %3894 = vmatprep.subr.mxu0 0.0
      %3895 = vmatpush1.msra.mxu0 %v3890
      %3896 = vmatprep.subr.mxu0 0.0
      %3897 = vmatpush1.msra.mxu0 %v3889
      %3898 = vmatprep.subr.mxu0 0.0
      %3899 = vmatpush1.msra.mxu0 %v3888
      %3900 = vmatprep.subr.mxu0 0.0
      %3901 = vmatpush1.msra.mxu0 %v3887
      %3902 = vmatprep.subr.mxu0 0.0
      %3903 = vmatpush1.msra.mxu0 %v3886
      %3904 = vmatprep.subr.mxu0 0.0
      %3905 = vmatpush1.msra.mxu0 %v3885
      %3906 = vmatprep.subr.mxu0 0.0
      %3907 = vmatpush1.msra.mxu0 %v3884
      %3908 = vmatprep.subr.mxu0 0.0
      %3909 = vmatpush1.msra.mxu0 %v3883
      %3910 = vmatprep.subr.mxu0 0.0
      %3911 = vmatpush1.msra.mxu0 %v3882
      %3912 = vmatprep.subr.mxu0 0.0
      %3913 = vmatpush1.msra.mxu0 %v3881
      %3914 = vmatprep.subr.mxu0 0.0
      %3915 = vmatpush1.msra.mxu0 %v3880
      %3916 = vmatprep.subr.mxu0 0.0
      %3917 = vmatpush1.msra.mxu0 %v3879
      %3918 = vmatprep.subr.mxu0 0.0
      %3919 = vmatpush1.msra.mxu0 %v3878
      %3920 = vmatprep.subr.mxu0 0.0
      %3921 = vmatpush1.msra.mxu0 %v3877
      %3922 = vmatprep.subr.mxu0 0.0
      %3923 = vmatpush1.msra.mxu0 %v3876
      %3924 = vmatprep.subr.mxu0 0.0
      %3925 = vmatpush2.msra.mxu0 0.0
      %3926 = vmatprep.subr.mxu0 0.0
      %3927 = vmatpush2.msra.mxu0 0.0
      %3928 = vmatprep.subr.mxu0 0.0
      %3929 = vmatpush2.msra.mxu0 0.0
      %3930 = vmatprep.subr.mxu0 0.0
      %3931 = vmatpush2.msra.mxu0 0.0
      %3932 = vmatprep.subr.mxu0 0.0
      %3933 = vmatpush2.msra.mxu0 0.0
      %3934 = vmatprep.subr.mxu0 0.0
      %3935 = vmatpush2.msra.mxu0 0.0
      %3936 = vmatprep.subr.mxu0 0.0
      %3937 = vmatpush2.msra.mxu0 0.0
      %3938 = vmatprep.subr.mxu0 0.0
      %3939 = vmatpush2.msra.mxu0 0.0
      %3940 = vmatprep.subr.mxu0 0.0
      %3941 = vmatpush2.msra.mxu0 0.0
      %3942 = vmatprep.subr.mxu0 0.0
      %3943 = vmatpush2.msra.mxu0 0.0
      %3944 = vmatprep.subr.mxu0 0.0
      %3945 = vmatpush2.msra.mxu0 0.0
      %3946 = vmatprep.subr.mxu0 0.0
      %3947 = vmatpush2.msra.mxu0 0.0
      %3948 = vmatprep.subr.mxu0 0.0
      %3949 = vmatpush2.msra.mxu0 0.0
      %3950 = vmatprep.subr.mxu0 0.0
      %3951 = vmatpush2.msra.mxu0 0.0
      %3952 = vmatprep.subr.mxu0 0.0
      %3953 = vmatpush2.msra.mxu0 0.0
      %3954 = vmatprep.subr.mxu0 0.0
      %3955 = vmatpush2.msra.mxu0 0.0
      %3956 = vmatprep.mubr.f32.mxu0 0.0
      %3957 = vmatmul.mubr.f32.gmra.mxu0 %v3873
      %v3958 = vpop.f32.mrf.mxu0
      %v3959 = vadd.f32 0.0, %v3958
      %v3960 = vpop.f32.mrf.mxu0
      %3961 = vmatprep.mubr.f32.mxu0 0.0
      %3962 = vmatmul.mubr.f32.gmra.mxu0 %v3874
      %v3963 = vpop.f32.mrf.mxu0
      %v3964 = vadd.f32 0.0, %v3963
      %v3965 = vpop.f32.mrf.mxu0
      %3966 = vdwg.mxu0
      %v3967 = vadd.f32 %v3868, %v3959
      %v3968 = vadd.f32 %v3869, %v3964
      %s3969 = sadd.s32 %s3871, 1
      %s3970 = scalar_lea.vmem [#allocation4], %s3969
      %v3971 = vld [vmem:[%s3970] sm:$0xff]
      %v3972 = vld [vmem:[%s3970 + $0x8] sm:$0x3]
      %s3973 = scalar_lea.vmem %s8, 896
      %v3974 = vld [vmem:[%s3973] sm:$0xff]
      %v3975 = vld [vmem:[%s3973 + $0x8] sm:$0xff]
      %v3976 = vld [vmem:[%s3973 + $0x10] sm:$0xff]
      %v3977 = vld [vmem:[%s3973 + $0x18] sm:$0xff]
      %v3978 = vld [vmem:[%s3973 + $0x20] sm:$0xff]
      %v3979 = vld [vmem:[%s3973 + $0x28] sm:$0xff]
      %v3980 = vld [vmem:[%s3973 + $0x30] sm:$0xff]
      %v3981 = vld [vmem:[%s3973 + $0x38] sm:$0xff]
      %v3982 = vld [vmem:[%s3973 + $0x40] sm:$0xff]
      %v3983 = vld [vmem:[%s3973 + $0x48] sm:$0xff]
      %v3984 = vld [vmem:[%s3973 + $0x50] sm:$0xff]
      %v3985 = vld [vmem:[%s3973 + $0x58] sm:$0xff]
      %v3986 = vld [vmem:[%s3973 + $0x60] sm:$0xff]
      %v3987 = vld [vmem:[%s3973 + $0x68] sm:$0xff]
      %v3988 = vld [vmem:[%s3973 + $0x70] sm:$0xff]
      %v3989 = vld [vmem:[%s3973 + $0x78] sm:$0xff]
      %3990 = vmatprep.subr.mxu0 0.0
      %3991 = vmatpush1.msra.mxu0 %v3989
      %3992 = vmatprep.subr.mxu0 0.0
      %3993 = vmatpush1.msra.mxu0 %v3988
      %3994 = vmatprep.subr.mxu0 0.0
      %3995 = vmatpush1.msra.mxu0 %v3987
      %3996 = vmatprep.subr.mxu0 0.0
      %3997 = vmatpush1.msra.mxu0 %v3986
      %3998 = vmatprep.subr.mxu0 0.0
      %3999 = vmatpush1.msra.mxu0 %v3985
      %4000 = vmatprep.subr.mxu0 0.0
      %4001 = vmatpush1.msra.mxu0 %v3984
      %4002 = vmatprep.subr.mxu0 0.0
      %4003 = vmatpush1.msra.mxu0 %v3983
      %4004 = vmatprep.subr.mxu0 0.0
      %4005 = vmatpush1.msra.mxu0 %v3982
      %4006 = vmatprep.subr.mxu0 0.0
      %4007 = vmatpush1.msra.mxu0 %v3981
      %4008 = vmatprep.subr.mxu0 0.0
      %4009 = vmatpush1.msra.mxu0 %v3980
      %4010 = vmatprep.subr.mxu0 0.0
      %4011 = vmatpush1.msra.mxu0 %v3979
      %4012 = vmatprep.subr.mxu0 0.0
      %4013 = vmatpush1.msra.mxu0 %v3978
      %4014 = vmatprep.subr.mxu0 0.0
      %4015 = vmatpush1.msra.mxu0 %v3977
      %4016 = vmatprep.subr.mxu0 0.0
      %4017 = vmatpush1.msra.mxu0 %v3976
      %4018 = vmatprep.subr.mxu0 0.0
      %4019 = vmatpush1.msra.mxu0 %v3975
      %4020 = vmatprep.subr.mxu0 0.0
      %4021 = vmatpush1.msra.mxu0 %v3974
      %4022 = vmatprep.subr.mxu0 0.0
      %4023 = vmatpush2.msra.mxu0 0.0
      %4024 = vmatprep.subr.mxu0 0.0
      %4025 = vmatpush2.msra.mxu0 0.0
      %4026 = vmatprep.subr.mxu0 0.0
      %4027 = vmatpush2.msra.mxu0 0.0
      %4028 = vmatprep.subr.mxu0 0.0
      %4029 = vmatpush2.msra.mxu0 0.0
      %4030 = vmatprep.subr.mxu0 0.0
      %4031 = vmatpush2.msra.mxu0 0.0
      %4032 = vmatprep.subr.mxu0 0.0
      %4033 = vmatpush2.msra.mxu0 0.0
      %4034 = vmatprep.subr.mxu0 0.0
      %4035 = vmatpush2.msra.mxu0 0.0
      %4036 = vmatprep.subr.mxu0 0.0
      %4037 = vmatpush2.msra.mxu0 0.0
      %4038 = vmatprep.subr.mxu0 0.0
      %4039 = vmatpush2.msra.mxu0 0.0
      %4040 = vmatprep.subr.mxu0 0.0
      %4041 = vmatpush2.msra.mxu0 0.0
      %4042 = vmatprep.subr.mxu0 0.0
      %4043 = vmatpush2.msra.mxu0 0.0
      %4044 = vmatprep.subr.mxu0 0.0
      %4045 = vmatpush2.msra.mxu0 0.0
      %4046 = vmatprep.subr.mxu0 0.0
      %4047 = vmatpush2.msra.mxu0 0.0
      %4048 = vmatprep.subr.mxu0 0.0
      %4049 = vmatpush2.msra.mxu0 0.0
      %4050 = vmatprep.subr.mxu0 0.0
      %4051 = vmatpush2.msra.mxu0 0.0
      %4052 = vmatprep.subr.mxu0 0.0
      %4053 = vmatpush2.msra.mxu0 0.0
      %4054 = vmatprep.mubr.f32.mxu0 0.0
      %4055 = vmatmul.mubr.f32.gmra.mxu0 %v3971
      %v4056 = vpop.f32.mrf.mxu0
      %v4057 = vadd.f32 0.0, %v4056
      %v4058 = vpop.f32.mrf.mxu0
      %4059 = vmatprep.mubr.f32.mxu0 0.0
      %4060 = vmatmul.mubr.f32.gmra.mxu0 %v3972
      %v4061 = vpop.f32.mrf.mxu0
      %v4062 = vadd.f32 0.0, %v4061
      %v4063 = vpop.f32.mrf.mxu0
      %4064 = vdwg.mxu0
      %v4065 = vadd.f32 %v3967, %v4057
      %v4066 = vadd.f32 %v3968, %v4062
      %s4067 = sadd.s32 %s3871, 2
      %s4068 = scalar_lea.vmem [#allocation4], %s4067
      %v4069 = vld [vmem:[%s4068] sm:$0xff]
      %v4070 = vld [vmem:[%s4068 + $0x8] sm:$0x3]
      %s4071 = scalar_lea.vmem %s8, 1024
      %v4072 = vld [vmem:[%s4071] sm:$0xff]
      %v4073 = vld [vmem:[%s4071 + $0x8] sm:$0xff]
      %v4074 = vld [vmem:[%s4071 + $0x10] sm:$0xff]
      %v4075 = vld [vmem:[%s4071 + $0x18] sm:$0xff]
      %v4076 = vld [vmem:[%s4071 + $0x20] sm:$0xff]
      %v4077 = vld [vmem:[%s4071 + $0x28] sm:$0xff]
      %v4078 = vld [vmem:[%s4071 + $0x30] sm:$0xff]
      %v4079 = vld [vmem:[%s4071 + $0x38] sm:$0xff]
      %v4080 = vld [vmem:[%s4071 + $0x40] sm:$0xff]
      %v4081 = vld [vmem:[%s4071 + $0x48] sm:$0xff]
      %v4082 = vld [vmem:[%s4071 + $0x50] sm:$0xff]
      %v4083 = vld [vmem:[%s4071 + $0x58] sm:$0xff]
      %v4084 = vld [vmem:[%s4071 + $0x60] sm:$0xff]
      %v4085 = vld [vmem:[%s4071 + $0x68] sm:$0xff]
      %v4086 = vld [vmem:[%s4071 + $0x70] sm:$0xff]
      %v4087 = vld [vmem:[%s4071 + $0x78] sm:$0xff]
      %4088 = vmatprep.subr.mxu0 0.0
      %4089 = vmatpush1.msra.mxu0 %v4087
      %4090 = vmatprep.subr.mxu0 0.0
      %4091 = vmatpush1.msra.mxu0 %v4086
      %4092 = vmatprep.subr.mxu0 0.0
      %4093 = vmatpush1.msra.mxu0 %v4085
      %4094 = vmatprep.subr.mxu0 0.0
      %4095 = vmatpush1.msra.mxu0 %v4084
      %4096 = vmatprep.subr.mxu0 0.0
      %4097 = vmatpush1.msra.mxu0 %v4083
      %4098 = vmatprep.subr.mxu0 0.0
      %4099 = vmatpush1.msra.mxu0 %v4082
      %4100 = vmatprep.subr.mxu0 0.0
      %4101 = vmatpush1.msra.mxu0 %v4081
      %4102 = vmatprep.subr.mxu0 0.0
      %4103 = vmatpush1.msra.mxu0 %v4080
      %4104 = vmatprep.subr.mxu0 0.0
      %4105 = vmatpush1.msra.mxu0 %v4079
      %4106 = vmatprep.subr.mxu0 0.0
      %4107 = vmatpush1.msra.mxu0 %v4078
      %4108 = vmatprep.subr.mxu0 0.0
      %4109 = vmatpush1.msra.mxu0 %v4077
      %4110 = vmatprep.subr.mxu0 0.0
      %4111 = vmatpush1.msra.mxu0 %v4076
      %4112 = vmatprep.subr.mxu0 0.0
      %4113 = vmatpush1.msra.mxu0 %v4075
      %4114 = vmatprep.subr.mxu0 0.0
      %4115 = vmatpush1.msra.mxu0 %v4074
      %4116 = vmatprep.subr.mxu0 0.0
      %4117 = vmatpush1.msra.mxu0 %v4073
      %4118 = vmatprep.subr.mxu0 0.0
      %4119 = vmatpush1.msra.mxu0 %v4072
      %4120 = vmatprep.subr.mxu0 0.0
      %4121 = vmatpush2.msra.mxu0 0.0
      %4122 = vmatprep.subr.mxu0 0.0
      %4123 = vmatpush2.msra.mxu0 0.0
      %4124 = vmatprep.subr.mxu0 0.0
      %4125 = vmatpush2.msra.mxu0 0.0
      %4126 = vmatprep.subr.mxu0 0.0
      %4127 = vmatpush2.msra.mxu0 0.0
      %4128 = vmatprep.subr.mxu0 0.0
      %4129 = vmatpush2.msra.mxu0 0.0
      %4130 = vmatprep.subr.mxu0 0.0
      %4131 = vmatpush2.msra.mxu0 0.0
      %4132 = vmatprep.subr.mxu0 0.0
      %4133 = vmatpush2.msra.mxu0 0.0
      %4134 = vmatprep.subr.mxu0 0.0
      %4135 = vmatpush2.msra.mxu0 0.0
      %4136 = vmatprep.subr.mxu0 0.0
      %4137 = vmatpush2.msra.mxu0 0.0
      %4138 = vmatprep.subr.mxu0 0.0
      %4139 = vmatpush2.msra.mxu0 0.0
      %4140 = vmatprep.subr.mxu0 0.0
      %4141 = vmatpush2.msra.mxu0 0.0
      %4142 = vmatprep.subr.mxu0 0.0
      %4143 = vmatpush2.msra.mxu0 0.0
      %4144 = vmatprep.subr.mxu0 0.0
      %4145 = vmatpush2.msra.mxu0 0.0
      %4146 = vmatprep.subr.mxu0 0.0
      %4147 = vmatpush2.msra.mxu0 0.0
      %4148 = vmatprep.subr.mxu0 0.0
      %4149 = vmatpush2.msra.mxu0 0.0
      %4150 = vmatprep.subr.mxu0 0.0
      %4151 = vmatpush2.msra.mxu0 0.0
      %4152 = vmatprep.mubr.f32.mxu0 0.0
      %4153 = vmatmul.mubr.f32.gmra.mxu0 %v4069
      %v4154 = vpop.f32.mrf.mxu0
      %v4155 = vadd.f32 0.0, %v4154
      %v4156 = vpop.f32.mrf.mxu0
      %4157 = vmatprep.mubr.f32.mxu0 0.0
      %4158 = vmatmul.mubr.f32.gmra.mxu0 %v4070
      %v4159 = vpop.f32.mrf.mxu0
      %v4160 = vadd.f32 0.0, %v4159
      %v4161 = vpop.f32.mrf.mxu0
      %4162 = vdwg.mxu0
      %v4163 = vadd.f32 %v4065, %v4155
      %v4164 = vadd.f32 %v4066, %v4160
      %v4165 = vmax.f32 %v4163, 0.0
      %v4166 = vmax.f32 %v4164, 0.0
      %s4167 = scalar_lea.vmem [#allocation5], %s3286
      %4168 = vst [vmem:[%s4167] sm:$0xff] %v4165
      %4169 = vst [vmem:[%s4167 + $0x8] sm:$0x3] %v4166
      %vm4170 = vcmask 1041408
      %v4171 = vsel %vm4170, %v4166, 0.0
      %v4172 = vadd.f32 %v4165, %v4171
      %v4173 = vrot.slane %v4172, 4
      %v4174 = vadd.f32 %v4172, %v4173
      %v4175 = vrot.slane %v4174, 2
      %v4176 = vadd.f32 %v4174, %v4175
      %v4177 = vrot.slane %v4176, 1
      %v4178 = vadd.f32 %v4176, %v4177
      %v4179 = vadd.f32 %v3284, %v4178
      %v4180 = vmul.f32 %v4165, %v4165
      %v4181 = vmul.f32 %v4166, %v4166
      %v4182 = vsel %vm4170, %v4181, 0.0
      %v4183 = vadd.f32 %v4180, %v4182
      %v4184 = vrot.slane %v4183, 4
      %v4185 = vadd.f32 %v4183, %v4184
      %v4186 = vrot.slane %v4185, 2
      %v4187 = vadd.f32 %v4185, %v4186
      %v4188 = vrot.slane %v4187, 1
      %v4189 = vadd.f32 %v4187, %v4188
      %v4190 = vadd.f32 %v3285, %v4189
    $region101: #{model4_forward.1} parent=1 // loop_footer
      %s3283 = sadd.s32 1, %s3279
    $region102: #{model4_forward.1} parent=1 // loop_footer_branch
      %3278 = sbr.rel target = $region98
    $region103: #{model4_forward.1} parent=1 // loop_exit
      _
    %v4191 = vadd.f32 %v3284, 0.0
    %v4192 = vadd.f32 %v3285, 0.0
    loop: start=0, step=1, limit=10
    $region104: #{model4_forward.1} parent=1 // loop_pre_header
      _
    $region105: #{model4_forward.1} parent=1 // loop_header
      %s4194 = sphi 0, %s4198
      %p4195 = scmp.ge.s32.totalorder %s4194, 10
      %v4199 = vphi 0.0, %v5098
      %v4200 = vphi 0.0, %v5109
    $region106: #{model4_forward.1} parent=1 // loop_header_branch
      %4197 = sbr.rel (%p4195) target = $region110
    $region107: #{model4_forward.1} parent=1 // loop_body
      %s4201 = smul.u32 %s4194, 16
      %s4202 = sadd.s32 %s4201, 192
      %s4203 = scalar_lea.vmem [#allocation4], %s4202
      %v4204 = vld [vmem:[%s4203] sm:$0xff]
      %v4205 = vld [vmem:[%s4203 + $0x8] sm:$0x3]
      %v4206 = vld [vmem:[%s8] sm:$0xff]
      %v4207 = vld [vmem:[%s8 + $0x8] sm:$0xff]
      %v4208 = vld [vmem:[%s8 + $0x10] sm:$0xff]
      %v4209 = vld [vmem:[%s8 + $0x18] sm:$0xff]
      %v4210 = vld [vmem:[%s8 + $0x20] sm:$0xff]
      %v4211 = vld [vmem:[%s8 + $0x28] sm:$0xff]
      %v4212 = vld [vmem:[%s8 + $0x30] sm:$0xff]
      %v4213 = vld [vmem:[%s8 + $0x38] sm:$0xff]
      %v4214 = vld [vmem:[%s8 + $0x40] sm:$0xff]
      %v4215 = vld [vmem:[%s8 + $0x48] sm:$0xff]
      %v4216 = vld [vmem:[%s8 + $0x50] sm:$0xff]
      %v4217 = vld [vmem:[%s8 + $0x58] sm:$0xff]
      %v4218 = vld [vmem:[%s8 + $0x60] sm:$0xff]
      %v4219 = vld [vmem:[%s8 + $0x68] sm:$0xff]
      %v4220 = vld [vmem:[%s8 + $0x70] sm:$0xff]
      %v4221 = vld [vmem:[%s8 + $0x78] sm:$0xff]
      %s4222 = sadd.s32 %s4201, 193
      %s4223 = scalar_lea.vmem [#allocation4], %s4222
      %v4224 = vld [vmem:[%s4223] sm:$0xff]
      %v4225 = vld [vmem:[%s4223 + $0x8] sm:$0x3]
      %s4226 = scalar_lea.vmem %s8, 128
      %v4227 = vld [vmem:[%s4226] sm:$0xff]
      %v4228 = vld [vmem:[%s4226 + $0x8] sm:$0xff]
      %v4229 = vld [vmem:[%s4226 + $0x10] sm:$0xff]
      %v4230 = vld [vmem:[%s4226 + $0x18] sm:$0xff]
      %v4231 = vld [vmem:[%s4226 + $0x20] sm:$0xff]
      %v4232 = vld [vmem:[%s4226 + $0x28] sm:$0xff]
      %v4233 = vld [vmem:[%s4226 + $0x30] sm:$0xff]
      %v4234 = vld [vmem:[%s4226 + $0x38] sm:$0xff]
      %v4235 = vld [vmem:[%s4226 + $0x40] sm:$0xff]
      %v4236 = vld [vmem:[%s4226 + $0x48] sm:$0xff]
      %v4237 = vld [vmem:[%s4226 + $0x50] sm:$0xff]
      %v4238 = vld [vmem:[%s4226 + $0x58] sm:$0xff]
      %v4239 = vld [vmem:[%s4226 + $0x60] sm:$0xff]
      %v4240 = vld [vmem:[%s4226 + $0x68] sm:$0xff]
      %v4241 = vld [vmem:[%s4226 + $0x70] sm:$0xff]
      %v4242 = vld [vmem:[%s4226 + $0x78] sm:$0xff]
      %4243 = vmatprep.subr.mxu0 0.0
      %4244 = vmatpush1.msra.mxu0 %v4242
      %4245 = vmatprep.subr.mxu0 0.0
      %4246 = vmatpush1.msra.mxu0 %v4241
      %4247 = vmatprep.subr.mxu0 0.0
      %4248 = vmatpush1.msra.mxu0 %v4240
      %4249 = vmatprep.subr.mxu0 0.0
      %4250 = vmatpush1.msra.mxu0 %v4239
      %4251 = vmatprep.subr.mxu0 0.0
      %4252 = vmatpush1.msra.mxu0 %v4238
      %4253 = vmatprep.subr.mxu0 0.0
      %4254 = vmatpush1.msra.mxu0 %v4237
      %4255 = vmatprep.subr.mxu0 0.0
      %4256 = vmatpush1.msra.mxu0 %v4236
      %4257 = vmatprep.subr.mxu0 0.0
      %4258 = vmatpush1.msra.mxu0 %v4235
      %4259 = vmatprep.subr.mxu0 0.0
      %4260 = vmatpush1.msra.mxu0 %v4234
      %4261 = vmatprep.subr.mxu0 0.0
      %4262 = vmatpush1.msra.mxu0 %v4233
      %4263 = vmatprep.subr.mxu0 0.0
      %4264 = vmatpush1.msra.mxu0 %v4232
      %4265 = vmatprep.subr.mxu0 0.0
      %4266 = vmatpush1.msra.mxu0 %v4231
      %4267 = vmatprep.subr.mxu0 0.0
      %4268 = vmatpush1.msra.mxu0 %v4230
      %4269 = vmatprep.subr.mxu0 0.0
      %4270 = vmatpush1.msra.mxu0 %v4229
      %4271 = vmatprep.subr.mxu0 0.0
      %4272 = vmatpush1.msra.mxu0 %v4228
      %4273 = vmatprep.subr.mxu0 0.0
      %4274 = vmatpush1.msra.mxu0 %v4227
      %4275 = vmatprep.subr.mxu0 0.0
      %4276 = vmatpush2.msra.mxu0 0.0
      %4277 = vmatprep.subr.mxu0 0.0
      %4278 = vmatpush2.msra.mxu0 0.0
      %4279 = vmatprep.subr.mxu0 0.0
      %4280 = vmatpush2.msra.mxu0 0.0
      %4281 = vmatprep.subr.mxu0 0.0
      %4282 = vmatpush2.msra.mxu0 0.0
      %4283 = vmatprep.subr.mxu0 0.0
      %4284 = vmatpush2.msra.mxu0 0.0
      %4285 = vmatprep.subr.mxu0 0.0
      %4286 = vmatpush2.msra.mxu0 0.0
      %4287 = vmatprep.subr.mxu0 0.0
      %4288 = vmatpush2.msra.mxu0 0.0
      %4289 = vmatprep.subr.mxu0 0.0
      %4290 = vmatpush2.msra.mxu0 0.0
      %4291 = vmatprep.subr.mxu0 0.0
      %4292 = vmatpush2.msra.mxu0 0.0
      %4293 = vmatprep.subr.mxu0 0.0
      %4294 = vmatpush2.msra.mxu0 0.0
      %4295 = vmatprep.subr.mxu0 0.0
      %4296 = vmatpush2.msra.mxu0 0.0
      %4297 = vmatprep.subr.mxu0 0.0
      %4298 = vmatpush2.msra.mxu0 0.0
      %4299 = vmatprep.subr.mxu0 0.0
      %4300 = vmatpush2.msra.mxu0 0.0
      %4301 = vmatprep.subr.mxu0 0.0
      %4302 = vmatpush2.msra.mxu0 0.0
      %4303 = vmatprep.subr.mxu0 0.0
      %4304 = vmatpush2.msra.mxu0 0.0
      %4305 = vmatprep.subr.mxu0 0.0
      %4306 = vmatpush2.msra.mxu0 0.0
      %4307 = vmatprep.mubr.f32.mxu0 0.0
      %4308 = vmatmul.mubr.f32.gmra.mxu0 %v4224
      %v4309 = vpop.f32.mrf.mxu0
      %v4310 = vadd.f32 0.0, %v4309
      %v4311 = vpop.f32.mrf.mxu0
      %4312 = vmatprep.mubr.f32.mxu0 0.0
      %4313 = vmatmul.mubr.f32.gmra.mxu0 %v4225
      %v4314 = vpop.f32.mrf.mxu0
      %v4315 = vadd.f32 0.0, %v4314
      %v4316 = vpop.f32.mrf.mxu0
      %4317 = vdwg.mxu0
      %4318 = vmatprep.subr.mxu0 0.0
      %4319 = vmatpush1.msra.mxu0 %v4221
      %4320 = vmatprep.subr.mxu0 0.0
      %4321 = vmatpush1.msra.mxu0 %v4220
      %4322 = vmatprep.subr.mxu0 0.0
      %4323 = vmatpush1.msra.mxu0 %v4219
      %4324 = vmatprep.subr.mxu0 0.0
      %4325 = vmatpush1.msra.mxu0 %v4218
      %4326 = vmatprep.subr.mxu0 0.0
      %4327 = vmatpush1.msra.mxu0 %v4217
      %4328 = vmatprep.subr.mxu0 0.0
      %4329 = vmatpush1.msra.mxu0 %v4216
      %4330 = vmatprep.subr.mxu0 0.0
      %4331 = vmatpush1.msra.mxu0 %v4215
      %4332 = vmatprep.subr.mxu0 0.0
      %4333 = vmatpush1.msra.mxu0 %v4214
      %4334 = vmatprep.subr.mxu0 0.0
      %4335 = vmatpush1.msra.mxu0 %v4213
      %4336 = vmatprep.subr.mxu0 0.0
      %4337 = vmatpush1.msra.mxu0 %v4212
      %4338 = vmatprep.subr.mxu0 0.0
      %4339 = vmatpush1.msra.mxu0 %v4211
      %4340 = vmatprep.subr.mxu0 0.0
      %4341 = vmatpush1.msra.mxu0 %v4210
      %4342 = vmatprep.subr.mxu0 0.0
      %4343 = vmatpush1.msra.mxu0 %v4209
      %4344 = vmatprep.subr.mxu0 0.0
      %4345 = vmatpush1.msra.mxu0 %v4208
      %4346 = vmatprep.subr.mxu0 0.0
      %4347 = vmatpush1.msra.mxu0 %v4207
      %4348 = vmatprep.subr.mxu0 0.0
      %4349 = vmatpush1.msra.mxu0 %v4206
      %4350 = vmatprep.subr.mxu0 0.0
      %4351 = vmatpush2.msra.mxu0 0.0
      %4352 = vmatprep.subr.mxu0 0.0
      %4353 = vmatpush2.msra.mxu0 0.0
      %4354 = vmatprep.subr.mxu0 0.0
      %4355 = vmatpush2.msra.mxu0 0.0
      %4356 = vmatprep.subr.mxu0 0.0
      %4357 = vmatpush2.msra.mxu0 0.0
      %4358 = vmatprep.subr.mxu0 0.0
      %4359 = vmatpush2.msra.mxu0 0.0
      %4360 = vmatprep.subr.mxu0 0.0
      %4361 = vmatpush2.msra.mxu0 0.0
      %4362 = vmatprep.subr.mxu0 0.0
      %4363 = vmatpush2.msra.mxu0 0.0
      %4364 = vmatprep.subr.mxu0 0.0
      %4365 = vmatpush2.msra.mxu0 0.0
      %4366 = vmatprep.subr.mxu0 0.0
      %4367 = vmatpush2.msra.mxu0 0.0
      %4368 = vmatprep.subr.mxu0 0.0
      %4369 = vmatpush2.msra.mxu0 0.0
      %4370 = vmatprep.subr.mxu0 0.0
      %4371 = vmatpush2.msra.mxu0 0.0
      %4372 = vmatprep.subr.mxu0 0.0
      %4373 = vmatpush2.msra.mxu0 0.0
      %4374 = vmatprep.subr.mxu0 0.0
      %4375 = vmatpush2.msra.mxu0 0.0
      %4376 = vmatprep.subr.mxu0 0.0
      %4377 = vmatpush2.msra.mxu0 0.0
      %4378 = vmatprep.subr.mxu0 0.0
      %4379 = vmatpush2.msra.mxu0 0.0
      %4380 = vmatprep.subr.mxu0 0.0
      %4381 = vmatpush2.msra.mxu0 0.0
      %4382 = vmatprep.mubr.f32.mxu0 0.0
      %4383 = vmatmul.mubr.f32.gmra.mxu0 %v4204
      %v4384 = vpop.f32.mrf.mxu0
      %v4385 = vadd.f32 %v4310, %v4384
      %v4386 = vpop.f32.mrf.mxu0
      %4387 = vmatprep.mubr.f32.mxu0 0.0
      %4388 = vmatmul.mubr.f32.gmra.mxu0 %v4205
      %v4389 = vpop.f32.mrf.mxu0
      %v4390 = vadd.f32 %v4315, %v4389
      %v4391 = vpop.f32.mrf.mxu0
      %4392 = vdwg.mxu0
      %s4393 = sadd.s32 %s4201, 194
      %s4394 = scalar_lea.vmem [#allocation4], %s4393
      %v4395 = vld [vmem:[%s4394] sm:$0xff]
      %v4396 = vld [vmem:[%s4394 + $0x8] sm:$0x3]
      %s4397 = scalar_lea.vmem %s8, 256
      %v4398 = vld [vmem:[%s4397] sm:$0xff]
      %v4399 = vld [vmem:[%s4397 + $0x8] sm:$0xff]
      %v4400 = vld [vmem:[%s4397 + $0x10] sm:$0xff]
      %v4401 = vld [vmem:[%s4397 + $0x18] sm:$0xff]
      %v4402 = vld [vmem:[%s4397 + $0x20] sm:$0xff]
      %v4403 = vld [vmem:[%s4397 + $0x28] sm:$0xff]
      %v4404 = vld [vmem:[%s4397 + $0x30] sm:$0xff]
      %v4405 = vld [vmem:[%s4397 + $0x38] sm:$0xff]
      %v4406 = vld [vmem:[%s4397 + $0x40] sm:$0xff]
      %v4407 = vld [vmem:[%s4397 + $0x48] sm:$0xff]
      %v4408 = vld [vmem:[%s4397 + $0x50] sm:$0xff]
      %v4409 = vld [vmem:[%s4397 + $0x58] sm:$0xff]
      %v4410 = vld [vmem:[%s4397 + $0x60] sm:$0xff]
      %v4411 = vld [vmem:[%s4397 + $0x68] sm:$0xff]
      %v4412 = vld [vmem:[%s4397 + $0x70] sm:$0xff]
      %v4413 = vld [vmem:[%s4397 + $0x78] sm:$0xff]
      %4414 = vmatprep.subr.mxu0 0.0
      %4415 = vmatpush1.msra.mxu0 %v4413
      %4416 = vmatprep.subr.mxu0 0.0
      %4417 = vmatpush1.msra.mxu0 %v4412
      %4418 = vmatprep.subr.mxu0 0.0
      %4419 = vmatpush1.msra.mxu0 %v4411
      %4420 = vmatprep.subr.mxu0 0.0
      %4421 = vmatpush1.msra.mxu0 %v4410
      %4422 = vmatprep.subr.mxu0 0.0
      %4423 = vmatpush1.msra.mxu0 %v4409
      %4424 = vmatprep.subr.mxu0 0.0
      %4425 = vmatpush1.msra.mxu0 %v4408
      %4426 = vmatprep.subr.mxu0 0.0
      %4427 = vmatpush1.msra.mxu0 %v4407
      %4428 = vmatprep.subr.mxu0 0.0
      %4429 = vmatpush1.msra.mxu0 %v4406
      %4430 = vmatprep.subr.mxu0 0.0
      %4431 = vmatpush1.msra.mxu0 %v4405
      %4432 = vmatprep.subr.mxu0 0.0
      %4433 = vmatpush1.msra.mxu0 %v4404
      %4434 = vmatprep.subr.mxu0 0.0
      %4435 = vmatpush1.msra.mxu0 %v4403
      %4436 = vmatprep.subr.mxu0 0.0
      %4437 = vmatpush1.msra.mxu0 %v4402
      %4438 = vmatprep.subr.mxu0 0.0
      %4439 = vmatpush1.msra.mxu0 %v4401
      %4440 = vmatprep.subr.mxu0 0.0
      %4441 = vmatpush1.msra.mxu0 %v4400
      %4442 = vmatprep.subr.mxu0 0.0
      %4443 = vmatpush1.msra.mxu0 %v4399
      %4444 = vmatprep.subr.mxu0 0.0
      %4445 = vmatpush1.msra.mxu0 %v4398
      %4446 = vmatprep.subr.mxu0 0.0
      %4447 = vmatpush2.msra.mxu0 0.0
      %4448 = vmatprep.subr.mxu0 0.0
      %4449 = vmatpush2.msra.mxu0 0.0
      %4450 = vmatprep.subr.mxu0 0.0
      %4451 = vmatpush2.msra.mxu0 0.0
      %4452 = vmatprep.subr.mxu0 0.0
      %4453 = vmatpush2.msra.mxu0 0.0
      %4454 = vmatprep.subr.mxu0 0.0
      %4455 = vmatpush2.msra.mxu0 0.0
      %4456 = vmatprep.subr.mxu0 0.0
      %4457 = vmatpush2.msra.mxu0 0.0
      %4458 = vmatprep.subr.mxu0 0.0
      %4459 = vmatpush2.msra.mxu0 0.0
      %4460 = vmatprep.subr.mxu0 0.0
      %4461 = vmatpush2.msra.mxu0 0.0
      %4462 = vmatprep.subr.mxu0 0.0
      %4463 = vmatpush2.msra.mxu0 0.0
      %4464 = vmatprep.subr.mxu0 0.0
      %4465 = vmatpush2.msra.mxu0 0.0
      %4466 = vmatprep.subr.mxu0 0.0
      %4467 = vmatpush2.msra.mxu0 0.0
      %4468 = vmatprep.subr.mxu0 0.0
      %4469 = vmatpush2.msra.mxu0 0.0
      %4470 = vmatprep.subr.mxu0 0.0
      %4471 = vmatpush2.msra.mxu0 0.0
      %4472 = vmatprep.subr.mxu0 0.0
      %4473 = vmatpush2.msra.mxu0 0.0
      %4474 = vmatprep.subr.mxu0 0.0
      %4475 = vmatpush2.msra.mxu0 0.0
      %4476 = vmatprep.subr.mxu0 0.0
      %4477 = vmatpush2.msra.mxu0 0.0
      %4478 = vmatprep.mubr.f32.mxu0 0.0
      %4479 = vmatmul.mubr.f32.gmra.mxu0 %v4395
      %v4480 = vpop.f32.mrf.mxu0
      %v4481 = vadd.f32 0.0, %v4480
      %v4482 = vpop.f32.mrf.mxu0
      %4483 = vmatprep.mubr.f32.mxu0 0.0
      %4484 = vmatmul.mubr.f32.gmra.mxu0 %v4396
      %v4485 = vpop.f32.mrf.mxu0
      %v4486 = vadd.f32 0.0, %v4485
      %v4487 = vpop.f32.mrf.mxu0
      %4488 = vdwg.mxu0
      %v4489 = vadd.f32 %v4385, %v4481
      %v4490 = vadd.f32 %v4390, %v4486
      %s4491 = sadd.s32 %s4194, 1
      %s4492 = smul.u32 %s4491, 16
      %s4493 = sadd.s32 %s4492, 192
      %s4494 = scalar_lea.vmem [#allocation4], %s4493
      %v4495 = vld [vmem:[%s4494] sm:$0xff]
      %v4496 = vld [vmem:[%s4494 + $0x8] sm:$0x3]
      %s4497 = scalar_lea.vmem %s8, 384
      %v4498 = vld [vmem:[%s4497] sm:$0xff]
      %v4499 = vld [vmem:[%s4497 + $0x8] sm:$0xff]
      %v4500 = vld [vmem:[%s4497 + $0x10] sm:$0xff]
      %v4501 = vld [vmem:[%s4497 + $0x18] sm:$0xff]
      %v4502 = vld [vmem:[%s4497 + $0x20] sm:$0xff]
      %v4503 = vld [vmem:[%s4497 + $0x28] sm:$0xff]
      %v4504 = vld [vmem:[%s4497 + $0x30] sm:$0xff]
      %v4505 = vld [vmem:[%s4497 + $0x38] sm:$0xff]
      %v4506 = vld [vmem:[%s4497 + $0x40] sm:$0xff]
      %v4507 = vld [vmem:[%s4497 + $0x48] sm:$0xff]
      %v4508 = vld [vmem:[%s4497 + $0x50] sm:$0xff]
      %v4509 = vld [vmem:[%s4497 + $0x58] sm:$0xff]
      %v4510 = vld [vmem:[%s4497 + $0x60] sm:$0xff]
      %v4511 = vld [vmem:[%s4497 + $0x68] sm:$0xff]
      %v4512 = vld [vmem:[%s4497 + $0x70] sm:$0xff]
      %v4513 = vld [vmem:[%s4497 + $0x78] sm:$0xff]
      %4514 = vmatprep.subr.mxu0 0.0
      %4515 = vmatpush1.msra.mxu0 %v4513
      %4516 = vmatprep.subr.mxu0 0.0
      %4517 = vmatpush1.msra.mxu0 %v4512
      %4518 = vmatprep.subr.mxu0 0.0
      %4519 = vmatpush1.msra.mxu0 %v4511
      %4520 = vmatprep.subr.mxu0 0.0
      %4521 = vmatpush1.msra.mxu0 %v4510
      %4522 = vmatprep.subr.mxu0 0.0
      %4523 = vmatpush1.msra.mxu0 %v4509
      %4524 = vmatprep.subr.mxu0 0.0
      %4525 = vmatpush1.msra.mxu0 %v4508
      %4526 = vmatprep.subr.mxu0 0.0
      %4527 = vmatpush1.msra.mxu0 %v4507
      %4528 = vmatprep.subr.mxu0 0.0
      %4529 = vmatpush1.msra.mxu0 %v4506
      %4530 = vmatprep.subr.mxu0 0.0
      %4531 = vmatpush1.msra.mxu0 %v4505
      %4532 = vmatprep.subr.mxu0 0.0
      %4533 = vmatpush1.msra.mxu0 %v4504
      %4534 = vmatprep.subr.mxu0 0.0
      %4535 = vmatpush1.msra.mxu0 %v4503
      %4536 = vmatprep.subr.mxu0 0.0
      %4537 = vmatpush1.msra.mxu0 %v4502
      %4538 = vmatprep.subr.mxu0 0.0
      %4539 = vmatpush1.msra.mxu0 %v4501
      %4540 = vmatprep.subr.mxu0 0.0
      %4541 = vmatpush1.msra.mxu0 %v4500
      %4542 = vmatprep.subr.mxu0 0.0
      %4543 = vmatpush1.msra.mxu0 %v4499
      %4544 = vmatprep.subr.mxu0 0.0
      %4545 = vmatpush1.msra.mxu0 %v4498
      %4546 = vmatprep.subr.mxu0 0.0
      %4547 = vmatpush2.msra.mxu0 0.0
      %4548 = vmatprep.subr.mxu0 0.0
      %4549 = vmatpush2.msra.mxu0 0.0
      %4550 = vmatprep.subr.mxu0 0.0
      %4551 = vmatpush2.msra.mxu0 0.0
      %4552 = vmatprep.subr.mxu0 0.0
      %4553 = vmatpush2.msra.mxu0 0.0
      %4554 = vmatprep.subr.mxu0 0.0
      %4555 = vmatpush2.msra.mxu0 0.0
      %4556 = vmatprep.subr.mxu0 0.0
      %4557 = vmatpush2.msra.mxu0 0.0
      %4558 = vmatprep.subr.mxu0 0.0
      %4559 = vmatpush2.msra.mxu0 0.0
      %4560 = vmatprep.subr.mxu0 0.0
      %4561 = vmatpush2.msra.mxu0 0.0
      %4562 = vmatprep.subr.mxu0 0.0
      %4563 = vmatpush2.msra.mxu0 0.0
      %4564 = vmatprep.subr.mxu0 0.0
      %4565 = vmatpush2.msra.mxu0 0.0
      %4566 = vmatprep.subr.mxu0 0.0
      %4567 = vmatpush2.msra.mxu0 0.0
      %4568 = vmatprep.subr.mxu0 0.0
      %4569 = vmatpush2.msra.mxu0 0.0
      %4570 = vmatprep.subr.mxu0 0.0
      %4571 = vmatpush2.msra.mxu0 0.0
      %4572 = vmatprep.subr.mxu0 0.0
      %4573 = vmatpush2.msra.mxu0 0.0
      %4574 = vmatprep.subr.mxu0 0.0
      %4575 = vmatpush2.msra.mxu0 0.0
      %4576 = vmatprep.subr.mxu0 0.0
      %4577 = vmatpush2.msra.mxu0 0.0
      %4578 = vmatprep.mubr.f32.mxu0 0.0
      %4579 = vmatmul.mubr.f32.gmra.mxu0 %v4495
      %v4580 = vpop.f32.mrf.mxu0
      %v4581 = vadd.f32 0.0, %v4580
      %v4582 = vpop.f32.mrf.mxu0
      %4583 = vmatprep.mubr.f32.mxu0 0.0
      %4584 = vmatmul.mubr.f32.gmra.mxu0 %v4496
      %v4585 = vpop.f32.mrf.mxu0
      %v4586 = vadd.f32 0.0, %v4585
      %v4587 = vpop.f32.mrf.mxu0
      %4588 = vdwg.mxu0
      %v4589 = vadd.f32 %v4489, %v4581
      %v4590 = vadd.f32 %v4490, %v4586
      %s4591 = sadd.s32 %s4492, 193
      %s4592 = scalar_lea.vmem [#allocation4], %s4591
      %v4593 = vld [vmem:[%s4592] sm:$0xff]
      %v4594 = vld [vmem:[%s4592 + $0x8] sm:$0x3]
      %s4595 = scalar_lea.vmem %s8, 512
      %v4596 = vld [vmem:[%s4595] sm:$0xff]
      %v4597 = vld [vmem:[%s4595 + $0x8] sm:$0xff]
      %v4598 = vld [vmem:[%s4595 + $0x10] sm:$0xff]
      %v4599 = vld [vmem:[%s4595 + $0x18] sm:$0xff]
      %v4600 = vld [vmem:[%s4595 + $0x20] sm:$0xff]
      %v4601 = vld [vmem:[%s4595 + $0x28] sm:$0xff]
      %v4602 = vld [vmem:[%s4595 + $0x30] sm:$0xff]
      %v4603 = vld [vmem:[%s4595 + $0x38] sm:$0xff]
      %v4604 = vld [vmem:[%s4595 + $0x40] sm:$0xff]
      %v4605 = vld [vmem:[%s4595 + $0x48] sm:$0xff]
      %v4606 = vld [vmem:[%s4595 + $0x50] sm:$0xff]
      %v4607 = vld [vmem:[%s4595 + $0x58] sm:$0xff]
      %v4608 = vld [vmem:[%s4595 + $0x60] sm:$0xff]
      %v4609 = vld [vmem:[%s4595 + $0x68] sm:$0xff]
      %v4610 = vld [vmem:[%s4595 + $0x70] sm:$0xff]
      %v4611 = vld [vmem:[%s4595 + $0x78] sm:$0xff]
      %4612 = vmatprep.subr.mxu0 0.0
      %4613 = vmatpush1.msra.mxu0 %v4611
      %4614 = vmatprep.subr.mxu0 0.0
      %4615 = vmatpush1.msra.mxu0 %v4610
      %4616 = vmatprep.subr.mxu0 0.0
      %4617 = vmatpush1.msra.mxu0 %v4609
      %4618 = vmatprep.subr.mxu0 0.0
      %4619 = vmatpush1.msra.mxu0 %v4608
      %4620 = vmatprep.subr.mxu0 0.0
      %4621 = vmatpush1.msra.mxu0 %v4607
      %4622 = vmatprep.subr.mxu0 0.0
      %4623 = vmatpush1.msra.mxu0 %v4606
      %4624 = vmatprep.subr.mxu0 0.0
      %4625 = vmatpush1.msra.mxu0 %v4605
      %4626 = vmatprep.subr.mxu0 0.0
      %4627 = vmatpush1.msra.mxu0 %v4604
      %4628 = vmatprep.subr.mxu0 0.0
      %4629 = vmatpush1.msra.mxu0 %v4603
      %4630 = vmatprep.subr.mxu0 0.0
      %4631 = vmatpush1.msra.mxu0 %v4602
      %4632 = vmatprep.subr.mxu0 0.0
      %4633 = vmatpush1.msra.mxu0 %v4601
      %4634 = vmatprep.subr.mxu0 0.0
      %4635 = vmatpush1.msra.mxu0 %v4600
      %4636 = vmatprep.subr.mxu0 0.0
      %4637 = vmatpush1.msra.mxu0 %v4599
      %4638 = vmatprep.subr.mxu0 0.0
      %4639 = vmatpush1.msra.mxu0 %v4598
      %4640 = vmatprep.subr.mxu0 0.0
      %4641 = vmatpush1.msra.mxu0 %v4597
      %4642 = vmatprep.subr.mxu0 0.0
      %4643 = vmatpush1.msra.mxu0 %v4596
      %4644 = vmatprep.subr.mxu0 0.0
      %4645 = vmatpush2.msra.mxu0 0.0
      %4646 = vmatprep.subr.mxu0 0.0
      %4647 = vmatpush2.msra.mxu0 0.0
      %4648 = vmatprep.subr.mxu0 0.0
      %4649 = vmatpush2.msra.mxu0 0.0
      %4650 = vmatprep.subr.mxu0 0.0
      %4651 = vmatpush2.msra.mxu0 0.0
      %4652 = vmatprep.subr.mxu0 0.0
      %4653 = vmatpush2.msra.mxu0 0.0
      %4654 = vmatprep.subr.mxu0 0.0
      %4655 = vmatpush2.msra.mxu0 0.0
      %4656 = vmatprep.subr.mxu0 0.0
      %4657 = vmatpush2.msra.mxu0 0.0
      %4658 = vmatprep.subr.mxu0 0.0
      %4659 = vmatpush2.msra.mxu0 0.0
      %4660 = vmatprep.subr.mxu0 0.0
      %4661 = vmatpush2.msra.mxu0 0.0
      %4662 = vmatprep.subr.mxu0 0.0
      %4663 = vmatpush2.msra.mxu0 0.0
      %4664 = vmatprep.subr.mxu0 0.0
      %4665 = vmatpush2.msra.mxu0 0.0
      %4666 = vmatprep.subr.mxu0 0.0
      %4667 = vmatpush2.msra.mxu0 0.0
      %4668 = vmatprep.subr.mxu0 0.0
      %4669 = vmatpush2.msra.mxu0 0.0
      %4670 = vmatprep.subr.mxu0 0.0
      %4671 = vmatpush2.msra.mxu0 0.0
      %4672 = vmatprep.subr.mxu0 0.0
      %4673 = vmatpush2.msra.mxu0 0.0
      %4674 = vmatprep.subr.mxu0 0.0
      %4675 = vmatpush2.msra.mxu0 0.0
      %4676 = vmatprep.mubr.f32.mxu0 0.0
      %4677 = vmatmul.mubr.f32.gmra.mxu0 %v4593
      %v4678 = vpop.f32.mrf.mxu0
      %v4679 = vadd.f32 0.0, %v4678
      %v4680 = vpop.f32.mrf.mxu0
      %4681 = vmatprep.mubr.f32.mxu0 0.0
      %4682 = vmatmul.mubr.f32.gmra.mxu0 %v4594
      %v4683 = vpop.f32.mrf.mxu0
      %v4684 = vadd.f32 0.0, %v4683
      %v4685 = vpop.f32.mrf.mxu0
      %4686 = vdwg.mxu0
      %v4687 = vadd.f32 %v4589, %v4679
      %v4688 = vadd.f32 %v4590, %v4684
      %s4689 = sadd.s32 %s4492, 194
      %s4690 = scalar_lea.vmem [#allocation4], %s4689
      %v4691 = vld [vmem:[%s4690] sm:$0xff]
      %v4692 = vld [vmem:[%s4690 + $0x8] sm:$0x3]
      %s4693 = scalar_lea.vmem %s8, 640
      %v4694 = vld [vmem:[%s4693] sm:$0xff]
      %v4695 = vld [vmem:[%s4693 + $0x8] sm:$0xff]
      %v4696 = vld [vmem:[%s4693 + $0x10] sm:$0xff]
      %v4697 = vld [vmem:[%s4693 + $0x18] sm:$0xff]
      %v4698 = vld [vmem:[%s4693 + $0x20] sm:$0xff]
      %v4699 = vld [vmem:[%s4693 + $0x28] sm:$0xff]
      %v4700 = vld [vmem:[%s4693 + $0x30] sm:$0xff]
      %v4701 = vld [vmem:[%s4693 + $0x38] sm:$0xff]
      %v4702 = vld [vmem:[%s4693 + $0x40] sm:$0xff]
      %v4703 = vld [vmem:[%s4693 + $0x48] sm:$0xff]
      %v4704 = vld [vmem:[%s4693 + $0x50] sm:$0xff]
      %v4705 = vld [vmem:[%s4693 + $0x58] sm:$0xff]
      %v4706 = vld [vmem:[%s4693 + $0x60] sm:$0xff]
      %v4707 = vld [vmem:[%s4693 + $0x68] sm:$0xff]
      %v4708 = vld [vmem:[%s4693 + $0x70] sm:$0xff]
      %v4709 = vld [vmem:[%s4693 + $0x78] sm:$0xff]
      %4710 = vmatprep.subr.mxu0 0.0
      %4711 = vmatpush1.msra.mxu0 %v4709
      %4712 = vmatprep.subr.mxu0 0.0
      %4713 = vmatpush1.msra.mxu0 %v4708
      %4714 = vmatprep.subr.mxu0 0.0
      %4715 = vmatpush1.msra.mxu0 %v4707
      %4716 = vmatprep.subr.mxu0 0.0
      %4717 = vmatpush1.msra.mxu0 %v4706
      %4718 = vmatprep.subr.mxu0 0.0
      %4719 = vmatpush1.msra.mxu0 %v4705
      %4720 = vmatprep.subr.mxu0 0.0
      %4721 = vmatpush1.msra.mxu0 %v4704
      %4722 = vmatprep.subr.mxu0 0.0
      %4723 = vmatpush1.msra.mxu0 %v4703
      %4724 = vmatprep.subr.mxu0 0.0
      %4725 = vmatpush1.msra.mxu0 %v4702
      %4726 = vmatprep.subr.mxu0 0.0
      %4727 = vmatpush1.msra.mxu0 %v4701
      %4728 = vmatprep.subr.mxu0 0.0
      %4729 = vmatpush1.msra.mxu0 %v4700
      %4730 = vmatprep.subr.mxu0 0.0
      %4731 = vmatpush1.msra.mxu0 %v4699
      %4732 = vmatprep.subr.mxu0 0.0
      %4733 = vmatpush1.msra.mxu0 %v4698
      %4734 = vmatprep.subr.mxu0 0.0
      %4735 = vmatpush1.msra.mxu0 %v4697
      %4736 = vmatprep.subr.mxu0 0.0
      %4737 = vmatpush1.msra.mxu0 %v4696
      %4738 = vmatprep.subr.mxu0 0.0
      %4739 = vmatpush1.msra.mxu0 %v4695
      %4740 = vmatprep.subr.mxu0 0.0
      %4741 = vmatpush1.msra.mxu0 %v4694
      %4742 = vmatprep.subr.mxu0 0.0
      %4743 = vmatpush2.msra.mxu0 0.0
      %4744 = vmatprep.subr.mxu0 0.0
      %4745 = vmatpush2.msra.mxu0 0.0
      %4746 = vmatprep.subr.mxu0 0.0
      %4747 = vmatpush2.msra.mxu0 0.0
      %4748 = vmatprep.subr.mxu0 0.0
      %4749 = vmatpush2.msra.mxu0 0.0
      %4750 = vmatprep.subr.mxu0 0.0
      %4751 = vmatpush2.msra.mxu0 0.0
      %4752 = vmatprep.subr.mxu0 0.0
      %4753 = vmatpush2.msra.mxu0 0.0
      %4754 = vmatprep.subr.mxu0 0.0
      %4755 = vmatpush2.msra.mxu0 0.0
      %4756 = vmatprep.subr.mxu0 0.0
      %4757 = vmatpush2.msra.mxu0 0.0
      %4758 = vmatprep.subr.mxu0 0.0
      %4759 = vmatpush2.msra.mxu0 0.0
      %4760 = vmatprep.subr.mxu0 0.0
      %4761 = vmatpush2.msra.mxu0 0.0
      %4762 = vmatprep.subr.mxu0 0.0
      %4763 = vmatpush2.msra.mxu0 0.0
      %4764 = vmatprep.subr.mxu0 0.0
      %4765 = vmatpush2.msra.mxu0 0.0
      %4766 = vmatprep.subr.mxu0 0.0
      %4767 = vmatpush2.msra.mxu0 0.0
      %4768 = vmatprep.subr.mxu0 0.0
      %4769 = vmatpush2.msra.mxu0 0.0
      %4770 = vmatprep.subr.mxu0 0.0
      %4771 = vmatpush2.msra.mxu0 0.0
      %4772 = vmatprep.subr.mxu0 0.0
      %4773 = vmatpush2.msra.mxu0 0.0
      %4774 = vmatprep.mubr.f32.mxu0 0.0
      %4775 = vmatmul.mubr.f32.gmra.mxu0 %v4691
      %v4776 = vpop.f32.mrf.mxu0
      %v4777 = vadd.f32 0.0, %v4776
      %v4778 = vpop.f32.mrf.mxu0
      %4779 = vmatprep.mubr.f32.mxu0 0.0
      %4780 = vmatmul.mubr.f32.gmra.mxu0 %v4692
      %v4781 = vpop.f32.mrf.mxu0
      %v4782 = vadd.f32 0.0, %v4781
      %v4783 = vpop.f32.mrf.mxu0
      %4784 = vdwg.mxu0
      %v4785 = vadd.f32 %v4687, %v4777
      %v4786 = vadd.f32 %v4688, %v4782
      %s4787 = sadd.s32 %s4194, 2
      %s4788 = smul.u32 %s4787, 16
      %s4789 = sadd.s32 %s4788, 192
      %s4790 = scalar_lea.vmem [#allocation4], %s4789
      %v4791 = vld [vmem:[%s4790] sm:$0xff]
      %v4792 = vld [vmem:[%s4790 + $0x8] sm:$0x3]
      %s4793 = scalar_lea.vmem %s8, 768
      %v4794 = vld [vmem:[%s4793] sm:$0xff]
      %v4795 = vld [vmem:[%s4793 + $0x8] sm:$0xff]
      %v4796 = vld [vmem:[%s4793 + $0x10] sm:$0xff]
      %v4797 = vld [vmem:[%s4793 + $0x18] sm:$0xff]
      %v4798 = vld [vmem:[%s4793 + $0x20] sm:$0xff]
      %v4799 = vld [vmem:[%s4793 + $0x28] sm:$0xff]
      %v4800 = vld [vmem:[%s4793 + $0x30] sm:$0xff]
      %v4801 = vld [vmem:[%s4793 + $0x38] sm:$0xff]
      %v4802 = vld [vmem:[%s4793 + $0x40] sm:$0xff]
      %v4803 = vld [vmem:[%s4793 + $0x48] sm:$0xff]
      %v4804 = vld [vmem:[%s4793 + $0x50] sm:$0xff]
      %v4805 = vld [vmem:[%s4793 + $0x58] sm:$0xff]
      %v4806 = vld [vmem:[%s4793 + $0x60] sm:$0xff]
      %v4807 = vld [vmem:[%s4793 + $0x68] sm:$0xff]
      %v4808 = vld [vmem:[%s4793 + $0x70] sm:$0xff]
      %v4809 = vld [vmem:[%s4793 + $0x78] sm:$0xff]
      %4810 = vmatprep.subr.mxu0 0.0
      %4811 = vmatpush1.msra.mxu0 %v4809
      %4812 = vmatprep.subr.mxu0 0.0
      %4813 = vmatpush1.msra.mxu0 %v4808
      %4814 = vmatprep.subr.mxu0 0.0
      %4815 = vmatpush1.msra.mxu0 %v4807
      %4816 = vmatprep.subr.mxu0 0.0
      %4817 = vmatpush1.msra.mxu0 %v4806
      %4818 = vmatprep.subr.mxu0 0.0
      %4819 = vmatpush1.msra.mxu0 %v4805
      %4820 = vmatprep.subr.mxu0 0.0
      %4821 = vmatpush1.msra.mxu0 %v4804
      %4822 = vmatprep.subr.mxu0 0.0
      %4823 = vmatpush1.msra.mxu0 %v4803
      %4824 = vmatprep.subr.mxu0 0.0
      %4825 = vmatpush1.msra.mxu0 %v4802
      %4826 = vmatprep.subr.mxu0 0.0
      %4827 = vmatpush1.msra.mxu0 %v4801
      %4828 = vmatprep.subr.mxu0 0.0
      %4829 = vmatpush1.msra.mxu0 %v4800
      %4830 = vmatprep.subr.mxu0 0.0
      %4831 = vmatpush1.msra.mxu0 %v4799
      %4832 = vmatprep.subr.mxu0 0.0
      %4833 = vmatpush1.msra.mxu0 %v4798
      %4834 = vmatprep.subr.mxu0 0.0
      %4835 = vmatpush1.msra.mxu0 %v4797
      %4836 = vmatprep.subr.mxu0 0.0
      %4837 = vmatpush1.msra.mxu0 %v4796
      %4838 = vmatprep.subr.mxu0 0.0
      %4839 = vmatpush1.msra.mxu0 %v4795
      %4840 = vmatprep.subr.mxu0 0.0
      %4841 = vmatpush1.msra.mxu0 %v4794
      %4842 = vmatprep.subr.mxu0 0.0
      %4843 = vmatpush2.msra.mxu0 0.0
      %4844 = vmatprep.subr.mxu0 0.0
      %4845 = vmatpush2.msra.mxu0 0.0
      %4846 = vmatprep.subr.mxu0 0.0
      %4847 = vmatpush2.msra.mxu0 0.0
      %4848 = vmatprep.subr.mxu0 0.0
      %4849 = vmatpush2.msra.mxu0 0.0
      %4850 = vmatprep.subr.mxu0 0.0
      %4851 = vmatpush2.msra.mxu0 0.0
      %4852 = vmatprep.subr.mxu0 0.0
      %4853 = vmatpush2.msra.mxu0 0.0
      %4854 = vmatprep.subr.mxu0 0.0
      %4855 = vmatpush2.msra.mxu0 0.0
      %4856 = vmatprep.subr.mxu0 0.0
      %4857 = vmatpush2.msra.mxu0 0.0
      %4858 = vmatprep.subr.mxu0 0.0
      %4859 = vmatpush2.msra.mxu0 0.0
      %4860 = vmatprep.subr.mxu0 0.0
      %4861 = vmatpush2.msra.mxu0 0.0
      %4862 = vmatprep.subr.mxu0 0.0
      %4863 = vmatpush2.msra.mxu0 0.0
      %4864 = vmatprep.subr.mxu0 0.0
      %4865 = vmatpush2.msra.mxu0 0.0
      %4866 = vmatprep.subr.mxu0 0.0
      %4867 = vmatpush2.msra.mxu0 0.0
      %4868 = vmatprep.subr.mxu0 0.0
      %4869 = vmatpush2.msra.mxu0 0.0
      %4870 = vmatprep.subr.mxu0 0.0
      %4871 = vmatpush2.msra.mxu0 0.0
      %4872 = vmatprep.subr.mxu0 0.0
      %4873 = vmatpush2.msra.mxu0 0.0
      %4874 = vmatprep.mubr.f32.mxu0 0.0
      %4875 = vmatmul.mubr.f32.gmra.mxu0 %v4791
      %v4876 = vpop.f32.mrf.mxu0
      %v4877 = vadd.f32 0.0, %v4876
      %v4878 = vpop.f32.mrf.mxu0
      %4879 = vmatprep.mubr.f32.mxu0 0.0
      %4880 = vmatmul.mubr.f32.gmra.mxu0 %v4792
      %v4881 = vpop.f32.mrf.mxu0
      %v4882 = vadd.f32 0.0, %v4881
      %v4883 = vpop.f32.mrf.mxu0
      %4884 = vdwg.mxu0
      %v4885 = vadd.f32 %v4785, %v4877
      %v4886 = vadd.f32 %v4786, %v4882
      %s4887 = sadd.s32 %s4788, 193
      %s4888 = scalar_lea.vmem [#allocation4], %s4887
      %v4889 = vld [vmem:[%s4888] sm:$0xff]
      %v4890 = vld [vmem:[%s4888 + $0x8] sm:$0x3]
      %s4891 = scalar_lea.vmem %s8, 896
      %v4892 = vld [vmem:[%s4891] sm:$0xff]
      %v4893 = vld [vmem:[%s4891 + $0x8] sm:$0xff]
      %v4894 = vld [vmem:[%s4891 + $0x10] sm:$0xff]
      %v4895 = vld [vmem:[%s4891 + $0x18] sm:$0xff]
      %v4896 = vld [vmem:[%s4891 + $0x20] sm:$0xff]
      %v4897 = vld [vmem:[%s4891 + $0x28] sm:$0xff]
      %v4898 = vld [vmem:[%s4891 + $0x30] sm:$0xff]
      %v4899 = vld [vmem:[%s4891 + $0x38] sm:$0xff]
      %v4900 = vld [vmem:[%s4891 + $0x40] sm:$0xff]
      %v4901 = vld [vmem:[%s4891 + $0x48] sm:$0xff]
      %v4902 = vld [vmem:[%s4891 + $0x50] sm:$0xff]
      %v4903 = vld [vmem:[%s4891 + $0x58] sm:$0xff]
      %v4904 = vld [vmem:[%s4891 + $0x60] sm:$0xff]
      %v4905 = vld [vmem:[%s4891 + $0x68] sm:$0xff]
      %v4906 = vld [vmem:[%s4891 + $0x70] sm:$0xff]
      %v4907 = vld [vmem:[%s4891 + $0x78] sm:$0xff]
      %4908 = vmatprep.subr.mxu0 0.0
      %4909 = vmatpush1.msra.mxu0 %v4907
      %4910 = vmatprep.subr.mxu0 0.0
      %4911 = vmatpush1.msra.mxu0 %v4906
      %4912 = vmatprep.subr.mxu0 0.0
      %4913 = vmatpush1.msra.mxu0 %v4905
      %4914 = vmatprep.subr.mxu0 0.0
      %4915 = vmatpush1.msra.mxu0 %v4904
      %4916 = vmatprep.subr.mxu0 0.0
      %4917 = vmatpush1.msra.mxu0 %v4903
      %4918 = vmatprep.subr.mxu0 0.0
      %4919 = vmatpush1.msra.mxu0 %v4902
      %4920 = vmatprep.subr.mxu0 0.0
      %4921 = vmatpush1.msra.mxu0 %v4901
      %4922 = vmatprep.subr.mxu0 0.0
      %4923 = vmatpush1.msra.mxu0 %v4900
      %4924 = vmatprep.subr.mxu0 0.0
      %4925 = vmatpush1.msra.mxu0 %v4899
      %4926 = vmatprep.subr.mxu0 0.0
      %4927 = vmatpush1.msra.mxu0 %v4898
      %4928 = vmatprep.subr.mxu0 0.0
      %4929 = vmatpush1.msra.mxu0 %v4897
      %4930 = vmatprep.subr.mxu0 0.0
      %4931 = vmatpush1.msra.mxu0 %v4896
      %4932 = vmatprep.subr.mxu0 0.0
      %4933 = vmatpush1.msra.mxu0 %v4895
      %4934 = vmatprep.subr.mxu0 0.0
      %4935 = vmatpush1.msra.mxu0 %v4894
      %4936 = vmatprep.subr.mxu0 0.0
      %4937 = vmatpush1.msra.mxu0 %v4893
      %4938 = vmatprep.subr.mxu0 0.0
      %4939 = vmatpush1.msra.mxu0 %v4892
      %4940 = vmatprep.subr.mxu0 0.0
      %4941 = vmatpush2.msra.mxu0 0.0
      %4942 = vmatprep.subr.mxu0 0.0
      %4943 = vmatpush2.msra.mxu0 0.0
      %4944 = vmatprep.subr.mxu0 0.0
      %4945 = vmatpush2.msra.mxu0 0.0
      %4946 = vmatprep.subr.mxu0 0.0
      %4947 = vmatpush2.msra.mxu0 0.0
      %4948 = vmatprep.subr.mxu0 0.0
      %4949 = vmatpush2.msra.mxu0 0.0
      %4950 = vmatprep.subr.mxu0 0.0
      %4951 = vmatpush2.msra.mxu0 0.0
      %4952 = vmatprep.subr.mxu0 0.0
      %4953 = vmatpush2.msra.mxu0 0.0
      %4954 = vmatprep.subr.mxu0 0.0
      %4955 = vmatpush2.msra.mxu0 0.0
      %4956 = vmatprep.subr.mxu0 0.0
      %4957 = vmatpush2.msra.mxu0 0.0
      %4958 = vmatprep.subr.mxu0 0.0
      %4959 = vmatpush2.msra.mxu0 0.0
      %4960 = vmatprep.subr.mxu0 0.0
      %4961 = vmatpush2.msra.mxu0 0.0
      %4962 = vmatprep.subr.mxu0 0.0
      %4963 = vmatpush2.msra.mxu0 0.0
      %4964 = vmatprep.subr.mxu0 0.0
      %4965 = vmatpush2.msra.mxu0 0.0
      %4966 = vmatprep.subr.mxu0 0.0
      %4967 = vmatpush2.msra.mxu0 0.0
      %4968 = vmatprep.subr.mxu0 0.0
      %4969 = vmatpush2.msra.mxu0 0.0
      %4970 = vmatprep.subr.mxu0 0.0
      %4971 = vmatpush2.msra.mxu0 0.0
      %4972 = vmatprep.mubr.f32.mxu0 0.0
      %4973 = vmatmul.mubr.f32.gmra.mxu0 %v4889
      %v4974 = vpop.f32.mrf.mxu0
      %v4975 = vadd.f32 0.0, %v4974
      %v4976 = vpop.f32.mrf.mxu0
      %4977 = vmatprep.mubr.f32.mxu0 0.0
      %4978 = vmatmul.mubr.f32.gmra.mxu0 %v4890
      %v4979 = vpop.f32.mrf.mxu0
      %v4980 = vadd.f32 0.0, %v4979
      %v4981 = vpop.f32.mrf.mxu0
      %4982 = vdwg.mxu0
      %v4983 = vadd.f32 %v4885, %v4975
      %v4984 = vadd.f32 %v4886, %v4980
      %s4985 = sadd.s32 %s4788, 194
      %s4986 = scalar_lea.vmem [#allocation4], %s4985
      %v4987 = vld [vmem:[%s4986] sm:$0xff]
      %v4988 = vld [vmem:[%s4986 + $0x8] sm:$0x3]
      %s4989 = scalar_lea.vmem %s8, 1024
      %v4990 = vld [vmem:[%s4989] sm:$0xff]
      %v4991 = vld [vmem:[%s4989 + $0x8] sm:$0xff]
      %v4992 = vld [vmem:[%s4989 + $0x10] sm:$0xff]
      %v4993 = vld [vmem:[%s4989 + $0x18] sm:$0xff]
      %v4994 = vld [vmem:[%s4989 + $0x20] sm:$0xff]
      %v4995 = vld [vmem:[%s4989 + $0x28] sm:$0xff]
      %v4996 = vld [vmem:[%s4989 + $0x30] sm:$0xff]
      %v4997 = vld [vmem:[%s4989 + $0x38] sm:$0xff]
      %v4998 = vld [vmem:[%s4989 + $0x40] sm:$0xff]
      %v4999 = vld [vmem:[%s4989 + $0x48] sm:$0xff]
      %v5000 = vld [vmem:[%s4989 + $0x50] sm:$0xff]
      %v5001 = vld [vmem:[%s4989 + $0x58] sm:$0xff]
      %v5002 = vld [vmem:[%s4989 + $0x60] sm:$0xff]
      %v5003 = vld [vmem:[%s4989 + $0x68] sm:$0xff]
      %v5004 = vld [vmem:[%s4989 + $0x70] sm:$0xff]
      %v5005 = vld [vmem:[%s4989 + $0x78] sm:$0xff]
      %5006 = vmatprep.subr.mxu0 0.0
      %5007 = vmatpush1.msra.mxu0 %v5005
      %5008 = vmatprep.subr.mxu0 0.0
      %5009 = vmatpush1.msra.mxu0 %v5004
      %5010 = vmatprep.subr.mxu0 0.0
      %5011 = vmatpush1.msra.mxu0 %v5003
      %5012 = vmatprep.subr.mxu0 0.0
      %5013 = vmatpush1.msra.mxu0 %v5002
      %5014 = vmatprep.subr.mxu0 0.0
      %5015 = vmatpush1.msra.mxu0 %v5001
      %5016 = vmatprep.subr.mxu0 0.0
      %5017 = vmatpush1.msra.mxu0 %v5000
      %5018 = vmatprep.subr.mxu0 0.0
      %5019 = vmatpush1.msra.mxu0 %v4999
      %5020 = vmatprep.subr.mxu0 0.0
      %5021 = vmatpush1.msra.mxu0 %v4998
      %5022 = vmatprep.subr.mxu0 0.0
      %5023 = vmatpush1.msra.mxu0 %v4997
      %5024 = vmatprep.subr.mxu0 0.0
      %5025 = vmatpush1.msra.mxu0 %v4996
      %5026 = vmatprep.subr.mxu0 0.0
      %5027 = vmatpush1.msra.mxu0 %v4995
      %5028 = vmatprep.subr.mxu0 0.0
      %5029 = vmatpush1.msra.mxu0 %v4994
      %5030 = vmatprep.subr.mxu0 0.0
      %5031 = vmatpush1.msra.mxu0 %v4993
      %5032 = vmatprep.subr.mxu0 0.0
      %5033 = vmatpush1.msra.mxu0 %v4992
      %5034 = vmatprep.subr.mxu0 0.0
      %5035 = vmatpush1.msra.mxu0 %v4991
      %5036 = vmatprep.subr.mxu0 0.0
      %5037 = vmatpush1.msra.mxu0 %v4990
      %5038 = vmatprep.subr.mxu0 0.0
      %5039 = vmatpush2.msra.mxu0 0.0
      %5040 = vmatprep.subr.mxu0 0.0
      %5041 = vmatpush2.msra.mxu0 0.0
      %5042 = vmatprep.subr.mxu0 0.0
      %5043 = vmatpush2.msra.mxu0 0.0
      %5044 = vmatprep.subr.mxu0 0.0
      %5045 = vmatpush2.msra.mxu0 0.0
      %5046 = vmatprep.subr.mxu0 0.0
      %5047 = vmatpush2.msra.mxu0 0.0
      %5048 = vmatprep.subr.mxu0 0.0
      %5049 = vmatpush2.msra.mxu0 0.0
      %5050 = vmatprep.subr.mxu0 0.0
      %5051 = vmatpush2.msra.mxu0 0.0
      %5052 = vmatprep.subr.mxu0 0.0
      %5053 = vmatpush2.msra.mxu0 0.0
      %5054 = vmatprep.subr.mxu0 0.0
      %5055 = vmatpush2.msra.mxu0 0.0
      %5056 = vmatprep.subr.mxu0 0.0
      %5057 = vmatpush2.msra.mxu0 0.0
      %5058 = vmatprep.subr.mxu0 0.0
      %5059 = vmatpush2.msra.mxu0 0.0
      %5060 = vmatprep.subr.mxu0 0.0
      %5061 = vmatpush2.msra.mxu0 0.0
      %5062 = vmatprep.subr.mxu0 0.0
      %5063 = vmatpush2.msra.mxu0 0.0
      %5064 = vmatprep.subr.mxu0 0.0
      %5065 = vmatpush2.msra.mxu0 0.0
      %5066 = vmatprep.subr.mxu0 0.0
      %5067 = vmatpush2.msra.mxu0 0.0
      %5068 = vmatprep.subr.mxu0 0.0
      %5069 = vmatpush2.msra.mxu0 0.0
      %5070 = vmatprep.mubr.f32.mxu0 0.0
      %5071 = vmatmul.mubr.f32.gmra.mxu0 %v4987
      %v5072 = vpop.f32.mrf.mxu0
      %v5073 = vadd.f32 0.0, %v5072
      %v5074 = vpop.f32.mrf.mxu0
      %5075 = vmatprep.mubr.f32.mxu0 0.0
      %5076 = vmatmul.mubr.f32.gmra.mxu0 %v4988
      %v5077 = vpop.f32.mrf.mxu0
      %v5078 = vadd.f32 0.0, %v5077
      %v5079 = vpop.f32.mrf.mxu0
      %5080 = vdwg.mxu0
      %v5081 = vadd.f32 %v4983, %v5073
      %v5082 = vadd.f32 %v4984, %v5078
      %v5083 = vmax.f32 %v5081, 0.0
      %v5084 = vmax.f32 %v5082, 0.0
      %s5085 = sadd.s32 %s4201, 160
      %s5086 = scalar_lea.vmem [#allocation5], %s5085
      %5087 = vst [vmem:[%s5086] sm:$0xff] %v5083
      %5088 = vst [vmem:[%s5086 + $0x8] sm:$0x3] %v5084
      %vm5089 = vcmask 1041408
      %v5090 = vsel %vm5089, %v5084, 0.0
      %v5091 = vadd.f32 %v5083, %v5090
      %v5092 = vrot.slane %v5091, 4
      %v5093 = vadd.f32 %v5091, %v5092
      %v5094 = vrot.slane %v5093, 2
      %v5095 = vadd.f32 %v5093, %v5094
      %v5096 = vrot.slane %v5095, 1
      %v5097 = vadd.f32 %v5095, %v5096
      %v5098 = vadd.f32 %v4199, %v5097
      %v5099 = vmul.f32 %v5083, %v5083
      %v5100 = vmul.f32 %v5084, %v5084
      %v5101 = vsel %vm5089, %v5100, 0.0
      %v5102 = vadd.f32 %v5099, %v5101
      %v5103 = vrot.slane %v5102, 4
      %v5104 = vadd.f32 %v5102, %v5103
      %v5105 = vrot.slane %v5104, 2
      %v5106 = vadd.f32 %v5104, %v5105
      %v5107 = vrot.slane %v5106, 1
      %v5108 = vadd.f32 %v5106, %v5107
      %v5109 = vadd.f32 %v4200, %v5108
    $region108: #{model4_forward.1} parent=1 // loop_footer
      %s4198 = sadd.s32 1, %s4194
    $region109: #{model4_forward.1} parent=1 // loop_footer_branch
      %4193 = sbr.rel target = $region105
    $region110: #{model4_forward.1} parent=1 // loop_exit
      _
    %v5110 = vadd.f32 %v4191, %v4199
    %v5111 = vadd.f32 %v4192, %v4200
    %v5112 = vld [vmem:[%s9] sm:$0x1]
    %v5113 = vld [vmem:[%s10] sm:$0x1]
    %v5114 = vmul.f32 %v5110, 0.005
    %v5115 = vmul.f32 %v5111, 0.005
    %v5116 = vmul.f32 %v5114, %v5114
    %v5117 = vsub.f32 %v5115, %v5116
    %v5118 = vmax.f32 %v5117, 0.0
    %v5119 = vadd.f32 %v5118, 1e-05
    %v5120 = vrsqrt.pop %v5119
    %v5121 = vmul.f32 %v5112, %v5120
    %v5122 = vmul.f32 %v5114, %v5121
    %v5123 = vsub.f32 %v5113, %v5122
    loop: start=0, step=1, limit=8
    $region111: #{model4_forward.1} parent=1 // loop_pre_header
      _
    $region112: #{model4_forward.1} parent=1 // loop_header
      %s5125 = sphi 0, %s5129
      %p5126 = scmp.ge.s32.totalorder %s5125, 8
      %v5130 = vphi 0.0, %v5990
      %v5131 = vphi 0.0, %v5998
    $region113: #{model4_forward.1} parent=1 // loop_header_branch
      %5128 = sbr.rel (%p5126) target = $region117
    $region114: #{model4_forward.1} parent=1 // loop_body
      %s5132 = smul.u32 %s5125, 16
      %s5133 = scalar_lea.vmem [#allocation5], %s5132
      %v5134 = vld [vmem:[%s5133] sm:$0xff]
      %v5136 = vlaneseq
      %v5137 = vshrl.u32 %v5136, 7
      %v5138 = vsub.s32 0, %v5137
      %v5139 = vrot.slane %v5121, %v5138
      %v5141 = vmul.f32 %v5134, %v5139
      %v5143 = vlaneseq
      %v5144 = vshrl.u32 %v5143, 7
      %v5145 = vsub.s32 0, %v5144
      %v5146 = vrot.slane %v5123, %v5145
      %v5148 = vadd.f32 %v5141, %v5146
      %v5149 = vld [vmem:[%s11] sm:$0xff]
      %v5150 = vld [vmem:[%s11 + $0x8] sm:$0xff]
      %v5151 = vld [vmem:[%s11 + $0x10] sm:$0xff]
      %v5152 = vld [vmem:[%s11 + $0x18] sm:$0xff]
      %v5153 = vld [vmem:[%s11 + $0x20] sm:$0xff]
      %v5154 = vld [vmem:[%s11 + $0x28] sm:$0xff]
      %v5155 = vld [vmem:[%s11 + $0x30] sm:$0xff]
      %v5156 = vld [vmem:[%s11 + $0x38] sm:$0xff]
      %v5157 = vld [vmem:[%s11 + $0x40] sm:$0xff]
      %v5158 = vld [vmem:[%s11 + $0x48] sm:$0xff]
      %v5159 = vld [vmem:[%s11 + $0x50] sm:$0xff]
      %v5160 = vld [vmem:[%s11 + $0x58] sm:$0xff]
      %v5161 = vld [vmem:[%s11 + $0x60] sm:$0xff]
      %v5162 = vld [vmem:[%s11 + $0x68] sm:$0xff]
      %v5163 = vld [vmem:[%s11 + $0x70] sm:$0xff]
      %v5164 = vld [vmem:[%s11 + $0x78] sm:$0xff]
      %s5165 = sadd.s32 %s5132, 1
      %s5166 = scalar_lea.vmem [#allocation5], %s5165
      %v5167 = vld [vmem:[%s5166] sm:$0xff]
      %v5168 = vmul.f32 %v5167, %v5139
      %v5169 = vadd.f32 %v5168, %v5146
      %s5170 = scalar_lea.vmem %s11, 128
      %v5171 = vld [vmem:[%s5170] sm:$0xff]
      %v5172 = vld [vmem:[%s5170 + $0x8] sm:$0xff]
      %v5173 = vld [vmem:[%s5170 + $0x10] sm:$0xff]
      %v5174 = vld [vmem:[%s5170 + $0x18] sm:$0xff]
      %v5175 = vld [vmem:[%s5170 + $0x20] sm:$0xff]
      %v5176 = vld [vmem:[%s5170 + $0x28] sm:$0xff]
      %v5177 = vld [vmem:[%s5170 + $0x30] sm:$0xff]
      %v5178 = vld [vmem:[%s5170 + $0x38] sm:$0xff]
      %v5179 = vld [vmem:[%s5170 + $0x40] sm:$0xff]
      %v5180 = vld [vmem:[%s5170 + $0x48] sm:$0xff]
      %v5181 = vld [vmem:[%s5170 + $0x50] sm:$0xff]
      %v5182 = vld [vmem:[%s5170 + $0x58] sm:$0xff]
      %v5183 = vld [vmem:[%s5170 + $0x60] sm:$0xff]
      %v5184 = vld [vmem:[%s5170 + $0x68] sm:$0xff]
      %v5185 = vld [vmem:[%s5170 + $0x70] sm:$0xff]
      %v5186 = vld [vmem:[%s5170 + $0x78] sm:$0xff]
      %5187 = vmatprep.subr.mxu0 0.0
      %5188 = vmatpush1.msra.mxu0 %v5186
      %5189 = vmatprep.subr.mxu0 0.0
      %5190 = vmatpush1.msra.mxu0 %v5185
      %5191 = vmatprep.subr.mxu0 0.0
      %5192 = vmatpush1.msra.mxu0 %v5184
      %5193 = vmatprep.subr.mxu0 0.0
      %5194 = vmatpush1.msra.mxu0 %v5183
      %5195 = vmatprep.subr.mxu0 0.0
      %5196 = vmatpush1.msra.mxu0 %v5182
      %5197 = vmatprep.subr.mxu0 0.0
      %5198 = vmatpush1.msra.mxu0 %v5181
      %5199 = vmatprep.subr.mxu0 0.0
      %5200 = vmatpush1.msra.mxu0 %v5180
      %5201 = vmatprep.subr.mxu0 0.0
      %5202 = vmatpush1.msra.mxu0 %v5179
      %5203 = vmatprep.subr.mxu0 0.0
      %5204 = vmatpush1.msra.mxu0 %v5178
      %5205 = vmatprep.subr.mxu0 0.0
      %5206 = vmatpush1.msra.mxu0 %v5177
      %5207 = vmatprep.subr.mxu0 0.0
      %5208 = vmatpush1.msra.mxu0 %v5176
      %5209 = vmatprep.subr.mxu0 0.0
      %5210 = vmatpush1.msra.mxu0 %v5175
      %5211 = vmatprep.subr.mxu0 0.0
      %5212 = vmatpush1.msra.mxu0 %v5174
      %5213 = vmatprep.subr.mxu0 0.0
      %5214 = vmatpush1.msra.mxu0 %v5173
      %5215 = vmatprep.subr.mxu0 0.0
      %5216 = vmatpush1.msra.mxu0 %v5172
      %5217 = vmatprep.subr.mxu0 0.0
      %5218 = vmatpush1.msra.mxu0 %v5171
      %5219 = vmatprep.subr.mxu0 0.0
      %5220 = vmatpush2.msra.mxu0 0.0
      %5221 = vmatprep.subr.mxu0 0.0
      %5222 = vmatpush2.msra.mxu0 0.0
      %5223 = vmatprep.subr.mxu0 0.0
      %5224 = vmatpush2.msra.mxu0 0.0
      %5225 = vmatprep.subr.mxu0 0.0
      %5226 = vmatpush2.msra.mxu0 0.0
      %5227 = vmatprep.subr.mxu0 0.0
      %5228 = vmatpush2.msra.mxu0 0.0
      %5229 = vmatprep.subr.mxu0 0.0
      %5230 = vmatpush2.msra.mxu0 0.0
      %5231 = vmatprep.subr.mxu0 0.0
      %5232 = vmatpush2.msra.mxu0 0.0
      %5233 = vmatprep.subr.mxu0 0.0
      %5234 = vmatpush2.msra.mxu0 0.0
      %5235 = vmatprep.subr.mxu0 0.0
      %5236 = vmatpush2.msra.mxu0 0.0
      %5237 = vmatprep.subr.mxu0 0.0
      %5238 = vmatpush2.msra.mxu0 0.0
      %5239 = vmatprep.subr.mxu0 0.0
      %5240 = vmatpush2.msra.mxu0 0.0
      %5241 = vmatprep.subr.mxu0 0.0
      %5242 = vmatpush2.msra.mxu0 0.0
      %5243 = vmatprep.subr.mxu0 0.0
      %5244 = vmatpush2.msra.mxu0 0.0
      %5245 = vmatprep.subr.mxu0 0.0
      %5246 = vmatpush2.msra.mxu0 0.0
      %5247 = vmatprep.subr.mxu0 0.0
      %5248 = vmatpush2.msra.mxu0 0.0
      %5249 = vmatprep.subr.mxu0 0.0
      %5250 = vmatpush2.msra.mxu0 0.0
      %5251 = vmatprep.mubr.f32.mxu0 0.0
      %5252 = vmatmul.mubr.f32.gmra.mxu0 %v5169
      %v5253 = vpop.f32.mrf.mxu0
      %v5254 = vadd.f32 0.0, %v5253
      %v5255 = vpop.f32.mrf.mxu0
      %5256 = vdwg.mxu0
      %5257 = vmatprep.subr.mxu0 0.0
      %5258 = vmatpush1.msra.mxu0 %v5164
      %5259 = vmatprep.subr.mxu0 0.0
      %5260 = vmatpush1.msra.mxu0 %v5163
      %5261 = vmatprep.subr.mxu0 0.0
      %5262 = vmatpush1.msra.mxu0 %v5162
      %5263 = vmatprep.subr.mxu0 0.0
      %5264 = vmatpush1.msra.mxu0 %v5161
      %5265 = vmatprep.subr.mxu0 0.0
      %5266 = vmatpush1.msra.mxu0 %v5160
      %5267 = vmatprep.subr.mxu0 0.0
      %5268 = vmatpush1.msra.mxu0 %v5159
      %5269 = vmatprep.subr.mxu0 0.0
      %5270 = vmatpush1.msra.mxu0 %v5158
      %5271 = vmatprep.subr.mxu0 0.0
      %5272 = vmatpush1.msra.mxu0 %v5157
      %5273 = vmatprep.subr.mxu0 0.0
      %5274 = vmatpush1.msra.mxu0 %v5156
      %5275 = vmatprep.subr.mxu0 0.0
      %5276 = vmatpush1.msra.mxu0 %v5155
      %5277 = vmatprep.subr.mxu0 0.0
      %5278 = vmatpush1.msra.mxu0 %v5154
      %5279 = vmatprep.subr.mxu0 0.0
      %5280 = vmatpush1.msra.mxu0 %v5153
      %5281 = vmatprep.subr.mxu0 0.0
      %5282 = vmatpush1.msra.mxu0 %v5152
      %5283 = vmatprep.subr.mxu0 0.0
      %5284 = vmatpush1.msra.mxu0 %v5151
      %5285 = vmatprep.subr.mxu0 0.0
      %5286 = vmatpush1.msra.mxu0 %v5150
      %5287 = vmatprep.subr.mxu0 0.0
      %5288 = vmatpush1.msra.mxu0 %v5149
      %5289 = vmatprep.subr.mxu0 0.0
      %5290 = vmatpush2.msra.mxu0 0.0
      %5291 = vmatprep.subr.mxu0 0.0
      %5292 = vmatpush2.msra.mxu0 0.0
      %5293 = vmatprep.subr.mxu0 0.0
      %5294 = vmatpush2.msra.mxu0 0.0
      %5295 = vmatprep.subr.mxu0 0.0
      %5296 = vmatpush2.msra.mxu0 0.0
      %5297 = vmatprep.subr.mxu0 0.0
      %5298 = vmatpush2.msra.mxu0 0.0
      %5299 = vmatprep.subr.mxu0 0.0
      %5300 = vmatpush2.msra.mxu0 0.0
      %5301 = vmatprep.subr.mxu0 0.0
      %5302 = vmatpush2.msra.mxu0 0.0
      %5303 = vmatprep.subr.mxu0 0.0
      %5304 = vmatpush2.msra.mxu0 0.0
      %5305 = vmatprep.subr.mxu0 0.0
      %5306 = vmatpush2.msra.mxu0 0.0
      %5307 = vmatprep.subr.mxu0 0.0
      %5308 = vmatpush2.msra.mxu0 0.0
      %5309 = vmatprep.subr.mxu0 0.0
      %5310 = vmatpush2.msra.mxu0 0.0
      %5311 = vmatprep.subr.mxu0 0.0
      %5312 = vmatpush2.msra.mxu0 0.0
      %5313 = vmatprep.subr.mxu0 0.0
      %5314 = vmatpush2.msra.mxu0 0.0
      %5315 = vmatprep.subr.mxu0 0.0
      %5316 = vmatpush2.msra.mxu0 0.0
      %5317 = vmatprep.subr.mxu0 0.0
      %5318 = vmatpush2.msra.mxu0 0.0
      %5319 = vmatprep.subr.mxu0 0.0
      %5320 = vmatpush2.msra.mxu0 0.0
      %5321 = vmatprep.mubr.f32.mxu0 0.0
      %5322 = vmatmul.mubr.f32.gmra.mxu0 %v5148
      %v5323 = vpop.f32.mrf.mxu0
      %v5324 = vadd.f32 %v5254, %v5323
      %v5325 = vpop.f32.mrf.mxu0
      %5326 = vdwg.mxu0
      %s5327 = sadd.s32 %s5132, 2
      %s5328 = scalar_lea.vmem [#allocation5], %s5327
      %v5329 = vld [vmem:[%s5328] sm:$0xff]
      %v5330 = vmul.f32 %v5329, %v5139
      %v5331 = vadd.f32 %v5330, %v5146
      %s5332 = scalar_lea.vmem %s11, 256
      %v5333 = vld [vmem:[%s5332] sm:$0xff]
      %v5334 = vld [vmem:[%s5332 + $0x8] sm:$0xff]
      %v5335 = vld [vmem:[%s5332 + $0x10] sm:$0xff]
      %v5336 = vld [vmem:[%s5332 + $0x18] sm:$0xff]
      %v5337 = vld [vmem:[%s5332 + $0x20] sm:$0xff]
      %v5338 = vld [vmem:[%s5332 + $0x28] sm:$0xff]
      %v5339 = vld [vmem:[%s5332 + $0x30] sm:$0xff]
      %v5340 = vld [vmem:[%s5332 + $0x38] sm:$0xff]
      %v5341 = vld [vmem:[%s5332 + $0x40] sm:$0xff]
      %v5342 = vld [vmem:[%s5332 + $0x48] sm:$0xff]
      %v5343 = vld [vmem:[%s5332 + $0x50] sm:$0xff]
      %v5344 = vld [vmem:[%s5332 + $0x58] sm:$0xff]
      %v5345 = vld [vmem:[%s5332 + $0x60] sm:$0xff]
      %v5346 = vld [vmem:[%s5332 + $0x68] sm:$0xff]
      %v5347 = vld [vmem:[%s5332 + $0x70] sm:$0xff]
      %v5348 = vld [vmem:[%s5332 + $0x78] sm:$0xff]
      %5349 = vmatprep.subr.mxu0 0.0
      %5350 = vmatpush1.msra.mxu0 %v5348
      %5351 = vmatprep.subr.mxu0 0.0
      %5352 = vmatpush1.msra.mxu0 %v5347
      %5353 = vmatprep.subr.mxu0 0.0
      %5354 = vmatpush1.msra.mxu0 %v5346
      %5355 = vmatprep.subr.mxu0 0.0
      %5356 = vmatpush1.msra.mxu0 %v5345
      %5357 = vmatprep.subr.mxu0 0.0
      %5358 = vmatpush1.msra.mxu0 %v5344
      %5359 = vmatprep.subr.mxu0 0.0
      %5360 = vmatpush1.msra.mxu0 %v5343
      %5361 = vmatprep.subr.mxu0 0.0
      %5362 = vmatpush1.msra.mxu0 %v5342
      %5363 = vmatprep.subr.mxu0 0.0
      %5364 = vmatpush1.msra.mxu0 %v5341
      %5365 = vmatprep.subr.mxu0 0.0
      %5366 = vmatpush1.msra.mxu0 %v5340
      %5367 = vmatprep.subr.mxu0 0.0
      %5368 = vmatpush1.msra.mxu0 %v5339
      %5369 = vmatprep.subr.mxu0 0.0
      %5370 = vmatpush1.msra.mxu0 %v5338
      %5371 = vmatprep.subr.mxu0 0.0
      %5372 = vmatpush1.msra.mxu0 %v5337
      %5373 = vmatprep.subr.mxu0 0.0
      %5374 = vmatpush1.msra.mxu0 %v5336
      %5375 = vmatprep.subr.mxu0 0.0
      %5376 = vmatpush1.msra.mxu0 %v5335
      %5377 = vmatprep.subr.mxu0 0.0
      %5378 = vmatpush1.msra.mxu0 %v5334
      %5379 = vmatprep.subr.mxu0 0.0
      %5380 = vmatpush1.msra.mxu0 %v5333
      %5381 = vmatprep.subr.mxu0 0.0
      %5382 = vmatpush2.msra.mxu0 0.0
      %5383 = vmatprep.subr.mxu0 0.0
      %5384 = vmatpush2.msra.mxu0 0.0
      %5385 = vmatprep.subr.mxu0 0.0
      %5386 = vmatpush2.msra.mxu0 0.0
      %5387 = vmatprep.subr.mxu0 0.0
      %5388 = vmatpush2.msra.mxu0 0.0
      %5389 = vmatprep.subr.mxu0 0.0
      %5390 = vmatpush2.msra.mxu0 0.0
      %5391 = vmatprep.subr.mxu0 0.0
      %5392 = vmatpush2.msra.mxu0 0.0
      %5393 = vmatprep.subr.mxu0 0.0
      %5394 = vmatpush2.msra.mxu0 0.0
      %5395 = vmatprep.subr.mxu0 0.0
      %5396 = vmatpush2.msra.mxu0 0.0
      %5397 = vmatprep.subr.mxu0 0.0
      %5398 = vmatpush2.msra.mxu0 0.0
      %5399 = vmatprep.subr.mxu0 0.0
      %5400 = vmatpush2.msra.mxu0 0.0
      %5401 = vmatprep.subr.mxu0 0.0
      %5402 = vmatpush2.msra.mxu0 0.0
      %5403 = vmatprep.subr.mxu0 0.0
      %5404 = vmatpush2.msra.mxu0 0.0
      %5405 = vmatprep.subr.mxu0 0.0
      %5406 = vmatpush2.msra.mxu0 0.0
      %5407 = vmatprep.subr.mxu0 0.0
      %5408 = vmatpush2.msra.mxu0 0.0
      %5409 = vmatprep.subr.mxu0 0.0
      %5410 = vmatpush2.msra.mxu0 0.0
      %5411 = vmatprep.subr.mxu0 0.0
      %5412 = vmatpush2.msra.mxu0 0.0
      %5413 = vmatprep.mubr.f32.mxu0 0.0
      %5414 = vmatmul.mubr.f32.gmra.mxu0 %v5331
      %v5415 = vpop.f32.mrf.mxu0
      %v5416 = vadd.f32 0.0, %v5415
      %v5417 = vpop.f32.mrf.mxu0
      %5418 = vdwg.mxu0
      %v5419 = vadd.f32 %v5324, %v5416
      %s5420 = sadd.s32 %s5125, 1
      %s5421 = smul.u32 %s5420, 16
      %s5422 = scalar_lea.vmem [#allocation5], %s5421
      %v5423 = vld [vmem:[%s5422] sm:$0xff]
      %v5424 = vmul.f32 %v5423, %v5139
      %v5425 = vadd.f32 %v5424, %v5146
      %s5426 = scalar_lea.vmem %s11, 384
      %v5427 = vld [vmem:[%s5426] sm:$0xff]
      %v5428 = vld [vmem:[%s5426 + $0x8] sm:$0xff]
      %v5429 = vld [vmem:[%s5426 + $0x10] sm:$0xff]
      %v5430 = vld [vmem:[%s5426 + $0x18] sm:$0xff]
      %v5431 = vld [vmem:[%s5426 + $0x20] sm:$0xff]
      %v5432 = vld [vmem:[%s5426 + $0x28] sm:$0xff]
      %v5433 = vld [vmem:[%s5426 + $0x30] sm:$0xff]
      %v5434 = vld [vmem:[%s5426 + $0x38] sm:$0xff]
      %v5435 = vld [vmem:[%s5426 + $0x40] sm:$0xff]
      %v5436 = vld [vmem:[%s5426 + $0x48] sm:$0xff]
      %v5437 = vld [vmem:[%s5426 + $0x50] sm:$0xff]
      %v5438 = vld [vmem:[%s5426 + $0x58] sm:$0xff]
      %v5439 = vld [vmem:[%s5426 + $0x60] sm:$0xff]
      %v5440 = vld [vmem:[%s5426 + $0x68] sm:$0xff]
      %v5441 = vld [vmem:[%s5426 + $0x70] sm:$0xff]
      %v5442 = vld [vmem:[%s5426 + $0x78] sm:$0xff]
      %5443 = vmatprep.subr.mxu0 0.0
      %5444 = vmatpush1.msra.mxu0 %v5442
      %5445 = vmatprep.subr.mxu0 0.0
      %5446 = vmatpush1.msra.mxu0 %v5441
      %5447 = vmatprep.subr.mxu0 0.0
      %5448 = vmatpush1.msra.mxu0 %v5440
      %5449 = vmatprep.subr.mxu0 0.0
      %5450 = vmatpush1.msra.mxu0 %v5439
      %5451 = vmatprep.subr.mxu0 0.0
      %5452 = vmatpush1.msra.mxu0 %v5438
      %5453 = vmatprep.subr.mxu0 0.0
      %5454 = vmatpush1.msra.mxu0 %v5437
      %5455 = vmatprep.subr.mxu0 0.0
      %5456 = vmatpush1.msra.mxu0 %v5436
      %5457 = vmatprep.subr.mxu0 0.0
      %5458 = vmatpush1.msra.mxu0 %v5435
      %5459 = vmatprep.subr.mxu0 0.0
      %5460 = vmatpush1.msra.mxu0 %v5434
      %5461 = vmatprep.subr.mxu0 0.0
      %5462 = vmatpush1.msra.mxu0 %v5433
      %5463 = vmatprep.subr.mxu0 0.0
      %5464 = vmatpush1.msra.mxu0 %v5432
      %5465 = vmatprep.subr.mxu0 0.0
      %5466 = vmatpush1.msra.mxu0 %v5431
      %5467 = vmatprep.subr.mxu0 0.0
      %5468 = vmatpush1.msra.mxu0 %v5430
      %5469 = vmatprep.subr.mxu0 0.0
      %5470 = vmatpush1.msra.mxu0 %v5429
      %5471 = vmatprep.subr.mxu0 0.0
      %5472 = vmatpush1.msra.mxu0 %v5428
      %5473 = vmatprep.subr.mxu0 0.0
      %5474 = vmatpush1.msra.mxu0 %v5427
      %5475 = vmatprep.subr.mxu0 0.0
      %5476 = vmatpush2.msra.mxu0 0.0
      %5477 = vmatprep.subr.mxu0 0.0
      %5478 = vmatpush2.msra.mxu0 0.0
      %5479 = vmatprep.subr.mxu0 0.0
      %5480 = vmatpush2.msra.mxu0 0.0
      %5481 = vmatprep.subr.mxu0 0.0
      %5482 = vmatpush2.msra.mxu0 0.0
      %5483 = vmatprep.subr.mxu0 0.0
      %5484 = vmatpush2.msra.mxu0 0.0
      %5485 = vmatprep.subr.mxu0 0.0
      %5486 = vmatpush2.msra.mxu0 0.0
      %5487 = vmatprep.subr.mxu0 0.0
      %5488 = vmatpush2.msra.mxu0 0.0
      %5489 = vmatprep.subr.mxu0 0.0
      %5490 = vmatpush2.msra.mxu0 0.0
      %5491 = vmatprep.subr.mxu0 0.0
      %5492 = vmatpush2.msra.mxu0 0.0
      %5493 = vmatprep.subr.mxu0 0.0
      %5494 = vmatpush2.msra.mxu0 0.0
      %5495 = vmatprep.subr.mxu0 0.0
      %5496 = vmatpush2.msra.mxu0 0.0
      %5497 = vmatprep.subr.mxu0 0.0
      %5498 = vmatpush2.msra.mxu0 0.0
      %5499 = vmatprep.subr.mxu0 0.0
      %5500 = vmatpush2.msra.mxu0 0.0
      %5501 = vmatprep.subr.mxu0 0.0
      %5502 = vmatpush2.msra.mxu0 0.0
      %5503 = vmatprep.subr.mxu0 0.0
      %5504 = vmatpush2.msra.mxu0 0.0
      %5505 = vmatprep.subr.mxu0 0.0
      %5506 = vmatpush2.msra.mxu0 0.0
      %5507 = vmatprep.mubr.f32.mxu0 0.0
      %5508 = vmatmul.mubr.f32.gmra.mxu0 %v5425
      %v5509 = vpop.f32.mrf.mxu0
      %v5510 = vadd.f32 0.0, %v5509
      %v5511 = vpop.f32.mrf.mxu0
      %5512 = vdwg.mxu0
      %v5513 = vadd.f32 %v5419, %v5510
      %s5514 = sadd.s32 %s5421, 1
      %s5515 = scalar_lea.vmem [#allocation5], %s5514
      %v5516 = vld [vmem:[%s5515] sm:$0xff]
      %v5517 = vmul.f32 %v5516, %v5139
      %v5518 = vadd.f32 %v5517, %v5146
      %s5519 = scalar_lea.vmem %s11, 512
      %v5520 = vld [vmem:[%s5519] sm:$0xff]
      %v5521 = vld [vmem:[%s5519 + $0x8] sm:$0xff]
      %v5522 = vld [vmem:[%s5519 + $0x10] sm:$0xff]
      %v5523 = vld [vmem:[%s5519 + $0x18] sm:$0xff]
      %v5524 = vld [vmem:[%s5519 + $0x20] sm:$0xff]
      %v5525 = vld [vmem:[%s5519 + $0x28] sm:$0xff]
      %v5526 = vld [vmem:[%s5519 + $0x30] sm:$0xff]
      %v5527 = vld [vmem:[%s5519 + $0x38] sm:$0xff]
      %v5528 = vld [vmem:[%s5519 + $0x40] sm:$0xff]
      %v5529 = vld [vmem:[%s5519 + $0x48] sm:$0xff]
      %v5530 = vld [vmem:[%s5519 + $0x50] sm:$0xff]
      %v5531 = vld [vmem:[%s5519 + $0x58] sm:$0xff]
      %v5532 = vld [vmem:[%s5519 + $0x60] sm:$0xff]
      %v5533 = vld [vmem:[%s5519 + $0x68] sm:$0xff]
      %v5534 = vld [vmem:[%s5519 + $0x70] sm:$0xff]
      %v5535 = vld [vmem:[%s5519 + $0x78] sm:$0xff]
      %5536 = vmatprep.subr.mxu0 0.0
      %5537 = vmatpush1.msra.mxu0 %v5535
      %5538 = vmatprep.subr.mxu0 0.0
      %5539 = vmatpush1.msra.mxu0 %v5534
      %5540 = vmatprep.subr.mxu0 0.0
      %5541 = vmatpush1.msra.mxu0 %v5533
      %5542 = vmatprep.subr.mxu0 0.0
      %5543 = vmatpush1.msra.mxu0 %v5532
      %5544 = vmatprep.subr.mxu0 0.0
      %5545 = vmatpush1.msra.mxu0 %v5531
      %5546 = vmatprep.subr.mxu0 0.0
      %5547 = vmatpush1.msra.mxu0 %v5530
      %5548 = vmatprep.subr.mxu0 0.0
      %5549 = vmatpush1.msra.mxu0 %v5529
      %5550 = vmatprep.subr.mxu0 0.0
      %5551 = vmatpush1.msra.mxu0 %v5528
      %5552 = vmatprep.subr.mxu0 0.0
      %5553 = vmatpush1.msra.mxu0 %v5527
      %5554 = vmatprep.subr.mxu0 0.0
      %5555 = vmatpush1.msra.mxu0 %v5526
      %5556 = vmatprep.subr.mxu0 0.0
      %5557 = vmatpush1.msra.mxu0 %v5525
      %5558 = vmatprep.subr.mxu0 0.0
      %5559 = vmatpush1.msra.mxu0 %v5524
      %5560 = vmatprep.subr.mxu0 0.0
      %5561 = vmatpush1.msra.mxu0 %v5523
      %5562 = vmatprep.subr.mxu0 0.0
      %5563 = vmatpush1.msra.mxu0 %v5522
      %5564 = vmatprep.subr.mxu0 0.0
      %5565 = vmatpush1.msra.mxu0 %v5521
      %5566 = vmatprep.subr.mxu0 0.0
      %5567 = vmatpush1.msra.mxu0 %v5520
      %5568 = vmatprep.subr.mxu0 0.0
      %5569 = vmatpush2.msra.mxu0 0.0
      %5570 = vmatprep.subr.mxu0 0.0
      %5571 = vmatpush2.msra.mxu0 0.0
      %5572 = vmatprep.subr.mxu0 0.0
      %5573 = vmatpush2.msra.mxu0 0.0
      %5574 = vmatprep.subr.mxu0 0.0
      %5575 = vmatpush2.msra.mxu0 0.0
      %5576 = vmatprep.subr.mxu0 0.0
      %5577 = vmatpush2.msra.mxu0 0.0
      %5578 = vmatprep.subr.mxu0 0.0
      %5579 = vmatpush2.msra.mxu0 0.0
      %5580 = vmatprep.subr.mxu0 0.0
      %5581 = vmatpush2.msra.mxu0 0.0
      %5582 = vmatprep.subr.mxu0 0.0
      %5583 = vmatpush2.msra.mxu0 0.0
      %5584 = vmatprep.subr.mxu0 0.0
      %5585 = vmatpush2.msra.mxu0 0.0
      %5586 = vmatprep.subr.mxu0 0.0
      %5587 = vmatpush2.msra.mxu0 0.0
      %5588 = vmatprep.subr.mxu0 0.0
      %5589 = vmatpush2.msra.mxu0 0.0
      %5590 = vmatprep.subr.mxu0 0.0
      %5591 = vmatpush2.msra.mxu0 0.0
      %5592 = vmatprep.subr.mxu0 0.0
      %5593 = vmatpush2.msra.mxu0 0.0
      %5594 = vmatprep.subr.mxu0 0.0
      %5595 = vmatpush2.msra.mxu0 0.0
      %5596 = vmatprep.subr.mxu0 0.0
      %5597 = vmatpush2.msra.mxu0 0.0
      %5598 = vmatprep.subr.mxu0 0.0
      %5599 = vmatpush2.msra.mxu0 0.0
      %5600 = vmatprep.mubr.f32.mxu0 0.0
      %5601 = vmatmul.mubr.f32.gmra.mxu0 %v5518
      %v5602 = vpop.f32.mrf.mxu0
      %v5603 = vadd.f32 0.0, %v5602
      %v5604 = vpop.f32.mrf.mxu0
      %5605 = vdwg.mxu0
      %v5606 = vadd.f32 %v5513, %v5603
      %s5607 = sadd.s32 %s5421, 2
      %s5608 = scalar_lea.vmem [#allocation5], %s5607
      %v5609 = vld [vmem:[%s5608] sm:$0xff]
      %v5610 = vmul.f32 %v5609, %v5139
      %v5611 = vadd.f32 %v5610, %v5146
      %s5612 = scalar_lea.vmem %s11, 640
      %v5613 = vld [vmem:[%s5612] sm:$0xff]
      %v5614 = vld [vmem:[%s5612 + $0x8] sm:$0xff]
      %v5615 = vld [vmem:[%s5612 + $0x10] sm:$0xff]
      %v5616 = vld [vmem:[%s5612 + $0x18] sm:$0xff]
      %v5617 = vld [vmem:[%s5612 + $0x20] sm:$0xff]
      %v5618 = vld [vmem:[%s5612 + $0x28] sm:$0xff]
      %v5619 = vld [vmem:[%s5612 + $0x30] sm:$0xff]
      %v5620 = vld [vmem:[%s5612 + $0x38] sm:$0xff]
      %v5621 = vld [vmem:[%s5612 + $0x40] sm:$0xff]
      %v5622 = vld [vmem:[%s5612 + $0x48] sm:$0xff]
      %v5623 = vld [vmem:[%s5612 + $0x50] sm:$0xff]
      %v5624 = vld [vmem:[%s5612 + $0x58] sm:$0xff]
      %v5625 = vld [vmem:[%s5612 + $0x60] sm:$0xff]
      %v5626 = vld [vmem:[%s5612 + $0x68] sm:$0xff]
      %v5627 = vld [vmem:[%s5612 + $0x70] sm:$0xff]
      %v5628 = vld [vmem:[%s5612 + $0x78] sm:$0xff]
      %5629 = vmatprep.subr.mxu0 0.0
      %5630 = vmatpush1.msra.mxu0 %v5628
      %5631 = vmatprep.subr.mxu0 0.0
      %5632 = vmatpush1.msra.mxu0 %v5627
      %5633 = vmatprep.subr.mxu0 0.0
      %5634 = vmatpush1.msra.mxu0 %v5626
      %5635 = vmatprep.subr.mxu0 0.0
      %5636 = vmatpush1.msra.mxu0 %v5625
      %5637 = vmatprep.subr.mxu0 0.0
      %5638 = vmatpush1.msra.mxu0 %v5624
      %5639 = vmatprep.subr.mxu0 0.0
      %5640 = vmatpush1.msra.mxu0 %v5623
      %5641 = vmatprep.subr.mxu0 0.0
      %5642 = vmatpush1.msra.mxu0 %v5622
      %5643 = vmatprep.subr.mxu0 0.0
      %5644 = vmatpush1.msra.mxu0 %v5621
      %5645 = vmatprep.subr.mxu0 0.0
      %5646 = vmatpush1.msra.mxu0 %v5620
      %5647 = vmatprep.subr.mxu0 0.0
      %5648 = vmatpush1.msra.mxu0 %v5619
      %5649 = vmatprep.subr.mxu0 0.0
      %5650 = vmatpush1.msra.mxu0 %v5618
      %5651 = vmatprep.subr.mxu0 0.0
      %5652 = vmatpush1.msra.mxu0 %v5617
      %5653 = vmatprep.subr.mxu0 0.0
      %5654 = vmatpush1.msra.mxu0 %v5616
      %5655 = vmatprep.subr.mxu0 0.0
      %5656 = vmatpush1.msra.mxu0 %v5615
      %5657 = vmatprep.subr.mxu0 0.0
      %5658 = vmatpush1.msra.mxu0 %v5614
      %5659 = vmatprep.subr.mxu0 0.0
      %5660 = vmatpush1.msra.mxu0 %v5613
      %5661 = vmatprep.subr.mxu0 0.0
      %5662 = vmatpush2.msra.mxu0 0.0
      %5663 = vmatprep.subr.mxu0 0.0
      %5664 = vmatpush2.msra.mxu0 0.0
      %5665 = vmatprep.subr.mxu0 0.0
      %5666 = vmatpush2.msra.mxu0 0.0
      %5667 = vmatprep.subr.mxu0 0.0
      %5668 = vmatpush2.msra.mxu0 0.0
      %5669 = vmatprep.subr.mxu0 0.0
      %5670 = vmatpush2.msra.mxu0 0.0
      %5671 = vmatprep.subr.mxu0 0.0
      %5672 = vmatpush2.msra.mxu0 0.0
      %5673 = vmatprep.subr.mxu0 0.0
      %5674 = vmatpush2.msra.mxu0 0.0
      %5675 = vmatprep.subr.mxu0 0.0
      %5676 = vmatpush2.msra.mxu0 0.0
      %5677 = vmatprep.subr.mxu0 0.0
      %5678 = vmatpush2.msra.mxu0 0.0
      %5679 = vmatprep.subr.mxu0 0.0
      %5680 = vmatpush2.msra.mxu0 0.0
      %5681 = vmatprep.subr.mxu0 0.0
      %5682 = vmatpush2.msra.mxu0 0.0
      %5683 = vmatprep.subr.mxu0 0.0
      %5684 = vmatpush2.msra.mxu0 0.0
      %5685 = vmatprep.subr.mxu0 0.0
      %5686 = vmatpush2.msra.mxu0 0.0
      %5687 = vmatprep.subr.mxu0 0.0
      %5688 = vmatpush2.msra.mxu0 0.0
      %5689 = vmatprep.subr.mxu0 0.0
      %5690 = vmatpush2.msra.mxu0 0.0
      %5691 = vmatprep.subr.mxu0 0.0
      %5692 = vmatpush2.msra.mxu0 0.0
      %5693 = vmatprep.mubr.f32.mxu0 0.0
      %5694 = vmatmul.mubr.f32.gmra.mxu0 %v5611
      %v5695 = vpop.f32.mrf.mxu0
      %v5696 = vadd.f32 0.0, %v5695
      %v5697 = vpop.f32.mrf.mxu0
      %5698 = vdwg.mxu0
      %v5699 = vadd.f32 %v5606, %v5696
      %s5700 = sadd.s32 %s5125, 2
      %s5701 = smul.u32 %s5700, 16
      %s5702 = scalar_lea.vmem [#allocation5], %s5701
      %v5703 = vld [vmem:[%s5702] sm:$0xff]
      %v5704 = vmul.f32 %v5703, %v5139
      %v5705 = vadd.f32 %v5704, %v5146
      %s5706 = scalar_lea.vmem %s11, 768
      %v5707 = vld [vmem:[%s5706] sm:$0xff]
      %v5708 = vld [vmem:[%s5706 + $0x8] sm:$0xff]
      %v5709 = vld [vmem:[%s5706 + $0x10] sm:$0xff]
      %v5710 = vld [vmem:[%s5706 + $0x18] sm:$0xff]
      %v5711 = vld [vmem:[%s5706 + $0x20] sm:$0xff]
      %v5712 = vld [vmem:[%s5706 + $0x28] sm:$0xff]
      %v5713 = vld [vmem:[%s5706 + $0x30] sm:$0xff]
      %v5714 = vld [vmem:[%s5706 + $0x38] sm:$0xff]
      %v5715 = vld [vmem:[%s5706 + $0x40] sm:$0xff]
      %v5716 = vld [vmem:[%s5706 + $0x48] sm:$0xff]
      %v5717 = vld [vmem:[%s5706 + $0x50] sm:$0xff]
      %v5718 = vld [vmem:[%s5706 + $0x58] sm:$0xff]
      %v5719 = vld [vmem:[%s5706 + $0x60] sm:$0xff]
      %v5720 = vld [vmem:[%s5706 + $0x68] sm:$0xff]
      %v5721 = vld [vmem:[%s5706 + $0x70] sm:$0xff]
      %v5722 = vld [vmem:[%s5706 + $0x78] sm:$0xff]
      %5723 = vmatprep.subr.mxu0 0.0
      %5724 = vmatpush1.msra.mxu0 %v5722
      %5725 = vmatprep.subr.mxu0 0.0
      %5726 = vmatpush1.msra.mxu0 %v5721
      %5727 = vmatprep.subr.mxu0 0.0
      %5728 = vmatpush1.msra.mxu0 %v5720
      %5729 = vmatprep.subr.mxu0 0.0
      %5730 = vmatpush1.msra.mxu0 %v5719
      %5731 = vmatprep.subr.mxu0 0.0
      %5732 = vmatpush1.msra.mxu0 %v5718
      %5733 = vmatprep.subr.mxu0 0.0
      %5734 = vmatpush1.msra.mxu0 %v5717
      %5735 = vmatprep.subr.mxu0 0.0
      %5736 = vmatpush1.msra.mxu0 %v5716
      %5737 = vmatprep.subr.mxu0 0.0
      %5738 = vmatpush1.msra.mxu0 %v5715
      %5739 = vmatprep.subr.mxu0 0.0
      %5740 = vmatpush1.msra.mxu0 %v5714
      %5741 = vmatprep.subr.mxu0 0.0
      %5742 = vmatpush1.msra.mxu0 %v5713
      %5743 = vmatprep.subr.mxu0 0.0
      %5744 = vmatpush1.msra.mxu0 %v5712
      %5745 = vmatprep.subr.mxu0 0.0
      %5746 = vmatpush1.msra.mxu0 %v5711
      %5747 = vmatprep.subr.mxu0 0.0
      %5748 = vmatpush1.msra.mxu0 %v5710
      %5749 = vmatprep.subr.mxu0 0.0
      %5750 = vmatpush1.msra.mxu0 %v5709
      %5751 = vmatprep.subr.mxu0 0.0
      %5752 = vmatpush1.msra.mxu0 %v5708
      %5753 = vmatprep.subr.mxu0 0.0
      %5754 = vmatpush1.msra.mxu0 %v5707
      %5755 = vmatprep.subr.mxu0 0.0
      %5756 = vmatpush2.msra.mxu0 0.0
      %5757 = vmatprep.subr.mxu0 0.0
      %5758 = vmatpush2.msra.mxu0 0.0
      %5759 = vmatprep.subr.mxu0 0.0
      %5760 = vmatpush2.msra.mxu0 0.0
      %5761 = vmatprep.subr.mxu0 0.0
      %5762 = vmatpush2.msra.mxu0 0.0
      %5763 = vmatprep.subr.mxu0 0.0
      %5764 = vmatpush2.msra.mxu0 0.0
      %5765 = vmatprep.subr.mxu0 0.0
      %5766 = vmatpush2.msra.mxu0 0.0
      %5767 = vmatprep.subr.mxu0 0.0
      %5768 = vmatpush2.msra.mxu0 0.0
      %5769 = vmatprep.subr.mxu0 0.0
      %5770 = vmatpush2.msra.mxu0 0.0
      %5771 = vmatprep.subr.mxu0 0.0
      %5772 = vmatpush2.msra.mxu0 0.0
      %5773 = vmatprep.subr.mxu0 0.0
      %5774 = vmatpush2.msra.mxu0 0.0
      %5775 = vmatprep.subr.mxu0 0.0
      %5776 = vmatpush2.msra.mxu0 0.0
      %5777 = vmatprep.subr.mxu0 0.0
      %5778 = vmatpush2.msra.mxu0 0.0
      %5779 = vmatprep.subr.mxu0 0.0
      %5780 = vmatpush2.msra.mxu0 0.0
      %5781 = vmatprep.subr.mxu0 0.0
      %5782 = vmatpush2.msra.mxu0 0.0
      %5783 = vmatprep.subr.mxu0 0.0
      %5784 = vmatpush2.msra.mxu0 0.0
      %5785 = vmatprep.subr.mxu0 0.0
      %5786 = vmatpush2.msra.mxu0 0.0
      %5787 = vmatprep.mubr.f32.mxu0 0.0
      %5788 = vmatmul.mubr.f32.gmra.mxu0 %v5705
      %v5789 = vpop.f32.mrf.mxu0
      %v5790 = vadd.f32 0.0, %v5789
      %v5791 = vpop.f32.mrf.mxu0
      %5792 = vdwg.mxu0
      %v5793 = vadd.f32 %v5699, %v5790
      %s5794 = sadd.s32 %s5701, 1
      %s5795 = scalar_lea.vmem [#allocation5], %s5794
      %v5796 = vld [vmem:[%s5795] sm:$0xff]
      %v5797 = vmul.f32 %v5796, %v5139
      %v5798 = vadd.f32 %v5797, %v5146
      %s5799 = scalar_lea.vmem %s11, 896
      %v5800 = vld [vmem:[%s5799] sm:$0xff]
      %v5801 = vld [vmem:[%s5799 + $0x8] sm:$0xff]
      %v5802 = vld [vmem:[%s5799 + $0x10] sm:$0xff]
      %v5803 = vld [vmem:[%s5799 + $0x18] sm:$0xff]
      %v5804 = vld [vmem:[%s5799 + $0x20] sm:$0xff]
      %v5805 = vld [vmem:[%s5799 + $0x28] sm:$0xff]
      %v5806 = vld [vmem:[%s5799 + $0x30] sm:$0xff]
      %v5807 = vld [vmem:[%s5799 + $0x38] sm:$0xff]
      %v5808 = vld [vmem:[%s5799 + $0x40] sm:$0xff]
      %v5809 = vld [vmem:[%s5799 + $0x48] sm:$0xff]
      %v5810 = vld [vmem:[%s5799 + $0x50] sm:$0xff]
      %v5811 = vld [vmem:[%s5799 + $0x58] sm:$0xff]
      %v5812 = vld [vmem:[%s5799 + $0x60] sm:$0xff]
      %v5813 = vld [vmem:[%s5799 + $0x68] sm:$0xff]
      %v5814 = vld [vmem:[%s5799 + $0x70] sm:$0xff]
      %v5815 = vld [vmem:[%s5799 + $0x78] sm:$0xff]
      %5816 = vmatprep.subr.mxu0 0.0
      %5817 = vmatpush1.msra.mxu0 %v5815
      %5818 = vmatprep.subr.mxu0 0.0
      %5819 = vmatpush1.msra.mxu0 %v5814
      %5820 = vmatprep.subr.mxu0 0.0
      %5821 = vmatpush1.msra.mxu0 %v5813
      %5822 = vmatprep.subr.mxu0 0.0
      %5823 = vmatpush1.msra.mxu0 %v5812
      %5824 = vmatprep.subr.mxu0 0.0
      %5825 = vmatpush1.msra.mxu0 %v5811
      %5826 = vmatprep.subr.mxu0 0.0
      %5827 = vmatpush1.msra.mxu0 %v5810
      %5828 = vmatprep.subr.mxu0 0.0
      %5829 = vmatpush1.msra.mxu0 %v5809
      %5830 = vmatprep.subr.mxu0 0.0
      %5831 = vmatpush1.msra.mxu0 %v5808
      %5832 = vmatprep.subr.mxu0 0.0
      %5833 = vmatpush1.msra.mxu0 %v5807
      %5834 = vmatprep.subr.mxu0 0.0
      %5835 = vmatpush1.msra.mxu0 %v5806
      %5836 = vmatprep.subr.mxu0 0.0
      %5837 = vmatpush1.msra.mxu0 %v5805
      %5838 = vmatprep.subr.mxu0 0.0
      %5839 = vmatpush1.msra.mxu0 %v5804
      %5840 = vmatprep.subr.mxu0 0.0
      %5841 = vmatpush1.msra.mxu0 %v5803
      %5842 = vmatprep.subr.mxu0 0.0
      %5843 = vmatpush1.msra.mxu0 %v5802
      %5844 = vmatprep.subr.mxu0 0.0
      %5845 = vmatpush1.msra.mxu0 %v5801
      %5846 = vmatprep.subr.mxu0 0.0
      %5847 = vmatpush1.msra.mxu0 %v5800
      %5848 = vmatprep.subr.mxu0 0.0
      %5849 = vmatpush2.msra.mxu0 0.0
      %5850 = vmatprep.subr.mxu0 0.0
      %5851 = vmatpush2.msra.mxu0 0.0
      %5852 = vmatprep.subr.mxu0 0.0
      %5853 = vmatpush2.msra.mxu0 0.0
      %5854 = vmatprep.subr.mxu0 0.0
      %5855 = vmatpush2.msra.mxu0 0.0
      %5856 = vmatprep.subr.mxu0 0.0
      %5857 = vmatpush2.msra.mxu0 0.0
      %5858 = vmatprep.subr.mxu0 0.0
      %5859 = vmatpush2.msra.mxu0 0.0
      %5860 = vmatprep.subr.mxu0 0.0
      %5861 = vmatpush2.msra.mxu0 0.0
      %5862 = vmatprep.subr.mxu0 0.0
      %5863 = vmatpush2.msra.mxu0 0.0
      %5864 = vmatprep.subr.mxu0 0.0
      %5865 = vmatpush2.msra.mxu0 0.0
      %5866 = vmatprep.subr.mxu0 0.0
      %5867 = vmatpush2.msra.mxu0 0.0
      %5868 = vmatprep.subr.mxu0 0.0
      %5869 = vmatpush2.msra.mxu0 0.0
      %5870 = vmatprep.subr.mxu0 0.0
      %5871 = vmatpush2.msra.mxu0 0.0
      %5872 = vmatprep.subr.mxu0 0.0
      %5873 = vmatpush2.msra.mxu0 0.0
      %5874 = vmatprep.subr.mxu0 0.0
      %5875 = vmatpush2.msra.mxu0 0.0
      %5876 = vmatprep.subr.mxu0 0.0
      %5877 = vmatpush2.msra.mxu0 0.0
      %5878 = vmatprep.subr.mxu0 0.0
      %5879 = vmatpush2.msra.mxu0 0.0
      %5880 = vmatprep.mubr.f32.mxu0 0.0
      %5881 = vmatmul.mubr.f32.gmra.mxu0 %v5798
      %v5882 = vpop.f32.mrf.mxu0
      %v5883 = vadd.f32 0.0, %v5882
      %v5884 = vpop.f32.mrf.mxu0
      %5885 = vdwg.mxu0
      %v5886 = vadd.f32 %v5793, %v5883
      %s5887 = sadd.s32 %s5701, 2
      %s5888 = scalar_lea.vmem [#allocation5], %s5887
      %v5889 = vld [vmem:[%s5888] sm:$0xff]
      %v5890 = vmul.f32 %v5889, %v5139
      %v5891 = vadd.f32 %v5890, %v5146
      %s5892 = scalar_lea.vmem %s11, 1024
      %v5893 = vld [vmem:[%s5892] sm:$0xff]
      %v5894 = vld [vmem:[%s5892 + $0x8] sm:$0xff]
      %v5895 = vld [vmem:[%s5892 + $0x10] sm:$0xff]
      %v5896 = vld [vmem:[%s5892 + $0x18] sm:$0xff]
      %v5897 = vld [vmem:[%s5892 + $0x20] sm:$0xff]
      %v5898 = vld [vmem:[%s5892 + $0x28] sm:$0xff]
      %v5899 = vld [vmem:[%s5892 + $0x30] sm:$0xff]
      %v5900 = vld [vmem:[%s5892 + $0x38] sm:$0xff]
      %v5901 = vld [vmem:[%s5892 + $0x40] sm:$0xff]
      %v5902 = vld [vmem:[%s5892 + $0x48] sm:$0xff]
      %v5903 = vld [vmem:[%s5892 + $0x50] sm:$0xff]
      %v5904 = vld [vmem:[%s5892 + $0x58] sm:$0xff]
      %v5905 = vld [vmem:[%s5892 + $0x60] sm:$0xff]
      %v5906 = vld [vmem:[%s5892 + $0x68] sm:$0xff]
      %v5907 = vld [vmem:[%s5892 + $0x70] sm:$0xff]
      %v5908 = vld [vmem:[%s5892 + $0x78] sm:$0xff]
      %5909 = vmatprep.subr.mxu0 0.0
      %5910 = vmatpush1.msra.mxu0 %v5908
      %5911 = vmatprep.subr.mxu0 0.0
      %5912 = vmatpush1.msra.mxu0 %v5907
      %5913 = vmatprep.subr.mxu0 0.0
      %5914 = vmatpush1.msra.mxu0 %v5906
      %5915 = vmatprep.subr.mxu0 0.0
      %5916 = vmatpush1.msra.mxu0 %v5905
      %5917 = vmatprep.subr.mxu0 0.0
      %5918 = vmatpush1.msra.mxu0 %v5904
      %5919 = vmatprep.subr.mxu0 0.0
      %5920 = vmatpush1.msra.mxu0 %v5903
      %5921 = vmatprep.subr.mxu0 0.0
      %5922 = vmatpush1.msra.mxu0 %v5902
      %5923 = vmatprep.subr.mxu0 0.0
      %5924 = vmatpush1.msra.mxu0 %v5901
      %5925 = vmatprep.subr.mxu0 0.0
      %5926 = vmatpush1.msra.mxu0 %v5900
      %5927 = vmatprep.subr.mxu0 0.0
      %5928 = vmatpush1.msra.mxu0 %v5899
      %5929 = vmatprep.subr.mxu0 0.0
      %5930 = vmatpush1.msra.mxu0 %v5898
      %5931 = vmatprep.subr.mxu0 0.0
      %5932 = vmatpush1.msra.mxu0 %v5897
      %5933 = vmatprep.subr.mxu0 0.0
      %5934 = vmatpush1.msra.mxu0 %v5896
      %5935 = vmatprep.subr.mxu0 0.0
      %5936 = vmatpush1.msra.mxu0 %v5895
      %5937 = vmatprep.subr.mxu0 0.0
      %5938 = vmatpush1.msra.mxu0 %v5894
      %5939 = vmatprep.subr.mxu0 0.0
      %5940 = vmatpush1.msra.mxu0 %v5893
      %5941 = vmatprep.subr.mxu0 0.0
      %5942 = vmatpush2.msra.mxu0 0.0
      %5943 = vmatprep.subr.mxu0 0.0
      %5944 = vmatpush2.msra.mxu0 0.0
      %5945 = vmatprep.subr.mxu0 0.0
      %5946 = vmatpush2.msra.mxu0 0.0
      %5947 = vmatprep.subr.mxu0 0.0
      %5948 = vmatpush2.msra.mxu0 0.0
      %5949 = vmatprep.subr.mxu0 0.0
      %5950 = vmatpush2.msra.mxu0 0.0
      %5951 = vmatprep.subr.mxu0 0.0
      %5952 = vmatpush2.msra.mxu0 0.0
      %5953 = vmatprep.subr.mxu0 0.0
      %5954 = vmatpush2.msra.mxu0 0.0
      %5955 = vmatprep.subr.mxu0 0.0
      %5956 = vmatpush2.msra.mxu0 0.0
      %5957 = vmatprep.subr.mxu0 0.0
      %5958 = vmatpush2.msra.mxu0 0.0
      %5959 = vmatprep.subr.mxu0 0.0
      %5960 = vmatpush2.msra.mxu0 0.0
      %5961 = vmatprep.subr.mxu0 0.0
      %5962 = vmatpush2.msra.mxu0 0.0
      %5963 = vmatprep.subr.mxu0 0.0
      %5964 = vmatpush2.msra.mxu0 0.0
      %5965 = vmatprep.subr.mxu0 0.0
      %5966 = vmatpush2.msra.mxu0 0.0
      %5967 = vmatprep.subr.mxu0 0.0
      %5968 = vmatpush2.msra.mxu0 0.0
      %5969 = vmatprep.subr.mxu0 0.0
      %5970 = vmatpush2.msra.mxu0 0.0
      %5971 = vmatprep.subr.mxu0 0.0
      %5972 = vmatpush2.msra.mxu0 0.0
      %5973 = vmatprep.mubr.f32.mxu0 0.0
      %5974 = vmatmul.mubr.f32.gmra.mxu0 %v5891
      %v5975 = vpop.f32.mrf.mxu0
      %v5976 = vadd.f32 0.0, %v5975
      %v5977 = vpop.f32.mrf.mxu0
      %5978 = vdwg.mxu0
      %v5979 = vadd.f32 %v5886, %v5976
      %v5980 = vmax.f32 %v5979, 0.0
      %s5981 = smul.u32 %s5125, 8
      %s5982 = scalar_lea.vmem [#allocation6], %s5981
      %5983 = vst [vmem:[%s5982] sm:$0xff] %v5980
      %v5984 = vrot.slane %v5980, 4
      %v5985 = vadd.f32 %v5980, %v5984
      %v5986 = vrot.slane %v5985, 2
      %v5987 = vadd.f32 %v5985, %v5986
      %v5988 = vrot.slane %v5987, 1
      %v5989 = vadd.f32 %v5987, %v5988
      %v5990 = vadd.f32 %v5130, %v5989
      %v5991 = vmul.f32 %v5980, %v5980
      %v5992 = vrot.slane %v5991, 4
      %v5993 = vadd.f32 %v5991, %v5992
      %v5994 = vrot.slane %v5993, 2
      %v5995 = vadd.f32 %v5993, %v5994
      %v5996 = vrot.slane %v5995, 1
      %v5997 = vadd.f32 %v5995, %v5996
      %v5998 = vadd.f32 %v5131, %v5997
    $region115: #{model4_forward.1} parent=1 // loop_footer
      %s5129 = sadd.s32 1, %s5125
    $region116: #{model4_forward.1} parent=1 // loop_footer_branch
      %5124 = sbr.rel target = $region112
    $region117: #{model4_forward.1} parent=1 // loop_exit
      _
    %v5999 = vadd.f32 %v5130, 0.0
    %v6000 = vadd.f32 %v5131, 0.0
    loop: start=0, step=1, limit=8
    $region118: #{model4_forward.1} parent=1 // loop_pre_header
      _
    $region119: #{model4_forward.1} parent=1 // loop_header
      %s6002 = sphi 0, %s6006
      %p6003 = scmp.ge.s32.totalorder %s6002, 8
      %v6007 = vphi 0.0, %v6871
      %v6008 = vphi 0.0, %v6879
    $region120: #{model4_forward.1} parent=1 // loop_header_branch
      %6005 = sbr.rel (%p6003) target = $region124
    $region121: #{model4_forward.1} parent=1 // loop_body
      %s6009 = smul.u32 %s6002, 16
      %s6010 = sadd.s32 %s6009, 160
      %s6011 = scalar_lea.vmem [#allocation5], %s6010
      %v6012 = vld [vmem:[%s6011] sm:$0xff]
      %v6014 = vlaneseq
      %v6015 = vshrl.u32 %v6014, 7
      %v6016 = vsub.s32 0, %v6015
      %v6017 = vrot.slane %v5121, %v6016
      %v6019 = vmul.f32 %v6012, %v6017
      %v6021 = vlaneseq
      %v6022 = vshrl.u32 %v6021, 7
      %v6023 = vsub.s32 0, %v6022
      %v6024 = vrot.slane %v5123, %v6023
      %v6026 = vadd.f32 %v6019, %v6024
      %v6027 = vld [vmem:[%s11] sm:$0xff]
      %v6028 = vld [vmem:[%s11 + $0x8] sm:$0xff]
      %v6029 = vld [vmem:[%s11 + $0x10] sm:$0xff]
      %v6030 = vld [vmem:[%s11 + $0x18] sm:$0xff]
      %v6031 = vld [vmem:[%s11 + $0x20] sm:$0xff]
      %v6032 = vld [vmem:[%s11 + $0x28] sm:$0xff]
      %v6033 = vld [vmem:[%s11 + $0x30] sm:$0xff]
      %v6034 = vld [vmem:[%s11 + $0x38] sm:$0xff]
      %v6035 = vld [vmem:[%s11 + $0x40] sm:$0xff]
      %v6036 = vld [vmem:[%s11 + $0x48] sm:$0xff]
      %v6037 = vld [vmem:[%s11 + $0x50] sm:$0xff]
      %v6038 = vld [vmem:[%s11 + $0x58] sm:$0xff]
      %v6039 = vld [vmem:[%s11 + $0x60] sm:$0xff]
      %v6040 = vld [vmem:[%s11 + $0x68] sm:$0xff]
      %v6041 = vld [vmem:[%s11 + $0x70] sm:$0xff]
      %v6042 = vld [vmem:[%s11 + $0x78] sm:$0xff]
      %s6043 = sadd.s32 %s6009, 161
      %s6044 = scalar_lea.vmem [#allocation5], %s6043
      %v6045 = vld [vmem:[%s6044] sm:$0xff]
      %v6046 = vmul.f32 %v6045, %v6017
      %v6047 = vadd.f32 %v6046, %v6024
      %s6048 = scalar_lea.vmem %s11, 128
      %v6049 = vld [vmem:[%s6048] sm:$0xff]
      %v6050 = vld [vmem:[%s6048 + $0x8] sm:$0xff]
      %v6051 = vld [vmem:[%s6048 + $0x10] sm:$0xff]
      %v6052 = vld [vmem:[%s6048 + $0x18] sm:$0xff]
      %v6053 = vld [vmem:[%s6048 + $0x20] sm:$0xff]
      %v6054 = vld [vmem:[%s6048 + $0x28] sm:$0xff]
      %v6055 = vld [vmem:[%s6048 + $0x30] sm:$0xff]
      %v6056 = vld [vmem:[%s6048 + $0x38] sm:$0xff]
      %v6057 = vld [vmem:[%s6048 + $0x40] sm:$0xff]
      %v6058 = vld [vmem:[%s6048 + $0x48] sm:$0xff]
      %v6059 = vld [vmem:[%s6048 + $0x50] sm:$0xff]
      %v6060 = vld [vmem:[%s6048 + $0x58] sm:$0xff]
      %v6061 = vld [vmem:[%s6048 + $0x60] sm:$0xff]
      %v6062 = vld [vmem:[%s6048 + $0x68] sm:$0xff]
      %v6063 = vld [vmem:[%s6048 + $0x70] sm:$0xff]
      %v6064 = vld [vmem:[%s6048 + $0x78] sm:$0xff]
      %6065 = vmatprep.subr.mxu0 0.0
      %6066 = vmatpush1.msra.mxu0 %v6064
      %6067 = vmatprep.subr.mxu0 0.0
      %6068 = vmatpush1.msra.mxu0 %v6063
      %6069 = vmatprep.subr.mxu0 0.0
      %6070 = vmatpush1.msra.mxu0 %v6062
      %6071 = vmatprep.subr.mxu0 0.0
      %6072 = vmatpush1.msra.mxu0 %v6061
      %6073 = vmatprep.subr.mxu0 0.0
      %6074 = vmatpush1.msra.mxu0 %v6060
      %6075 = vmatprep.subr.mxu0 0.0
      %6076 = vmatpush1.msra.mxu0 %v6059
      %6077 = vmatprep.subr.mxu0 0.0
      %6078 = vmatpush1.msra.mxu0 %v6058
      %6079 = vmatprep.subr.mxu0 0.0
      %6080 = vmatpush1.msra.mxu0 %v6057
      %6081 = vmatprep.subr.mxu0 0.0
      %6082 = vmatpush1.msra.mxu0 %v6056
      %6083 = vmatprep.subr.mxu0 0.0
      %6084 = vmatpush1.msra.mxu0 %v6055
      %6085 = vmatprep.subr.mxu0 0.0
      %6086 = vmatpush1.msra.mxu0 %v6054
      %6087 = vmatprep.subr.mxu0 0.0
      %6088 = vmatpush1.msra.mxu0 %v6053
      %6089 = vmatprep.subr.mxu0 0.0
      %6090 = vmatpush1.msra.mxu0 %v6052
      %6091 = vmatprep.subr.mxu0 0.0
      %6092 = vmatpush1.msra.mxu0 %v6051
      %6093 = vmatprep.subr.mxu0 0.0
      %6094 = vmatpush1.msra.mxu0 %v6050
      %6095 = vmatprep.subr.mxu0 0.0
      %6096 = vmatpush1.msra.mxu0 %v6049
      %6097 = vmatprep.subr.mxu0 0.0
      %6098 = vmatpush2.msra.mxu0 0.0
      %6099 = vmatprep.subr.mxu0 0.0
      %6100 = vmatpush2.msra.mxu0 0.0
      %6101 = vmatprep.subr.mxu0 0.0
      %6102 = vmatpush2.msra.mxu0 0.0
      %6103 = vmatprep.subr.mxu0 0.0
      %6104 = vmatpush2.msra.mxu0 0.0
      %6105 = vmatprep.subr.mxu0 0.0
      %6106 = vmatpush2.msra.mxu0 0.0
      %6107 = vmatprep.subr.mxu0 0.0
      %6108 = vmatpush2.msra.mxu0 0.0
      %6109 = vmatprep.subr.mxu0 0.0
      %6110 = vmatpush2.msra.mxu0 0.0
      %6111 = vmatprep.subr.mxu0 0.0
      %6112 = vmatpush2.msra.mxu0 0.0
      %6113 = vmatprep.subr.mxu0 0.0
      %6114 = vmatpush2.msra.mxu0 0.0
      %6115 = vmatprep.subr.mxu0 0.0
      %6116 = vmatpush2.msra.mxu0 0.0
      %6117 = vmatprep.subr.mxu0 0.0
      %6118 = vmatpush2.msra.mxu0 0.0
      %6119 = vmatprep.subr.mxu0 0.0
      %6120 = vmatpush2.msra.mxu0 0.0
      %6121 = vmatprep.subr.mxu0 0.0
      %6122 = vmatpush2.msra.mxu0 0.0
      %6123 = vmatprep.subr.mxu0 0.0
      %6124 = vmatpush2.msra.mxu0 0.0
      %6125 = vmatprep.subr.mxu0 0.0
      %6126 = vmatpush2.msra.mxu0 0.0
      %6127 = vmatprep.subr.mxu0 0.0
      %6128 = vmatpush2.msra.mxu0 0.0
      %6129 = vmatprep.mubr.f32.mxu0 0.0
      %6130 = vmatmul.mubr.f32.gmra.mxu0 %v6047
      %v6131 = vpop.f32.mrf.mxu0
      %v6132 = vadd.f32 0.0, %v6131
      %v6133 = vpop.f32.mrf.mxu0
      %6134 = vdwg.mxu0
      %6135 = vmatprep.subr.mxu0 0.0
      %6136 = vmatpush1.msra.mxu0 %v6042
      %6137 = vmatprep.subr.mxu0 0.0
      %6138 = vmatpush1.msra.mxu0 %v6041
      %6139 = vmatprep.subr.mxu0 0.0
      %6140 = vmatpush1.msra.mxu0 %v6040
      %6141 = vmatprep.subr.mxu0 0.0
      %6142 = vmatpush1.msra.mxu0 %v6039
      %6143 = vmatprep.subr.mxu0 0.0
      %6144 = vmatpush1.msra.mxu0 %v6038
      %6145 = vmatprep.subr.mxu0 0.0
      %6146 = vmatpush1.msra.mxu0 %v6037
      %6147 = vmatprep.subr.mxu0 0.0
      %6148 = vmatpush1.msra.mxu0 %v6036
      %6149 = vmatprep.subr.mxu0 0.0
      %6150 = vmatpush1.msra.mxu0 %v6035
      %6151 = vmatprep.subr.mxu0 0.0
      %6152 = vmatpush1.msra.mxu0 %v6034
      %6153 = vmatprep.subr.mxu0 0.0
      %6154 = vmatpush1.msra.mxu0 %v6033
      %6155 = vmatprep.subr.mxu0 0.0
      %6156 = vmatpush1.msra.mxu0 %v6032
      %6157 = vmatprep.subr.mxu0 0.0
      %6158 = vmatpush1.msra.mxu0 %v6031
      %6159 = vmatprep.subr.mxu0 0.0
      %6160 = vmatpush1.msra.mxu0 %v6030
      %6161 = vmatprep.subr.mxu0 0.0
      %6162 = vmatpush1.msra.mxu0 %v6029
      %6163 = vmatprep.subr.mxu0 0.0
      %6164 = vmatpush1.msra.mxu0 %v6028
      %6165 = vmatprep.subr.mxu0 0.0
      %6166 = vmatpush1.msra.mxu0 %v6027
      %6167 = vmatprep.subr.mxu0 0.0
      %6168 = vmatpush2.msra.mxu0 0.0
      %6169 = vmatprep.subr.mxu0 0.0
      %6170 = vmatpush2.msra.mxu0 0.0
      %6171 = vmatprep.subr.mxu0 0.0
      %6172 = vmatpush2.msra.mxu0 0.0
      %6173 = vmatprep.subr.mxu0 0.0
      %6174 = vmatpush2.msra.mxu0 0.0
      %6175 = vmatprep.subr.mxu0 0.0
      %6176 = vmatpush2.msra.mxu0 0.0
      %6177 = vmatprep.subr.mxu0 0.0
      %6178 = vmatpush2.msra.mxu0 0.0
      %6179 = vmatprep.subr.mxu0 0.0
      %6180 = vmatpush2.msra.mxu0 0.0
      %6181 = vmatprep.subr.mxu0 0.0
      %6182 = vmatpush2.msra.mxu0 0.0
      %6183 = vmatprep.subr.mxu0 0.0
      %6184 = vmatpush2.msra.mxu0 0.0
      %6185 = vmatprep.subr.mxu0 0.0
      %6186 = vmatpush2.msra.mxu0 0.0
      %6187 = vmatprep.subr.mxu0 0.0
      %6188 = vmatpush2.msra.mxu0 0.0
      %6189 = vmatprep.subr.mxu0 0.0
      %6190 = vmatpush2.msra.mxu0 0.0
      %6191 = vmatprep.subr.mxu0 0.0
      %6192 = vmatpush2.msra.mxu0 0.0
      %6193 = vmatprep.subr.mxu0 0.0
      %6194 = vmatpush2.msra.mxu0 0.0
      %6195 = vmatprep.subr.mxu0 0.0
      %6196 = vmatpush2.msra.mxu0 0.0
      %6197 = vmatprep.subr.mxu0 0.0
      %6198 = vmatpush2.msra.mxu0 0.0
      %6199 = vmatprep.mubr.f32.mxu0 0.0
      %6200 = vmatmul.mubr.f32.gmra.mxu0 %v6026
      %v6201 = vpop.f32.mrf.mxu0
      %v6202 = vadd.f32 %v6132, %v6201
      %v6203 = vpop.f32.mrf.mxu0
      %6204 = vdwg.mxu0
      %s6205 = sadd.s32 %s6009, 162
      %s6206 = scalar_lea.vmem [#allocation5], %s6205
      %v6207 = vld [vmem:[%s6206] sm:$0xff]
      %v6208 = vmul.f32 %v6207, %v6017
      %v6209 = vadd.f32 %v6208, %v6024
      %s6210 = scalar_lea.vmem %s11, 256
      %v6211 = vld [vmem:[%s6210] sm:$0xff]
      %v6212 = vld [vmem:[%s6210 + $0x8] sm:$0xff]
      %v6213 = vld [vmem:[%s6210 + $0x10] sm:$0xff]
      %v6214 = vld [vmem:[%s6210 + $0x18] sm:$0xff]
      %v6215 = vld [vmem:[%s6210 + $0x20] sm:$0xff]
      %v6216 = vld [vmem:[%s6210 + $0x28] sm:$0xff]
      %v6217 = vld [vmem:[%s6210 + $0x30] sm:$0xff]
      %v6218 = vld [vmem:[%s6210 + $0x38] sm:$0xff]
      %v6219 = vld [vmem:[%s6210 + $0x40] sm:$0xff]
      %v6220 = vld [vmem:[%s6210 + $0x48] sm:$0xff]
      %v6221 = vld [vmem:[%s6210 + $0x50] sm:$0xff]
      %v6222 = vld [vmem:[%s6210 + $0x58] sm:$0xff]
      %v6223 = vld [vmem:[%s6210 + $0x60] sm:$0xff]
      %v6224 = vld [vmem:[%s6210 + $0x68] sm:$0xff]
      %v6225 = vld [vmem:[%s6210 + $0x70] sm:$0xff]
      %v6226 = vld [vmem:[%s6210 + $0x78] sm:$0xff]
      %6227 = vmatprep.subr.mxu0 0.0
      %6228 = vmatpush1.msra.mxu0 %v6226
      %6229 = vmatprep.subr.mxu0 0.0
      %6230 = vmatpush1.msra.mxu0 %v6225
      %6231 = vmatprep.subr.mxu0 0.0
      %6232 = vmatpush1.msra.mxu0 %v6224
      %6233 = vmatprep.subr.mxu0 0.0
      %6234 = vmatpush1.msra.mxu0 %v6223
      %6235 = vmatprep.subr.mxu0 0.0
      %6236 = vmatpush1.msra.mxu0 %v6222
      %6237 = vmatprep.subr.mxu0 0.0
      %6238 = vmatpush1.msra.mxu0 %v6221
      %6239 = vmatprep.subr.mxu0 0.0
      %6240 = vmatpush1.msra.mxu0 %v6220
      %6241 = vmatprep.subr.mxu0 0.0
      %6242 = vmatpush1.msra.mxu0 %v6219
      %6243 = vmatprep.subr.mxu0 0.0
      %6244 = vmatpush1.msra.mxu0 %v6218
      %6245 = vmatprep.subr.mxu0 0.0
      %6246 = vmatpush1.msra.mxu0 %v6217
      %6247 = vmatprep.subr.mxu0 0.0
      %6248 = vmatpush1.msra.mxu0 %v6216
      %6249 = vmatprep.subr.mxu0 0.0
      %6250 = vmatpush1.msra.mxu0 %v6215
      %6251 = vmatprep.subr.mxu0 0.0
      %6252 = vmatpush1.msra.mxu0 %v6214
      %6253 = vmatprep.subr.mxu0 0.0
      %6254 = vmatpush1.msra.mxu0 %v6213
      %6255 = vmatprep.subr.mxu0 0.0
      %6256 = vmatpush1.msra.mxu0 %v6212
      %6257 = vmatprep.subr.mxu0 0.0
      %6258 = vmatpush1.msra.mxu0 %v6211
      %6259 = vmatprep.subr.mxu0 0.0
      %6260 = vmatpush2.msra.mxu0 0.0
      %6261 = vmatprep.subr.mxu0 0.0
      %6262 = vmatpush2.msra.mxu0 0.0
      %6263 = vmatprep.subr.mxu0 0.0
      %6264 = vmatpush2.msra.mxu0 0.0
      %6265 = vmatprep.subr.mxu0 0.0
      %6266 = vmatpush2.msra.mxu0 0.0
      %6267 = vmatprep.subr.mxu0 0.0
      %6268 = vmatpush2.msra.mxu0 0.0
      %6269 = vmatprep.subr.mxu0 0.0
      %6270 = vmatpush2.msra.mxu0 0.0
      %6271 = vmatprep.subr.mxu0 0.0
      %6272 = vmatpush2.msra.mxu0 0.0
      %6273 = vmatprep.subr.mxu0 0.0
      %6274 = vmatpush2.msra.mxu0 0.0
      %6275 = vmatprep.subr.mxu0 0.0
      %6276 = vmatpush2.msra.mxu0 0.0
      %6277 = vmatprep.subr.mxu0 0.0
      %6278 = vmatpush2.msra.mxu0 0.0
      %6279 = vmatprep.subr.mxu0 0.0
      %6280 = vmatpush2.msra.mxu0 0.0
      %6281 = vmatprep.subr.mxu0 0.0
      %6282 = vmatpush2.msra.mxu0 0.0
      %6283 = vmatprep.subr.mxu0 0.0
      %6284 = vmatpush2.msra.mxu0 0.0
      %6285 = vmatprep.subr.mxu0 0.0
      %6286 = vmatpush2.msra.mxu0 0.0
      %6287 = vmatprep.subr.mxu0 0.0
      %6288 = vmatpush2.msra.mxu0 0.0
      %6289 = vmatprep.subr.mxu0 0.0
      %6290 = vmatpush2.msra.mxu0 0.0
      %6291 = vmatprep.mubr.f32.mxu0 0.0
      %6292 = vmatmul.mubr.f32.gmra.mxu0 %v6209
      %v6293 = vpop.f32.mrf.mxu0
      %v6294 = vadd.f32 0.0, %v6293
      %v6295 = vpop.f32.mrf.mxu0
      %6296 = vdwg.mxu0
      %v6297 = vadd.f32 %v6202, %v6294
      %s6298 = sadd.s32 %s6002, 1
      %s6299 = smul.u32 %s6298, 16
      %s6300 = sadd.s32 %s6299, 160
      %s6301 = scalar_lea.vmem [#allocation5], %s6300
      %v6302 = vld [vmem:[%s6301] sm:$0xff]
      %v6303 = vmul.f32 %v6302, %v6017
      %v6304 = vadd.f32 %v6303, %v6024
      %s6305 = scalar_lea.vmem %s11, 384
      %v6306 = vld [vmem:[%s6305] sm:$0xff]
      %v6307 = vld [vmem:[%s6305 + $0x8] sm:$0xff]
      %v6308 = vld [vmem:[%s6305 + $0x10] sm:$0xff]
      %v6309 = vld [vmem:[%s6305 + $0x18] sm:$0xff]
      %v6310 = vld [vmem:[%s6305 + $0x20] sm:$0xff]
      %v6311 = vld [vmem:[%s6305 + $0x28] sm:$0xff]
      %v6312 = vld [vmem:[%s6305 + $0x30] sm:$0xff]
      %v6313 = vld [vmem:[%s6305 + $0x38] sm:$0xff]
      %v6314 = vld [vmem:[%s6305 + $0x40] sm:$0xff]
      %v6315 = vld [vmem:[%s6305 + $0x48] sm:$0xff]
      %v6316 = vld [vmem:[%s6305 + $0x50] sm:$0xff]
      %v6317 = vld [vmem:[%s6305 + $0x58] sm:$0xff]
      %v6318 = vld [vmem:[%s6305 + $0x60] sm:$0xff]
      %v6319 = vld [vmem:[%s6305 + $0x68] sm:$0xff]
      %v6320 = vld [vmem:[%s6305 + $0x70] sm:$0xff]
      %v6321 = vld [vmem:[%s6305 + $0x78] sm:$0xff]
      %6322 = vmatprep.subr.mxu0 0.0
      %6323 = vmatpush1.msra.mxu0 %v6321
      %6324 = vmatprep.subr.mxu0 0.0
      %6325 = vmatpush1.msra.mxu0 %v6320
      %6326 = vmatprep.subr.mxu0 0.0
      %6327 = vmatpush1.msra.mxu0 %v6319
      %6328 = vmatprep.subr.mxu0 0.0
      %6329 = vmatpush1.msra.mxu0 %v6318
      %6330 = vmatprep.subr.mxu0 0.0
      %6331 = vmatpush1.msra.mxu0 %v6317
      %6332 = vmatprep.subr.mxu0 0.0
      %6333 = vmatpush1.msra.mxu0 %v6316
      %6334 = vmatprep.subr.mxu0 0.0
      %6335 = vmatpush1.msra.mxu0 %v6315
      %6336 = vmatprep.subr.mxu0 0.0
      %6337 = vmatpush1.msra.mxu0 %v6314
      %6338 = vmatprep.subr.mxu0 0.0
      %6339 = vmatpush1.msra.mxu0 %v6313
      %6340 = vmatprep.subr.mxu0 0.0
      %6341 = vmatpush1.msra.mxu0 %v6312
      %6342 = vmatprep.subr.mxu0 0.0
      %6343 = vmatpush1.msra.mxu0 %v6311
      %6344 = vmatprep.subr.mxu0 0.0
      %6345 = vmatpush1.msra.mxu0 %v6310
      %6346 = vmatprep.subr.mxu0 0.0
      %6347 = vmatpush1.msra.mxu0 %v6309
      %6348 = vmatprep.subr.mxu0 0.0
      %6349 = vmatpush1.msra.mxu0 %v6308
      %6350 = vmatprep.subr.mxu0 0.0
      %6351 = vmatpush1.msra.mxu0 %v6307
      %6352 = vmatprep.subr.mxu0 0.0
      %6353 = vmatpush1.msra.mxu0 %v6306
      %6354 = vmatprep.subr.mxu0 0.0
      %6355 = vmatpush2.msra.mxu0 0.0
      %6356 = vmatprep.subr.mxu0 0.0
      %6357 = vmatpush2.msra.mxu0 0.0
      %6358 = vmatprep.subr.mxu0 0.0
      %6359 = vmatpush2.msra.mxu0 0.0
      %6360 = vmatprep.subr.mxu0 0.0
      %6361 = vmatpush2.msra.mxu0 0.0
      %6362 = vmatprep.subr.mxu0 0.0
      %6363 = vmatpush2.msra.mxu0 0.0
      %6364 = vmatprep.subr.mxu0 0.0
      %6365 = vmatpush2.msra.mxu0 0.0
      %6366 = vmatprep.subr.mxu0 0.0
      %6367 = vmatpush2.msra.mxu0 0.0
      %6368 = vmatprep.subr.mxu0 0.0
      %6369 = vmatpush2.msra.mxu0 0.0
      %6370 = vmatprep.subr.mxu0 0.0
      %6371 = vmatpush2.msra.mxu0 0.0
      %6372 = vmatprep.subr.mxu0 0.0
      %6373 = vmatpush2.msra.mxu0 0.0
      %6374 = vmatprep.subr.mxu0 0.0
      %6375 = vmatpush2.msra.mxu0 0.0
      %6376 = vmatprep.subr.mxu0 0.0
      %6377 = vmatpush2.msra.mxu0 0.0
      %6378 = vmatprep.subr.mxu0 0.0
      %6379 = vmatpush2.msra.mxu0 0.0
      %6380 = vmatprep.subr.mxu0 0.0
      %6381 = vmatpush2.msra.mxu0 0.0
      %6382 = vmatprep.subr.mxu0 0.0
      %6383 = vmatpush2.msra.mxu0 0.0
      %6384 = vmatprep.subr.mxu0 0.0
      %6385 = vmatpush2.msra.mxu0 0.0
      %6386 = vmatprep.mubr.f32.mxu0 0.0
      %6387 = vmatmul.mubr.f32.gmra.mxu0 %v6304
      %v6388 = vpop.f32.mrf.mxu0
      %v6389 = vadd.f32 0.0, %v6388
      %v6390 = vpop.f32.mrf.mxu0
      %6391 = vdwg.mxu0
      %v6392 = vadd.f32 %v6297, %v6389
      %s6393 = sadd.s32 %s6299, 161
      %s6394 = scalar_lea.vmem [#allocation5], %s6393
      %v6395 = vld [vmem:[%s6394] sm:$0xff]
      %v6396 = vmul.f32 %v6395, %v6017
      %v6397 = vadd.f32 %v6396, %v6024
      %s6398 = scalar_lea.vmem %s11, 512
      %v6399 = vld [vmem:[%s6398] sm:$0xff]
      %v6400 = vld [vmem:[%s6398 + $0x8] sm:$0xff]
      %v6401 = vld [vmem:[%s6398 + $0x10] sm:$0xff]
      %v6402 = vld [vmem:[%s6398 + $0x18] sm:$0xff]
      %v6403 = vld [vmem:[%s6398 + $0x20] sm:$0xff]
      %v6404 = vld [vmem:[%s6398 + $0x28] sm:$0xff]
      %v6405 = vld [vmem:[%s6398 + $0x30] sm:$0xff]
      %v6406 = vld [vmem:[%s6398 + $0x38] sm:$0xff]
      %v6407 = vld [vmem:[%s6398 + $0x40] sm:$0xff]
      %v6408 = vld [vmem:[%s6398 + $0x48] sm:$0xff]
      %v6409 = vld [vmem:[%s6398 + $0x50] sm:$0xff]
      %v6410 = vld [vmem:[%s6398 + $0x58] sm:$0xff]
      %v6411 = vld [vmem:[%s6398 + $0x60] sm:$0xff]
      %v6412 = vld [vmem:[%s6398 + $0x68] sm:$0xff]
      %v6413 = vld [vmem:[%s6398 + $0x70] sm:$0xff]
      %v6414 = vld [vmem:[%s6398 + $0x78] sm:$0xff]
      %6415 = vmatprep.subr.mxu0 0.0
      %6416 = vmatpush1.msra.mxu0 %v6414
      %6417 = vmatprep.subr.mxu0 0.0
      %6418 = vmatpush1.msra.mxu0 %v6413
      %6419 = vmatprep.subr.mxu0 0.0
      %6420 = vmatpush1.msra.mxu0 %v6412
      %6421 = vmatprep.subr.mxu0 0.0
      %6422 = vmatpush1.msra.mxu0 %v6411
      %6423 = vmatprep.subr.mxu0 0.0
      %6424 = vmatpush1.msra.mxu0 %v6410
      %6425 = vmatprep.subr.mxu0 0.0
      %6426 = vmatpush1.msra.mxu0 %v6409
      %6427 = vmatprep.subr.mxu0 0.0
      %6428 = vmatpush1.msra.mxu0 %v6408
      %6429 = vmatprep.subr.mxu0 0.0
      %6430 = vmatpush1.msra.mxu0 %v6407
      %6431 = vmatprep.subr.mxu0 0.0
      %6432 = vmatpush1.msra.mxu0 %v6406
      %6433 = vmatprep.subr.mxu0 0.0
      %6434 = vmatpush1.msra.mxu0 %v6405
      %6435 = vmatprep.subr.mxu0 0.0
      %6436 = vmatpush1.msra.mxu0 %v6404
      %6437 = vmatprep.subr.mxu0 0.0
      %6438 = vmatpush1.msra.mxu0 %v6403
      %6439 = vmatprep.subr.mxu0 0.0
      %6440 = vmatpush1.msra.mxu0 %v6402
      %6441 = vmatprep.subr.mxu0 0.0
      %6442 = vmatpush1.msra.mxu0 %v6401
      %6443 = vmatprep.subr.mxu0 0.0
      %6444 = vmatpush1.msra.mxu0 %v6400
      %6445 = vmatprep.subr.mxu0 0.0
      %6446 = vmatpush1.msra.mxu0 %v6399
      %6447 = vmatprep.subr.mxu0 0.0
      %6448 = vmatpush2.msra.mxu0 0.0
      %6449 = vmatprep.subr.mxu0 0.0
      %6450 = vmatpush2.msra.mxu0 0.0
      %6451 = vmatprep.subr.mxu0 0.0
      %6452 = vmatpush2.msra.mxu0 0.0
      %6453 = vmatprep.subr.mxu0 0.0
      %6454 = vmatpush2.msra.mxu0 0.0
      %6455 = vmatprep.subr.mxu0 0.0
      %6456 = vmatpush2.msra.mxu0 0.0
      %6457 = vmatprep.subr.mxu0 0.0
      %6458 = vmatpush2.msra.mxu0 0.0
      %6459 = vmatprep.subr.mxu0 0.0
      %6460 = vmatpush2.msra.mxu0 0.0
      %6461 = vmatprep.subr.mxu0 0.0
      %6462 = vmatpush2.msra.mxu0 0.0
      %6463 = vmatprep.subr.mxu0 0.0
      %6464 = vmatpush2.msra.mxu0 0.0
      %6465 = vmatprep.subr.mxu0 0.0
      %6466 = vmatpush2.msra.mxu0 0.0
      %6467 = vmatprep.subr.mxu0 0.0
      %6468 = vmatpush2.msra.mxu0 0.0
      %6469 = vmatprep.subr.mxu0 0.0
      %6470 = vmatpush2.msra.mxu0 0.0
      %6471 = vmatprep.subr.mxu0 0.0
      %6472 = vmatpush2.msra.mxu0 0.0
      %6473 = vmatprep.subr.mxu0 0.0
      %6474 = vmatpush2.msra.mxu0 0.0
      %6475 = vmatprep.subr.mxu0 0.0
      %6476 = vmatpush2.msra.mxu0 0.0
      %6477 = vmatprep.subr.mxu0 0.0
      %6478 = vmatpush2.msra.mxu0 0.0
      %6479 = vmatprep.mubr.f32.mxu0 0.0
      %6480 = vmatmul.mubr.f32.gmra.mxu0 %v6397
      %v6481 = vpop.f32.mrf.mxu0
      %v6482 = vadd.f32 0.0, %v6481
      %v6483 = vpop.f32.mrf.mxu0
      %6484 = vdwg.mxu0
      %v6485 = vadd.f32 %v6392, %v6482
      %s6486 = sadd.s32 %s6299, 162
      %s6487 = scalar_lea.vmem [#allocation5], %s6486
      %v6488 = vld [vmem:[%s6487] sm:$0xff]
      %v6489 = vmul.f32 %v6488, %v6017
      %v6490 = vadd.f32 %v6489, %v6024
      %s6491 = scalar_lea.vmem %s11, 640
      %v6492 = vld [vmem:[%s6491] sm:$0xff]
      %v6493 = vld [vmem:[%s6491 + $0x8] sm:$0xff]
      %v6494 = vld [vmem:[%s6491 + $0x10] sm:$0xff]
      %v6495 = vld [vmem:[%s6491 + $0x18] sm:$0xff]
      %v6496 = vld [vmem:[%s6491 + $0x20] sm:$0xff]
      %v6497 = vld [vmem:[%s6491 + $0x28] sm:$0xff]
      %v6498 = vld [vmem:[%s6491 + $0x30] sm:$0xff]
      %v6499 = vld [vmem:[%s6491 + $0x38] sm:$0xff]
      %v6500 = vld [vmem:[%s6491 + $0x40] sm:$0xff]
      %v6501 = vld [vmem:[%s6491 + $0x48] sm:$0xff]
      %v6502 = vld [vmem:[%s6491 + $0x50] sm:$0xff]
      %v6503 = vld [vmem:[%s6491 + $0x58] sm:$0xff]
      %v6504 = vld [vmem:[%s6491 + $0x60] sm:$0xff]
      %v6505 = vld [vmem:[%s6491 + $0x68] sm:$0xff]
      %v6506 = vld [vmem:[%s6491 + $0x70] sm:$0xff]
      %v6507 = vld [vmem:[%s6491 + $0x78] sm:$0xff]
      %6508 = vmatprep.subr.mxu0 0.0
      %6509 = vmatpush1.msra.mxu0 %v6507
      %6510 = vmatprep.subr.mxu0 0.0
      %6511 = vmatpush1.msra.mxu0 %v6506
      %6512 = vmatprep.subr.mxu0 0.0
      %6513 = vmatpush1.msra.mxu0 %v6505
      %6514 = vmatprep.subr.mxu0 0.0
      %6515 = vmatpush1.msra.mxu0 %v6504
      %6516 = vmatprep.subr.mxu0 0.0
      %6517 = vmatpush1.msra.mxu0 %v6503
      %6518 = vmatprep.subr.mxu0 0.0
      %6519 = vmatpush1.msra.mxu0 %v6502
      %6520 = vmatprep.subr.mxu0 0.0
      %6521 = vmatpush1.msra.mxu0 %v6501
      %6522 = vmatprep.subr.mxu0 0.0
      %6523 = vmatpush1.msra.mxu0 %v6500
      %6524 = vmatprep.subr.mxu0 0.0
      %6525 = vmatpush1.msra.mxu0 %v6499
      %6526 = vmatprep.subr.mxu0 0.0
      %6527 = vmatpush1.msra.mxu0 %v6498
      %6528 = vmatprep.subr.mxu0 0.0
      %6529 = vmatpush1.msra.mxu0 %v6497
      %6530 = vmatprep.subr.mxu0 0.0
      %6531 = vmatpush1.msra.mxu0 %v6496
      %6532 = vmatprep.subr.mxu0 0.0
      %6533 = vmatpush1.msra.mxu0 %v6495
      %6534 = vmatprep.subr.mxu0 0.0
      %6535 = vmatpush1.msra.mxu0 %v6494
      %6536 = vmatprep.subr.mxu0 0.0
      %6537 = vmatpush1.msra.mxu0 %v6493
      %6538 = vmatprep.subr.mxu0 0.0
      %6539 = vmatpush1.msra.mxu0 %v6492
      %6540 = vmatprep.subr.mxu0 0.0
      %6541 = vmatpush2.msra.mxu0 0.0
      %6542 = vmatprep.subr.mxu0 0.0
      %6543 = vmatpush2.msra.mxu0 0.0
      %6544 = vmatprep.subr.mxu0 0.0
      %6545 = vmatpush2.msra.mxu0 0.0
      %6546 = vmatprep.subr.mxu0 0.0
      %6547 = vmatpush2.msra.mxu0 0.0
      %6548 = vmatprep.subr.mxu0 0.0
      %6549 = vmatpush2.msra.mxu0 0.0
      %6550 = vmatprep.subr.mxu0 0.0
      %6551 = vmatpush2.msra.mxu0 0.0
      %6552 = vmatprep.subr.mxu0 0.0
      %6553 = vmatpush2.msra.mxu0 0.0
      %6554 = vmatprep.subr.mxu0 0.0
      %6555 = vmatpush2.msra.mxu0 0.0
      %6556 = vmatprep.subr.mxu0 0.0
      %6557 = vmatpush2.msra.mxu0 0.0
      %6558 = vmatprep.subr.mxu0 0.0
      %6559 = vmatpush2.msra.mxu0 0.0
      %6560 = vmatprep.subr.mxu0 0.0
      %6561 = vmatpush2.msra.mxu0 0.0
      %6562 = vmatprep.subr.mxu0 0.0
      %6563 = vmatpush2.msra.mxu0 0.0
      %6564 = vmatprep.subr.mxu0 0.0
      %6565 = vmatpush2.msra.mxu0 0.0
      %6566 = vmatprep.subr.mxu0 0.0
      %6567 = vmatpush2.msra.mxu0 0.0
      %6568 = vmatprep.subr.mxu0 0.0
      %6569 = vmatpush2.msra.mxu0 0.0
      %6570 = vmatprep.subr.mxu0 0.0
      %6571 = vmatpush2.msra.mxu0 0.0
      %6572 = vmatprep.mubr.f32.mxu0 0.0
      %6573 = vmatmul.mubr.f32.gmra.mxu0 %v6490
      %v6574 = vpop.f32.mrf.mxu0
      %v6575 = vadd.f32 0.0, %v6574
      %v6576 = vpop.f32.mrf.mxu0
      %6577 = vdwg.mxu0
      %v6578 = vadd.f32 %v6485, %v6575
      %s6579 = sadd.s32 %s6002, 2
      %s6580 = smul.u32 %s6579, 16
      %s6581 = sadd.s32 %s6580, 160
      %s6582 = scalar_lea.vmem [#allocation5], %s6581
      %v6583 = vld [vmem:[%s6582] sm:$0xff]
      %v6584 = vmul.f32 %v6583, %v6017
      %v6585 = vadd.f32 %v6584, %v6024
      %s6586 = scalar_lea.vmem %s11, 768
      %v6587 = vld [vmem:[%s6586] sm:$0xff]
      %v6588 = vld [vmem:[%s6586 + $0x8] sm:$0xff]
      %v6589 = vld [vmem:[%s6586 + $0x10] sm:$0xff]
      %v6590 = vld [vmem:[%s6586 + $0x18] sm:$0xff]
      %v6591 = vld [vmem:[%s6586 + $0x20] sm:$0xff]
      %v6592 = vld [vmem:[%s6586 + $0x28] sm:$0xff]
      %v6593 = vld [vmem:[%s6586 + $0x30] sm:$0xff]
      %v6594 = vld [vmem:[%s6586 + $0x38] sm:$0xff]
      %v6595 = vld [vmem:[%s6586 + $0x40] sm:$0xff]
      %v6596 = vld [vmem:[%s6586 + $0x48] sm:$0xff]
      %v6597 = vld [vmem:[%s6586 + $0x50] sm:$0xff]
      %v6598 = vld [vmem:[%s6586 + $0x58] sm:$0xff]
      %v6599 = vld [vmem:[%s6586 + $0x60] sm:$0xff]
      %v6600 = vld [vmem:[%s6586 + $0x68] sm:$0xff]
      %v6601 = vld [vmem:[%s6586 + $0x70] sm:$0xff]
      %v6602 = vld [vmem:[%s6586 + $0x78] sm:$0xff]
      %6603 = vmatprep.subr.mxu0 0.0
      %6604 = vmatpush1.msra.mxu0 %v6602
      %6605 = vmatprep.subr.mxu0 0.0
      %6606 = vmatpush1.msra.mxu0 %v6601
      %6607 = vmatprep.subr.mxu0 0.0
      %6608 = vmatpush1.msra.mxu0 %v6600
      %6609 = vmatprep.subr.mxu0 0.0
      %6610 = vmatpush1.msra.mxu0 %v6599
      %6611 = vmatprep.subr.mxu0 0.0
      %6612 = vmatpush1.msra.mxu0 %v6598
      %6613 = vmatprep.subr.mxu0 0.0
      %6614 = vmatpush1.msra.mxu0 %v6597
      %6615 = vmatprep.subr.mxu0 0.0
      %6616 = vmatpush1.msra.mxu0 %v6596
      %6617 = vmatprep.subr.mxu0 0.0
      %6618 = vmatpush1.msra.mxu0 %v6595
      %6619 = vmatprep.subr.mxu0 0.0
      %6620 = vmatpush1.msra.mxu0 %v6594
      %6621 = vmatprep.subr.mxu0 0.0
      %6622 = vmatpush1.msra.mxu0 %v6593
      %6623 = vmatprep.subr.mxu0 0.0
      %6624 = vmatpush1.msra.mxu0 %v6592
      %6625 = vmatprep.subr.mxu0 0.0
      %6626 = vmatpush1.msra.mxu0 %v6591
      %6627 = vmatprep.subr.mxu0 0.0
      %6628 = vmatpush1.msra.mxu0 %v6590
      %6629 = vmatprep.subr.mxu0 0.0
      %6630 = vmatpush1.msra.mxu0 %v6589
      %6631 = vmatprep.subr.mxu0 0.0
      %6632 = vmatpush1.msra.mxu0 %v6588
      %6633 = vmatprep.subr.mxu0 0.0
      %6634 = vmatpush1.msra.mxu0 %v6587
      %6635 = vmatprep.subr.mxu0 0.0
      %6636 = vmatpush2.msra.mxu0 0.0
      %6637 = vmatprep.subr.mxu0 0.0
      %6638 = vmatpush2.msra.mxu0 0.0
      %6639 = vmatprep.subr.mxu0 0.0
      %6640 = vmatpush2.msra.mxu0 0.0
      %6641 = vmatprep.subr.mxu0 0.0
      %6642 = vmatpush2.msra.mxu0 0.0
      %6643 = vmatprep.subr.mxu0 0.0
      %6644 = vmatpush2.msra.mxu0 0.0
      %6645 = vmatprep.subr.mxu0 0.0
      %6646 = vmatpush2.msra.mxu0 0.0
      %6647 = vmatprep.subr.mxu0 0.0
      %6648 = vmatpush2.msra.mxu0 0.0
      %6649 = vmatprep.subr.mxu0 0.0
      %6650 = vmatpush2.msra.mxu0 0.0
      %6651 = vmatprep.subr.mxu0 0.0
      %6652 = vmatpush2.msra.mxu0 0.0
      %6653 = vmatprep.subr.mxu0 0.0
      %6654 = vmatpush2.msra.mxu0 0.0
      %6655 = vmatprep.subr.mxu0 0.0
      %6656 = vmatpush2.msra.mxu0 0.0
      %6657 = vmatprep.subr.mxu0 0.0
      %6658 = vmatpush2.msra.mxu0 0.0
      %6659 = vmatprep.subr.mxu0 0.0
      %6660 = vmatpush2.msra.mxu0 0.0
      %6661 = vmatprep.subr.mxu0 0.0
      %6662 = vmatpush2.msra.mxu0 0.0
      %6663 = vmatprep.subr.mxu0 0.0
      %6664 = vmatpush2.msra.mxu0 0.0
      %6665 = vmatprep.subr.mxu0 0.0
      %6666 = vmatpush2.msra.mxu0 0.0
      %6667 = vmatprep.mubr.f32.mxu0 0.0
      %6668 = vmatmul.mubr.f32.gmra.mxu0 %v6585
      %v6669 = vpop.f32.mrf.mxu0
      %v6670 = vadd.f32 0.0, %v6669
      %v6671 = vpop.f32.mrf.mxu0
      %6672 = vdwg.mxu0
      %v6673 = vadd.f32 %v6578, %v6670
      %s6674 = sadd.s32 %s6580, 161
      %s6675 = scalar_lea.vmem [#allocation5], %s6674
      %v6676 = vld [vmem:[%s6675] sm:$0xff]
      %v6677 = vmul.f32 %v6676, %v6017
      %v6678 = vadd.f32 %v6677, %v6024
      %s6679 = scalar_lea.vmem %s11, 896
      %v6680 = vld [vmem:[%s6679] sm:$0xff]
      %v6681 = vld [vmem:[%s6679 + $0x8] sm:$0xff]
      %v6682 = vld [vmem:[%s6679 + $0x10] sm:$0xff]
      %v6683 = vld [vmem:[%s6679 + $0x18] sm:$0xff]
      %v6684 = vld [vmem:[%s6679 + $0x20] sm:$0xff]
      %v6685 = vld [vmem:[%s6679 + $0x28] sm:$0xff]
      %v6686 = vld [vmem:[%s6679 + $0x30] sm:$0xff]
      %v6687 = vld [vmem:[%s6679 + $0x38] sm:$0xff]
      %v6688 = vld [vmem:[%s6679 + $0x40] sm:$0xff]
      %v6689 = vld [vmem:[%s6679 + $0x48] sm:$0xff]
      %v6690 = vld [vmem:[%s6679 + $0x50] sm:$0xff]
      %v6691 = vld [vmem:[%s6679 + $0x58] sm:$0xff]
      %v6692 = vld [vmem:[%s6679 + $0x60] sm:$0xff]
      %v6693 = vld [vmem:[%s6679 + $0x68] sm:$0xff]
      %v6694 = vld [vmem:[%s6679 + $0x70] sm:$0xff]
      %v6695 = vld [vmem:[%s6679 + $0x78] sm:$0xff]
      %6696 = vmatprep.subr.mxu0 0.0
      %6697 = vmatpush1.msra.mxu0 %v6695
      %6698 = vmatprep.subr.mxu0 0.0
      %6699 = vmatpush1.msra.mxu0 %v6694
      %6700 = vmatprep.subr.mxu0 0.0
      %6701 = vmatpush1.msra.mxu0 %v6693
      %6702 = vmatprep.subr.mxu0 0.0
      %6703 = vmatpush1.msra.mxu0 %v6692
      %6704 = vmatprep.subr.mxu0 0.0
      %6705 = vmatpush1.msra.mxu0 %v6691
      %6706 = vmatprep.subr.mxu0 0.0
      %6707 = vmatpush1.msra.mxu0 %v6690
      %6708 = vmatprep.subr.mxu0 0.0
      %6709 = vmatpush1.msra.mxu0 %v6689
      %6710 = vmatprep.subr.mxu0 0.0
      %6711 = vmatpush1.msra.mxu0 %v6688
      %6712 = vmatprep.subr.mxu0 0.0
      %6713 = vmatpush1.msra.mxu0 %v6687
      %6714 = vmatprep.subr.mxu0 0.0
      %6715 = vmatpush1.msra.mxu0 %v6686
      %6716 = vmatprep.subr.mxu0 0.0
      %6717 = vmatpush1.msra.mxu0 %v6685
      %6718 = vmatprep.subr.mxu0 0.0
      %6719 = vmatpush1.msra.mxu0 %v6684
      %6720 = vmatprep.subr.mxu0 0.0
      %6721 = vmatpush1.msra.mxu0 %v6683
      %6722 = vmatprep.subr.mxu0 0.0
      %6723 = vmatpush1.msra.mxu0 %v6682
      %6724 = vmatprep.subr.mxu0 0.0
      %6725 = vmatpush1.msra.mxu0 %v6681
      %6726 = vmatprep.subr.mxu0 0.0
      %6727 = vmatpush1.msra.mxu0 %v6680
      %6728 = vmatprep.subr.mxu0 0.0
      %6729 = vmatpush2.msra.mxu0 0.0
      %6730 = vmatprep.subr.mxu0 0.0
      %6731 = vmatpush2.msra.mxu0 0.0
      %6732 = vmatprep.subr.mxu0 0.0
      %6733 = vmatpush2.msra.mxu0 0.0
      %6734 = vmatprep.subr.mxu0 0.0
      %6735 = vmatpush2.msra.mxu0 0.0
      %6736 = vmatprep.subr.mxu0 0.0
      %6737 = vmatpush2.msra.mxu0 0.0
      %6738 = vmatprep.subr.mxu0 0.0
      %6739 = vmatpush2.msra.mxu0 0.0
      %6740 = vmatprep.subr.mxu0 0.0
      %6741 = vmatpush2.msra.mxu0 0.0
      %6742 = vmatprep.subr.mxu0 0.0
      %6743 = vmatpush2.msra.mxu0 0.0
      %6744 = vmatprep.subr.mxu0 0.0
      %6745 = vmatpush2.msra.mxu0 0.0
      %6746 = vmatprep.subr.mxu0 0.0
      %6747 = vmatpush2.msra.mxu0 0.0
      %6748 = vmatprep.subr.mxu0 0.0
      %6749 = vmatpush2.msra.mxu0 0.0
      %6750 = vmatprep.subr.mxu0 0.0
      %6751 = vmatpush2.msra.mxu0 0.0
      %6752 = vmatprep.subr.mxu0 0.0
      %6753 = vmatpush2.msra.mxu0 0.0
      %6754 = vmatprep.subr.mxu0 0.0
      %6755 = vmatpush2.msra.mxu0 0.0
      %6756 = vmatprep.subr.mxu0 0.0
      %6757 = vmatpush2.msra.mxu0 0.0
      %6758 = vmatprep.subr.mxu0 0.0
      %6759 = vmatpush2.msra.mxu0 0.0
      %6760 = vmatprep.mubr.f32.mxu0 0.0
      %6761 = vmatmul.mubr.f32.gmra.mxu0 %v6678
      %v6762 = vpop.f32.mrf.mxu0
      %v6763 = vadd.f32 0.0, %v6762
      %v6764 = vpop.f32.mrf.mxu0
      %6765 = vdwg.mxu0
      %v6766 = vadd.f32 %v6673, %v6763
      %s6767 = sadd.s32 %s6580, 162
      %s6768 = scalar_lea.vmem [#allocation5], %s6767
      %v6769 = vld [vmem:[%s6768] sm:$0xff]
      %v6770 = vmul.f32 %v6769, %v6017
      %v6771 = vadd.f32 %v6770, %v6024
      %s6772 = scalar_lea.vmem %s11, 1024
      %v6773 = vld [vmem:[%s6772] sm:$0xff]
      %v6774 = vld [vmem:[%s6772 + $0x8] sm:$0xff]
      %v6775 = vld [vmem:[%s6772 + $0x10] sm:$0xff]
      %v6776 = vld [vmem:[%s6772 + $0x18] sm:$0xff]
      %v6777 = vld [vmem:[%s6772 + $0x20] sm:$0xff]
      %v6778 = vld [vmem:[%s6772 + $0x28] sm:$0xff]
      %v6779 = vld [vmem:[%s6772 + $0x30] sm:$0xff]
      %v6780 = vld [vmem:[%s6772 + $0x38] sm:$0xff]
      %v6781 = vld [vmem:[%s6772 + $0x40] sm:$0xff]
      %v6782 = vld [vmem:[%s6772 + $0x48] sm:$0xff]
      %v6783 = vld [vmem:[%s6772 + $0x50] sm:$0xff]
      %v6784 = vld [vmem:[%s6772 + $0x58] sm:$0xff]
      %v6785 = vld [vmem:[%s6772 + $0x60] sm:$0xff]
      %v6786 = vld [vmem:[%s6772 + $0x68] sm:$0xff]
      %v6787 = vld [vmem:[%s6772 + $0x70] sm:$0xff]
      %v6788 = vld [vmem:[%s6772 + $0x78] sm:$0xff]
      %6789 = vmatprep.subr.mxu0 0.0
      %6790 = vmatpush1.msra.mxu0 %v6788
      %6791 = vmatprep.subr.mxu0 0.0
      %6792 = vmatpush1.msra.mxu0 %v6787
      %6793 = vmatprep.subr.mxu0 0.0
      %6794 = vmatpush1.msra.mxu0 %v6786
      %6795 = vmatprep.subr.mxu0 0.0
      %6796 = vmatpush1.msra.mxu0 %v6785
      %6797 = vmatprep.subr.mxu0 0.0
      %6798 = vmatpush1.msra.mxu0 %v6784
      %6799 = vmatprep.subr.mxu0 0.0
      %6800 = vmatpush1.msra.mxu0 %v6783
      %6801 = vmatprep.subr.mxu0 0.0
      %6802 = vmatpush1.msra.mxu0 %v6782
      %6803 = vmatprep.subr.mxu0 0.0
      %6804 = vmatpush1.msra.mxu0 %v6781
      %6805 = vmatprep.subr.mxu0 0.0
      %6806 = vmatpush1.msra.mxu0 %v6780
      %6807 = vmatprep.subr.mxu0 0.0
      %6808 = vmatpush1.msra.mxu0 %v6779
      %6809 = vmatprep.subr.mxu0 0.0
      %6810 = vmatpush1.msra.mxu0 %v6778
      %6811 = vmatprep.subr.mxu0 0.0
      %6812 = vmatpush1.msra.mxu0 %v6777
      %6813 = vmatprep.subr.mxu0 0.0
      %6814 = vmatpush1.msra.mxu0 %v6776
      %6815 = vmatprep.subr.mxu0 0.0
      %6816 = vmatpush1.msra.mxu0 %v6775
      %6817 = vmatprep.subr.mxu0 0.0
      %6818 = vmatpush1.msra.mxu0 %v6774
      %6819 = vmatprep.subr.mxu0 0.0
      %6820 = vmatpush1.msra.mxu0 %v6773
      %6821 = vmatprep.subr.mxu0 0.0
      %6822 = vmatpush2.msra.mxu0 0.0
      %6823 = vmatprep.subr.mxu0 0.0
      %6824 = vmatpush2.msra.mxu0 0.0
      %6825 = vmatprep.subr.mxu0 0.0
      %6826 = vmatpush2.msra.mxu0 0.0
      %6827 = vmatprep.subr.mxu0 0.0
      %6828 = vmatpush2.msra.mxu0 0.0
      %6829 = vmatprep.subr.mxu0 0.0
      %6830 = vmatpush2.msra.mxu0 0.0
      %6831 = vmatprep.subr.mxu0 0.0
      %6832 = vmatpush2.msra.mxu0 0.0
      %6833 = vmatprep.subr.mxu0 0.0
      %6834 = vmatpush2.msra.mxu0 0.0
      %6835 = vmatprep.subr.mxu0 0.0
      %6836 = vmatpush2.msra.mxu0 0.0
      %6837 = vmatprep.subr.mxu0 0.0
      %6838 = vmatpush2.msra.mxu0 0.0
      %6839 = vmatprep.subr.mxu0 0.0
      %6840 = vmatpush2.msra.mxu0 0.0
      %6841 = vmatprep.subr.mxu0 0.0
      %6842 = vmatpush2.msra.mxu0 0.0
      %6843 = vmatprep.subr.mxu0 0.0
      %6844 = vmatpush2.msra.mxu0 0.0
      %6845 = vmatprep.subr.mxu0 0.0
      %6846 = vmatpush2.msra.mxu0 0.0
      %6847 = vmatprep.subr.mxu0 0.0
      %6848 = vmatpush2.msra.mxu0 0.0
      %6849 = vmatprep.subr.mxu0 0.0
      %6850 = vmatpush2.msra.mxu0 0.0
      %6851 = vmatprep.subr.mxu0 0.0
      %6852 = vmatpush2.msra.mxu0 0.0
      %6853 = vmatprep.mubr.f32.mxu0 0.0
      %6854 = vmatmul.mubr.f32.gmra.mxu0 %v6771
      %v6855 = vpop.f32.mrf.mxu0
      %v6856 = vadd.f32 0.0, %v6855
      %v6857 = vpop.f32.mrf.mxu0
      %6858 = vdwg.mxu0
      %v6859 = vadd.f32 %v6766, %v6856
      %v6860 = vmax.f32 %v6859, 0.0
      %s6861 = smul.u32 %s6002, 8
      %s6862 = sadd.s32 %s6861, 64
      %s6863 = scalar_lea.vmem [#allocation6], %s6862
      %6864 = vst [vmem:[%s6863] sm:$0xff] %v6860
      %v6865 = vrot.slane %v6860, 4
      %v6866 = vadd.f32 %v6860, %v6865
      %v6867 = vrot.slane %v6866, 2
      %v6868 = vadd.f32 %v6866, %v6867
      %v6869 = vrot.slane %v6868, 1
      %v6870 = vadd.f32 %v6868, %v6869
      %v6871 = vadd.f32 %v6007, %v6870
      %v6872 = vmul.f32 %v6860, %v6860
      %v6873 = vrot.slane %v6872, 4
      %v6874 = vadd.f32 %v6872, %v6873
      %v6875 = vrot.slane %v6874, 2
      %v6876 = vadd.f32 %v6874, %v6875
      %v6877 = vrot.slane %v6876, 1
      %v6878 = vadd.f32 %v6876, %v6877
      %v6879 = vadd.f32 %v6008, %v6878
    $region122: #{model4_forward.1} parent=1 // loop_footer
      %s6006 = sadd.s32 1, %s6002
    $region123: #{model4_forward.1} parent=1 // loop_footer_branch
      %6001 = sbr.rel target = $region119
    $region124: #{model4_forward.1} parent=1 // loop_exit
      _
    %v6880 = vadd.f32 %v5999, %v6007
    %v6881 = vadd.f32 %v6000, %v6008
    %v6882 = vld [vmem:[%s12] sm:$0x1]
    %v6883 = vld [vmem:[%s13] sm:$0x1]
    %v6884 = vmul.f32 %v6880, 0.0078125
    %v6885 = vmul.f32 %v6881, 0.0078125
    %v6886 = vmul.f32 %v6884, %v6884
    %v6887 = vsub.f32 %v6885, %v6886
    %v6888 = vmax.f32 %v6887, 0.0
    %v6889 = vadd.f32 %v6888, 1e-05
    %v6890 = vrsqrt.pop %v6889
    %v6891 = vmul.f32 %v6882, %v6890
    %v6892 = vmul.f32 %v6884, %v6891
    %v6893 = vsub.f32 %v6883, %v6892
    %v6894 = vld [vmem:[%s14] sm:$0xff]
    %v6895 = vld [vmem:[%s14 + $0x8] sm:$0xff]
    %v6896 = vld [vmem:[%s14 + $0x10] sm:$0xff]
    %v6897 = vld [vmem:[%s14 + $0x18] sm:$0xff]
    %v6898 = vld [vmem:[%s14 + $0x20] sm:$0xff]
    %v6899 = vld [vmem:[%s14 + $0x28] sm:$0xff]
    %v6900 = vld [vmem:[%s14 + $0x30] sm:$0xff]
    %v6901 = vld [vmem:[%s14 + $0x38] sm:$0xff]
    %v6902 = vld [vmem:[%s14 + $0x40] sm:$0xff]
    %v6903 = vld [vmem:[%s14 + $0x48] sm:$0xff]
    %v6904 = vld [vmem:[%s14 + $0x50] sm:$0xff]
    %v6905 = vld [vmem:[%s14 + $0x58] sm:$0xff]
    %v6906 = vld [vmem:[%s14 + $0x60] sm:$0xff]
    %v6907 = vld [vmem:[%s14 + $0x68] sm:$0xff]
    %v6908 = vld [vmem:[%s14 + $0x70] sm:$0xff]
    %v6909 = vld [vmem:[%s14 + $0x78] sm:$0xff]
    %v6910 = vld [vmem:[#allocation6] sm:$0x3f]
    %vm6911 = vcmask 1045504
    %v6912 = vsel %vm6911, %v6910, 0.0
    %v6913 = vrot.slane %v6912, 4
    %v6914 = vadd.f32 %v6912, %v6913
    %v6915 = vrot.slane %v6914, 2
    %v6916 = vadd.f32 %v6914, %v6915
    %v6917 = vrot.slane %v6916, 1
    %v6918 = vadd.f32 %v6916, %v6917
    %v6919 = vadd.f32 %v6918, 0.0
    %v6920 = vld [vmem:[#allocation6 + $0x8] sm:$0x3f]
    %v6921 = vsel %vm6911, %v6920, 0.0
    %v6922 = vrot.slane %v6921, 4
    %v6923 = vadd.f32 %v6921, %v6922
    %v6924 = vrot.slane %v6923, 2
    %v6925 = vadd.f32 %v6923, %v6924
    %v6926 = vrot.slane %v6925, 1
    %v6927 = vadd.f32 %v6925, %v6926
    %v6928 = vadd.f32 %v6919, %v6927
    %v6929 = vld [vmem:[#allocation6 + $0x10] sm:$0x3f]
    %v6930 = vsel %vm6911, %v6929, 0.0
    %v6931 = vrot.slane %v6930, 4
    %v6932 = vadd.f32 %v6930, %v6931
    %v6933 = vrot.slane %v6932, 2
    %v6934 = vadd.f32 %v6932, %v6933
    %v6935 = vrot.slane %v6934, 1
    %v6936 = vadd.f32 %v6934, %v6935
    %v6937 = vadd.f32 %v6928, %v6936
    %v6938 = vld [vmem:[#allocation6 + $0x18] sm:$0x3f]
    %v6939 = vsel %vm6911, %v6938, 0.0
    %v6940 = vrot.slane %v6939, 4
    %v6941 = vadd.f32 %v6939, %v6940
    %v6942 = vrot.slane %v6941, 2
    %v6943 = vadd.f32 %v6941, %v6942
    %v6944 = vrot.slane %v6943, 1
    %v6945 = vadd.f32 %v6943, %v6944
    %v6946 = vadd.f32 %v6937, %v6945
    %v6947 = vld [vmem:[#allocation6 + $0x20] sm:$0x3f]
    %v6948 = vsel %vm6911, %v6947, 0.0
    %v6949 = vrot.slane %v6948, 4
    %v6950 = vadd.f32 %v6948, %v6949
    %v6951 = vrot.slane %v6950, 2
    %v6952 = vadd.f32 %v6950, %v6951
    %v6953 = vrot.slane %v6952, 1
    %v6954 = vadd.f32 %v6952, %v6953
    %v6955 = vadd.f32 %v6946, %v6954
    %v6956 = vld [vmem:[#allocation6 + $0x28] sm:$0x3f]
    %v6957 = vsel %vm6911, %v6956, 0.0
    %v6958 = vrot.slane %v6957, 4
    %v6959 = vadd.f32 %v6957, %v6958
    %v6960 = vrot.slane %v6959, 2
    %v6961 = vadd.f32 %v6959, %v6960
    %v6962 = vrot.slane %v6961, 1
    %v6963 = vadd.f32 %v6961, %v6962
    %v6964 = vadd.f32 %v6955, %v6963
    %v6965 = vmul.f32 %v6964, 0.027777778
    %v6966 = vmul.f32 %v6965, %v6891
    %v6967 = vadd.f32 %v6966, %v6893
    %6968 = vmatprep.subr.mxu0 0.0
    %6969 = vmatpush1.msra.mxu0 %v6909
    %6970 = vmatprep.subr.mxu0 0.0
    %6971 = vmatpush1.msra.mxu0 %v6908
    %6972 = vmatprep.subr.mxu0 0.0
    %6973 = vmatpush1.msra.mxu0 %v6907
    %6974 = vmatprep.subr.mxu0 0.0
    %6975 = vmatpush1.msra.mxu0 %v6906
    %6976 = vmatprep.subr.mxu0 0.0
    %6977 = vmatpush1.msra.mxu0 %v6905
    %6978 = vmatprep.subr.mxu0 0.0
    %6979 = vmatpush1.msra.mxu0 %v6904
    %6980 = vmatprep.subr.mxu0 0.0
    %6981 = vmatpush1.msra.mxu0 %v6903
    %6982 = vmatprep.subr.mxu0 0.0
    %6983 = vmatpush1.msra.mxu0 %v6902
    %6984 = vmatprep.subr.mxu0 0.0
    %6985 = vmatpush1.msra.mxu0 %v6901
    %6986 = vmatprep.subr.mxu0 0.0
    %6987 = vmatpush1.msra.mxu0 %v6900
    %6988 = vmatprep.subr.mxu0 0.0
    %6989 = vmatpush1.msra.mxu0 %v6899
    %6990 = vmatprep.subr.mxu0 0.0
    %6991 = vmatpush1.msra.mxu0 %v6898
    %6992 = vmatprep.subr.mxu0 0.0
    %6993 = vmatpush1.msra.mxu0 %v6897
    %6994 = vmatprep.subr.mxu0 0.0
    %6995 = vmatpush1.msra.mxu0 %v6896
    %6996 = vmatprep.subr.mxu0 0.0
    %6997 = vmatpush1.msra.mxu0 %v6895
    %6998 = vmatprep.subr.mxu0 0.0
    %6999 = vmatpush1.msra.mxu0 %v6894
    %7000 = vmatprep.subr.mxu0 0.0
    %7001 = vmatpush2.msra.mxu0 0.0
    %7002 = vmatprep.subr.mxu0 0.0
    %7003 = vmatpush2.msra.mxu0 0.0
    %7004 = vmatprep.subr.mxu0 0.0
    %7005 = vmatpush2.msra.mxu0 0.0
    %7006 = vmatprep.subr.mxu0 0.0
    %7007 = vmatpush2.msra.mxu0 0.0
    %7008 = vmatprep.subr.mxu0 0.0
    %7009 = vmatpush2.msra.mxu0 0.0
    %7010 = vmatprep.subr.mxu0 0.0
    %7011 = vmatpush2.msra.mxu0 0.0
    %7012 = vmatprep.subr.mxu0 0.0
    %7013 = vmatpush2.msra.mxu0 0.0
    %7014 = vmatprep.subr.mxu0 0.0
    %7015 = vmatpush2.msra.mxu0 0.0
    %7016 = vmatprep.subr.mxu0 0.0
    %7017 = vmatpush2.msra.mxu0 0.0
    %7018 = vmatprep.subr.mxu0 0.0
    %7019 = vmatpush2.msra.mxu0 0.0
    %7020 = vmatprep.subr.mxu0 0.0
    %7021 = vmatpush2.msra.mxu0 0.0
    %7022 = vmatprep.subr.mxu0 0.0
    %7023 = vmatpush2.msra.mxu0 0.0
    %7024 = vmatprep.subr.mxu0 0.0
    %7025 = vmatpush2.msra.mxu0 0.0
    %7026 = vmatprep.subr.mxu0 0.0
    %7027 = vmatpush2.msra.mxu0 0.0
    %7028 = vmatprep.subr.mxu0 0.0
    %7029 = vmatpush2.msra.mxu0 0.0
    %7030 = vmatprep.subr.mxu0 0.0
    %7031 = vmatpush2.msra.mxu0 0.0
    %7032 = vmatprep.mubr.f32.mxu0 0.0
    %7033 = vmatmul.mubr.f32.gmra.mxu0 %v6967
    %v7034 = vpop.f32.mrf.mxu0
    %v7035 = vadd.f32 0.0, %v7034
    %v7036 = vpop.f32.mrf.mxu0
    %7037 = vdwg.mxu0
    %vm7038 = vcmask 73728
    %v7039 = vsel %vm7038, %v7035, -inf
    %7040 = vmax.xlane.f32.xlu0 %v7039
    %v7041 = vpop.xlane.xlu0 %7040
    %v7042 = vsub.f32 %v7035, %v7041
    %v7043 = vmul.f32 %v7042, 1.442695
    %v7044 = vpow.pop %v7043
    %v7045 = vsel %vm7038, %v7044, 0.0
    %7046 = vadd.xlane.f32.xlu0 %v7045
    %v7047 = vpop.xlane.xlu0 %7046
    %v7048 = vlog2.pop %v7047
    %v7049 = vmul.f32 %v7048, 0.6931472
    %v7050 = vsub.f32 %v7042, %v7049
    %7051 = vst.msk [vmem:[#allocation7] sm:$0x1] %vm7038, %v7050
    %v7052 = vld [vmem:[#allocation6 + $0x40] sm:$0x3f]
    %v7053 = vsel %vm6911, %v7052, 0.0
    %v7054 = vrot.slane %v7053, 4
    %v7055 = vadd.f32 %v7053, %v7054
    %v7056 = vrot.slane %v7055, 2
    %v7057 = vadd.f32 %v7055, %v7056
    %v7058 = vrot.slane %v7057, 1
    %v7059 = vadd.f32 %v7057, %v7058
    %v7060 = vadd.f32 %v7059, 0.0
    %v7061 = vld [vmem:[#allocation6 + $0x48] sm:$0x3f]
    %v7062 = vsel %vm6911, %v7061, 0.0
    %v7063 = vrot.slane %v7062, 4
    %v7064 = vadd.f32 %v7062, %v7063
    %v7065 = vrot.slane %v7064, 2
    %v7066 = vadd.f32 %v7064, %v7065
    %v7067 = vrot.slane %v7066, 1
    %v7068 = vadd.f32 %v7066, %v7067
    %v7069 = vadd.f32 %v7060, %v7068
    %v7070 = vld [vmem:[#allocation6 + $0x50] sm:$0x3f]
    %v7071 = vsel %vm6911, %v7070, 0.0
    %v7072 = vrot.slane %v7071, 4
    %v7073 = vadd.f32 %v7071, %v7072
    %v7074 = vrot.slane %v7073, 2
    %v7075 = vadd.f32 %v7073, %v7074
    %v7076 = vrot.slane %v7075, 1
    %v7077 = vadd.f32 %v7075, %v7076
    %v7078 = vadd.f32 %v7069, %v7077
    %v7079 = vld [vmem:[#allocation6 + $0x58] sm:$0x3f]
    %v7080 = vsel %vm6911, %v7079, 0.0
    %v7081 = vrot.slane %v7080, 4
    %v7082 = vadd.f32 %v7080, %v7081
    %v7083 = vrot.slane %v7082, 2
    %v7084 = vadd.f32 %v7082, %v7083
    %v7085 = vrot.slane %v7084, 1
    %v7086 = vadd.f32 %v7084, %v7085
    %v7087 = vadd.f32 %v7078, %v7086
    %v7088 = vld [vmem:[#allocation6 + $0x60] sm:$0x3f]
    %v7089 = vsel %vm6911, %v7088, 0.0
    %v7090 = vrot.slane %v7089, 4
    %v7091 = vadd.f32 %v7089, %v7090
    %v7092 = vrot.slane %v7091, 2
    %v7093 = vadd.f32 %v7091, %v7092
    %v7094 = vrot.slane %v7093, 1
    %v7095 = vadd.f32 %v7093, %v7094
    %v7096 = vadd.f32 %v7087, %v7095
    %v7097 = vld [vmem:[#allocation6 + $0x68] sm:$0x3f]
    %v7098 = vsel %vm6911, %v7097, 0.0
    %v7099 = vrot.slane %v7098, 4
    %v7100 = vadd.f32 %v7098, %v7099
    %v7101 = vrot.slane %v7100, 2
    %v7102 = vadd.f32 %v7100, %v7101
    %v7103 = vrot.slane %v7102, 1
    %v7104 = vadd.f32 %v7102, %v7103
    %v7105 = vadd.f32 %v7096, %v7104
    %v7106 = vmul.f32 %v7105, 0.027777778
    %v7107 = vmul.f32 %v7106, %v6891
    %v7108 = vadd.f32 %v7107, %v6893
    %7109 = vmatprep.subr.mxu0 0.0
    %7110 = vmatpush1.msra.mxu0 %v6909
    %7111 = vmatprep.subr.mxu0 0.0
    %7112 = vmatpush1.msra.mxu0 %v6908
    %7113 = vmatprep.subr.mxu0 0.0
    %7114 = vmatpush1.msra.mxu0 %v6907
    %7115 = vmatprep.subr.mxu0 0.0
    %7116 = vmatpush1.msra.mxu0 %v6906
    %7117 = vmatprep.subr.mxu0 0.0
    %7118 = vmatpush1.msra.mxu0 %v6905
    %7119 = vmatprep.subr.mxu0 0.0
    %7120 = vmatpush1.msra.mxu0 %v6904
    %7121 = vmatprep.subr.mxu0 0.0
    %7122 = vmatpush1.msra.mxu0 %v6903
    %7123 = vmatprep.subr.mxu0 0.0
    %7124 = vmatpush1.msra.mxu0 %v6902
    %7125 = vmatprep.subr.mxu0 0.0
    %7126 = vmatpush1.msra.mxu0 %v6901
    %7127 = vmatprep.subr.mxu0 0.0
    %7128 = vmatpush1.msra.mxu0 %v6900
    %7129 = vmatprep.subr.mxu0 0.0
    %7130 = vmatpush1.msra.mxu0 %v6899
    %7131 = vmatprep.subr.mxu0 0.0
    %7132 = vmatpush1.msra.mxu0 %v6898
    %7133 = vmatprep.subr.mxu0 0.0
    %7134 = vmatpush1.msra.mxu0 %v6897
    %7135 = vmatprep.subr.mxu0 0.0
    %7136 = vmatpush1.msra.mxu0 %v6896
    %7137 = vmatprep.subr.mxu0 0.0
    %7138 = vmatpush1.msra.mxu0 %v6895
    %7139 = vmatprep.subr.mxu0 0.0
    %7140 = vmatpush1.msra.mxu0 %v6894
    %7141 = vmatprep.subr.mxu0 0.0
    %7142 = vmatpush2.msra.mxu0 0.0
    %7143 = vmatprep.subr.mxu0 0.0
    %7144 = vmatpush2.msra.mxu0 0.0
    %7145 = vmatprep.subr.mxu0 0.0
    %7146 = vmatpush2.msra.mxu0 0.0
    %7147 = vmatprep.subr.mxu0 0.0
    %7148 = vmatpush2.msra.mxu0 0.0
    %7149 = vmatprep.subr.mxu0 0.0
    %7150 = vmatpush2.msra.mxu0 0.0
    %7151 = vmatprep.subr.mxu0 0.0
    %7152 = vmatpush2.msra.mxu0 0.0
    %7153 = vmatprep.subr.mxu0 0.0
    %7154 = vmatpush2.msra.mxu0 0.0
    %7155 = vmatprep.subr.mxu0 0.0
    %7156 = vmatpush2.msra.mxu0 0.0
    %7157 = vmatprep.subr.mxu0 0.0
    %7158 = vmatpush2.msra.mxu0 0.0
    %7159 = vmatprep.subr.mxu0 0.0
    %7160 = vmatpush2.msra.mxu0 0.0
    %7161 = vmatprep.subr.mxu0 0.0
    %7162 = vmatpush2.msra.mxu0 0.0
    %7163 = vmatprep.subr.mxu0 0.0
    %7164 = vmatpush2.msra.mxu0 0.0
    %7165 = vmatprep.subr.mxu0 0.0
    %7166 = vmatpush2.msra.mxu0 0.0
    %7167 = vmatprep.subr.mxu0 0.0
    %7168 = vmatpush2.msra.mxu0 0.0
    %7169 = vmatprep.subr.mxu0 0.0
    %7170 = vmatpush2.msra.mxu0 0.0
    %7171 = vmatprep.subr.mxu0 0.0
    %7172 = vmatpush2.msra.mxu0 0.0
    %7173 = vmatprep.mubr.f32.mxu0 0.0
    %7174 = vmatmul.mubr.f32.gmra.mxu0 %v7108
    %v7175 = vpop.f32.mrf.mxu0
    %v7176 = vadd.f32 0.0, %v7175
    %v7177 = vpop.f32.mrf.mxu0
    %7178 = vdwg.mxu0
    %v7179 = vsel %vm7038, %v7176, -inf
    %7180 = vmax.xlane.f32.xlu0 %v7179
    %v7181 = vpop.xlane.xlu0 %7180
    %v7182 = vsub.f32 %v7176, %v7181
    %v7183 = vmul.f32 %v7182, 1.442695
    %v7184 = vpow.pop %v7183
    %v7185 = vsel %vm7038, %v7184, 0.0
    %7186 = vadd.xlane.f32.xlu0 %v7185
    %v7187 = vpop.xlane.xlu0 %7186
    %v7188 = vlog2.pop %v7187
    %v7189 = vmul.f32 %v7188, 0.6931472
    %v7190 = vsub.f32 %v7182, %v7189
    %7191 = vst.msk [vmem:[#allocation7 + $0x1] sm:$0x1] %vm7038, %v7190
    // Predicated region
    $region125: #{model4_forward.1} parent=1 // pred_check
      _
    $region126: #{model4_forward.1} parent=1 // pred_check_branch
      %7193 = sbr.rel (0) target = $region128
    $region127: #{model4_forward.1} parent=1 // pred_region
      %s7195 = ssub.s32 32, 32
      %7196 = vsyncadd [#allocation8], %s7195
      %s7198 = sshll.u32 [#allocation7], 4
      %s7199 = int_to_ptr.vmem [resolvable:$true] %s7198
      %7201 = dma.vmem_to_hbm [thread:$0]  %s7199, 32, %s15, [#allocation8]
    $region128: #{model4_forward.1} parent=1 // pred_fallthru
      _
    // Predicated region
    $region129: #{model4_forward.1} parent=1 // pred_check
      _
    $region130: #{model4_forward.1} parent=1 // pred_check_branch
      %7203 = sbr.rel (0) target = $region132
    $region131: #{model4_forward.1} parent=1 // pred_region
      %7204 = dma.done [#allocation8], 32
    $region132: #{model4_forward.1} parent=1 // pred_fallthru
      _
    %7205 = vsyncpa [#allocation8], 1

</llo_original>
